<compile_context>
chip_gen: v7x
topology: tpu7x:2x2x1
jax: 0.10.0
libtpu: 0.0.40
codegen_flags: <defaults>
</compile_context>

<pallas_src>
import math

import numpy as np
import jax
import jax.numpy as jnp
from jax.experimental import pallas as pl
from jax.experimental.pallas import tpu as pltpu

# ---------------- config ----------------
D_MODEL = 32
N_HEADS = 4
D_HEAD = D_MODEL // N_HEADS
D_FF = 64
N_LAYERS = 2
SRC_VOCAB = 50
TGT_VOCAB = 50
MAX_LEN = 64
EPS = 1e-6
LANES = 128


# ---------------- host-side parameter packing ----------------
class _Packer:
    """Packs 1-D/2-D f32 params into one (rows, 128) slab with static offsets."""

    def __init__(self, row_pad=8):
        self.row_pad = row_pad
        self.parts = []
        self.offs = {}
        self.n = 0

    def add(self, name, arr):
        a = np.asarray(arr, dtype=np.float32)
        if a.ndim == 1:
            a = a[None, :]
        r, c = a.shape
        rp = -(-r // self.row_pad) * self.row_pad
        buf = np.zeros((rp, LANES), np.float32)
        buf[:r, :c] = a
        self.offs[name] = (self.n, r, c)
        self.parts.append(buf)
        self.n += rp

    def finish(self):
        return jnp.asarray(np.concatenate(self.parts, axis=0)), self.offs


def pack_params(params):
    """One-time host packing: matrices+tables slab, vector (bias/LN) slab."""
    inv = 1.0 / math.sqrt(D_HEAD)
    wp = _Packer(row_pad=8)   # matrices, embedding tables, PE
    vp = _Packer(row_pad=8)   # 1-row vectors (biases, LN gamma/beta)

    wp.add("src_tab", params["src_embed"]["table"])
    wp.add("tgt_tab", params["tgt_embed"]["table"])
    wp.add("pe", params["src_embed"]["pe"])

    def add_ln(pfx, p):
        vp.add(pfx + "_g", p["g"])
        vp.add(pfx + "_b", p["b"])

    def add_self_attn(pfx, p):
        # fused QKV with 1/sqrt(d_head) folded into the Q columns / Q bias
        qkv_w = np.concatenate(
            [np.asarray(p["wq"]) * inv, np.asarray(p["wk"]), np.asarray(p["wv"])],
            axis=1)
        qkv_b = np.concatenate(
            [np.asarray(p["bq"]) * inv, np.asarray(p["bk"]), np.asarray(p["bv"])])
        wp.add(pfx + "_qkv", qkv_w)
        vp.add(pfx + "_qkv_b", qkv_b)
        wp.add(pfx + "_wo", p["wo"])
        vp.add(pfx + "_wo_b", p["bo"])

    def add_cross_attn(pfx, p):
        wp.add(pfx + "_q", np.asarray(p["wq"]) * inv)
        vp.add(pfx + "_q_b", np.asarray(p["bq"]) * inv)
        wp.add(pfx + "_kv",
               np.concatenate([np.asarray(p["wk"]), np.asarray(p["wv"])], axis=1))
        vp.add(pfx + "_kv_b",
               np.concatenate([np.asarray(p["bk"]), np.asarray(p["bv"])]))
        wp.add(pfx + "_wo", p["wo"])
        vp.add(pfx + "_wo_b", p["bo"])

    def add_ff(pfx, p):
        wp.add(pfx + "_w1", p["w1"])
        vp.add(pfx + "_b1", p["b1"])
        wp.add(pfx + "_w2", p["w2"])
        vp.add(pfx + "_b2", p["b2"])

    for i, lp in enumerate(params["encoder"]["layers"]):
        add_ln(f"enc{i}_ln1", lp["ln1"])
        add_self_attn(f"enc{i}_sa", lp["self_attn"])
        add_ln(f"enc{i}_ln2", lp["ln2"])
        add_ff(f"enc{i}_ff", lp["ff"])
    add_ln("enc_norm", params["encoder"]["norm"])

    for i, lp in enumerate(params["decoder"]["layers"]):
        add_ln(f"dec{i}_ln1", lp["ln1"])
        add_self_attn(f"dec{i}_sa", lp["self_attn"])
        add_ln(f"dec{i}_ln2", lp["ln2"])
        add_cross_attn(f"dec{i}_ca", lp["src_attn"])
        add_ln(f"dec{i}_ln3", lp["ln3"])
        add_ff(f"dec{i}_ff", lp["ff"])
    add_ln("dec_norm", params["decoder"]["norm"])

    wslab, woffs = wp.finish()
    vslab, voffs = vp.finish()
    return wslab, vslab, woffs, voffs


# ---------------- the fused Pallas kernel (one batch per grid step) ----------------
def _make_kernel(woffs, voffs, S_src, S_tgt):
    D, H, Dh = D_MODEL, N_HEADS, D_HEAD
    sqrt_d = math.sqrt(D)

    def kernel(src_ids, tgt_ids, w_ref, v_ref, srcm_ref, tgtm_ref, out_ref):
        b = pl.program_id(0)

        def W(name):                      # static slice of the matrix slab
            r, n, c = woffs[name]
            return w_ref[r:r + n, 0:c]

        def Vr(name):                     # (1, c) row of the vector slab
            r, _, c = voffs[name]
            return v_ref[r:r + 1, 0:c]

        def layer_norm(x, pfx):
            # Annotated-Transformer LayerNorm: unbiased (d-1) std, eps on std.
            mean = jnp.mean(x, axis=-1, keepdims=True)
            var = jnp.sum((x - mean) ** 2, axis=-1, keepdims=True) * (1.0 / (D - 1))
            std = jnp.sqrt(var)
            return Vr(pfx + "_g") * (x - mean) / (std + EPS) + Vr(pfx + "_b")

        def embed(tab_name, ids_ref, S):
            # in-kernel embedding gather (dynamic row reads from the slab),
            # sqrt(d_model) scale + positional encoding add.
            tab_off = woffs[tab_name][0]
            rows = [w_ref[pl.ds(tab_off + ids_ref[b, s], 1), 0:D]
                    for s in range(S)]
            x = jnp.concatenate(rows, axis=0) * sqrt_d
            pe_off = woffs["pe"][0]
            return x + w_ref[pe_off:pe_off + S, 0:D]

        def core_attn(q, k, v, mask_add):
            # q: (Sq, D), k/v: (Sk, D)  (Q already scaled by 1/sqrt(d_head))
            outs = []
            for h in range(H):
                c = h * Dh
                qh = q[:, c:c + Dh]
                kh = k[:, c:c + Dh]
                vh = v[:, c:c + Dh]
                s = jax.lax.dot_general(qh, kh, (((1,), (1,)), ((), ())),
                                        preferred_element_type=jnp.float32)
                s = s + mask_add
                s = s - jnp.max(s, axis=-1, keepdims=True)
                p = jnp.exp(s)
                p = p / jnp.sum(p, axis=-1, keepdims=True)   # exact softmax
                outs.append(jnp.dot(p, vh, preferred_element_type=jnp.float32))
            return jnp.concatenate(outs, axis=1)             # (Sq, D)

        def self_attn(x, pfx, mask_add):
            qkv = jnp.dot(x, W(pfx + "_qkv"),
                          preferred_element_type=jnp.float32) + Vr(pfx + "_qkv_b")
            o = core_attn(qkv[:, 0:D], qkv[:, D:2 * D], qkv[:, 2 * D:3 * D], mask_add)
            return jnp.dot(o, W(pfx + "_wo"),
                           preferred_element_type=jnp.float32) + Vr(pfx + "_wo_b")

        def cross_attn(x, mem, pfx, mask_add):
            q = jnp.dot(x, W(pfx + "_q"),
                        preferred_element_type=jnp.float32) + Vr(pfx + "_q_b")
            kv = jnp.dot(mem, W(pfx + "_kv"),
                         preferred_element_type=jnp.float32) + Vr(pfx + "_kv_b")
            o = core_attn(q, kv[:, 0:D], kv[:, D:2 * D], mask_add)
            return jnp.dot(o, W(pfx + "_wo"),
                           preferred_element_type=jnp.float32) + Vr(pfx + "_wo_b")

        def ffn(x, pfx):
            h = jnp.dot(x, W(pfx + "_w1"),
                        preferred_element_type=jnp.float32) + Vr(pfx + "_b1")
            h = jnp.maximum(h, 0.0)
            return jnp.dot(h, W(pfx + "_w2"),
                           preferred_element_type=jnp.float32) + Vr(pfx + "_b2")

        # additive masks, computed once per invocation and reused everywhere
        src_add = (srcm_ref[...] - 1.0) * 1e9     # (1, S_src): 0 keep / -1e9 mask
        tgt_add = (tgtm_ref[...] - 1.0) * 1e9     # (S_tgt, S_tgt)

        # -------- encoder --------
        x = embed("src_tab", src_ids, S_src)
        for i in range(N_LAYERS):
            nx = layer_norm(x, f"enc{i}_ln1")
            x = x + self_attn(nx, f"enc{i}_sa", src_add)
            nx = layer_norm(x, f"enc{i}_ln2")
            x = x + ffn(nx, f"enc{i}_ff")
        memory = layer_norm(x, "enc_norm")

        # -------- decoder --------
        y = embed("tgt_tab", tgt_ids, S_tgt)
        for i in range(N_LAYERS):
            ny = layer_norm(y, f"dec{i}_ln1")
            y = y + self_attn(ny, f"dec{i}_sa", tgt_add)
            ny = layer_norm(y, f"dec{i}_ln2")
            y = y + cross_attn(ny, memory, f"dec{i}_ca", src_add)
            ny = layer_norm(y, f"dec{i}_ln3")
            y = y + ffn(ny, f"dec{i}_ff")
        out_ref[...] = layer_norm(y, "dec_norm")

    return kernel


# ---------------- forward wrapper ----------------
def make_transformer_forward(woffs, voffs):
    def fwd(wslab, vslab, src, tgt, src_mask, tgt_mask):
        B, S_src = src.shape
        S_tgt = tgt.shape[1]
        kernel = _make_kernel(woffs, voffs, S_src, S_tgt)

        grid_spec = pltpu.PrefetchScalarGridSpec(
            num_scalar_prefetch=2,            # src token ids, tgt token ids (SMEM)
            grid=(B,),
            in_specs=[
                pl.BlockSpec(wslab.shape, lambda b, *_: (0, 0)),           # weight slab
                pl.BlockSpec(vslab.shape, lambda b, *_: (0, 0)),           # bias/LN slab
                pl.BlockSpec((None, 1, S_src), lambda b, *_: (b, 0, 0)),   # src mask
                pl.BlockSpec((None, S_tgt, S_tgt), lambda b, *_: (b, 0, 0)),  # tgt mask
            ],
            out_specs=pl.BlockSpec((None, S_tgt, D_MODEL), lambda b, *_: (b, 0, 0)),
        )
        return pl.pallas_call(
            kernel,
            out_shape=jax.ShapeDtypeStruct((B, S_tgt, D_MODEL), jnp.float32),
            grid_spec=grid_spec,
            compiler_params=pltpu.CompilerParams(
                dimension_semantics=("parallel",)),   # batch-parallel (2 TCs on v7x)
        )(src.astype(jnp.int32), tgt.astype(jnp.int32),
          wslab, vslab,
          src_mask.astype(jnp.float32), tgt_mask.astype(jnp.float32))

    return jax.jit(fwd)


# ---------------- sinusoidal positional encoding ----------------
def positional_encoding(max_len, d_model):
    pos = jnp.arange(max_len, dtype=jnp.float32)[:, None]
    div = jnp.exp(
        jnp.arange(0, d_model, 2, dtype=jnp.float32) * (-math.log(10000.0) / d_model))
    pe = jnp.zeros((max_len, d_model), jnp.float32)
    pe = pe.at[:, 0::2].set(jnp.sin(pos * div))
    pe = pe.at[:, 1::2].set(jnp.cos(pos * div))
    return pe


# ---------------- deterministic parameter init (module-style tree) ----------------
def init_params(key):
    keys = iter(jax.random.split(key, 256))

    def lin(din, dout):
        w = jax.random.normal(next(keys), (din, dout), jnp.float32) * 0.02
        b = jnp.zeros((dout,), jnp.float32)
        return w, b

    def mha_p():
        wq, bq = lin(D_MODEL, D_MODEL)
        wk, bk = lin(D_MODEL, D_MODEL)
        wv, bv = lin(D_MODEL, D_MODEL)
        wo, bo = lin(D_MODEL, D_MODEL)
        return dict(wq=wq, bq=bq, wk=wk, bk=bk, wv=wv, bv=bv, wo=wo, bo=bo)

    def ff_p():
        w1, b1 = lin(D_MODEL, D_FF)
        w2, b2 = lin(D_FF, D_MODEL)
        return dict(w1=w1, b1=b1, w2=w2, b2=b2)

    def ln_p():
        return dict(g=jnp.ones((D_MODEL,), jnp.float32),
                    b=jnp.zeros((D_MODEL,), jnp.float32))

    pe = positional_encoding(MAX_LEN, D_MODEL)
    gw, gb = lin(D_MODEL, TGT_VOCAB)
    return {
        "src_embed": {
            "table": jax.random.normal(next(keys), (SRC_VOCAB, D_MODEL), jnp.float32) * 0.02,
            "pe": pe,
        },
        "tgt_embed": {
            "table": jax.random.normal(next(keys), (TGT_VOCAB, D_MODEL), jnp.float32) * 0.02,
            "pe": pe,
        },
        "encoder": {
            "layers": [
                dict(self_attn=mha_p(), ff=ff_p(), ln1=ln_p(), ln2=ln_p())
                for _ in range(N_LAYERS)
            ],
            "norm": ln_p(),
        },
        "decoder": {
            "layers": [
                dict(self_attn=mha_p(), src_attn=mha_p(), ff=ff_p(),
                     ln1=ln_p(), ln2=ln_p(), ln3=ln_p())
                for _ in range(N_LAYERS)
            ],
            "norm": ln_p(),
        },
        # TODO(synk): generator (output projection + log_softmax) is defined in
        # the PyTorch __init__ but never invoked by forward(); kept unused here.
        "generator": {"w": gw, "b": gb},
    }


if __name__ == "__main__":
    B, S = 2, 8
    params = init_params(jax.random.PRNGKey(0))

    # one-time host-side packing of all params into two lane-dense slabs
    wslab, vslab, woffs, voffs = pack_params(params)
    forward = make_transformer_forward(woffs, voffs)

    k1, k2 = jax.random.split(jax.random.PRNGKey(1))
    src = jax.random.randint(k1, (B, S), 1, SRC_VOCAB, dtype=jnp.int32)
    tgt = jax.random.randint(k2, (B, S), 1, TGT_VOCAB, dtype=jnp.int32)
    src_mask = jnp.ones((B, 1, S), jnp.float32)                                      # [B, 1, S]
    tgt_mask = jnp.broadcast_to(jnp.tril(jnp.ones((S, S), jnp.float32)), (B, S, S))  # causal

    out = forward(wslab, vslab, src, tgt, src_mask, tgt_mask)
    out = jax.block_until_ready(out)
    assert out.shape == (B, S, D_MODEL) and out.dtype == jnp.float32
    assert bool(jnp.all(jnp.isfinite(out)))
    print("KERNEL_OK")
</pallas_src>

<mosaic_0001>
module attributes {stable_mosaic.version = 11 : i64} {
  func.func @kernel(%arg0: i32, %arg1: memref<2x8xi32, #tpu.memory_space<smem>>, %arg2: memref<2x8xi32, #tpu.memory_space<smem>>, %arg3: memref<1008x128xf32, #tpu.memory_space<vmem>>, %arg4: memref<368x128xf32, #tpu.memory_space<vmem>>, %arg5: memref<1x1x8xf32, #tpu.memory_space<vmem>>, %arg6: memref<1x8x8xf32, #tpu.memory_space<vmem>>, %arg7: memref<1x8x32xf32, #tpu.memory_space<vmem>>) attributes {dimension_semantics = [#tpu.dimension_semantics<parallel>], iteration_bounds = array<i64: 2>, scalar_prefetch = 2 : i64, scratch_operands = 0 : i64, tpu.core_type = #tpu.core_type<tc>, window_params = [{pipeline_mode = #tpu.pipeline_mode<synchronous>, transform_indices = @transform_0, window_bounds = array<i64: 1008, 128>}, {pipeline_mode = #tpu.pipeline_mode<synchronous>, transform_indices = @transform_1, window_bounds = array<i64: 368, 128>}, {transform_indices = @transform_2, window_bounds = array<i64: 1, 1, 8>}, {transform_indices = @transform_3, window_bounds = array<i64: 1, 8, 8>}, {transform_indices = @transform_4, window_bounds = array<i64: 1, 8, 32>}]} {
    %c0 = arith.constant 0 : index
    %c0_0 = arith.constant 0 : index
    %c0_1 = arith.constant 0 : index
    %0 = vector.load %arg5[%c0, %c0_0, %c0_1] : memref<1x1x8xf32, #tpu.memory_space<vmem>>, vector<1x1x8xf32>
    %1 = vector.shape_cast %0 : vector<1x1x8xf32> to vector<1x8xf32>
    %cst = arith.constant 1.000000e+00 : f32
    %2 = vector.broadcast %cst : f32 to vector<1x8xf32>
    %3 = arith.subf %1, %2 : vector<1x8xf32>
    %cst_2 = arith.constant 1.000000e+09 : f32
    %4 = vector.broadcast %cst_2 : f32 to vector<1x8xf32>
    %5 = arith.mulf %3, %4 : vector<1x8xf32>
    %c0_3 = arith.constant 0 : index
    %c0_4 = arith.constant 0 : index
    %c0_5 = arith.constant 0 : index
    %6 = vector.load %arg6[%c0_3, %c0_4, %c0_5] : memref<1x8x8xf32, #tpu.memory_space<vmem>>, vector<1x8x8xf32>
    %7 = vector.shape_cast %6 : vector<1x8x8xf32> to vector<8x8xf32>
    %cst_6 = arith.constant 1.000000e+00 : f32
    %8 = vector.broadcast %cst_6 : f32 to vector<8x8xf32>
    %9 = arith.subf %7, %8 : vector<8x8xf32>
    %cst_7 = arith.constant 1.000000e+09 : f32
    %10 = vector.broadcast %cst_7 : f32 to vector<8x8xf32>
    %11 = arith.mulf %9, %10 : vector<8x8xf32>
    %12 = arith.index_cast %arg0 : i32 to index
    %c0_8 = arith.constant 0 : index
    %13 = memref.load %arg1[%12, %c0_8] : memref<2x8xi32, #tpu.memory_space<smem>>
    %c0_i32 = arith.constant 0 : i32
    %14 = arith.addi %c0_i32, %13 : i32
    %15 = arith.index_cast %14 : i32 to index
    %c0_9 = arith.constant 0 : index
    %16 = vector.load %arg3[%15, %c0_9] : memref<1008x128xf32, #tpu.memory_space<vmem>>, vector<1x32xf32>
    %17 = arith.index_cast %arg0 : i32 to index
    %c1 = arith.constant 1 : index
    %18 = memref.load %arg1[%17, %c1] : memref<2x8xi32, #tpu.memory_space<smem>>
    %c0_i32_10 = arith.constant 0 : i32
    %19 = arith.addi %c0_i32_10, %18 : i32
    %20 = arith.index_cast %19 : i32 to index
    %c0_11 = arith.constant 0 : index
    %21 = vector.load %arg3[%20, %c0_11] : memref<1008x128xf32, #tpu.memory_space<vmem>>, vector<1x32xf32>
    %22 = arith.index_cast %arg0 : i32 to index
    %c2 = arith.constant 2 : index
    %23 = memref.load %arg1[%22, %c2] : memref<2x8xi32, #tpu.memory_space<smem>>
    %c0_i32_12 = arith.constant 0 : i32
    %24 = arith.addi %c0_i32_12, %23 : i32
    %25 = arith.index_cast %24 : i32 to index
    %c0_13 = arith.constant 0 : index
    %26 = vector.load %arg3[%25, %c0_13] : memref<1008x128xf32, #tpu.memory_space<vmem>>, vector<1x32xf32>
    %27 = arith.index_cast %arg0 : i32 to index
    %c3 = arith.constant 3 : index
    %28 = memref.load %arg1[%27, %c3] : memref<2x8xi32, #tpu.memory_space<smem>>
    %c0_i32_14 = arith.constant 0 : i32
    %29 = arith.addi %c0_i32_14, %28 : i32
    %30 = arith.index_cast %29 : i32 to index
    %c0_15 = arith.constant 0 : index
    %31 = vector.load %arg3[%30, %c0_15] : memref<1008x128xf32, #tpu.memory_space<vmem>>, vector<1x32xf32>
    %32 = arith.index_cast %arg0 : i32 to index
    %c4 = arith.constant 4 : index
    %33 = memref.load %arg1[%32, %c4] : memref<2x8xi32, #tpu.memory_space<smem>>
    %c0_i32_16 = arith.constant 0 : i32
    %34 = arith.addi %c0_i32_16, %33 : i32
    %35 = arith.index_cast %34 : i32 to index
    %c0_17 = arith.constant 0 : index
    %36 = vector.load %arg3[%35, %c0_17] : memref<1008x128xf32, #tpu.memory_space<vmem>>, vector<1x32xf32>
    %37 = arith.index_cast %arg0 : i32 to index
    %c5 = arith.constant 5 : index
    %38 = memref.load %arg1[%37, %c5] : memref<2x8xi32, #tpu.memory_space<smem>>
    %c0_i32_18 = arith.constant 0 : i32
    %39 = arith.addi %c0_i32_18, %38 : i32
    %40 = arith.index_cast %39 : i32 to index
    %c0_19 = arith.constant 0 : index
    %41 = vector.load %arg3[%40, %c0_19] : memref<1008x128xf32, #tpu.memory_space<vmem>>, vector<1x32xf32>
    %42 = arith.index_cast %arg0 : i32 to index
    %c6 = arith.constant 6 : index
    %43 = memref.load %arg1[%42, %c6] : memref<2x8xi32, #tpu.memory_space<smem>>
    %c0_i32_20 = arith.constant 0 : i32
    %44 = arith.addi %c0_i32_20, %43 : i32
    %45 = arith.index_cast %44 : i32 to index
    %c0_21 = arith.constant 0 : index
    %46 = vector.load %arg3[%45, %c0_21] : memref<1008x128xf32, #tpu.memory_space<vmem>>, vector<1x32xf32>
    %47 = arith.index_cast %arg0 : i32 to index
    %c7 = arith.constant 7 : index
    %48 = memref.load %arg1[%47, %c7] : memref<2x8xi32, #tpu.memory_space<smem>>
    %c0_i32_22 = arith.constant 0 : i32
    %49 = arith.addi %c0_i32_22, %48 : i32
    %50 = arith.index_cast %49 : i32 to index
    %c0_23 = arith.constant 0 : index
    %51 = vector.load %arg3[%50, %c0_23] : memref<1008x128xf32, #tpu.memory_space<vmem>>, vector<1x32xf32>
    %52 = tpu.concatenate %16, %21, %26, %31, %36, %41, %46, %51 in 0 : vector<1x32xf32>, vector<1x32xf32>, vector<1x32xf32>, vector<1x32xf32>, vector<1x32xf32>, vector<1x32xf32>, vector<1x32xf32>, vector<1x32xf32> -> vector<8x32xf32>
    %cst_24 = arith.constant 5.65685415 : f32
    %53 = vector.broadcast %cst_24 : f32 to vector<8x32xf32>
    %54 = arith.mulf %52, %53 : vector<8x32xf32>
    %c112 = arith.constant 112 : index
    %c0_25 = arith.constant 0 : index
    %55 = vector.load %arg3[%c112, %c0_25] : memref<1008x128xf32, #tpu.memory_space<vmem>>, vector<8x32xf32>
    %56 = arith.addf %54, %55 : vector<8x32xf32>
    %cst_26 = arith.constant dense<0.000000e+00> : vector<8xf32>
    %57 = vector.multi_reduction <add>, %56, %cst_26 [1] : vector<8x32xf32> to vector<8xf32>
    %58 = vector.shape_cast %57 : vector<8xf32> to vector<8x1xf32>
    %cst_27 = arith.constant 3.200000e+01 : f32
    %59 = vector.broadcast %cst_27 : f32 to vector<8x1xf32>
    %60 = arith.divf %58, %59 : vector<8x1xf32>
    %61 = vector.broadcast %60 : vector<8x1xf32> to vector<8x32xf32>
    %62 = arith.subf %56, %61 : vector<8x32xf32>
    %63 = arith.mulf %62, %62 : vector<8x32xf32>
    %cst_28 = arith.constant dense<0.000000e+00> : vector<8xf32>
    %64 = vector.multi_reduction <add>, %63, %cst_28 [1] : vector<8x32xf32> to vector<8xf32>
    %65 = vector.shape_cast %64 : vector<8xf32> to vector<8x1xf32>
    %cst_29 = arith.constant 0.0322580636 : f32
    %66 = vector.broadcast %cst_29 : f32 to vector<8x1xf32>
    %67 = arith.mulf %65, %66 : vector<8x1xf32>
    %68 = math.sqrt %67 : vector<8x1xf32>
    %c0_30 = arith.constant 0 : index
    %c0_31 = arith.constant 0 : index
    %69 = vector.load %arg4[%c0_30, %c0_31] : memref<368x128xf32, #tpu.memory_space<vmem>>, vector<1x32xf32>
    %70 = vector.broadcast %60 : vector<8x1xf32> to vector<8x32xf32>
    %71 = arith.subf %56, %70 : vector<8x32xf32>
    %72 = vector.broadcast %69 : vector<1x32xf32> to vector<8x32xf32>
    %73 = arith.mulf %72, %71 : vector<8x32xf32>
    %cst_32 = arith.constant 9.99999997E-7 : f32
    %74 = vector.broadcast %cst_32 : f32 to vector<8x1xf32>
    %75 = arith.addf %68, %74 : vector<8x1xf32>
    %76 = vector.broadcast %75 : vector<8x1xf32> to vector<8x32xf32>
    %77 = arith.divf %73, %76 : vector<8x32xf32>
    %c8 = arith.constant 8 : index
    %c0_33 = arith.constant 0 : index
    %78 = vector.load %arg4[%c8, %c0_33] : memref<368x128xf32, #tpu.memory_space<vmem>>, vector<1x32xf32>
    %79 = vector.broadcast %78 : vector<1x32xf32> to vector<8x32xf32>
    %80 = arith.addf %77, %79 : vector<8x32xf32>
    %c176 = arith.constant 176 : index
    %c0_34 = arith.constant 0 : index
    %81 = vector.load %arg3[%c176, %c0_34] : memref<1008x128xf32, #tpu.memory_space<vmem>>, vector<32x96xf32>
    %cst_35 = arith.constant dense<0.000000e+00> : vector<8x96xf32>
    %82 = tpu.matmul %80, %81, %cst_35 {dimension_numbers = #tpu.dot_dimension_numbers<[1], [0], [0], [1], [0, 0, 1, 1], [], []>} : vector<8x32xf32>, vector<32x96xf32>, vector<8x96xf32> -> vector<8x96xf32>
    %c16 = arith.constant 16 : index
    %c0_36 = arith.constant 0 : index
    %83 = vector.load %arg4[%c16, %c0_36] : memref<368x128xf32, #tpu.memory_space<vmem>>, vector<1x96xf32>
    %84 = vector.broadcast %83 : vector<1x96xf32> to vector<8x96xf32>
    %85 = arith.addf %82, %84 : vector<8x96xf32>
    %86 = vector.extract_strided_slice %85 {offsets = [0, 0], sizes = [8, 32], strides = [1, 1]} : vector<8x96xf32> to vector<8x32xf32>
    %87 = vector.extract_strided_slice %85 {offsets = [0, 32], sizes = [8, 32], strides = [1, 1]} : vector<8x96xf32> to vector<8x32xf32>
    %88 = vector.extract_strided_slice %85 {offsets = [0, 64], sizes = [8, 32], strides = [1, 1]} : vector<8x96xf32> to vector<8x32xf32>
    %89 = vector.extract_strided_slice %86 {offsets = [0, 0], sizes = [8, 8], strides = [1, 1]} : vector<8x32xf32> to vector<8x8xf32>
    %90 = vector.extract_strided_slice %87 {offsets = [0, 0], sizes = [8, 8], strides = [1, 1]} : vector<8x32xf32> to vector<8x8xf32>
    %91 = vector.extract_strided_slice %88 {offsets = [0, 0], sizes = [8, 8], strides = [1, 1]} : vector<8x32xf32> to vector<8x8xf32>
    %cst_37 = arith.constant dense<0.000000e+00> : vector<8x8xf32>
    %92 = tpu.matmul %89, %90, %cst_37 {dimension_numbers = #tpu.dot_dimension_numbers<[1], [1], [0], [0], [0, 0, 1, 0], [], []>} : vector<8x8xf32>, vector<8x8xf32>, vector<8x8xf32> -> vector<8x8xf32>
    %93 = vector.broadcast %5 : vector<1x8xf32> to vector<8x8xf32>
    %94 = arith.addf %92, %93 : vector<8x8xf32>
    %cst_38 = arith.constant dense<0xFF800000> : vector<8xf32>
    %95 = vector.multi_reduction <maximumf>, %94, %cst_38 [1] : vector<8x8xf32> to vector<8xf32>
    %96 = vector.shape_cast %95 : vector<8xf32> to vector<8x1xf32>
    %97 = vector.broadcast %96 : vector<8x1xf32> to vector<8x8xf32>
    %98 = arith.subf %94, %97 : vector<8x8xf32>
    %99 = math.exp %98 : vector<8x8xf32>
    %cst_39 = arith.constant dense<0.000000e+00> : vector<8xf32>
    %100 = vector.multi_reduction <add>, %99, %cst_39 [1] : vector<8x8xf32> to vector<8xf32>
    %101 = vector.shape_cast %100 : vector<8xf32> to vector<8x1xf32>
    %102 = vector.broadcast %101 : vector<8x1xf32> to vector<8x8xf32>
    %103 = arith.divf %99, %102 : vector<8x8xf32>
    %cst_40 = arith.constant dense<0.000000e+00> : vector<8x8xf32>
    %104 = tpu.matmul %103, %91, %cst_40 {dimension_numbers = #tpu.dot_dimension_numbers<[1], [0], [0], [1], [0, 0, 1, 1], [], []>} : vector<8x8xf32>, vector<8x8xf32>, vector<8x8xf32> -> vector<8x8xf32>
    %105 = vector.extract_strided_slice %86 {offsets = [0, 8], sizes = [8, 8], strides = [1, 1]} : vector<8x32xf32> to vector<8x8xf32>
    %106 = vector.extract_strided_slice %87 {offsets = [0, 8], sizes = [8, 8], strides = [1, 1]} : vector<8x32xf32> to vector<8x8xf32>
    %107 = vector.extract_strided_slice %88 {offsets = [0, 8], sizes = [8, 8], strides = [1, 1]} : vector<8x32xf32> to vector<8x8xf32>
    %cst_41 = arith.constant dense<0.000000e+00> : vector<8x8xf32>
    %108 = tpu.matmul %105, %106, %cst_41 {dimension_numbers = #tpu.dot_dimension_numbers<[1], [1], [0], [0], [0, 0, 1, 0], [], []>} : vector<8x8xf32>, vector<8x8xf32>, vector<8x8xf32> -> vector<8x8xf32>
    %109 = vector.broadcast %5 : vector<1x8xf32> to vector<8x8xf32>
    %110 = arith.addf %108, %109 : vector<8x8xf32>
    %cst_42 = arith.constant dense<0xFF800000> : vector<8xf32>
    %111 = vector.multi_reduction <maximumf>, %110, %cst_42 [1] : vector<8x8xf32> to vector<8xf32>
    %112 = vector.shape_cast %111 : vector<8xf32> to vector<8x1xf32>
    %113 = vector.broadcast %112 : vector<8x1xf32> to vector<8x8xf32>
    %114 = arith.subf %110, %113 : vector<8x8xf32>
    %115 = math.exp %114 : vector<8x8xf32>
    %cst_43 = arith.constant dense<0.000000e+00> : vector<8xf32>
    %116 = vector.multi_reduction <add>, %115, %cst_43 [1] : vector<8x8xf32> to vector<8xf32>
    %117 = vector.shape_cast %116 : vector<8xf32> to vector<8x1xf32>
    %118 = vector.broadcast %117 : vector<8x1xf32> to vector<8x8xf32>
    %119 = arith.divf %115, %118 : vector<8x8xf32>
    %cst_44 = arith.constant dense<0.000000e+00> : vector<8x8xf32>
    %120 = tpu.matmul %119, %107, %cst_44 {dimension_numbers = #tpu.dot_dimension_numbers<[1], [0], [0], [1], [0, 0, 1, 1], [], []>} : vector<8x8xf32>, vector<8x8xf32>, vector<8x8xf32> -> vector<8x8xf32>
    %121 = vector.extract_strided_slice %86 {offsets = [0, 16], sizes = [8, 8], strides = [1, 1]} : vector<8x32xf32> to vector<8x8xf32>
    %122 = vector.extract_strided_slice %87 {offsets = [0, 16], sizes = [8, 8], strides = [1, 1]} : vector<8x32xf32> to vector<8x8xf32>
    %123 = vector.extract_strided_slice %88 {offsets = [0, 16], sizes = [8, 8], strides = [1, 1]} : vector<8x32xf32> to vector<8x8xf32>
    %cst_45 = arith.constant dense<0.000000e+00> : vector<8x8xf32>
    %124 = tpu.matmul %121, %122, %cst_45 {dimension_numbers = #tpu.dot_dimension_numbers<[1], [1], [0], [0], [0, 0, 1, 0], [], []>} : vector<8x8xf32>, vector<8x8xf32>, vector<8x8xf32> -> vector<8x8xf32>
    %125 = vector.broadcast %5 : vector<1x8xf32> to vector<8x8xf32>
    %126 = arith.addf %124, %125 : vector<8x8xf32>
    %cst_46 = arith.constant dense<0xFF800000> : vector<8xf32>
    %127 = vector.multi_reduction <maximumf>, %126, %cst_46 [1] : vector<8x8xf32> to vector<8xf32>
    %128 = vector.shape_cast %127 : vector<8xf32> to vector<8x1xf32>
    %129 = vector.broadcast %128 : vector<8x1xf32> to vector<8x8xf32>
    %130 = arith.subf %126, %129 : vector<8x8xf32>
    %131 = math.exp %130 : vector<8x8xf32>
    %cst_47 = arith.constant dense<0.000000e+00> : vector<8xf32>
    %132 = vector.multi_reduction <add>, %131, %cst_47 [1] : vector<8x8xf32> to vector<8xf32>
    %133 = vector.shape_cast %132 : vector<8xf32> to vector<8x1xf32>
    %134 = vector.broadcast %133 : vector<8x1xf32> to vector<8x8xf32>
    %135 = arith.divf %131, %134 : vector<8x8xf32>
    %cst_48 = arith.constant dense<0.000000e+00> : vector<8x8xf32>
    %136 = tpu.matmul %135, %123, %cst_48 {dimension_numbers = #tpu.dot_dimension_numbers<[1], [0], [0], [1], [0, 0, 1, 1], [], []>} : vector<8x8xf32>, vector<8x8xf32>, vector<8x8xf32> -> vector<8x8xf32>
    %137 = vector.extract_strided_slice %86 {offsets = [0, 24], sizes = [8, 8], strides = [1, 1]} : vector<8x32xf32> to vector<8x8xf32>
    %138 = vector.extract_strided_slice %87 {offsets = [0, 24], sizes = [8, 8], strides = [1, 1]} : vector<8x32xf32> to vector<8x8xf32>
    %139 = vector.extract_strided_slice %88 {offsets = [0, 24], sizes = [8, 8], strides = [1, 1]} : vector<8x32xf32> to vector<8x8xf32>
    %cst_49 = arith.constant dense<0.000000e+00> : vector<8x8xf32>
    %140 = tpu.matmul %137, %138, %cst_49 {dimension_numbers = #tpu.dot_dimension_numbers<[1], [1], [0], [0], [0, 0, 1, 0], [], []>} : vector<8x8xf32>, vector<8x8xf32>, vector<8x8xf32> -> vector<8x8xf32>
    %141 = vector.broadcast %5 : vector<1x8xf32> to vector<8x8xf32>
    %142 = arith.addf %140, %141 : vector<8x8xf32>
    %cst_50 = arith.constant dense<0xFF800000> : vector<8xf32>
    %143 = vector.multi_reduction <maximumf>, %142, %cst_50 [1] : vector<8x8xf32> to vector<8xf32>
    %144 = vector.shape_cast %143 : vector<8xf32> to vector<8x1xf32>
    %145 = vector.broadcast %144 : vector<8x1xf32> to vector<8x8xf32>
    %146 = arith.subf %142, %145 : vector<8x8xf32>
    %147 = math.exp %146 : vector<8x8xf32>
    %cst_51 = arith.constant dense<0.000000e+00> : vector<8xf32>
    %148 = vector.multi_reduction <add>, %147, %cst_51 [1] : vector<8x8xf32> to vector<8xf32>
    %149 = vector.shape_cast %148 : vector<8xf32> to vector<8x1xf32>
    %150 = vector.broadcast %149 : vector<8x1xf32> to vector<8x8xf32>
    %151 = arith.divf %147, %150 : vector<8x8xf32>
    %cst_52 = arith.constant dense<0.000000e+00> : vector<8x8xf32>
    %152 = tpu.matmul %151, %139, %cst_52 {dimension_numbers = #tpu.dot_dimension_numbers<[1], [0], [0], [1], [0, 0, 1, 1], [], []>} : vector<8x8xf32>, vector<8x8xf32>, vector<8x8xf32> -> vector<8x8xf32>
    %153 = tpu.concatenate %104, %120, %136, %152 in 1 : vector<8x8xf32>, vector<8x8xf32>, vector<8x8xf32>, vector<8x8xf32> -> vector<8x32xf32>
    %c208 = arith.constant 208 : index
    %c0_53 = arith.constant 0 : index
    %154 = vector.load %arg3[%c208, %c0_53] : memref<1008x128xf32, #tpu.memory_space<vmem>>, vector<32x32xf32>
    %cst_54 = arith.constant dense<0.000000e+00> : vector<8x32xf32>
    %155 = tpu.matmul %153, %154, %cst_54 {dimension_numbers = #tpu.dot_dimension_numbers<[1], [0], [0], [1], [0, 0, 1, 1], [], []>} : vector<8x32xf32>, vector<32x32xf32>, vector<8x32xf32> -> vector<8x32xf32>
    %c24 = arith.constant 24 : index
    %c0_55 = arith.constant 0 : index
    %156 = vector.load %arg4[%c24, %c0_55] : memref<368x128xf32, #tpu.memory_space<vmem>>, vector<1x32xf32>
    %157 = vector.broadcast %156 : vector<1x32xf32> to vector<8x32xf32>
    %158 = arith.addf %155, %157 : vector<8x32xf32>
    %159 = arith.addf %56, %158 : vector<8x32xf32>
    %cst_56 = arith.constant dense<0.000000e+00> : vector<8xf32>
    %160 = vector.multi_reduction <add>, %159, %cst_56 [1] : vector<8x32xf32> to vector<8xf32>
    %161 = vector.shape_cast %160 : vector<8xf32> to vector<8x1xf32>
    %cst_57 = arith.constant 3.200000e+01 : f32
    %162 = vector.broadcast %cst_57 : f32 to vector<8x1xf32>
    %163 = arith.divf %161, %162 : vector<8x1xf32>
    %164 = vector.broadcast %163 : vector<8x1xf32> to vector<8x32xf32>
    %165 = arith.subf %159, %164 : vector<8x32xf32>
    %166 = arith.mulf %165, %165 : vector<8x32xf32>
    %cst_58 = arith.constant dense<0.000000e+00> : vector<8xf32>
    %167 = vector.multi_reduction <add>, %166, %cst_58 [1] : vector<8x32xf32> to vector<8xf32>
    %168 = vector.shape_cast %167 : vector<8xf32> to vector<8x1xf32>
    %cst_59 = arith.constant 0.0322580636 : f32
    %169 = vector.broadcast %cst_59 : f32 to vector<8x1xf32>
    %170 = arith.mulf %168, %169 : vector<8x1xf32>
    %171 = math.sqrt %170 : vector<8x1xf32>
    %c32 = arith.constant 32 : index
    %c0_60 = arith.constant 0 : index
    %172 = vector.load %arg4[%c32, %c0_60] : memref<368x128xf32, #tpu.memory_space<vmem>>, vector<1x32xf32>
    %173 = vector.broadcast %163 : vector<8x1xf32> to vector<8x32xf32>
    %174 = arith.subf %159, %173 : vector<8x32xf32>
    %175 = vector.broadcast %172 : vector<1x32xf32> to vector<8x32xf32>
    %176 = arith.mulf %175, %174 : vector<8x32xf32>
    %cst_61 = arith.constant 9.99999997E-7 : f32
    %177 = vector.broadcast %cst_61 : f32 to vector<8x1xf32>
    %178 = arith.addf %171, %177 : vector<8x1xf32>
    %179 = vector.broadcast %178 : vector<8x1xf32> to vector<8x32xf32>
    %180 = arith.divf %176, %179 : vector<8x32xf32>
    %c40 = arith.constant 40 : index
    %c0_62 = arith.constant 0 : index
    %181 = vector.load %arg4[%c40, %c0_62] : memref<368x128xf32, #tpu.memory_space<vmem>>, vector<1x32xf32>
    %182 = vector.broadcast %181 : vector<1x32xf32> to vector<8x32xf32>
    %183 = arith.addf %180, %182 : vector<8x32xf32>
    %c240 = arith.constant 240 : index
    %c0_63 = arith.constant 0 : index
    %184 = vector.load %arg3[%c240, %c0_63] : memref<1008x128xf32, #tpu.memory_space<vmem>>, vector<32x64xf32>
    %cst_64 = arith.constant dense<0.000000e+00> : vector<8x64xf32>
    %185 = tpu.matmul %183, %184, %cst_64 {dimension_numbers = #tpu.dot_dimension_numbers<[1], [0], [0], [1], [0, 0, 1, 1], [], []>} : vector<8x32xf32>, vector<32x64xf32>, vector<8x64xf32> -> vector<8x64xf32>
    %c48 = arith.constant 48 : index
    %c0_65 = arith.constant 0 : index
    %186 = vector.load %arg4[%c48, %c0_65] : memref<368x128xf32, #tpu.memory_space<vmem>>, vector<1x64xf32>
    %187 = vector.broadcast %186 : vector<1x64xf32> to vector<8x64xf32>
    %188 = arith.addf %185, %187 : vector<8x64xf32>
    %cst_66 = arith.constant 0.000000e+00 : f32
    %189 = vector.broadcast %cst_66 : f32 to vector<8x64xf32>
    %190 = arith.maximumf %188, %189 : vector<8x64xf32>
    %c272 = arith.constant 272 : index
    %c0_67 = arith.constant 0 : index
    %191 = vector.load %arg3[%c272, %c0_67] : memref<1008x128xf32, #tpu.memory_space<vmem>>, vector<64x32xf32>
    %cst_68 = arith.constant dense<0.000000e+00> : vector<8x32xf32>
    %192 = tpu.matmul %190, %191, %cst_68 {dimension_numbers = #tpu.dot_dimension_numbers<[1], [0], [0], [1], [0, 0, 1, 1], [], []>} : vector<8x64xf32>, vector<64x32xf32>, vector<8x32xf32> -> vector<8x32xf32>
    %c56 = arith.constant 56 : index
    %c0_69 = arith.constant 0 : index
    %193 = vector.load %arg4[%c56, %c0_69] : memref<368x128xf32, #tpu.memory_space<vmem>>, vector<1x32xf32>
    %194 = vector.broadcast %193 : vector<1x32xf32> to vector<8x32xf32>
    %195 = arith.addf %192, %194 : vector<8x32xf32>
    %196 = arith.addf %159, %195 : vector<8x32xf32>
    %cst_70 = arith.constant dense<0.000000e+00> : vector<8xf32>
    %197 = vector.multi_reduction <add>, %196, %cst_70 [1] : vector<8x32xf32> to vector<8xf32>
    %198 = vector.shape_cast %197 : vector<8xf32> to vector<8x1xf32>
    %cst_71 = arith.constant 3.200000e+01 : f32
    %199 = vector.broadcast %cst_71 : f32 to vector<8x1xf32>
    %200 = arith.divf %198, %199 : vector<8x1xf32>
    %201 = vector.broadcast %200 : vector<8x1xf32> to vector<8x32xf32>
    %202 = arith.subf %196, %201 : vector<8x32xf32>
    %203 = arith.mulf %202, %202 : vector<8x32xf32>
    %cst_72 = arith.constant dense<0.000000e+00> : vector<8xf32>
    %204 = vector.multi_reduction <add>, %203, %cst_72 [1] : vector<8x32xf32> to vector<8xf32>
    %205 = vector.shape_cast %204 : vector<8xf32> to vector<8x1xf32>
    %cst_73 = arith.constant 0.0322580636 : f32
    %206 = vector.broadcast %cst_73 : f32 to vector<8x1xf32>
    %207 = arith.mulf %205, %206 : vector<8x1xf32>
    %208 = math.sqrt %207 : vector<8x1xf32>
    %c64 = arith.constant 64 : index
    %c0_74 = arith.constant 0 : index
    %209 = vector.load %arg4[%c64, %c0_74] : memref<368x128xf32, #tpu.memory_space<vmem>>, vector<1x32xf32>
    %210 = vector.broadcast %200 : vector<8x1xf32> to vector<8x32xf32>
    %211 = arith.subf %196, %210 : vector<8x32xf32>
    %212 = vector.broadcast %209 : vector<1x32xf32> to vector<8x32xf32>
    %213 = arith.mulf %212, %211 : vector<8x32xf32>
    %cst_75 = arith.constant 9.99999997E-7 : f32
    %214 = vector.broadcast %cst_75 : f32 to vector<8x1xf32>
    %215 = arith.addf %208, %214 : vector<8x1xf32>
    %216 = vector.broadcast %215 : vector<8x1xf32> to vector<8x32xf32>
    %217 = arith.divf %213, %216 : vector<8x32xf32>
    %c72 = arith.constant 72 : index
    %c0_76 = arith.constant 0 : index
    %218 = vector.load %arg4[%c72, %c0_76] : memref<368x128xf32, #tpu.memory_space<vmem>>, vector<1x32xf32>
    %219 = vector.broadcast %218 : vector<1x32xf32> to vector<8x32xf32>
    %220 = arith.addf %217, %219 : vector<8x32xf32>
    %c336 = arith.constant 336 : index
    %c0_77 = arith.constant 0 : index
    %221 = vector.load %arg3[%c336, %c0_77] : memref<1008x128xf32, #tpu.memory_space<vmem>>, vector<32x96xf32>
    %cst_78 = arith.constant dense<0.000000e+00> : vector<8x96xf32>
    %222 = tpu.matmul %220, %221, %cst_78 {dimension_numbers = #tpu.dot_dimension_numbers<[1], [0], [0], [1], [0, 0, 1, 1], [], []>} : vector<8x32xf32>, vector<32x96xf32>, vector<8x96xf32> -> vector<8x96xf32>
    %c80 = arith.constant 80 : index
    %c0_79 = arith.constant 0 : index
    %223 = vector.load %arg4[%c80, %c0_79] : memref<368x128xf32, #tpu.memory_space<vmem>>, vector<1x96xf32>
    %224 = vector.broadcast %223 : vector<1x96xf32> to vector<8x96xf32>
    %225 = arith.addf %222, %224 : vector<8x96xf32>
    %226 = vector.extract_strided_slice %225 {offsets = [0, 0], sizes = [8, 32], strides = [1, 1]} : vector<8x96xf32> to vector<8x32xf32>
    %227 = vector.extract_strided_slice %225 {offsets = [0, 32], sizes = [8, 32], strides = [1, 1]} : vector<8x96xf32> to vector<8x32xf32>
    %228 = vector.extract_strided_slice %225 {offsets = [0, 64], sizes = [8, 32], strides = [1, 1]} : vector<8x96xf32> to vector<8x32xf32>
    %229 = vector.extract_strided_slice %226 {offsets = [0, 0], sizes = [8, 8], strides = [1, 1]} : vector<8x32xf32> to vector<8x8xf32>
    %230 = vector.extract_strided_slice %227 {offsets = [0, 0], sizes = [8, 8], strides = [1, 1]} : vector<8x32xf32> to vector<8x8xf32>
    %231 = vector.extract_strided_slice %228 {offsets = [0, 0], sizes = [8, 8], strides = [1, 1]} : vector<8x32xf32> to vector<8x8xf32>
    %cst_80 = arith.constant dense<0.000000e+00> : vector<8x8xf32>
    %232 = tpu.matmul %229, %230, %cst_80 {dimension_numbers = #tpu.dot_dimension_numbers<[1], [1], [0], [0], [0, 0, 1, 0], [], []>} : vector<8x8xf32>, vector<8x8xf32>, vector<8x8xf32> -> vector<8x8xf32>
    %233 = vector.broadcast %5 : vector<1x8xf32> to vector<8x8xf32>
    %234 = arith.addf %232, %233 : vector<8x8xf32>
    %cst_81 = arith.constant dense<0xFF800000> : vector<8xf32>
    %235 = vector.multi_reduction <maximumf>, %234, %cst_81 [1] : vector<8x8xf32> to vector<8xf32>
    %236 = vector.shape_cast %235 : vector<8xf32> to vector<8x1xf32>
    %237 = vector.broadcast %236 : vector<8x1xf32> to vector<8x8xf32>
    %238 = arith.subf %234, %237 : vector<8x8xf32>
    %239 = math.exp %238 : vector<8x8xf32>
    %cst_82 = arith.constant dense<0.000000e+00> : vector<8xf32>
    %240 = vector.multi_reduction <add>, %239, %cst_82 [1] : vector<8x8xf32> to vector<8xf32>
    %241 = vector.shape_cast %240 : vector<8xf32> to vector<8x1xf32>
    %242 = vector.broadcast %241 : vector<8x1xf32> to vector<8x8xf32>
    %243 = arith.divf %239, %242 : vector<8x8xf32>
    %cst_83 = arith.constant dense<0.000000e+00> : vector<8x8xf32>
    %244 = tpu.matmul %243, %231, %cst_83 {dimension_numbers = #tpu.dot_dimension_numbers<[1], [0], [0], [1], [0, 0, 1, 1], [], []>} : vector<8x8xf32>, vector<8x8xf32>, vector<8x8xf32> -> vector<8x8xf32>
    %245 = vector.extract_strided_slice %226 {offsets = [0, 8], sizes = [8, 8], strides = [1, 1]} : vector<8x32xf32> to vector<8x8xf32>
    %246 = vector.extract_strided_slice %227 {offsets = [0, 8], sizes = [8, 8], strides = [1, 1]} : vector<8x32xf32> to vector<8x8xf32>
    %247 = vector.extract_strided_slice %228 {offsets = [0, 8], sizes = [8, 8], strides = [1, 1]} : vector<8x32xf32> to vector<8x8xf32>
    %cst_84 = arith.constant dense<0.000000e+00> : vector<8x8xf32>
    %248 = tpu.matmul %245, %246, %cst_84 {dimension_numbers = #tpu.dot_dimension_numbers<[1], [1], [0], [0], [0, 0, 1, 0], [], []>} : vector<8x8xf32>, vector<8x8xf32>, vector<8x8xf32> -> vector<8x8xf32>
    %249 = vector.broadcast %5 : vector<1x8xf32> to vector<8x8xf32>
    %250 = arith.addf %248, %249 : vector<8x8xf32>
    %cst_85 = arith.constant dense<0xFF800000> : vector<8xf32>
    %251 = vector.multi_reduction <maximumf>, %250, %cst_85 [1] : vector<8x8xf32> to vector<8xf32>
    %252 = vector.shape_cast %251 : vector<8xf32> to vector<8x1xf32>
    %253 = vector.broadcast %252 : vector<8x1xf32> to vector<8x8xf32>
    %254 = arith.subf %250, %253 : vector<8x8xf32>
    %255 = math.exp %254 : vector<8x8xf32>
    %cst_86 = arith.constant dense<0.000000e+00> : vector<8xf32>
    %256 = vector.multi_reduction <add>, %255, %cst_86 [1] : vector<8x8xf32> to vector<8xf32>
    %257 = vector.shape_cast %256 : vector<8xf32> to vector<8x1xf32>
    %258 = vector.broadcast %257 : vector<8x1xf32> to vector<8x8xf32>
    %259 = arith.divf %255, %258 : vector<8x8xf32>
    %cst_87 = arith.constant dense<0.000000e+00> : vector<8x8xf32>
    %260 = tpu.matmul %259, %247, %cst_87 {dimension_numbers = #tpu.dot_dimension_numbers<[1], [0], [0], [1], [0, 0, 1, 1], [], []>} : vector<8x8xf32>, vector<8x8xf32>, vector<8x8xf32> -> vector<8x8xf32>
    %261 = vector.extract_strided_slice %226 {offsets = [0, 16], sizes = [8, 8], strides = [1, 1]} : vector<8x32xf32> to vector<8x8xf32>
    %262 = vector.extract_strided_slice %227 {offsets = [0, 16], sizes = [8, 8], strides = [1, 1]} : vector<8x32xf32> to vector<8x8xf32>
    %263 = vector.extract_strided_slice %228 {offsets = [0, 16], sizes = [8, 8], strides = [1, 1]} : vector<8x32xf32> to vector<8x8xf32>
    %cst_88 = arith.constant dense<0.000000e+00> : vector<8x8xf32>
    %264 = tpu.matmul %261, %262, %cst_88 {dimension_numbers = #tpu.dot_dimension_numbers<[1], [1], [0], [0], [0, 0, 1, 0], [], []>} : vector<8x8xf32>, vector<8x8xf32>, vector<8x8xf32> -> vector<8x8xf32>
    %265 = vector.broadcast %5 : vector<1x8xf32> to vector<8x8xf32>
    %266 = arith.addf %264, %265 : vector<8x8xf32>
    %cst_89 = arith.constant dense<0xFF800000> : vector<8xf32>
    %267 = vector.multi_reduction <maximumf>, %266, %cst_89 [1] : vector<8x8xf32> to vector<8xf32>
    %268 = vector.shape_cast %267 : vector<8xf32> to vector<8x1xf32>
    %269 = vector.broadcast %268 : vector<8x1xf32> to vector<8x8xf32>
    %270 = arith.subf %266, %269 : vector<8x8xf32>
    %271 = math.exp %270 : vector<8x8xf32>
    %cst_90 = arith.constant dense<0.000000e+00> : vector<8xf32>
    %272 = vector.multi_reduction <add>, %271, %cst_90 [1] : vector<8x8xf32> to vector<8xf32>
    %273 = vector.shape_cast %272 : vector<8xf32> to vector<8x1xf32>
    %274 = vector.broadcast %273 : vector<8x1xf32> to vector<8x8xf32>
    %275 = arith.divf %271, %274 : vector<8x8xf32>
    %cst_91 = arith.constant dense<0.000000e+00> : vector<8x8xf32>
    %276 = tpu.matmul %275, %263, %cst_91 {dimension_numbers = #tpu.dot_dimension_numbers<[1], [0], [0], [1], [0, 0, 1, 1], [], []>} : vector<8x8xf32>, vector<8x8xf32>, vector<8x8xf32> -> vector<8x8xf32>
    %277 = vector.extract_strided_slice %226 {offsets = [0, 24], sizes = [8, 8], strides = [1, 1]} : vector<8x32xf32> to vector<8x8xf32>
    %278 = vector.extract_strided_slice %227 {offsets = [0, 24], sizes = [8, 8], strides = [1, 1]} : vector<8x32xf32> to vector<8x8xf32>
    %279 = vector.extract_strided_slice %228 {offsets = [0, 24], sizes = [8, 8], strides = [1, 1]} : vector<8x32xf32> to vector<8x8xf32>
    %cst_92 = arith.constant dense<0.000000e+00> : vector<8x8xf32>
    %280 = tpu.matmul %277, %278, %cst_92 {dimension_numbers = #tpu.dot_dimension_numbers<[1], [1], [0], [0], [0, 0, 1, 0], [], []>} : vector<8x8xf32>, vector<8x8xf32>, vector<8x8xf32> -> vector<8x8xf32>
    %281 = vector.broadcast %5 : vector<1x8xf32> to vector<8x8xf32>
    %282 = arith.addf %280, %281 : vector<8x8xf32>
    %cst_93 = arith.constant dense<0xFF800000> : vector<8xf32>
    %283 = vector.multi_reduction <maximumf>, %282, %cst_93 [1] : vector<8x8xf32> to vector<8xf32>
    %284 = vector.shape_cast %283 : vector<8xf32> to vector<8x1xf32>
    %285 = vector.broadcast %284 : vector<8x1xf32> to vector<8x8xf32>
    %286 = arith.subf %282, %285 : vector<8x8xf32>
    %287 = math.exp %286 : vector<8x8xf32>
    %cst_94 = arith.constant dense<0.000000e+00> : vector<8xf32>
    %288 = vector.multi_reduction <add>, %287, %cst_94 [1] : vector<8x8xf32> to vector<8xf32>
    %289 = vector.shape_cast %288 : vector<8xf32> to vector<8x1xf32>
    %290 = vector.broadcast %289 : vector<8x1xf32> to vector<8x8xf32>
    %291 = arith.divf %287, %290 : vector<8x8xf32>
    %cst_95 = arith.constant dense<0.000000e+00> : vector<8x8xf32>
    %292 = tpu.matmul %291, %279, %cst_95 {dimension_numbers = #tpu.dot_dimension_numbers<[1], [0], [0], [1], [0, 0, 1, 1], [], []>} : vector<8x8xf32>, vector<8x8xf32>, vector<8x8xf32> -> vector<8x8xf32>
    %293 = tpu.concatenate %244, %260, %276, %292 in 1 : vector<8x8xf32>, vector<8x8xf32>, vector<8x8xf32>, vector<8x8xf32> -> vector<8x32xf32>
    %c368 = arith.constant 368 : index
    %c0_96 = arith.constant 0 : index
    %294 = vector.load %arg3[%c368, %c0_96] : memref<1008x128xf32, #tpu.memory_space<vmem>>, vector<32x32xf32>
    %cst_97 = arith.constant dense<0.000000e+00> : vector<8x32xf32>
    %295 = tpu.matmul %293, %294, %cst_97 {dimension_numbers = #tpu.dot_dimension_numbers<[1], [0], [0], [1], [0, 0, 1, 1], [], []>} : vector<8x32xf32>, vector<32x32xf32>, vector<8x32xf32> -> vector<8x32xf32>
    %c88 = arith.constant 88 : index
    %c0_98 = arith.constant 0 : index
    %296 = vector.load %arg4[%c88, %c0_98] : memref<368x128xf32, #tpu.memory_space<vmem>>, vector<1x32xf32>
    %297 = vector.broadcast %296 : vector<1x32xf32> to vector<8x32xf32>
    %298 = arith.addf %295, %297 : vector<8x32xf32>
    %299 = arith.addf %196, %298 : vector<8x32xf32>
    %cst_99 = arith.constant dense<0.000000e+00> : vector<8xf32>
    %300 = vector.multi_reduction <add>, %299, %cst_99 [1] : vector<8x32xf32> to vector<8xf32>
    %301 = vector.shape_cast %300 : vector<8xf32> to vector<8x1xf32>
    %cst_100 = arith.constant 3.200000e+01 : f32
    %302 = vector.broadcast %cst_100 : f32 to vector<8x1xf32>
    %303 = arith.divf %301, %302 : vector<8x1xf32>
    %304 = vector.broadcast %303 : vector<8x1xf32> to vector<8x32xf32>
    %305 = arith.subf %299, %304 : vector<8x32xf32>
    %306 = arith.mulf %305, %305 : vector<8x32xf32>
    %cst_101 = arith.constant dense<0.000000e+00> : vector<8xf32>
    %307 = vector.multi_reduction <add>, %306, %cst_101 [1] : vector<8x32xf32> to vector<8xf32>
    %308 = vector.shape_cast %307 : vector<8xf32> to vector<8x1xf32>
    %cst_102 = arith.constant 0.0322580636 : f32
    %309 = vector.broadcast %cst_102 : f32 to vector<8x1xf32>
    %310 = arith.mulf %308, %309 : vector<8x1xf32>
    %311 = math.sqrt %310 : vector<8x1xf32>
    %c96 = arith.constant 96 : index
    %c0_103 = arith.constant 0 : index
    %312 = vector.load %arg4[%c96, %c0_103] : memref<368x128xf32, #tpu.memory_space<vmem>>, vector<1x32xf32>
    %313 = vector.broadcast %303 : vector<8x1xf32> to vector<8x32xf32>
    %314 = arith.subf %299, %313 : vector<8x32xf32>
    %315 = vector.broadcast %312 : vector<1x32xf32> to vector<8x32xf32>
    %316 = arith.mulf %315, %314 : vector<8x32xf32>
    %cst_104 = arith.constant 9.99999997E-7 : f32
    %317 = vector.broadcast %cst_104 : f32 to vector<8x1xf32>
    %318 = arith.addf %311, %317 : vector<8x1xf32>
    %319 = vector.broadcast %318 : vector<8x1xf32> to vector<8x32xf32>
    %320 = arith.divf %316, %319 : vector<8x32xf32>
    %c104 = arith.constant 104 : index
    %c0_105 = arith.constant 0 : index
    %321 = vector.load %arg4[%c104, %c0_105] : memref<368x128xf32, #tpu.memory_space<vmem>>, vector<1x32xf32>
    %322 = vector.broadcast %321 : vector<1x32xf32> to vector<8x32xf32>
    %323 = arith.addf %320, %322 : vector<8x32xf32>
    %c400 = arith.constant 400 : index
    %c0_106 = arith.constant 0 : index
    %324 = vector.load %arg3[%c400, %c0_106] : memref<1008x128xf32, #tpu.memory_space<vmem>>, vector<32x64xf32>
    %cst_107 = arith.constant dense<0.000000e+00> : vector<8x64xf32>
    %325 = tpu.matmul %323, %324, %cst_107 {dimension_numbers = #tpu.dot_dimension_numbers<[1], [0], [0], [1], [0, 0, 1, 1], [], []>} : vector<8x32xf32>, vector<32x64xf32>, vector<8x64xf32> -> vector<8x64xf32>
    %c112_108 = arith.constant 112 : index
    %c0_109 = arith.constant 0 : index
    %326 = vector.load %arg4[%c112_108, %c0_109] : memref<368x128xf32, #tpu.memory_space<vmem>>, vector<1x64xf32>
    %327 = vector.broadcast %326 : vector<1x64xf32> to vector<8x64xf32>
    %328 = arith.addf %325, %327 : vector<8x64xf32>
    %cst_110 = arith.constant 0.000000e+00 : f32
    %329 = vector.broadcast %cst_110 : f32 to vector<8x64xf32>
    %330 = arith.maximumf %328, %329 : vector<8x64xf32>
    %c432 = arith.constant 432 : index
    %c0_111 = arith.constant 0 : index
    %331 = vector.load %arg3[%c432, %c0_111] : memref<1008x128xf32, #tpu.memory_space<vmem>>, vector<64x32xf32>
    %cst_112 = arith.constant dense<0.000000e+00> : vector<8x32xf32>
    %332 = tpu.matmul %330, %331, %cst_112 {dimension_numbers = #tpu.dot_dimension_numbers<[1], [0], [0], [1], [0, 0, 1, 1], [], []>} : vector<8x64xf32>, vector<64x32xf32>, vector<8x32xf32> -> vector<8x32xf32>
    %c120 = arith.constant 120 : index
    %c0_113 = arith.constant 0 : index
    %333 = vector.load %arg4[%c120, %c0_113] : memref<368x128xf32, #tpu.memory_space<vmem>>, vector<1x32xf32>
    %334 = vector.broadcast %333 : vector<1x32xf32> to vector<8x32xf32>
    %335 = arith.addf %332, %334 : vector<8x32xf32>
    %336 = arith.addf %299, %335 : vector<8x32xf32>
    %cst_114 = arith.constant dense<0.000000e+00> : vector<8xf32>
    %337 = vector.multi_reduction <add>, %336, %cst_114 [1] : vector<8x32xf32> to vector<8xf32>
    %338 = vector.shape_cast %337 : vector<8xf32> to vector<8x1xf32>
    %cst_115 = arith.constant 3.200000e+01 : f32
    %339 = vector.broadcast %cst_115 : f32 to vector<8x1xf32>
    %340 = arith.divf %338, %339 : vector<8x1xf32>
    %341 = vector.broadcast %340 : vector<8x1xf32> to vector<8x32xf32>
    %342 = arith.subf %336, %341 : vector<8x32xf32>
    %343 = arith.mulf %342, %342 : vector<8x32xf32>
    %cst_116 = arith.constant dense<0.000000e+00> : vector<8xf32>
    %344 = vector.multi_reduction <add>, %343, %cst_116 [1] : vector<8x32xf32> to vector<8xf32>
    %345 = vector.shape_cast %344 : vector<8xf32> to vector<8x1xf32>
    %cst_117 = arith.constant 0.0322580636 : f32
    %346 = vector.broadcast %cst_117 : f32 to vector<8x1xf32>
    %347 = arith.mulf %345, %346 : vector<8x1xf32>
    %348 = math.sqrt %347 : vector<8x1xf32>
    %c128 = arith.constant 128 : index
    %c0_118 = arith.constant 0 : index
    %349 = vector.load %arg4[%c128, %c0_118] : memref<368x128xf32, #tpu.memory_space<vmem>>, vector<1x32xf32>
    %350 = vector.broadcast %340 : vector<8x1xf32> to vector<8x32xf32>
    %351 = arith.subf %336, %350 : vector<8x32xf32>
    %352 = vector.broadcast %349 : vector<1x32xf32> to vector<8x32xf32>
    %353 = arith.mulf %352, %351 : vector<8x32xf32>
    %cst_119 = arith.constant 9.99999997E-7 : f32
    %354 = vector.broadcast %cst_119 : f32 to vector<8x1xf32>
    %355 = arith.addf %348, %354 : vector<8x1xf32>
    %356 = vector.broadcast %355 : vector<8x1xf32> to vector<8x32xf32>
    %357 = arith.divf %353, %356 : vector<8x32xf32>
    %c136 = arith.constant 136 : index
    %c0_120 = arith.constant 0 : index
    %358 = vector.load %arg4[%c136, %c0_120] : memref<368x128xf32, #tpu.memory_space<vmem>>, vector<1x32xf32>
    %359 = vector.broadcast %358 : vector<1x32xf32> to vector<8x32xf32>
    %360 = arith.addf %357, %359 : vector<8x32xf32>
    %361 = arith.index_cast %arg0 : i32 to index
    %c0_121 = arith.constant 0 : index
    %362 = memref.load %arg2[%361, %c0_121] : memref<2x8xi32, #tpu.memory_space<smem>>
    %c56_i32 = arith.constant 56 : i32
    %363 = arith.addi %c56_i32, %362 : i32
    %364 = arith.index_cast %363 : i32 to index
    %c0_122 = arith.constant 0 : index
    %365 = vector.load %arg3[%364, %c0_122] : memref<1008x128xf32, #tpu.memory_space<vmem>>, vector<1x32xf32>
    %366 = arith.index_cast %arg0 : i32 to index
    %c1_123 = arith.constant 1 : index
    %367 = memref.load %arg2[%366, %c1_123] : memref<2x8xi32, #tpu.memory_space<smem>>
    %c56_i32_124 = arith.constant 56 : i32
    %368 = arith.addi %c56_i32_124, %367 : i32
    %369 = arith.index_cast %368 : i32 to index
    %c0_125 = arith.constant 0 : index
    %370 = vector.load %arg3[%369, %c0_125] : memref<1008x128xf32, #tpu.memory_space<vmem>>, vector<1x32xf32>
    %371 = arith.index_cast %arg0 : i32 to index
    %c2_126 = arith.constant 2 : index
    %372 = memref.load %arg2[%371, %c2_126] : memref<2x8xi32, #tpu.memory_space<smem>>
    %c56_i32_127 = arith.constant 56 : i32
    %373 = arith.addi %c56_i32_127, %372 : i32
    %374 = arith.index_cast %373 : i32 to index
    %c0_128 = arith.constant 0 : index
    %375 = vector.load %arg3[%374, %c0_128] : memref<1008x128xf32, #tpu.memory_space<vmem>>, vector<1x32xf32>
    %376 = arith.index_cast %arg0 : i32 to index
    %c3_129 = arith.constant 3 : index
    %377 = memref.load %arg2[%376, %c3_129] : memref<2x8xi32, #tpu.memory_space<smem>>
    %c56_i32_130 = arith.constant 56 : i32
    %378 = arith.addi %c56_i32_130, %377 : i32
    %379 = arith.index_cast %378 : i32 to index
    %c0_131 = arith.constant 0 : index
    %380 = vector.load %arg3[%379, %c0_131] : memref<1008x128xf32, #tpu.memory_space<vmem>>, vector<1x32xf32>
    %381 = arith.index_cast %arg0 : i32 to index
    %c4_132 = arith.constant 4 : index
    %382 = memref.load %arg2[%381, %c4_132] : memref<2x8xi32, #tpu.memory_space<smem>>
    %c56_i32_133 = arith.constant 56 : i32
    %383 = arith.addi %c56_i32_133, %382 : i32
    %384 = arith.index_cast %383 : i32 to index
    %c0_134 = arith.constant 0 : index
    %385 = vector.load %arg3[%384, %c0_134] : memref<1008x128xf32, #tpu.memory_space<vmem>>, vector<1x32xf32>
    %386 = arith.index_cast %arg0 : i32 to index
    %c5_135 = arith.constant 5 : index
    %387 = memref.load %arg2[%386, %c5_135] : memref<2x8xi32, #tpu.memory_space<smem>>
    %c56_i32_136 = arith.constant 56 : i32
    %388 = arith.addi %c56_i32_136, %387 : i32
    %389 = arith.index_cast %388 : i32 to index
    %c0_137 = arith.constant 0 : index
    %390 = vector.load %arg3[%389, %c0_137] : memref<1008x128xf32, #tpu.memory_space<vmem>>, vector<1x32xf32>
    %391 = arith.index_cast %arg0 : i32 to index
    %c6_138 = arith.constant 6 : index
    %392 = memref.load %arg2[%391, %c6_138] : memref<2x8xi32, #tpu.memory_space<smem>>
    %c56_i32_139 = arith.constant 56 : i32
    %393 = arith.addi %c56_i32_139, %392 : i32
    %394 = arith.index_cast %393 : i32 to index
    %c0_140 = arith.constant 0 : index
    %395 = vector.load %arg3[%394, %c0_140] : memref<1008x128xf32, #tpu.memory_space<vmem>>, vector<1x32xf32>
    %396 = arith.index_cast %arg0 : i32 to index
    %c7_141 = arith.constant 7 : index
    %397 = memref.load %arg2[%396, %c7_141] : memref<2x8xi32, #tpu.memory_space<smem>>
    %c56_i32_142 = arith.constant 56 : i32
    %398 = arith.addi %c56_i32_142, %397 : i32
    %399 = arith.index_cast %398 : i32 to index
    %c0_143 = arith.constant 0 : index
    %400 = vector.load %arg3[%399, %c0_143] : memref<1008x128xf32, #tpu.memory_space<vmem>>, vector<1x32xf32>
    %401 = tpu.concatenate %365, %370, %375, %380, %385, %390, %395, %400 in 0 : vector<1x32xf32>, vector<1x32xf32>, vector<1x32xf32>, vector<1x32xf32>, vector<1x32xf32>, vector<1x32xf32>, vector<1x32xf32>, vector<1x32xf32> -> vector<8x32xf32>
    %cst_144 = arith.constant 5.65685415 : f32
    %402 = vector.broadcast %cst_144 : f32 to vector<8x32xf32>
    %403 = arith.mulf %401, %402 : vector<8x32xf32>
    %c112_145 = arith.constant 112 : index
    %c0_146 = arith.constant 0 : index
    %404 = vector.load %arg3[%c112_145, %c0_146] : memref<1008x128xf32, #tpu.memory_space<vmem>>, vector<8x32xf32>
    %405 = arith.addf %403, %404 : vector<8x32xf32>
    %cst_147 = arith.constant dense<0.000000e+00> : vector<8xf32>
    %406 = vector.multi_reduction <add>, %405, %cst_147 [1] : vector<8x32xf32> to vector<8xf32>
    %407 = vector.shape_cast %406 : vector<8xf32> to vector<8x1xf32>
    %cst_148 = arith.constant 3.200000e+01 : f32
    %408 = vector.broadcast %cst_148 : f32 to vector<8x1xf32>
    %409 = arith.divf %407, %408 : vector<8x1xf32>
    %410 = vector.broadcast %409 : vector<8x1xf32> to vector<8x32xf32>
    %411 = arith.subf %405, %410 : vector<8x32xf32>
    %412 = arith.mulf %411, %411 : vector<8x32xf32>
    %cst_149 = arith.constant dense<0.000000e+00> : vector<8xf32>
    %413 = vector.multi_reduction <add>, %412, %cst_149 [1] : vector<8x32xf32> to vector<8xf32>
    %414 = vector.shape_cast %413 : vector<8xf32> to vector<8x1xf32>
    %cst_150 = arith.constant 0.0322580636 : f32
    %415 = vector.broadcast %cst_150 : f32 to vector<8x1xf32>
    %416 = arith.mulf %414, %415 : vector<8x1xf32>
    %417 = math.sqrt %416 : vector<8x1xf32>
    %c144 = arith.constant 144 : index
    %c0_151 = arith.constant 0 : index
    %418 = vector.load %arg4[%c144, %c0_151] : memref<368x128xf32, #tpu.memory_space<vmem>>, vector<1x32xf32>
    %419 = vector.broadcast %409 : vector<8x1xf32> to vector<8x32xf32>
    %420 = arith.subf %405, %419 : vector<8x32xf32>
    %421 = vector.broadcast %418 : vector<1x32xf32> to vector<8x32xf32>
    %422 = arith.mulf %421, %420 : vector<8x32xf32>
    %cst_152 = arith.constant 9.99999997E-7 : f32
    %423 = vector.broadcast %cst_152 : f32 to vector<8x1xf32>
    %424 = arith.addf %417, %423 : vector<8x1xf32>
    %425 = vector.broadcast %424 : vector<8x1xf32> to vector<8x32xf32>
    %426 = arith.divf %422, %425 : vector<8x32xf32>
    %c152 = arith.constant 152 : index
    %c0_153 = arith.constant 0 : index
    %427 = vector.load %arg4[%c152, %c0_153] : memref<368x128xf32, #tpu.memory_space<vmem>>, vector<1x32xf32>
    %428 = vector.broadcast %427 : vector<1x32xf32> to vector<8x32xf32>
    %429 = arith.addf %426, %428 : vector<8x32xf32>
    %c496 = arith.constant 496 : index
    %c0_154 = arith.constant 0 : index
    %430 = vector.load %arg3[%c496, %c0_154] : memref<1008x128xf32, #tpu.memory_space<vmem>>, vector<32x96xf32>
    %cst_155 = arith.constant dense<0.000000e+00> : vector<8x96xf32>
    %431 = tpu.matmul %429, %430, %cst_155 {dimension_numbers = #tpu.dot_dimension_numbers<[1], [0], [0], [1], [0, 0, 1, 1], [], []>} : vector<8x32xf32>, vector<32x96xf32>, vector<8x96xf32> -> vector<8x96xf32>
    %c160 = arith.constant 160 : index
    %c0_156 = arith.constant 0 : index
    %432 = vector.load %arg4[%c160, %c0_156] : memref<368x128xf32, #tpu.memory_space<vmem>>, vector<1x96xf32>
    %433 = vector.broadcast %432 : vector<1x96xf32> to vector<8x96xf32>
    %434 = arith.addf %431, %433 : vector<8x96xf32>
    %435 = vector.extract_strided_slice %434 {offsets = [0, 0], sizes = [8, 32], strides = [1, 1]} : vector<8x96xf32> to vector<8x32xf32>
    %436 = vector.extract_strided_slice %434 {offsets = [0, 32], sizes = [8, 32], strides = [1, 1]} : vector<8x96xf32> to vector<8x32xf32>
    %437 = vector.extract_strided_slice %434 {offsets = [0, 64], sizes = [8, 32], strides = [1, 1]} : vector<8x96xf32> to vector<8x32xf32>
    %438 = vector.extract_strided_slice %435 {offsets = [0, 0], sizes = [8, 8], strides = [1, 1]} : vector<8x32xf32> to vector<8x8xf32>
    %439 = vector.extract_strided_slice %436 {offsets = [0, 0], sizes = [8, 8], strides = [1, 1]} : vector<8x32xf32> to vector<8x8xf32>
    %440 = vector.extract_strided_slice %437 {offsets = [0, 0], sizes = [8, 8], strides = [1, 1]} : vector<8x32xf32> to vector<8x8xf32>
    %cst_157 = arith.constant dense<0.000000e+00> : vector<8x8xf32>
    %441 = tpu.matmul %438, %439, %cst_157 {dimension_numbers = #tpu.dot_dimension_numbers<[1], [1], [0], [0], [0, 0, 1, 0], [], []>} : vector<8x8xf32>, vector<8x8xf32>, vector<8x8xf32> -> vector<8x8xf32>
    %442 = arith.addf %441, %11 : vector<8x8xf32>
    %cst_158 = arith.constant dense<0xFF800000> : vector<8xf32>
    %443 = vector.multi_reduction <maximumf>, %442, %cst_158 [1] : vector<8x8xf32> to vector<8xf32>
    %444 = vector.shape_cast %443 : vector<8xf32> to vector<8x1xf32>
    %445 = vector.broadcast %444 : vector<8x1xf32> to vector<8x8xf32>
    %446 = arith.subf %442, %445 : vector<8x8xf32>
    %447 = math.exp %446 : vector<8x8xf32>
    %cst_159 = arith.constant dense<0.000000e+00> : vector<8xf32>
    %448 = vector.multi_reduction <add>, %447, %cst_159 [1] : vector<8x8xf32> to vector<8xf32>
    %449 = vector.shape_cast %448 : vector<8xf32> to vector<8x1xf32>
    %450 = vector.broadcast %449 : vector<8x1xf32> to vector<8x8xf32>
    %451 = arith.divf %447, %450 : vector<8x8xf32>
    %cst_160 = arith.constant dense<0.000000e+00> : vector<8x8xf32>
    %452 = tpu.matmul %451, %440, %cst_160 {dimension_numbers = #tpu.dot_dimension_numbers<[1], [0], [0], [1], [0, 0, 1, 1], [], []>} : vector<8x8xf32>, vector<8x8xf32>, vector<8x8xf32> -> vector<8x8xf32>
    %453 = vector.extract_strided_slice %435 {offsets = [0, 8], sizes = [8, 8], strides = [1, 1]} : vector<8x32xf32> to vector<8x8xf32>
    %454 = vector.extract_strided_slice %436 {offsets = [0, 8], sizes = [8, 8], strides = [1, 1]} : vector<8x32xf32> to vector<8x8xf32>
    %455 = vector.extract_strided_slice %437 {offsets = [0, 8], sizes = [8, 8], strides = [1, 1]} : vector<8x32xf32> to vector<8x8xf32>
    %cst_161 = arith.constant dense<0.000000e+00> : vector<8x8xf32>
    %456 = tpu.matmul %453, %454, %cst_161 {dimension_numbers = #tpu.dot_dimension_numbers<[1], [1], [0], [0], [0, 0, 1, 0], [], []>} : vector<8x8xf32>, vector<8x8xf32>, vector<8x8xf32> -> vector<8x8xf32>
    %457 = arith.addf %456, %11 : vector<8x8xf32>
    %cst_162 = arith.constant dense<0xFF800000> : vector<8xf32>
    %458 = vector.multi_reduction <maximumf>, %457, %cst_162 [1] : vector<8x8xf32> to vector<8xf32>
    %459 = vector.shape_cast %458 : vector<8xf32> to vector<8x1xf32>
    %460 = vector.broadcast %459 : vector<8x1xf32> to vector<8x8xf32>
    %461 = arith.subf %457, %460 : vector<8x8xf32>
    %462 = math.exp %461 : vector<8x8xf32>
    %cst_163 = arith.constant dense<0.000000e+00> : vector<8xf32>
    %463 = vector.multi_reduction <add>, %462, %cst_163 [1] : vector<8x8xf32> to vector<8xf32>
    %464 = vector.shape_cast %463 : vector<8xf32> to vector<8x1xf32>
    %465 = vector.broadcast %464 : vector<8x1xf32> to vector<8x8xf32>
    %466 = arith.divf %462, %465 : vector<8x8xf32>
    %cst_164 = arith.constant dense<0.000000e+00> : vector<8x8xf32>
    %467 = tpu.matmul %466, %455, %cst_164 {dimension_numbers = #tpu.dot_dimension_numbers<[1], [0], [0], [1], [0, 0, 1, 1], [], []>} : vector<8x8xf32>, vector<8x8xf32>, vector<8x8xf32> -> vector<8x8xf32>
    %468 = vector.extract_strided_slice %435 {offsets = [0, 16], sizes = [8, 8], strides = [1, 1]} : vector<8x32xf32> to vector<8x8xf32>
    %469 = vector.extract_strided_slice %436 {offsets = [0, 16], sizes = [8, 8], strides = [1, 1]} : vector<8x32xf32> to vector<8x8xf32>
    %470 = vector.extract_strided_slice %437 {offsets = [0, 16], sizes = [8, 8], strides = [1, 1]} : vector<8x32xf32> to vector<8x8xf32>
    %cst_165 = arith.constant dense<0.000000e+00> : vector<8x8xf32>
    %471 = tpu.matmul %468, %469, %cst_165 {dimension_numbers = #tpu.dot_dimension_numbers<[1], [1], [0], [0], [0, 0, 1, 0], [], []>} : vector<8x8xf32>, vector<8x8xf32>, vector<8x8xf32> -> vector<8x8xf32>
    %472 = arith.addf %471, %11 : vector<8x8xf32>
    %cst_166 = arith.constant dense<0xFF800000> : vector<8xf32>
    %473 = vector.multi_reduction <maximumf>, %472, %cst_166 [1] : vector<8x8xf32> to vector<8xf32>
    %474 = vector.shape_cast %473 : vector<8xf32> to vector<8x1xf32>
    %475 = vector.broadcast %474 : vector<8x1xf32> to vector<8x8xf32>
    %476 = arith.subf %472, %475 : vector<8x8xf32>
    %477 = math.exp %476 : vector<8x8xf32>
    %cst_167 = arith.constant dense<0.000000e+00> : vector<8xf32>
    %478 = vector.multi_reduction <add>, %477, %cst_167 [1] : vector<8x8xf32> to vector<8xf32>
    %479 = vector.shape_cast %478 : vector<8xf32> to vector<8x1xf32>
    %480 = vector.broadcast %479 : vector<8x1xf32> to vector<8x8xf32>
    %481 = arith.divf %477, %480 : vector<8x8xf32>
    %cst_168 = arith.constant dense<0.000000e+00> : vector<8x8xf32>
    %482 = tpu.matmul %481, %470, %cst_168 {dimension_numbers = #tpu.dot_dimension_numbers<[1], [0], [0], [1], [0, 0, 1, 1], [], []>} : vector<8x8xf32>, vector<8x8xf32>, vector<8x8xf32> -> vector<8x8xf32>
    %483 = vector.extract_strided_slice %435 {offsets = [0, 24], sizes = [8, 8], strides = [1, 1]} : vector<8x32xf32> to vector<8x8xf32>
    %484 = vector.extract_strided_slice %436 {offsets = [0, 24], sizes = [8, 8], strides = [1, 1]} : vector<8x32xf32> to vector<8x8xf32>
    %485 = vector.extract_strided_slice %437 {offsets = [0, 24], sizes = [8, 8], strides = [1, 1]} : vector<8x32xf32> to vector<8x8xf32>
    %cst_169 = arith.constant dense<0.000000e+00> : vector<8x8xf32>
    %486 = tpu.matmul %483, %484, %cst_169 {dimension_numbers = #tpu.dot_dimension_numbers<[1], [1], [0], [0], [0, 0, 1, 0], [], []>} : vector<8x8xf32>, vector<8x8xf32>, vector<8x8xf32> -> vector<8x8xf32>
    %487 = arith.addf %486, %11 : vector<8x8xf32>
    %cst_170 = arith.constant dense<0xFF800000> : vector<8xf32>
    %488 = vector.multi_reduction <maximumf>, %487, %cst_170 [1] : vector<8x8xf32> to vector<8xf32>
    %489 = vector.shape_cast %488 : vector<8xf32> to vector<8x1xf32>
    %490 = vector.broadcast %489 : vector<8x1xf32> to vector<8x8xf32>
    %491 = arith.subf %487, %490 : vector<8x8xf32>
    %492 = math.exp %491 : vector<8x8xf32>
    %cst_171 = arith.constant dense<0.000000e+00> : vector<8xf32>
    %493 = vector.multi_reduction <add>, %492, %cst_171 [1] : vector<8x8xf32> to vector<8xf32>
    %494 = vector.shape_cast %493 : vector<8xf32> to vector<8x1xf32>
    %495 = vector.broadcast %494 : vector<8x1xf32> to vector<8x8xf32>
    %496 = arith.divf %492, %495 : vector<8x8xf32>
    %cst_172 = arith.constant dense<0.000000e+00> : vector<8x8xf32>
    %497 = tpu.matmul %496, %485, %cst_172 {dimension_numbers = #tpu.dot_dimension_numbers<[1], [0], [0], [1], [0, 0, 1, 1], [], []>} : vector<8x8xf32>, vector<8x8xf32>, vector<8x8xf32> -> vector<8x8xf32>
    %498 = tpu.concatenate %452, %467, %482, %497 in 1 : vector<8x8xf32>, vector<8x8xf32>, vector<8x8xf32>, vector<8x8xf32> -> vector<8x32xf32>
    %c528 = arith.constant 528 : index
    %c0_173 = arith.constant 0 : index
    %499 = vector.load %arg3[%c528, %c0_173] : memref<1008x128xf32, #tpu.memory_space<vmem>>, vector<32x32xf32>
    %cst_174 = arith.constant dense<0.000000e+00> : vector<8x32xf32>
    %500 = tpu.matmul %498, %499, %cst_174 {dimension_numbers = #tpu.dot_dimension_numbers<[1], [0], [0], [1], [0, 0, 1, 1], [], []>} : vector<8x32xf32>, vector<32x32xf32>, vector<8x32xf32> -> vector<8x32xf32>
    %c168 = arith.constant 168 : index
    %c0_175 = arith.constant 0 : index
    %501 = vector.load %arg4[%c168, %c0_175] : memref<368x128xf32, #tpu.memory_space<vmem>>, vector<1x32xf32>
    %502 = vector.broadcast %501 : vector<1x32xf32> to vector<8x32xf32>
    %503 = arith.addf %500, %502 : vector<8x32xf32>
    %504 = arith.addf %405, %503 : vector<8x32xf32>
    %cst_176 = arith.constant dense<0.000000e+00> : vector<8xf32>
    %505 = vector.multi_reduction <add>, %504, %cst_176 [1] : vector<8x32xf32> to vector<8xf32>
    %506 = vector.shape_cast %505 : vector<8xf32> to vector<8x1xf32>
    %cst_177 = arith.constant 3.200000e+01 : f32
    %507 = vector.broadcast %cst_177 : f32 to vector<8x1xf32>
    %508 = arith.divf %506, %507 : vector<8x1xf32>
    %509 = vector.broadcast %508 : vector<8x1xf32> to vector<8x32xf32>
    %510 = arith.subf %504, %509 : vector<8x32xf32>
    %511 = arith.mulf %510, %510 : vector<8x32xf32>
    %cst_178 = arith.constant dense<0.000000e+00> : vector<8xf32>
    %512 = vector.multi_reduction <add>, %511, %cst_178 [1] : vector<8x32xf32> to vector<8xf32>
    %513 = vector.shape_cast %512 : vector<8xf32> to vector<8x1xf32>
    %cst_179 = arith.constant 0.0322580636 : f32
    %514 = vector.broadcast %cst_179 : f32 to vector<8x1xf32>
    %515 = arith.mulf %513, %514 : vector<8x1xf32>
    %516 = math.sqrt %515 : vector<8x1xf32>
    %c176_180 = arith.constant 176 : index
    %c0_181 = arith.constant 0 : index
    %517 = vector.load %arg4[%c176_180, %c0_181] : memref<368x128xf32, #tpu.memory_space<vmem>>, vector<1x32xf32>
    %518 = vector.broadcast %508 : vector<8x1xf32> to vector<8x32xf32>
    %519 = arith.subf %504, %518 : vector<8x32xf32>
    %520 = vector.broadcast %517 : vector<1x32xf32> to vector<8x32xf32>
    %521 = arith.mulf %520, %519 : vector<8x32xf32>
    %cst_182 = arith.constant 9.99999997E-7 : f32
    %522 = vector.broadcast %cst_182 : f32 to vector<8x1xf32>
    %523 = arith.addf %516, %522 : vector<8x1xf32>
    %524 = vector.broadcast %523 : vector<8x1xf32> to vector<8x32xf32>
    %525 = arith.divf %521, %524 : vector<8x32xf32>
    %c184 = arith.constant 184 : index
    %c0_183 = arith.constant 0 : index
    %526 = vector.load %arg4[%c184, %c0_183] : memref<368x128xf32, #tpu.memory_space<vmem>>, vector<1x32xf32>
    %527 = vector.broadcast %526 : vector<1x32xf32> to vector<8x32xf32>
    %528 = arith.addf %525, %527 : vector<8x32xf32>
    %c560 = arith.constant 560 : index
    %c0_184 = arith.constant 0 : index
    %529 = vector.load %arg3[%c560, %c0_184] : memref<1008x128xf32, #tpu.memory_space<vmem>>, vector<32x32xf32>
    %cst_185 = arith.constant dense<0.000000e+00> : vector<8x32xf32>
    %530 = tpu.matmul %528, %529, %cst_185 {dimension_numbers = #tpu.dot_dimension_numbers<[1], [0], [0], [1], [0, 0, 1, 1], [], []>} : vector<8x32xf32>, vector<32x32xf32>, vector<8x32xf32> -> vector<8x32xf32>
    %c192 = arith.constant 192 : index
    %c0_186 = arith.constant 0 : index
    %531 = vector.load %arg4[%c192, %c0_186] : memref<368x128xf32, #tpu.memory_space<vmem>>, vector<1x32xf32>
    %532 = vector.broadcast %531 : vector<1x32xf32> to vector<8x32xf32>
    %533 = arith.addf %530, %532 : vector<8x32xf32>
    %c592 = arith.constant 592 : index
    %c0_187 = arith.constant 0 : index
    %534 = vector.load %arg3[%c592, %c0_187] : memref<1008x128xf32, #tpu.memory_space<vmem>>, vector<32x64xf32>
    %cst_188 = arith.constant dense<0.000000e+00> : vector<8x64xf32>
    %535 = tpu.matmul %360, %534, %cst_188 {dimension_numbers = #tpu.dot_dimension_numbers<[1], [0], [0], [1], [0, 0, 1, 1], [], []>} : vector<8x32xf32>, vector<32x64xf32>, vector<8x64xf32> -> vector<8x64xf32>
    %c200 = arith.constant 200 : index
    %c0_189 = arith.constant 0 : index
    %536 = vector.load %arg4[%c200, %c0_189] : memref<368x128xf32, #tpu.memory_space<vmem>>, vector<1x64xf32>
    %537 = vector.broadcast %536 : vector<1x64xf32> to vector<8x64xf32>
    %538 = arith.addf %535, %537 : vector<8x64xf32>
    %539 = vector.extract_strided_slice %538 {offsets = [0, 0], sizes = [8, 32], strides = [1, 1]} : vector<8x64xf32> to vector<8x32xf32>
    %540 = vector.extract_strided_slice %538 {offsets = [0, 32], sizes = [8, 32], strides = [1, 1]} : vector<8x64xf32> to vector<8x32xf32>
    %541 = vector.extract_strided_slice %533 {offsets = [0, 0], sizes = [8, 8], strides = [1, 1]} : vector<8x32xf32> to vector<8x8xf32>
    %542 = vector.extract_strided_slice %539 {offsets = [0, 0], sizes = [8, 8], strides = [1, 1]} : vector<8x32xf32> to vector<8x8xf32>
    %543 = vector.extract_strided_slice %540 {offsets = [0, 0], sizes = [8, 8], strides = [1, 1]} : vector<8x32xf32> to vector<8x8xf32>
    %cst_190 = arith.constant dense<0.000000e+00> : vector<8x8xf32>
    %544 = tpu.matmul %541, %542, %cst_190 {dimension_numbers = #tpu.dot_dimension_numbers<[1], [1], [0], [0], [0, 0, 1, 0], [], []>} : vector<8x8xf32>, vector<8x8xf32>, vector<8x8xf32> -> vector<8x8xf32>
    %545 = vector.broadcast %5 : vector<1x8xf32> to vector<8x8xf32>
    %546 = arith.addf %544, %545 : vector<8x8xf32>
    %cst_191 = arith.constant dense<0xFF800000> : vector<8xf32>
    %547 = vector.multi_reduction <maximumf>, %546, %cst_191 [1] : vector<8x8xf32> to vector<8xf32>
    %548 = vector.shape_cast %547 : vector<8xf32> to vector<8x1xf32>
    %549 = vector.broadcast %548 : vector<8x1xf32> to vector<8x8xf32>
    %550 = arith.subf %546, %549 : vector<8x8xf32>
    %551 = math.exp %550 : vector<8x8xf32>
    %cst_192 = arith.constant dense<0.000000e+00> : vector<8xf32>
    %552 = vector.multi_reduction <add>, %551, %cst_192 [1] : vector<8x8xf32> to vector<8xf32>
    %553 = vector.shape_cast %552 : vector<8xf32> to vector<8x1xf32>
    %554 = vector.broadcast %553 : vector<8x1xf32> to vector<8x8xf32>
    %555 = arith.divf %551, %554 : vector<8x8xf32>
    %cst_193 = arith.constant dense<0.000000e+00> : vector<8x8xf32>
    %556 = tpu.matmul %555, %543, %cst_193 {dimension_numbers = #tpu.dot_dimension_numbers<[1], [0], [0], [1], [0, 0, 1, 1], [], []>} : vector<8x8xf32>, vector<8x8xf32>, vector<8x8xf32> -> vector<8x8xf32>
    %557 = vector.extract_strided_slice %533 {offsets = [0, 8], sizes = [8, 8], strides = [1, 1]} : vector<8x32xf32> to vector<8x8xf32>
    %558 = vector.extract_strided_slice %539 {offsets = [0, 8], sizes = [8, 8], strides = [1, 1]} : vector<8x32xf32> to vector<8x8xf32>
    %559 = vector.extract_strided_slice %540 {offsets = [0, 8], sizes = [8, 8], strides = [1, 1]} : vector<8x32xf32> to vector<8x8xf32>
    %cst_194 = arith.constant dense<0.000000e+00> : vector<8x8xf32>
    %560 = tpu.matmul %557, %558, %cst_194 {dimension_numbers = #tpu.dot_dimension_numbers<[1], [1], [0], [0], [0, 0, 1, 0], [], []>} : vector<8x8xf32>, vector<8x8xf32>, vector<8x8xf32> -> vector<8x8xf32>
    %561 = vector.broadcast %5 : vector<1x8xf32> to vector<8x8xf32>
    %562 = arith.addf %560, %561 : vector<8x8xf32>
    %cst_195 = arith.constant dense<0xFF800000> : vector<8xf32>
    %563 = vector.multi_reduction <maximumf>, %562, %cst_195 [1] : vector<8x8xf32> to vector<8xf32>
    %564 = vector.shape_cast %563 : vector<8xf32> to vector<8x1xf32>
    %565 = vector.broadcast %564 : vector<8x1xf32> to vector<8x8xf32>
    %566 = arith.subf %562, %565 : vector<8x8xf32>
    %567 = math.exp %566 : vector<8x8xf32>
    %cst_196 = arith.constant dense<0.000000e+00> : vector<8xf32>
    %568 = vector.multi_reduction <add>, %567, %cst_196 [1] : vector<8x8xf32> to vector<8xf32>
    %569 = vector.shape_cast %568 : vector<8xf32> to vector<8x1xf32>
    %570 = vector.broadcast %569 : vector<8x1xf32> to vector<8x8xf32>
    %571 = arith.divf %567, %570 : vector<8x8xf32>
    %cst_197 = arith.constant dense<0.000000e+00> : vector<8x8xf32>
    %572 = tpu.matmul %571, %559, %cst_197 {dimension_numbers = #tpu.dot_dimension_numbers<[1], [0], [0], [1], [0, 0, 1, 1], [], []>} : vector<8x8xf32>, vector<8x8xf32>, vector<8x8xf32> -> vector<8x8xf32>
    %573 = vector.extract_strided_slice %533 {offsets = [0, 16], sizes = [8, 8], strides = [1, 1]} : vector<8x32xf32> to vector<8x8xf32>
    %574 = vector.extract_strided_slice %539 {offsets = [0, 16], sizes = [8, 8], strides = [1, 1]} : vector<8x32xf32> to vector<8x8xf32>
    %575 = vector.extract_strided_slice %540 {offsets = [0, 16], sizes = [8, 8], strides = [1, 1]} : vector<8x32xf32> to vector<8x8xf32>
    %cst_198 = arith.constant dense<0.000000e+00> : vector<8x8xf32>
    %576 = tpu.matmul %573, %574, %cst_198 {dimension_numbers = #tpu.dot_dimension_numbers<[1], [1], [0], [0], [0, 0, 1, 0], [], []>} : vector<8x8xf32>, vector<8x8xf32>, vector<8x8xf32> -> vector<8x8xf32>
    %577 = vector.broadcast %5 : vector<1x8xf32> to vector<8x8xf32>
    %578 = arith.addf %576, %577 : vector<8x8xf32>
    %cst_199 = arith.constant dense<0xFF800000> : vector<8xf32>
    %579 = vector.multi_reduction <maximumf>, %578, %cst_199 [1] : vector<8x8xf32> to vector<8xf32>
    %580 = vector.shape_cast %579 : vector<8xf32> to vector<8x1xf32>
    %581 = vector.broadcast %580 : vector<8x1xf32> to vector<8x8xf32>
    %582 = arith.subf %578, %581 : vector<8x8xf32>
    %583 = math.exp %582 : vector<8x8xf32>
    %cst_200 = arith.constant dense<0.000000e+00> : vector<8xf32>
    %584 = vector.multi_reduction <add>, %583, %cst_200 [1] : vector<8x8xf32> to vector<8xf32>
    %585 = vector.shape_cast %584 : vector<8xf32> to vector<8x1xf32>
    %586 = vector.broadcast %585 : vector<8x1xf32> to vector<8x8xf32>
    %587 = arith.divf %583, %586 : vector<8x8xf32>
    %cst_201 = arith.constant dense<0.000000e+00> : vector<8x8xf32>
    %588 = tpu.matmul %587, %575, %cst_201 {dimension_numbers = #tpu.dot_dimension_numbers<[1], [0], [0], [1], [0, 0, 1, 1], [], []>} : vector<8x8xf32>, vector<8x8xf32>, vector<8x8xf32> -> vector<8x8xf32>
    %589 = vector.extract_strided_slice %533 {offsets = [0, 24], sizes = [8, 8], strides = [1, 1]} : vector<8x32xf32> to vector<8x8xf32>
    %590 = vector.extract_strided_slice %539 {offsets = [0, 24], sizes = [8, 8], strides = [1, 1]} : vector<8x32xf32> to vector<8x8xf32>
    %591 = vector.extract_strided_slice %540 {offsets = [0, 24], sizes = [8, 8], strides = [1, 1]} : vector<8x32xf32> to vector<8x8xf32>
    %cst_202 = arith.constant dense<0.000000e+00> : vector<8x8xf32>
    %592 = tpu.matmul %589, %590, %cst_202 {dimension_numbers = #tpu.dot_dimension_numbers<[1], [1], [0], [0], [0, 0, 1, 0], [], []>} : vector<8x8xf32>, vector<8x8xf32>, vector<8x8xf32> -> vector<8x8xf32>
    %593 = vector.broadcast %5 : vector<1x8xf32> to vector<8x8xf32>
    %594 = arith.addf %592, %593 : vector<8x8xf32>
    %cst_203 = arith.constant dense<0xFF800000> : vector<8xf32>
    %595 = vector.multi_reduction <maximumf>, %594, %cst_203 [1] : vector<8x8xf32> to vector<8xf32>
    %596 = vector.shape_cast %595 : vector<8xf32> to vector<8x1xf32>
    %597 = vector.broadcast %596 : vector<8x1xf32> to vector<8x8xf32>
    %598 = arith.subf %594, %597 : vector<8x8xf32>
    %599 = math.exp %598 : vector<8x8xf32>
    %cst_204 = arith.constant dense<0.000000e+00> : vector<8xf32>
    %600 = vector.multi_reduction <add>, %599, %cst_204 [1] : vector<8x8xf32> to vector<8xf32>
    %601 = vector.shape_cast %600 : vector<8xf32> to vector<8x1xf32>
    %602 = vector.broadcast %601 : vector<8x1xf32> to vector<8x8xf32>
    %603 = arith.divf %599, %602 : vector<8x8xf32>
    %cst_205 = arith.constant dense<0.000000e+00> : vector<8x8xf32>
    %604 = tpu.matmul %603, %591, %cst_205 {dimension_numbers = #tpu.dot_dimension_numbers<[1], [0], [0], [1], [0, 0, 1, 1], [], []>} : vector<8x8xf32>, vector<8x8xf32>, vector<8x8xf32> -> vector<8x8xf32>
    %605 = tpu.concatenate %556, %572, %588, %604 in 1 : vector<8x8xf32>, vector<8x8xf32>, vector<8x8xf32>, vector<8x8xf32> -> vector<8x32xf32>
    %c624 = arith.constant 624 : index
    %c0_206 = arith.constant 0 : index
    %606 = vector.load %arg3[%c624, %c0_206] : memref<1008x128xf32, #tpu.memory_space<vmem>>, vector<32x32xf32>
    %cst_207 = arith.constant dense<0.000000e+00> : vector<8x32xf32>
    %607 = tpu.matmul %605, %606, %cst_207 {dimension_numbers = #tpu.dot_dimension_numbers<[1], [0], [0], [1], [0, 0, 1, 1], [], []>} : vector<8x32xf32>, vector<32x32xf32>, vector<8x32xf32> -> vector<8x32xf32>
    %c208_208 = arith.constant 208 : index
    %c0_209 = arith.constant 0 : index
    %608 = vector.load %arg4[%c208_208, %c0_209] : memref<368x128xf32, #tpu.memory_space<vmem>>, vector<1x32xf32>
    %609 = vector.broadcast %608 : vector<1x32xf32> to vector<8x32xf32>
    %610 = arith.addf %607, %609 : vector<8x32xf32>
    %611 = arith.addf %504, %610 : vector<8x32xf32>
    %cst_210 = arith.constant dense<0.000000e+00> : vector<8xf32>
    %612 = vector.multi_reduction <add>, %611, %cst_210 [1] : vector<8x32xf32> to vector<8xf32>
    %613 = vector.shape_cast %612 : vector<8xf32> to vector<8x1xf32>
    %cst_211 = arith.constant 3.200000e+01 : f32
    %614 = vector.broadcast %cst_211 : f32 to vector<8x1xf32>
    %615 = arith.divf %613, %614 : vector<8x1xf32>
    %616 = vector.broadcast %615 : vector<8x1xf32> to vector<8x32xf32>
    %617 = arith.subf %611, %616 : vector<8x32xf32>
    %618 = arith.mulf %617, %617 : vector<8x32xf32>
    %cst_212 = arith.constant dense<0.000000e+00> : vector<8xf32>
    %619 = vector.multi_reduction <add>, %618, %cst_212 [1] : vector<8x32xf32> to vector<8xf32>
    %620 = vector.shape_cast %619 : vector<8xf32> to vector<8x1xf32>
    %cst_213 = arith.constant 0.0322580636 : f32
    %621 = vector.broadcast %cst_213 : f32 to vector<8x1xf32>
    %622 = arith.mulf %620, %621 : vector<8x1xf32>
    %623 = math.sqrt %622 : vector<8x1xf32>
    %c216 = arith.constant 216 : index
    %c0_214 = arith.constant 0 : index
    %624 = vector.load %arg4[%c216, %c0_214] : memref<368x128xf32, #tpu.memory_space<vmem>>, vector<1x32xf32>
    %625 = vector.broadcast %615 : vector<8x1xf32> to vector<8x32xf32>
    %626 = arith.subf %611, %625 : vector<8x32xf32>
    %627 = vector.broadcast %624 : vector<1x32xf32> to vector<8x32xf32>
    %628 = arith.mulf %627, %626 : vector<8x32xf32>
    %cst_215 = arith.constant 9.99999997E-7 : f32
    %629 = vector.broadcast %cst_215 : f32 to vector<8x1xf32>
    %630 = arith.addf %623, %629 : vector<8x1xf32>
    %631 = vector.broadcast %630 : vector<8x1xf32> to vector<8x32xf32>
    %632 = arith.divf %628, %631 : vector<8x32xf32>
    %c224 = arith.constant 224 : index
    %c0_216 = arith.constant 0 : index
    %633 = vector.load %arg4[%c224, %c0_216] : memref<368x128xf32, #tpu.memory_space<vmem>>, vector<1x32xf32>
    %634 = vector.broadcast %633 : vector<1x32xf32> to vector<8x32xf32>
    %635 = arith.addf %632, %634 : vector<8x32xf32>
    %c656 = arith.constant 656 : index
    %c0_217 = arith.constant 0 : index
    %636 = vector.load %arg3[%c656, %c0_217] : memref<1008x128xf32, #tpu.memory_space<vmem>>, vector<32x64xf32>
    %cst_218 = arith.constant dense<0.000000e+00> : vector<8x64xf32>
    %637 = tpu.matmul %635, %636, %cst_218 {dimension_numbers = #tpu.dot_dimension_numbers<[1], [0], [0], [1], [0, 0, 1, 1], [], []>} : vector<8x32xf32>, vector<32x64xf32>, vector<8x64xf32> -> vector<8x64xf32>
    %c232 = arith.constant 232 : index
    %c0_219 = arith.constant 0 : index
    %638 = vector.load %arg4[%c232, %c0_219] : memref<368x128xf32, #tpu.memory_space<vmem>>, vector<1x64xf32>
    %639 = vector.broadcast %638 : vector<1x64xf32> to vector<8x64xf32>
    %640 = arith.addf %637, %639 : vector<8x64xf32>
    %cst_220 = arith.constant 0.000000e+00 : f32
    %641 = vector.broadcast %cst_220 : f32 to vector<8x64xf32>
    %642 = arith.maximumf %640, %641 : vector<8x64xf32>
    %c688 = arith.constant 688 : index
    %c0_221 = arith.constant 0 : index
    %643 = vector.load %arg3[%c688, %c0_221] : memref<1008x128xf32, #tpu.memory_space<vmem>>, vector<64x32xf32>
    %cst_222 = arith.constant dense<0.000000e+00> : vector<8x32xf32>
    %644 = tpu.matmul %642, %643, %cst_222 {dimension_numbers = #tpu.dot_dimension_numbers<[1], [0], [0], [1], [0, 0, 1, 1], [], []>} : vector<8x64xf32>, vector<64x32xf32>, vector<8x32xf32> -> vector<8x32xf32>
    %c240_223 = arith.constant 240 : index
    %c0_224 = arith.constant 0 : index
    %645 = vector.load %arg4[%c240_223, %c0_224] : memref<368x128xf32, #tpu.memory_space<vmem>>, vector<1x32xf32>
    %646 = vector.broadcast %645 : vector<1x32xf32> to vector<8x32xf32>
    %647 = arith.addf %644, %646 : vector<8x32xf32>
    %648 = arith.addf %611, %647 : vector<8x32xf32>
    %cst_225 = arith.constant dense<0.000000e+00> : vector<8xf32>
    %649 = vector.multi_reduction <add>, %648, %cst_225 [1] : vector<8x32xf32> to vector<8xf32>
    %650 = vector.shape_cast %649 : vector<8xf32> to vector<8x1xf32>
    %cst_226 = arith.constant 3.200000e+01 : f32
    %651 = vector.broadcast %cst_226 : f32 to vector<8x1xf32>
    %652 = arith.divf %650, %651 : vector<8x1xf32>
    %653 = vector.broadcast %652 : vector<8x1xf32> to vector<8x32xf32>
    %654 = arith.subf %648, %653 : vector<8x32xf32>
    %655 = arith.mulf %654, %654 : vector<8x32xf32>
    %cst_227 = arith.constant dense<0.000000e+00> : vector<8xf32>
    %656 = vector.multi_reduction <add>, %655, %cst_227 [1] : vector<8x32xf32> to vector<8xf32>
    %657 = vector.shape_cast %656 : vector<8xf32> to vector<8x1xf32>
    %cst_228 = arith.constant 0.0322580636 : f32
    %658 = vector.broadcast %cst_228 : f32 to vector<8x1xf32>
    %659 = arith.mulf %657, %658 : vector<8x1xf32>
    %660 = math.sqrt %659 : vector<8x1xf32>
    %c248 = arith.constant 248 : index
    %c0_229 = arith.constant 0 : index
    %661 = vector.load %arg4[%c248, %c0_229] : memref<368x128xf32, #tpu.memory_space<vmem>>, vector<1x32xf32>
    %662 = vector.broadcast %652 : vector<8x1xf32> to vector<8x32xf32>
    %663 = arith.subf %648, %662 : vector<8x32xf32>
    %664 = vector.broadcast %661 : vector<1x32xf32> to vector<8x32xf32>
    %665 = arith.mulf %664, %663 : vector<8x32xf32>
    %cst_230 = arith.constant 9.99999997E-7 : f32
    %666 = vector.broadcast %cst_230 : f32 to vector<8x1xf32>
    %667 = arith.addf %660, %666 : vector<8x1xf32>
    %668 = vector.broadcast %667 : vector<8x1xf32> to vector<8x32xf32>
    %669 = arith.divf %665, %668 : vector<8x32xf32>
    %c256 = arith.constant 256 : index
    %c0_231 = arith.constant 0 : index
    %670 = vector.load %arg4[%c256, %c0_231] : memref<368x128xf32, #tpu.memory_space<vmem>>, vector<1x32xf32>
    %671 = vector.broadcast %670 : vector<1x32xf32> to vector<8x32xf32>
    %672 = arith.addf %669, %671 : vector<8x32xf32>
    %c752 = arith.constant 752 : index
    %c0_232 = arith.constant 0 : index
    %673 = vector.load %arg3[%c752, %c0_232] : memref<1008x128xf32, #tpu.memory_space<vmem>>, vector<32x96xf32>
    %cst_233 = arith.constant dense<0.000000e+00> : vector<8x96xf32>
    %674 = tpu.matmul %672, %673, %cst_233 {dimension_numbers = #tpu.dot_dimension_numbers<[1], [0], [0], [1], [0, 0, 1, 1], [], []>} : vector<8x32xf32>, vector<32x96xf32>, vector<8x96xf32> -> vector<8x96xf32>
    %c264 = arith.constant 264 : index
    %c0_234 = arith.constant 0 : index
    %675 = vector.load %arg4[%c264, %c0_234] : memref<368x128xf32, #tpu.memory_space<vmem>>, vector<1x96xf32>
    %676 = vector.broadcast %675 : vector<1x96xf32> to vector<8x96xf32>
    %677 = arith.addf %674, %676 : vector<8x96xf32>
    %678 = vector.extract_strided_slice %677 {offsets = [0, 0], sizes = [8, 32], strides = [1, 1]} : vector<8x96xf32> to vector<8x32xf32>
    %679 = vector.extract_strided_slice %677 {offsets = [0, 32], sizes = [8, 32], strides = [1, 1]} : vector<8x96xf32> to vector<8x32xf32>
    %680 = vector.extract_strided_slice %677 {offsets = [0, 64], sizes = [8, 32], strides = [1, 1]} : vector<8x96xf32> to vector<8x32xf32>
    %681 = vector.extract_strided_slice %678 {offsets = [0, 0], sizes = [8, 8], strides = [1, 1]} : vector<8x32xf32> to vector<8x8xf32>
    %682 = vector.extract_strided_slice %679 {offsets = [0, 0], sizes = [8, 8], strides = [1, 1]} : vector<8x32xf32> to vector<8x8xf32>
    %683 = vector.extract_strided_slice %680 {offsets = [0, 0], sizes = [8, 8], strides = [1, 1]} : vector<8x32xf32> to vector<8x8xf32>
    %cst_235 = arith.constant dense<0.000000e+00> : vector<8x8xf32>
    %684 = tpu.matmul %681, %682, %cst_235 {dimension_numbers = #tpu.dot_dimension_numbers<[1], [1], [0], [0], [0, 0, 1, 0], [], []>} : vector<8x8xf32>, vector<8x8xf32>, vector<8x8xf32> -> vector<8x8xf32>
    %685 = arith.addf %684, %11 : vector<8x8xf32>
    %cst_236 = arith.constant dense<0xFF800000> : vector<8xf32>
    %686 = vector.multi_reduction <maximumf>, %685, %cst_236 [1] : vector<8x8xf32> to vector<8xf32>
    %687 = vector.shape_cast %686 : vector<8xf32> to vector<8x1xf32>
    %688 = vector.broadcast %687 : vector<8x1xf32> to vector<8x8xf32>
    %689 = arith.subf %685, %688 : vector<8x8xf32>
    %690 = math.exp %689 : vector<8x8xf32>
    %cst_237 = arith.constant dense<0.000000e+00> : vector<8xf32>
    %691 = vector.multi_reduction <add>, %690, %cst_237 [1] : vector<8x8xf32> to vector<8xf32>
    %692 = vector.shape_cast %691 : vector<8xf32> to vector<8x1xf32>
    %693 = vector.broadcast %692 : vector<8x1xf32> to vector<8x8xf32>
    %694 = arith.divf %690, %693 : vector<8x8xf32>
    %cst_238 = arith.constant dense<0.000000e+00> : vector<8x8xf32>
    %695 = tpu.matmul %694, %683, %cst_238 {dimension_numbers = #tpu.dot_dimension_numbers<[1], [0], [0], [1], [0, 0, 1, 1], [], []>} : vector<8x8xf32>, vector<8x8xf32>, vector<8x8xf32> -> vector<8x8xf32>
    %696 = vector.extract_strided_slice %678 {offsets = [0, 8], sizes = [8, 8], strides = [1, 1]} : vector<8x32xf32> to vector<8x8xf32>
    %697 = vector.extract_strided_slice %679 {offsets = [0, 8], sizes = [8, 8], strides = [1, 1]} : vector<8x32xf32> to vector<8x8xf32>
    %698 = vector.extract_strided_slice %680 {offsets = [0, 8], sizes = [8, 8], strides = [1, 1]} : vector<8x32xf32> to vector<8x8xf32>
    %cst_239 = arith.constant dense<0.000000e+00> : vector<8x8xf32>
    %699 = tpu.matmul %696, %697, %cst_239 {dimension_numbers = #tpu.dot_dimension_numbers<[1], [1], [0], [0], [0, 0, 1, 0], [], []>} : vector<8x8xf32>, vector<8x8xf32>, vector<8x8xf32> -> vector<8x8xf32>
    %700 = arith.addf %699, %11 : vector<8x8xf32>
    %cst_240 = arith.constant dense<0xFF800000> : vector<8xf32>
    %701 = vector.multi_reduction <maximumf>, %700, %cst_240 [1] : vector<8x8xf32> to vector<8xf32>
    %702 = vector.shape_cast %701 : vector<8xf32> to vector<8x1xf32>
    %703 = vector.broadcast %702 : vector<8x1xf32> to vector<8x8xf32>
    %704 = arith.subf %700, %703 : vector<8x8xf32>
    %705 = math.exp %704 : vector<8x8xf32>
    %cst_241 = arith.constant dense<0.000000e+00> : vector<8xf32>
    %706 = vector.multi_reduction <add>, %705, %cst_241 [1] : vector<8x8xf32> to vector<8xf32>
    %707 = vector.shape_cast %706 : vector<8xf32> to vector<8x1xf32>
    %708 = vector.broadcast %707 : vector<8x1xf32> to vector<8x8xf32>
    %709 = arith.divf %705, %708 : vector<8x8xf32>
    %cst_242 = arith.constant dense<0.000000e+00> : vector<8x8xf32>
    %710 = tpu.matmul %709, %698, %cst_242 {dimension_numbers = #tpu.dot_dimension_numbers<[1], [0], [0], [1], [0, 0, 1, 1], [], []>} : vector<8x8xf32>, vector<8x8xf32>, vector<8x8xf32> -> vector<8x8xf32>
    %711 = vector.extract_strided_slice %678 {offsets = [0, 16], sizes = [8, 8], strides = [1, 1]} : vector<8x32xf32> to vector<8x8xf32>
    %712 = vector.extract_strided_slice %679 {offsets = [0, 16], sizes = [8, 8], strides = [1, 1]} : vector<8x32xf32> to vector<8x8xf32>
    %713 = vector.extract_strided_slice %680 {offsets = [0, 16], sizes = [8, 8], strides = [1, 1]} : vector<8x32xf32> to vector<8x8xf32>
    %cst_243 = arith.constant dense<0.000000e+00> : vector<8x8xf32>
    %714 = tpu.matmul %711, %712, %cst_243 {dimension_numbers = #tpu.dot_dimension_numbers<[1], [1], [0], [0], [0, 0, 1, 0], [], []>} : vector<8x8xf32>, vector<8x8xf32>, vector<8x8xf32> -> vector<8x8xf32>
    %715 = arith.addf %714, %11 : vector<8x8xf32>
    %cst_244 = arith.constant dense<0xFF800000> : vector<8xf32>
    %716 = vector.multi_reduction <maximumf>, %715, %cst_244 [1] : vector<8x8xf32> to vector<8xf32>
    %717 = vector.shape_cast %716 : vector<8xf32> to vector<8x1xf32>
    %718 = vector.broadcast %717 : vector<8x1xf32> to vector<8x8xf32>
    %719 = arith.subf %715, %718 : vector<8x8xf32>
    %720 = math.exp %719 : vector<8x8xf32>
    %cst_245 = arith.constant dense<0.000000e+00> : vector<8xf32>
    %721 = vector.multi_reduction <add>, %720, %cst_245 [1] : vector<8x8xf32> to vector<8xf32>
    %722 = vector.shape_cast %721 : vector<8xf32> to vector<8x1xf32>
    %723 = vector.broadcast %722 : vector<8x1xf32> to vector<8x8xf32>
    %724 = arith.divf %720, %723 : vector<8x8xf32>
    %cst_246 = arith.constant dense<0.000000e+00> : vector<8x8xf32>
    %725 = tpu.matmul %724, %713, %cst_246 {dimension_numbers = #tpu.dot_dimension_numbers<[1], [0], [0], [1], [0, 0, 1, 1], [], []>} : vector<8x8xf32>, vector<8x8xf32>, vector<8x8xf32> -> vector<8x8xf32>
    %726 = vector.extract_strided_slice %678 {offsets = [0, 24], sizes = [8, 8], strides = [1, 1]} : vector<8x32xf32> to vector<8x8xf32>
    %727 = vector.extract_strided_slice %679 {offsets = [0, 24], sizes = [8, 8], strides = [1, 1]} : vector<8x32xf32> to vector<8x8xf32>
    %728 = vector.extract_strided_slice %680 {offsets = [0, 24], sizes = [8, 8], strides = [1, 1]} : vector<8x32xf32> to vector<8x8xf32>
    %cst_247 = arith.constant dense<0.000000e+00> : vector<8x8xf32>
    %729 = tpu.matmul %726, %727, %cst_247 {dimension_numbers = #tpu.dot_dimension_numbers<[1], [1], [0], [0], [0, 0, 1, 0], [], []>} : vector<8x8xf32>, vector<8x8xf32>, vector<8x8xf32> -> vector<8x8xf32>
    %730 = arith.addf %729, %11 : vector<8x8xf32>
    %cst_248 = arith.constant dense<0xFF800000> : vector<8xf32>
    %731 = vector.multi_reduction <maximumf>, %730, %cst_248 [1] : vector<8x8xf32> to vector<8xf32>
    %732 = vector.shape_cast %731 : vector<8xf32> to vector<8x1xf32>
    %733 = vector.broadcast %732 : vector<8x1xf32> to vector<8x8xf32>
    %734 = arith.subf %730, %733 : vector<8x8xf32>
    %735 = math.exp %734 : vector<8x8xf32>
    %cst_249 = arith.constant dense<0.000000e+00> : vector<8xf32>
    %736 = vector.multi_reduction <add>, %735, %cst_249 [1] : vector<8x8xf32> to vector<8xf32>
    %737 = vector.shape_cast %736 : vector<8xf32> to vector<8x1xf32>
    %738 = vector.broadcast %737 : vector<8x1xf32> to vector<8x8xf32>
    %739 = arith.divf %735, %738 : vector<8x8xf32>
    %cst_250 = arith.constant dense<0.000000e+00> : vector<8x8xf32>
    %740 = tpu.matmul %739, %728, %cst_250 {dimension_numbers = #tpu.dot_dimension_numbers<[1], [0], [0], [1], [0, 0, 1, 1], [], []>} : vector<8x8xf32>, vector<8x8xf32>, vector<8x8xf32> -> vector<8x8xf32>
    %741 = tpu.concatenate %695, %710, %725, %740 in 1 : vector<8x8xf32>, vector<8x8xf32>, vector<8x8xf32>, vector<8x8xf32> -> vector<8x32xf32>
    %c784 = arith.constant 784 : index
    %c0_251 = arith.constant 0 : index
    %742 = vector.load %arg3[%c784, %c0_251] : memref<1008x128xf32, #tpu.memory_space<vmem>>, vector<32x32xf32>
    %cst_252 = arith.constant dense<0.000000e+00> : vector<8x32xf32>
    %743 = tpu.matmul %741, %742, %cst_252 {dimension_numbers = #tpu.dot_dimension_numbers<[1], [0], [0], [1], [0, 0, 1, 1], [], []>} : vector<8x32xf32>, vector<32x32xf32>, vector<8x32xf32> -> vector<8x32xf32>
    %c272_253 = arith.constant 272 : index
    %c0_254 = arith.constant 0 : index
    %744 = vector.load %arg4[%c272_253, %c0_254] : memref<368x128xf32, #tpu.memory_space<vmem>>, vector<1x32xf32>
    %745 = vector.broadcast %744 : vector<1x32xf32> to vector<8x32xf32>
    %746 = arith.addf %743, %745 : vector<8x32xf32>
    %747 = arith.addf %648, %746 : vector<8x32xf32>
    %cst_255 = arith.constant dense<0.000000e+00> : vector<8xf32>
    %748 = vector.multi_reduction <add>, %747, %cst_255 [1] : vector<8x32xf32> to vector<8xf32>
    %749 = vector.shape_cast %748 : vector<8xf32> to vector<8x1xf32>
    %cst_256 = arith.constant 3.200000e+01 : f32
    %750 = vector.broadcast %cst_256 : f32 to vector<8x1xf32>
    %751 = arith.divf %749, %750 : vector<8x1xf32>
    %752 = vector.broadcast %751 : vector<8x1xf32> to vector<8x32xf32>
    %753 = arith.subf %747, %752 : vector<8x32xf32>
    %754 = arith.mulf %753, %753 : vector<8x32xf32>
    %cst_257 = arith.constant dense<0.000000e+00> : vector<8xf32>
    %755 = vector.multi_reduction <add>, %754, %cst_257 [1] : vector<8x32xf32> to vector<8xf32>
    %756 = vector.shape_cast %755 : vector<8xf32> to vector<8x1xf32>
    %cst_258 = arith.constant 0.0322580636 : f32
    %757 = vector.broadcast %cst_258 : f32 to vector<8x1xf32>
    %758 = arith.mulf %756, %757 : vector<8x1xf32>
    %759 = math.sqrt %758 : vector<8x1xf32>
    %c280 = arith.constant 280 : index
    %c0_259 = arith.constant 0 : index
    %760 = vector.load %arg4[%c280, %c0_259] : memref<368x128xf32, #tpu.memory_space<vmem>>, vector<1x32xf32>
    %761 = vector.broadcast %751 : vector<8x1xf32> to vector<8x32xf32>
    %762 = arith.subf %747, %761 : vector<8x32xf32>
    %763 = vector.broadcast %760 : vector<1x32xf32> to vector<8x32xf32>
    %764 = arith.mulf %763, %762 : vector<8x32xf32>
    %cst_260 = arith.constant 9.99999997E-7 : f32
    %765 = vector.broadcast %cst_260 : f32 to vector<8x1xf32>
    %766 = arith.addf %759, %765 : vector<8x1xf32>
    %767 = vector.broadcast %766 : vector<8x1xf32> to vector<8x32xf32>
    %768 = arith.divf %764, %767 : vector<8x32xf32>
    %c288 = arith.constant 288 : index
    %c0_261 = arith.constant 0 : index
    %769 = vector.load %arg4[%c288, %c0_261] : memref<368x128xf32, #tpu.memory_space<vmem>>, vector<1x32xf32>
    %770 = vector.broadcast %769 : vector<1x32xf32> to vector<8x32xf32>
    %771 = arith.addf %768, %770 : vector<8x32xf32>
    %c816 = arith.constant 816 : index
    %c0_262 = arith.constant 0 : index
    %772 = vector.load %arg3[%c816, %c0_262] : memref<1008x128xf32, #tpu.memory_space<vmem>>, vector<32x32xf32>
    %cst_263 = arith.constant dense<0.000000e+00> : vector<8x32xf32>
    %773 = tpu.matmul %771, %772, %cst_263 {dimension_numbers = #tpu.dot_dimension_numbers<[1], [0], [0], [1], [0, 0, 1, 1], [], []>} : vector<8x32xf32>, vector<32x32xf32>, vector<8x32xf32> -> vector<8x32xf32>
    %c296 = arith.constant 296 : index
    %c0_264 = arith.constant 0 : index
    %774 = vector.load %arg4[%c296, %c0_264] : memref<368x128xf32, #tpu.memory_space<vmem>>, vector<1x32xf32>
    %775 = vector.broadcast %774 : vector<1x32xf32> to vector<8x32xf32>
    %776 = arith.addf %773, %775 : vector<8x32xf32>
    %c848 = arith.constant 848 : index
    %c0_265 = arith.constant 0 : index
    %777 = vector.load %arg3[%c848, %c0_265] : memref<1008x128xf32, #tpu.memory_space<vmem>>, vector<32x64xf32>
    %cst_266 = arith.constant dense<0.000000e+00> : vector<8x64xf32>
    %778 = tpu.matmul %360, %777, %cst_266 {dimension_numbers = #tpu.dot_dimension_numbers<[1], [0], [0], [1], [0, 0, 1, 1], [], []>} : vector<8x32xf32>, vector<32x64xf32>, vector<8x64xf32> -> vector<8x64xf32>
    %c304 = arith.constant 304 : index
    %c0_267 = arith.constant 0 : index
    %779 = vector.load %arg4[%c304, %c0_267] : memref<368x128xf32, #tpu.memory_space<vmem>>, vector<1x64xf32>
    %780 = vector.broadcast %779 : vector<1x64xf32> to vector<8x64xf32>
    %781 = arith.addf %778, %780 : vector<8x64xf32>
    %782 = vector.extract_strided_slice %781 {offsets = [0, 0], sizes = [8, 32], strides = [1, 1]} : vector<8x64xf32> to vector<8x32xf32>
    %783 = vector.extract_strided_slice %781 {offsets = [0, 32], sizes = [8, 32], strides = [1, 1]} : vector<8x64xf32> to vector<8x32xf32>
    %784 = vector.extract_strided_slice %776 {offsets = [0, 0], sizes = [8, 8], strides = [1, 1]} : vector<8x32xf32> to vector<8x8xf32>
    %785 = vector.extract_strided_slice %782 {offsets = [0, 0], sizes = [8, 8], strides = [1, 1]} : vector<8x32xf32> to vector<8x8xf32>
    %786 = vector.extract_strided_slice %783 {offsets = [0, 0], sizes = [8, 8], strides = [1, 1]} : vector<8x32xf32> to vector<8x8xf32>
    %cst_268 = arith.constant dense<0.000000e+00> : vector<8x8xf32>
    %787 = tpu.matmul %784, %785, %cst_268 {dimension_numbers = #tpu.dot_dimension_numbers<[1], [1], [0], [0], [0, 0, 1, 0], [], []>} : vector<8x8xf32>, vector<8x8xf32>, vector<8x8xf32> -> vector<8x8xf32>
    %788 = vector.broadcast %5 : vector<1x8xf32> to vector<8x8xf32>
    %789 = arith.addf %787, %788 : vector<8x8xf32>
    %cst_269 = arith.constant dense<0xFF800000> : vector<8xf32>
    %790 = vector.multi_reduction <maximumf>, %789, %cst_269 [1] : vector<8x8xf32> to vector<8xf32>
    %791 = vector.shape_cast %790 : vector<8xf32> to vector<8x1xf32>
    %792 = vector.broadcast %791 : vector<8x1xf32> to vector<8x8xf32>
    %793 = arith.subf %789, %792 : vector<8x8xf32>
    %794 = math.exp %793 : vector<8x8xf32>
    %cst_270 = arith.constant dense<0.000000e+00> : vector<8xf32>
    %795 = vector.multi_reduction <add>, %794, %cst_270 [1] : vector<8x8xf32> to vector<8xf32>
    %796 = vector.shape_cast %795 : vector<8xf32> to vector<8x1xf32>
    %797 = vector.broadcast %796 : vector<8x1xf32> to vector<8x8xf32>
    %798 = arith.divf %794, %797 : vector<8x8xf32>
    %cst_271 = arith.constant dense<0.000000e+00> : vector<8x8xf32>
    %799 = tpu.matmul %798, %786, %cst_271 {dimension_numbers = #tpu.dot_dimension_numbers<[1], [0], [0], [1], [0, 0, 1, 1], [], []>} : vector<8x8xf32>, vector<8x8xf32>, vector<8x8xf32> -> vector<8x8xf32>
    %800 = vector.extract_strided_slice %776 {offsets = [0, 8], sizes = [8, 8], strides = [1, 1]} : vector<8x32xf32> to vector<8x8xf32>
    %801 = vector.extract_strided_slice %782 {offsets = [0, 8], sizes = [8, 8], strides = [1, 1]} : vector<8x32xf32> to vector<8x8xf32>
    %802 = vector.extract_strided_slice %783 {offsets = [0, 8], sizes = [8, 8], strides = [1, 1]} : vector<8x32xf32> to vector<8x8xf32>
    %cst_272 = arith.constant dense<0.000000e+00> : vector<8x8xf32>
    %803 = tpu.matmul %800, %801, %cst_272 {dimension_numbers = #tpu.dot_dimension_numbers<[1], [1], [0], [0], [0, 0, 1, 0], [], []>} : vector<8x8xf32>, vector<8x8xf32>, vector<8x8xf32> -> vector<8x8xf32>
    %804 = vector.broadcast %5 : vector<1x8xf32> to vector<8x8xf32>
    %805 = arith.addf %803, %804 : vector<8x8xf32>
    %cst_273 = arith.constant dense<0xFF800000> : vector<8xf32>
    %806 = vector.multi_reduction <maximumf>, %805, %cst_273 [1] : vector<8x8xf32> to vector<8xf32>
    %807 = vector.shape_cast %806 : vector<8xf32> to vector<8x1xf32>
    %808 = vector.broadcast %807 : vector<8x1xf32> to vector<8x8xf32>
    %809 = arith.subf %805, %808 : vector<8x8xf32>
    %810 = math.exp %809 : vector<8x8xf32>
    %cst_274 = arith.constant dense<0.000000e+00> : vector<8xf32>
    %811 = vector.multi_reduction <add>, %810, %cst_274 [1] : vector<8x8xf32> to vector<8xf32>
    %812 = vector.shape_cast %811 : vector<8xf32> to vector<8x1xf32>
    %813 = vector.broadcast %812 : vector<8x1xf32> to vector<8x8xf32>
    %814 = arith.divf %810, %813 : vector<8x8xf32>
    %cst_275 = arith.constant dense<0.000000e+00> : vector<8x8xf32>
    %815 = tpu.matmul %814, %802, %cst_275 {dimension_numbers = #tpu.dot_dimension_numbers<[1], [0], [0], [1], [0, 0, 1, 1], [], []>} : vector<8x8xf32>, vector<8x8xf32>, vector<8x8xf32> -> vector<8x8xf32>
    %816 = vector.extract_strided_slice %776 {offsets = [0, 16], sizes = [8, 8], strides = [1, 1]} : vector<8x32xf32> to vector<8x8xf32>
    %817 = vector.extract_strided_slice %782 {offsets = [0, 16], sizes = [8, 8], strides = [1, 1]} : vector<8x32xf32> to vector<8x8xf32>
    %818 = vector.extract_strided_slice %783 {offsets = [0, 16], sizes = [8, 8], strides = [1, 1]} : vector<8x32xf32> to vector<8x8xf32>
    %cst_276 = arith.constant dense<0.000000e+00> : vector<8x8xf32>
    %819 = tpu.matmul %816, %817, %cst_276 {dimension_numbers = #tpu.dot_dimension_numbers<[1], [1], [0], [0], [0, 0, 1, 0], [], []>} : vector<8x8xf32>, vector<8x8xf32>, vector<8x8xf32> -> vector<8x8xf32>
    %820 = vector.broadcast %5 : vector<1x8xf32> to vector<8x8xf32>
    %821 = arith.addf %819, %820 : vector<8x8xf32>
    %cst_277 = arith.constant dense<0xFF800000> : vector<8xf32>
    %822 = vector.multi_reduction <maximumf>, %821, %cst_277 [1] : vector<8x8xf32> to vector<8xf32>
    %823 = vector.shape_cast %822 : vector<8xf32> to vector<8x1xf32>
    %824 = vector.broadcast %823 : vector<8x1xf32> to vector<8x8xf32>
    %825 = arith.subf %821, %824 : vector<8x8xf32>
    %826 = math.exp %825 : vector<8x8xf32>
    %cst_278 = arith.constant dense<0.000000e+00> : vector<8xf32>
    %827 = vector.multi_reduction <add>, %826, %cst_278 [1] : vector<8x8xf32> to vector<8xf32>
    %828 = vector.shape_cast %827 : vector<8xf32> to vector<8x1xf32>
    %829 = vector.broadcast %828 : vector<8x1xf32> to vector<8x8xf32>
    %830 = arith.divf %826, %829 : vector<8x8xf32>
    %cst_279 = arith.constant dense<0.000000e+00> : vector<8x8xf32>
    %831 = tpu.matmul %830, %818, %cst_279 {dimension_numbers = #tpu.dot_dimension_numbers<[1], [0], [0], [1], [0, 0, 1, 1], [], []>} : vector<8x8xf32>, vector<8x8xf32>, vector<8x8xf32> -> vector<8x8xf32>
    %832 = vector.extract_strided_slice %776 {offsets = [0, 24], sizes = [8, 8], strides = [1, 1]} : vector<8x32xf32> to vector<8x8xf32>
    %833 = vector.extract_strided_slice %782 {offsets = [0, 24], sizes = [8, 8], strides = [1, 1]} : vector<8x32xf32> to vector<8x8xf32>
    %834 = vector.extract_strided_slice %783 {offsets = [0, 24], sizes = [8, 8], strides = [1, 1]} : vector<8x32xf32> to vector<8x8xf32>
    %cst_280 = arith.constant dense<0.000000e+00> : vector<8x8xf32>
    %835 = tpu.matmul %832, %833, %cst_280 {dimension_numbers = #tpu.dot_dimension_numbers<[1], [1], [0], [0], [0, 0, 1, 0], [], []>} : vector<8x8xf32>, vector<8x8xf32>, vector<8x8xf32> -> vector<8x8xf32>
    %836 = vector.broadcast %5 : vector<1x8xf32> to vector<8x8xf32>
    %837 = arith.addf %835, %836 : vector<8x8xf32>
    %cst_281 = arith.constant dense<0xFF800000> : vector<8xf32>
    %838 = vector.multi_reduction <maximumf>, %837, %cst_281 [1] : vector<8x8xf32> to vector<8xf32>
    %839 = vector.shape_cast %838 : vector<8xf32> to vector<8x1xf32>
    %840 = vector.broadcast %839 : vector<8x1xf32> to vector<8x8xf32>
    %841 = arith.subf %837, %840 : vector<8x8xf32>
    %842 = math.exp %841 : vector<8x8xf32>
    %cst_282 = arith.constant dense<0.000000e+00> : vector<8xf32>
    %843 = vector.multi_reduction <add>, %842, %cst_282 [1] : vector<8x8xf32> to vector<8xf32>
    %844 = vector.shape_cast %843 : vector<8xf32> to vector<8x1xf32>
    %845 = vector.broadcast %844 : vector<8x1xf32> to vector<8x8xf32>
    %846 = arith.divf %842, %845 : vector<8x8xf32>
    %cst_283 = arith.constant dense<0.000000e+00> : vector<8x8xf32>
    %847 = tpu.matmul %846, %834, %cst_283 {dimension_numbers = #tpu.dot_dimension_numbers<[1], [0], [0], [1], [0, 0, 1, 1], [], []>} : vector<8x8xf32>, vector<8x8xf32>, vector<8x8xf32> -> vector<8x8xf32>
    %848 = tpu.concatenate %799, %815, %831, %847 in 1 : vector<8x8xf32>, vector<8x8xf32>, vector<8x8xf32>, vector<8x8xf32> -> vector<8x32xf32>
    %c880 = arith.constant 880 : index
    %c0_284 = arith.constant 0 : index
    %849 = vector.load %arg3[%c880, %c0_284] : memref<1008x128xf32, #tpu.memory_space<vmem>>, vector<32x32xf32>
    %cst_285 = arith.constant dense<0.000000e+00> : vector<8x32xf32>
    %850 = tpu.matmul %848, %849, %cst_285 {dimension_numbers = #tpu.dot_dimension_numbers<[1], [0], [0], [1], [0, 0, 1, 1], [], []>} : vector<8x32xf32>, vector<32x32xf32>, vector<8x32xf32> -> vector<8x32xf32>
    %c312 = arith.constant 312 : index
    %c0_286 = arith.constant 0 : index
    %851 = vector.load %arg4[%c312, %c0_286] : memref<368x128xf32, #tpu.memory_space<vmem>>, vector<1x32xf32>
    %852 = vector.broadcast %851 : vector<1x32xf32> to vector<8x32xf32>
    %853 = arith.addf %850, %852 : vector<8x32xf32>
    %854 = arith.addf %747, %853 : vector<8x32xf32>
    %cst_287 = arith.constant dense<0.000000e+00> : vector<8xf32>
    %855 = vector.multi_reduction <add>, %854, %cst_287 [1] : vector<8x32xf32> to vector<8xf32>
    %856 = vector.shape_cast %855 : vector<8xf32> to vector<8x1xf32>
    %cst_288 = arith.constant 3.200000e+01 : f32
    %857 = vector.broadcast %cst_288 : f32 to vector<8x1xf32>
    %858 = arith.divf %856, %857 : vector<8x1xf32>
    %859 = vector.broadcast %858 : vector<8x1xf32> to vector<8x32xf32>
    %860 = arith.subf %854, %859 : vector<8x32xf32>
    %861 = arith.mulf %860, %860 : vector<8x32xf32>
    %cst_289 = arith.constant dense<0.000000e+00> : vector<8xf32>
    %862 = vector.multi_reduction <add>, %861, %cst_289 [1] : vector<8x32xf32> to vector<8xf32>
    %863 = vector.shape_cast %862 : vector<8xf32> to vector<8x1xf32>
    %cst_290 = arith.constant 0.0322580636 : f32
    %864 = vector.broadcast %cst_290 : f32 to vector<8x1xf32>
    %865 = arith.mulf %863, %864 : vector<8x1xf32>
    %866 = math.sqrt %865 : vector<8x1xf32>
    %c320 = arith.constant 320 : index
    %c0_291 = arith.constant 0 : index
    %867 = vector.load %arg4[%c320, %c0_291] : memref<368x128xf32, #tpu.memory_space<vmem>>, vector<1x32xf32>
    %868 = vector.broadcast %858 : vector<8x1xf32> to vector<8x32xf32>
    %869 = arith.subf %854, %868 : vector<8x32xf32>
    %870 = vector.broadcast %867 : vector<1x32xf32> to vector<8x32xf32>
    %871 = arith.mulf %870, %869 : vector<8x32xf32>
    %cst_292 = arith.constant 9.99999997E-7 : f32
    %872 = vector.broadcast %cst_292 : f32 to vector<8x1xf32>
    %873 = arith.addf %866, %872 : vector<8x1xf32>
    %874 = vector.broadcast %873 : vector<8x1xf32> to vector<8x32xf32>
    %875 = arith.divf %871, %874 : vector<8x32xf32>
    %c328 = arith.constant 328 : index
    %c0_293 = arith.constant 0 : index
    %876 = vector.load %arg4[%c328, %c0_293] : memref<368x128xf32, #tpu.memory_space<vmem>>, vector<1x32xf32>
    %877 = vector.broadcast %876 : vector<1x32xf32> to vector<8x32xf32>
    %878 = arith.addf %875, %877 : vector<8x32xf32>
    %c912 = arith.constant 912 : index
    %c0_294 = arith.constant 0 : index
    %879 = vector.load %arg3[%c912, %c0_294] : memref<1008x128xf32, #tpu.memory_space<vmem>>, vector<32x64xf32>
    %cst_295 = arith.constant dense<0.000000e+00> : vector<8x64xf32>
    %880 = tpu.matmul %878, %879, %cst_295 {dimension_numbers = #tpu.dot_dimension_numbers<[1], [0], [0], [1], [0, 0, 1, 1], [], []>} : vector<8x32xf32>, vector<32x64xf32>, vector<8x64xf32> -> vector<8x64xf32>
    %c336_296 = arith.constant 336 : index
    %c0_297 = arith.constant 0 : index
    %881 = vector.load %arg4[%c336_296, %c0_297] : memref<368x128xf32, #tpu.memory_space<vmem>>, vector<1x64xf32>
    %882 = vector.broadcast %881 : vector<1x64xf32> to vector<8x64xf32>
    %883 = arith.addf %880, %882 : vector<8x64xf32>
    %cst_298 = arith.constant 0.000000e+00 : f32
    %884 = vector.broadcast %cst_298 : f32 to vector<8x64xf32>
    %885 = arith.maximumf %883, %884 : vector<8x64xf32>
    %c944 = arith.constant 944 : index
    %c0_299 = arith.constant 0 : index
    %886 = vector.load %arg3[%c944, %c0_299] : memref<1008x128xf32, #tpu.memory_space<vmem>>, vector<64x32xf32>
    %cst_300 = arith.constant dense<0.000000e+00> : vector<8x32xf32>
    %887 = tpu.matmul %885, %886, %cst_300 {dimension_numbers = #tpu.dot_dimension_numbers<[1], [0], [0], [1], [0, 0, 1, 1], [], []>} : vector<8x64xf32>, vector<64x32xf32>, vector<8x32xf32> -> vector<8x32xf32>
    %c344 = arith.constant 344 : index
    %c0_301 = arith.constant 0 : index
    %888 = vector.load %arg4[%c344, %c0_301] : memref<368x128xf32, #tpu.memory_space<vmem>>, vector<1x32xf32>
    %889 = vector.broadcast %888 : vector<1x32xf32> to vector<8x32xf32>
    %890 = arith.addf %887, %889 : vector<8x32xf32>
    %891 = arith.addf %854, %890 : vector<8x32xf32>
    %cst_302 = arith.constant dense<0.000000e+00> : vector<8xf32>
    %892 = vector.multi_reduction <add>, %891, %cst_302 [1] : vector<8x32xf32> to vector<8xf32>
    %893 = vector.shape_cast %892 : vector<8xf32> to vector<8x1xf32>
    %cst_303 = arith.constant 3.200000e+01 : f32
    %894 = vector.broadcast %cst_303 : f32 to vector<8x1xf32>
    %895 = arith.divf %893, %894 : vector<8x1xf32>
    %896 = vector.broadcast %895 : vector<8x1xf32> to vector<8x32xf32>
    %897 = arith.subf %891, %896 : vector<8x32xf32>
    %898 = arith.mulf %897, %897 : vector<8x32xf32>
    %cst_304 = arith.constant dense<0.000000e+00> : vector<8xf32>
    %899 = vector.multi_reduction <add>, %898, %cst_304 [1] : vector<8x32xf32> to vector<8xf32>
    %900 = vector.shape_cast %899 : vector<8xf32> to vector<8x1xf32>
    %cst_305 = arith.constant 0.0322580636 : f32
    %901 = vector.broadcast %cst_305 : f32 to vector<8x1xf32>
    %902 = arith.mulf %900, %901 : vector<8x1xf32>
    %903 = math.sqrt %902 : vector<8x1xf32>
    %c352 = arith.constant 352 : index
    %c0_306 = arith.constant 0 : index
    %904 = vector.load %arg4[%c352, %c0_306] : memref<368x128xf32, #tpu.memory_space<vmem>>, vector<1x32xf32>
    %905 = vector.broadcast %895 : vector<8x1xf32> to vector<8x32xf32>
    %906 = arith.subf %891, %905 : vector<8x32xf32>
    %907 = vector.broadcast %904 : vector<1x32xf32> to vector<8x32xf32>
    %908 = arith.mulf %907, %906 : vector<8x32xf32>
    %cst_307 = arith.constant 9.99999997E-7 : f32
    %909 = vector.broadcast %cst_307 : f32 to vector<8x1xf32>
    %910 = arith.addf %903, %909 : vector<8x1xf32>
    %911 = vector.broadcast %910 : vector<8x1xf32> to vector<8x32xf32>
    %912 = arith.divf %908, %911 : vector<8x32xf32>
    %c360 = arith.constant 360 : index
    %c0_308 = arith.constant 0 : index
    %913 = vector.load %arg4[%c360, %c0_308] : memref<368x128xf32, #tpu.memory_space<vmem>>, vector<1x32xf32>
    %914 = vector.broadcast %913 : vector<1x32xf32> to vector<8x32xf32>
    %915 = arith.addf %912, %914 : vector<8x32xf32>
    %c0_309 = arith.constant 0 : index
    %c0_310 = arith.constant 0 : index
    %c0_311 = arith.constant 0 : index
    %916 = vector.load %arg7[%c0_309, %c0_310, %c0_311] : memref<1x8x32xf32, #tpu.memory_space<vmem>>, vector<1x8x32xf32>
    %917 = vector.shape_cast %916 : vector<1x8x32xf32> to vector<8x32xf32>
    %918 = vector.shape_cast %915 : vector<8x32xf32> to vector<1x8x32xf32>
    tpu.vector_store %arg7[%c0_309, %c0_310, %c0_311], %918 {strides = array<i32>} : memref<1x8x32xf32, #tpu.memory_space<vmem>>, vector<1x8x32xf32>,
    return
  }
  func.func @transform_0(%arg0: i32, %arg1: memref<2x8xi32, #tpu.memory_space<smem>>, %arg2: memref<2x8xi32, #tpu.memory_space<smem>>) -> (i32, i32) {
    %c0_i32 = arith.constant 0 : i32
    %c0_i32_0 = arith.constant 0 : i32
    %c0_i32_1 = arith.constant 0 : i32
    return %c0_i32, %c0_i32_0 : i32, i32
  }
  func.func @transform_1(%arg0: i32, %arg1: memref<2x8xi32, #tpu.memory_space<smem>>, %arg2: memref<2x8xi32, #tpu.memory_space<smem>>) -> (i32, i32) {
    %c0_i32 = arith.constant 0 : i32
    %c0_i32_0 = arith.constant 0 : i32
    %c0_i32_1 = arith.constant 0 : i32
    return %c0_i32, %c0_i32_0 : i32, i32
  }
  func.func @transform_2(%arg0: i32, %arg1: memref<2x8xi32, #tpu.memory_space<smem>>, %arg2: memref<2x8xi32, #tpu.memory_space<smem>>) -> (i32, i32, i32) {
    %c0_i32 = arith.constant 0 : i32
    %c0_i32_0 = arith.constant 0 : i32
    %c0_i32_1 = arith.constant 0 : i32
    return %arg0, %c0_i32, %c0_i32_0 : i32, i32, i32
  }
  func.func @transform_3(%arg0: i32, %arg1: memref<2x8xi32, #tpu.memory_space<smem>>, %arg2: memref<2x8xi32, #tpu.memory_space<smem>>) -> (i32, i32, i32) {
    %c0_i32 = arith.constant 0 : i32
    %c0_i32_0 = arith.constant 0 : i32
    %c0_i32_1 = arith.constant 0 : i32
    return %arg0, %c0_i32, %c0_i32_0 : i32, i32, i32
  }
  func.func @transform_4(%arg0: i32, %arg1: memref<2x8xi32, #tpu.memory_space<smem>>, %arg2: memref<2x8xi32, #tpu.memory_space<smem>>) -> (i32, i32, i32) {
    %c0_i32 = arith.constant 0 : i32
    %c0_i32_0 = arith.constant 0 : i32
    %c0_i32_1 = arith.constant 0 : i32
    return %arg0, %c0_i32, %c0_i32_0 : i32, i32, i32
  }
}

</mosaic_0001>

<llo_original>
// kernel: fwd.1
$region0: #{fwd.1}
  #allocation0 [shape = 'u32[]', space=smem, size = 0x4, offset = 0x4, fixed_abs, tag = 'smem constant byte address 0x4 - core index']
  #allocation1 [shape = 'u32[144,128]{1,0:T(1,128)}', space=vmem, size = 0x12000, scoped, tag = 'internal scratch']
  #allocation2 [shape = 's32[1]{0}', space=sflag, size = 0x4, scoped, tag = 'scoped memory for fwd.1']
  #allocation3 [shape = 'u8[1024]{0}', space=smem, size = 0x400, scoped, tag = 'prefetched SMEM operand 0']
  #allocation4 [shape = 'u8[1024]{0}', space=smem, size = 0x400, scoped, tag = 'prefetched SMEM operand 1']
  %s0 = inlined_call_operand.vmem [shape: s32[2,8], index: 0, kind: input, shape index: {}]
  %s1 = inlined_call_operand.hbm [shape: s32[2,8], index: 1, kind: input, shape index: {}]
  %s2 = inlined_call_operand.hbm [shape: f32[1008,128], index: 2, kind: input, shape index: {}]
  %s3 = inlined_call_operand.hbm [shape: f32[368,128], index: 3, kind: input, shape index: {}]
  %s4 = inlined_call_operand.hbm [shape: f32[2,1,8], index: 4, kind: input, shape index: {}]
  %s5 = inlined_call_operand.vmem [shape: f32[2,8,8], index: 5, kind: input, shape index: {}]
  %s6 = inlined_call_operand.hbm [shape: f32[2,8,32], index: 6, kind: output, shape index: {}]
  %s7 = sld [smem:[#allocation0]]
  $region61: #{fwd.1} parent=0
    _
  %s9 = ssub.s32 1, %s7
  %s10 = scalar_select 0, %s9, %s7
  %s11 = sshll.u32 %s0, 4
  %s12 = int_to_ptr.vmem [resolvable:$true] %s11
  %14 = dma.vmem_to_smem %s12, 32, [#allocation3], [#allocation2]
  %16 = dma.hbm_to_smem %s1, 32, [#allocation4], [#allocation2]
  %17 = dma.done [#allocation2], 64
  %18 = sfence
  $region1: #{fwd.1} parent=0
    #allocation5 [shape = 'u8[516096]{0}', space=vmem, size = 0x7e000, scoped, tag = 'input window, operand 2, single buffered']
    #allocation6 [shape = 's32[2]{0}', space=sflag, size = 0x8, scoped, tag = 'scoped memory for fwd.1']
    #allocation7 [shape = 's32[2]{0}', space=sflag, size = 0x8, scoped, tag = 'scoped memory for fwd.1']
    #allocation8 [shape = 'u8[188416]{0}', space=vmem, size = 0x2e000, scoped, tag = 'input window, operand 3, single buffered']
    #allocation9 [shape = 's32[1]{0}', space=sflag, size = 0x4, scoped, tag = 'scoped memory for fwd.1']
    #allocation10 [shape = 'u8[1024]{0}', space=vmem, size = 0x400, scoped, tag = 'input window, operand 4']
    #allocation11 [shape = 'u8[8192]{0}', space=vmem, size = 0x2000, scoped, tag = 'output window, operand 0']
    %19 = vsyncpa [#allocation6], 0
    %20 = vsyncpa [#allocation9], 0
    %21 = vsyncpa [#allocation7], 0
    %s22 = scalar_lea.sflag [#allocation7], 1
    %23 = vsyncpa %s22, 0
    loop: start=0, step=1, limit=4
    $region2: #{fwd.1} parent=1 // loop_pre_header
      _
    $region3: #{fwd.1} parent=1 // loop_header
      %s25 = sphi 0, %s29
      %p26 = scmp.ge.s32.totalorder %s25, 4
      %s33 = sphi 0, %s33
      %s35 = sphi 0, %s33
      %s36 = sphi 0, %s35
      %s50 = sphi 0, %s36
      %s54 = sphi 0, %s54
      %s56 = sphi 0, %s54
      %s57 = sphi 0, %s56
      %s71 = sphi 0, %s57
      %s77 = sphi 0, %s79
      %s80 = sphi 0, %s77
      %s81 = sphi 0, %s80
      %s97 = sphi 0, %s81
      %s103 = sphi 0, %s105
      %s106 = sphi 0, %s103
      %s107 = sphi 0, %s106
      %s123 = sphi 0, %s107
      %s129 = sphi 0, %s131
      %s132 = sphi 0, %s129
      %s133 = sphi 0, %s132
      %s149 = sphi 0, %s133
    $region4: #{fwd.1} parent=1 // loop_header_branch
      %28 = sbr.rel (%p26) target = $region8
    $region5: #{fwd.1} parent=1 // loop_body
      %s30 = ssub.s32 %s25, 1
      %s31 = ssub.s32 %s25, 2
      %s32 = sadd.s32 %s25, 1
      %s34 = sadd.s32 %s33, 1
      %p37 = scmp.eq.s32.totalorder %s25, 1
      %p38 = scmp.ne.s32.totalorder %s33, %s35
      %p39 = scmp.eq.s32.totalorder %s25, 0
      %p40 = por %p38, %p39
      %p41 = scmp.ne.s32.totalorder %s33, %s35
      %p42 = scmp.eq.s32.totalorder %s30, 1
      %p43 = por %p41, %p42
      %p44 = scmp.ne.s32.totalorder %s35, %s36
      %p45 = scmp.eq.s32.totalorder %s30, 0
      %p46 = por %p44, %p45
      %p47 = scmp.ne.s32.totalorder %s35, %s36
      %p48 = scmp.eq.s32.totalorder %s31, 1
      %p49 = por %p47, %p48
      %p51 = scmp.ne.s32.totalorder %s36, %s50
      %p52 = scmp.eq.s32.totalorder %s31, 0
      %p53 = por %p51, %p52
      %s55 = sadd.s32 %s54, 1
      %p58 = scmp.eq.s32.totalorder %s25, 1
      %p59 = scmp.ne.s32.totalorder %s54, %s56
      %p60 = scmp.eq.s32.totalorder %s25, 0
      %p61 = por %p59, %p60
      %p62 = scmp.ne.s32.totalorder %s54, %s56
      %p63 = scmp.eq.s32.totalorder %s30, 1
      %p64 = por %p62, %p63
      %p65 = scmp.ne.s32.totalorder %s56, %s57
      %p66 = scmp.eq.s32.totalorder %s30, 0
      %p67 = por %p65, %p66
      %p68 = scmp.ne.s32.totalorder %s56, %s57
      %p69 = scmp.eq.s32.totalorder %s31, 1
      %p70 = por %p68, %p69
      %p72 = scmp.ne.s32.totalorder %s57, %s71
      %p73 = scmp.eq.s32.totalorder %s31, 0
      %p74 = por %p72, %p73
      %s75 = ssub.s32 %s25, %s32
      %p76 = scmp.eq.s32.totalorder %s75, 0
      %s78 = sadd.s32 %s77, 1
      %s79 = scalar_select %p76, %s77, %s78
      %p82 = pneg %p76
      %p83 = scmp.eq.s32.totalorder %s25, 1
      %p84 = por %p82, %p83
      %p85 = scmp.ne.s32.totalorder %s77, %s80
      %p86 = scmp.eq.s32.totalorder %s25, 0
      %p87 = por %p85, %p86
      %p88 = scmp.ne.s32.totalorder %s77, %s80
      %p89 = scmp.eq.s32.totalorder %s30, 1
      %p90 = por %p88, %p89
      %p91 = scmp.ne.s32.totalorder %s80, %s81
      %p92 = scmp.eq.s32.totalorder %s30, 0
      %p93 = por %p91, %p92
      %p94 = scmp.ne.s32.totalorder %s80, %s81
      %p95 = scmp.eq.s32.totalorder %s31, 1
      %p96 = por %p94, %p95
      %p98 = scmp.ne.s32.totalorder %s81, %s97
      %p99 = scmp.eq.s32.totalorder %s31, 0
      %p100 = por %p98, %p99
      %s101 = ssub.s32 %s25, %s32
      %p102 = scmp.eq.s32.totalorder %s101, 0
      %s104 = sadd.s32 %s103, 1
      %s105 = scalar_select %p102, %s103, %s104
      %p108 = pneg %p102
      %p109 = scmp.eq.s32.totalorder %s25, 1
      %p110 = por %p108, %p109
      %p111 = scmp.ne.s32.totalorder %s103, %s106
      %p112 = scmp.eq.s32.totalorder %s25, 0
      %p113 = por %p111, %p112
      %p114 = scmp.ne.s32.totalorder %s103, %s106
      %p115 = scmp.eq.s32.totalorder %s30, 1
      %p116 = por %p114, %p115
      %p117 = scmp.ne.s32.totalorder %s106, %s107
      %p118 = scmp.eq.s32.totalorder %s30, 0
      %p119 = por %p117, %p118
      %p120 = scmp.ne.s32.totalorder %s106, %s107
      %p121 = scmp.eq.s32.totalorder %s31, 1
      %p122 = por %p120, %p121
      %p124 = scmp.ne.s32.totalorder %s107, %s123
      %p125 = scmp.eq.s32.totalorder %s31, 0
      %p126 = por %p124, %p125
      %s127 = ssub.s32 %s25, %s32
      %p128 = scmp.eq.s32.totalorder %s127, 0
      %s130 = sadd.s32 %s129, 1
      %s131 = scalar_select %p128, %s129, %s130
      %p134 = pneg %p128
      %p135 = scmp.eq.s32.totalorder %s25, 1
      %p136 = por %p134, %p135
      %p137 = scmp.ne.s32.totalorder %s129, %s132
      %p138 = scmp.eq.s32.totalorder %s25, 0
      %p139 = por %p137, %p138
      %p140 = scmp.ne.s32.totalorder %s129, %s132
      %p141 = scmp.eq.s32.totalorder %s30, 1
      %p142 = por %p140, %p141
      %p143 = scmp.ne.s32.totalorder %s132, %s133
      %p144 = scmp.eq.s32.totalorder %s30, 0
      %p145 = por %p143, %p144
      %p146 = scmp.ne.s32.totalorder %s132, %s133
      %p147 = scmp.eq.s32.totalorder %s31, 1
      %p148 = por %p146, %p147
      %p150 = scmp.ne.s32.totalorder %s133, %s149
      %p151 = scmp.eq.s32.totalorder %s31, 0
      %p152 = por %p150, %p151
      %p153 = scmp.le.s32.totalorder 1, %s25
      %p154 = scmp.lt.s32.totalorder %s25, 3
      %p155 = pnand %p153, %p154
      %p156 = pneg %p155
      // Predicated region
      $region9: #{fwd.1} parent=5 // pred_check
        _
      $region10: #{fwd.1} parent=5 // pred_check_branch
        %158 = sbr.rel (%p155) target = $region12
      $region11: #{fwd.1} parent=5 // pred_region
        %s159 = ssub.s32 %s25, 1
        // Predicated region
        $region13: #{fwd.1} parent=11 // pred_check
          %p160 = pneg %p46
        $region14: #{fwd.1} parent=11 // pred_check_branch
          %162 = sbr.rel (%p160) target = $region16
        $region15: #{fwd.1} parent=11 // pred_region
          %s164 = ssub.s32 16128, 16128
          %165 = vsyncadd [#allocation6], %s164
          %s166 = sshll.u32 [#allocation5], 4
          %s167 = int_to_ptr.vmem [resolvable:$true] %s166
          %172 = dma.hbm_to_vmem [thread:$0]  %s2, 16128, %s167, [#allocation6], 128, 128, 8
        $region16: #{fwd.1} parent=11 // pred_fallthru
          _
        // Predicated region
        $region17: #{fwd.1} parent=11 // pred_check
          %p173 = pneg %p67
        $region18: #{fwd.1} parent=11 // pred_check_branch
          %175 = sbr.rel (%p173) target = $region20
        $region19: #{fwd.1} parent=11 // pred_region
          %s177 = ssub.s32 5888, 5888
          %178 = vsyncadd [#allocation9], %s177
          %s179 = sshll.u32 [#allocation8], 4
          %s180 = int_to_ptr.vmem [resolvable:$true] %s179
          %185 = dma.hbm_to_vmem [thread:$0]  %s3, 5888, %s180, [#allocation9], 128, 128, 8
        $region20: #{fwd.1} parent=11 // pred_fallthru
          _
      $region12: #{fwd.1} parent=5 // pred_fallthru
        _
      %p186 = scmp.lt.s32.totalorder %s25, 2
      // Predicated region
      $region21: #{fwd.1} parent=5 // pred_check
        %p187 = pneg %p186
      $region22: #{fwd.1} parent=5 // pred_check_branch
        %189 = sbr.rel (%p187) target = $region24
      $region23: #{fwd.1} parent=5 // pred_region
        // Predicated region
        $region25: #{fwd.1} parent=23 // pred_check
          %p190 = pneg %p87
        $region26: #{fwd.1} parent=23 // pred_check_branch
          %192 = sbr.rel (%p190) target = $region28
        $region27: #{fwd.1} parent=23 // pred_region
          %s193 = sand.u32 %s25, 1
          %s194 = scalar_lea.sflag [#allocation6], %s193
          %s195 = sand.u32 %s77, 1
          %s196 = scalar_lea.vmem [#allocation10], %s195
          %s198 = ssub.s32 16, 16
          %199 = vsyncadd %s194, %s198
          %s200 = smul.addr %s25, 16
          %s201 = scalar_lea.hbm %s4, %s200
          %s203 = sshll.u32 %s196, 4
          %s204 = int_to_ptr.vmem [resolvable:$true] %s203
          %206 = dma.hbm_to_vmem [thread:$0]  %s201, 16, %s204, %s194
        $region28: #{fwd.1} parent=23 // pred_fallthru
          _
        // Predicated region
        $region29: #{fwd.1} parent=23 // pred_check
          %p207 = pneg %p113
        $region30: #{fwd.1} parent=23 // pred_check_branch
          %209 = sbr.rel (%p207) target = $region32
        $region31: #{fwd.1} parent=23 // pred_region
          %p210 = scmp.lt.s32.totalorder %s25, 1
          %s211 = scalar_select %p210, %s25, 1
          %s212 = smul.addr %s211, 8
          %s213 = scalar_lea.vmem %s5, %s212
        $region32: #{fwd.1} parent=23 // pred_fallthru
          _
      $region24: #{fwd.1} parent=5 // pred_fallthru
        _
      %p214 = scmp.le.s32.totalorder 1, %s25
      %p215 = scmp.lt.s32.totalorder %s25, 3
      %p216 = pnand %p214, %p215
      %p217 = pneg %p216
      // Predicated region
      $region33: #{fwd.1} parent=5 // pred_check
        _
      $region34: #{fwd.1} parent=5 // pred_check_branch
        %219 = sbr.rel (%p216) target = $region36
      $region35: #{fwd.1} parent=5 // pred_region
        %s220 = ssub.s32 %s25, 1
        // Predicated region
        $region37: #{fwd.1} parent=35 // pred_check
          %p221 = pneg %p46
        $region38: #{fwd.1} parent=35 // pred_check_branch
          %223 = sbr.rel (%p221) target = $region40
        $region39: #{fwd.1} parent=35 // pred_region
          %224 = dma.done [#allocation6], 16128
        $region40: #{fwd.1} parent=35 // pred_fallthru
          _
        // Predicated region
        $region41: #{fwd.1} parent=35 // pred_check
          %p225 = pneg %p67
        $region42: #{fwd.1} parent=35 // pred_check_branch
          %227 = sbr.rel (%p225) target = $region44
        $region43: #{fwd.1} parent=35 // pred_region
          %228 = dma.done [#allocation9], 5888
        $region44: #{fwd.1} parent=35 // pred_fallthru
          _
        %s229 = sand.u32 %s30, 1
        %s230 = scalar_lea.sflag [#allocation6], %s229
        %s231 = sand.u32 %s80, 1
        %s232 = scalar_lea.vmem [#allocation10], %s231
        // Predicated region
        $region45: #{fwd.1} parent=35 // pred_check
          %p233 = pneg %p93
        $region46: #{fwd.1} parent=35 // pred_check_branch
          %235 = sbr.rel (%p233) target = $region48
        $region47: #{fwd.1} parent=35 // pred_region
          %236 = dma.done %s230, 16
        $region48: #{fwd.1} parent=35 // pred_fallthru
          _
        %p237 = pneg %p46
        %p238 = pneg %p43
        %p239 = pneg %p67
        %p240 = pneg %p64
        %s241 = sand.u32 %s30, 1
        %s242 = scalar_lea.sflag [#allocation6], %s241
        %s243 = sand.u32 %s80, 1
        %s244 = scalar_lea.vmem [#allocation10], %s243
        %p245 = pneg %p93
        %p246 = pneg %p90
        %p247 = scmp.lt.s32.totalorder %s30, 1
        %s248 = scalar_select %p247, %s30, 1
        %s249 = smul.addr %s248, 8
        %s250 = scalar_lea.vmem %s5, %s249
        %p251 = pneg %p119
        %p252 = pneg %p116
        %p253 = pneg %p145
        %p254 = pneg %p142
        %s255 = sand.u32 %s132, 1
        %s256 = scalar_lea.sflag [#allocation7], %s255
        %s257 = sand.u32 %s132, 1
        %s258 = smul.addr %s257, 8
        %s259 = scalar_lea.vmem [#allocation11], %s258
        %p260 = scmp.lt.s32.totalorder %s30, 1
        %s261 = scalar_select %p260, %s30, 1
        %s262 = smul.addr %s261, 8
        %s263 = scalar_lea.vmem %s5, %s262
        %v264 = vld [vmem:[%s232] sm:$0x1]
        %v265 = vsub.f32 %v264, 1.0
        %v266 = vmul.f32 %v265, 1e+09
        %v267 = vld [vmem:[%s263] sm:$0xff]
        %v268 = vsub.f32 %v267, 1.0
        %v269 = vmul.f32 %v268, 1e+09
        %s270 = smul.u32 %s30, 128
        %s271 = sld [smem:[#allocation3 + %s270]]
        %s272 = scalar_lea.vmem [#allocation5], %s271
        %v273 = vld [vmem:[%s272] sm:$0x1]
        %s274 = sadd.s32 %s270, 1
        %s275 = sld [smem:[#allocation3 + %s274]]
        %s276 = scalar_lea.vmem [#allocation5], %s275
        %v277 = vld [vmem:[%s276] sm:$0x1]
        %s278 = sadd.s32 %s270, 2
        %s279 = sld [smem:[#allocation3 + %s278]]
        %s280 = scalar_lea.vmem [#allocation5], %s279
        %v281 = vld [vmem:[%s280] sm:$0x1]
        %s282 = sadd.s32 %s270, 3
        %s283 = sld [smem:[#allocation3 + %s282]]
        %s284 = scalar_lea.vmem [#allocation5], %s283
        %v285 = vld [vmem:[%s284] sm:$0x1]
        %s286 = sadd.s32 %s270, 4
        %s287 = sld [smem:[#allocation3 + %s286]]
        %s288 = scalar_lea.vmem [#allocation5], %s287
        %v289 = vld [vmem:[%s288] sm:$0x1]
        %s290 = sadd.s32 %s270, 5
        %s291 = sld [smem:[#allocation3 + %s290]]
        %s292 = scalar_lea.vmem [#allocation5], %s291
        %v293 = vld [vmem:[%s292] sm:$0x1]
        %s294 = sadd.s32 %s270, 6
        %s295 = sld [smem:[#allocation3 + %s294]]
        %s296 = scalar_lea.vmem [#allocation5], %s295
        %v297 = vld [vmem:[%s296] sm:$0x1]
        %s298 = sadd.s32 %s270, 7
        %s299 = sld [smem:[#allocation3 + %s298]]
        %s300 = scalar_lea.vmem [#allocation5], %s299
        %v301 = vld [vmem:[%s300] sm:$0x1]
        %v303 = vrot.slane %v277, 7
        %v306 = vrot.slane %v281, 6
        %v309 = vrot.slane %v285, 5
        %v312 = vrot.slane %v289, 4
        %v315 = vrot.slane %v293, 3
        %v318 = vrot.slane %v297, 2
        %v321 = vrot.slane %v301, 1
        %vm323 = vcmask 1040384
        %v324 = vsel %vm323, %v273, %v303
        %vm325 = vcmask 1041408
        %v326 = vsel %vm325, %v324, %v306
        %vm327 = vcmask 1042432
        %v328 = vsel %vm327, %v326, %v309
        %vm329 = vcmask 1043456
        %v330 = vsel %vm329, %v328, %v312
        %vm331 = vcmask 1044480
        %v332 = vsel %vm331, %v330, %v315
        %vm333 = vcmask 1045504
        %v334 = vsel %vm333, %v332, %v318
        %vm335 = vcmask 1046528
        %v336 = vsel %vm335, %v334, %v321
        %v337 = vmul.f32 %v336, 5.656854
        %v338 = vld [vmem:[#allocation5 + $0x70] sm:$0xff]
        %v339 = vadd.f32 %v337, %v338
        %vm340 = vcmask 261120
        %v341 = vsel %vm340, %v339, 0.0
        %342 = vadd.xlane.f32.xlu0 %v341
        %v343 = vpop.xlane.xlu0 %342
        %v344 = vrcp.pop 32.0
        %v345 = vmul.f32 %v343, %v344
        %v346 = vsub.f32 %v339, %v345
        %v347 = vmul.f32 %v346, %v346
        %v348 = vsel %vm340, %v347, 0.0
        %349 = vadd.xlane.f32.xlu0 %v348
        %v350 = vpop.xlane.xlu0 %349
        %v351 = vmul.f32 %v350, 0.032258064
        %v352 = vrsqrt.pop %v351
        %v353 = vmul.f32 %v351, %v352
        %vm354 = vcmp.eq.f32.partialorder %v351, inf
        %v355 = vsel %vm354, %v351, %v353
        %vm356 = vcmp.eq.f32.partialorder %v351, 0.0
        %v357 = vand.u32 %v351, 2147483648
        %v358 = vsel %vm356, %v357, %v355
        %v359 = vld [vmem:[#allocation8] sm:$0x1]
        %v360 = vlaneseq
        %v361 = vshrl.u32 %v360, 7
        %v362 = vsub.s32 0, %v361
        %v363 = vrot.slane %v359, %v362
        %v364 = vmul.f32 %v363, %v346
        %v365 = vadd.f32 %v358, 1e-06
        %v366 = vrcp.pop %v365
        %v367 = vmul.f32 %v364, %v366
        %v368 = vld [vmem:[#allocation8 + $0x8] sm:$0x1]
        %v369 = vlaneseq
        %v370 = vshrl.u32 %v369, 7
        %v371 = vsub.s32 0, %v370
        %v372 = vrot.slane %v368, %v371
        %v373 = vadd.f32 %v367, %v372
        %v374 = vld [vmem:[#allocation5 + $0xb0] sm:$0xff]
        %v375 = vld [vmem:[#allocation5 + $0xb8] sm:$0xff]
        %v376 = vld [vmem:[#allocation5 + $0xc0] sm:$0xff]
        %v377 = vld [vmem:[#allocation5 + $0xc8] sm:$0xff]
        %v378 = vld [vmem:[#allocation8 + $0x10] sm:$0x1]
        %v379 = vlaneseq
        %v380 = vshrl.u32 %v379, 7
        %v381 = vsub.s32 0, %v380
        %v382 = vrot.slane %v378, %v381
        %v384 = vsel %vm340, %v373, 0
        %386 = vmatprep.subr.mxu0 0.0
        %387 = vmatpush1.msra.mxu0 %v374
        %388 = vmatprep.subr.mxu0 0.0
        %389 = vmatpush1.msra.mxu0 %v375
        %390 = vmatprep.subr.mxu0 0.0
        %391 = vmatpush1.msra.mxu0 %v376
        %392 = vmatprep.subr.mxu0 0.0
        %393 = vmatpush1.msra.mxu0 %v377
        %394 = vmatprep.subr.mxu0 0.0
        %395 = vmatpush1.msra.mxu0 0.0
        %396 = vmatprep.subr.mxu0 0.0
        %397 = vmatpush1.msra.mxu0 0.0
        %398 = vmatprep.subr.mxu0 0.0
        %399 = vmatpush1.msra.mxu0 0.0
        %400 = vmatprep.subr.mxu0 0.0
        %401 = vmatpush1.msra.mxu0 0.0
        %402 = vmatprep.subr.mxu0 0.0
        %403 = vmatpush1.msra.mxu0 0.0
        %404 = vmatprep.subr.mxu0 0.0
        %405 = vmatpush1.msra.mxu0 0.0
        %406 = vmatprep.subr.mxu0 0.0
        %407 = vmatpush1.msra.mxu0 0.0
        %408 = vmatprep.subr.mxu0 0.0
        %409 = vmatpush1.msra.mxu0 0.0
        %410 = vmatprep.subr.mxu0 0.0
        %411 = vmatpush1.msra.mxu0 0.0
        %412 = vmatprep.subr.mxu0 0.0
        %413 = vmatpush1.msra.mxu0 0.0
        %414 = vmatprep.subr.mxu0 0.0
        %415 = vmatpush1.msra.mxu0 0.0
        %416 = vmatprep.subr.mxu0 0.0
        %417 = vmatpush1.msra.mxu0 0.0
        %418 = vmatprep.subr.mxu0 0.0
        %419 = vmatpush1.msra.mxu0 0.0
        %420 = vmatprep.subr.mxu0 0.0
        %421 = vmatpush1.msra.mxu0 0.0
        %422 = vmatprep.subr.mxu0 0.0
        %423 = vmatpush1.msra.mxu0 0.0
        %424 = vmatprep.subr.mxu0 0.0
        %425 = vmatpush1.msra.mxu0 0.0
        %426 = vmatprep.subr.mxu0 0.0
        %427 = vmatpush1.msra.mxu0 0.0
        %428 = vmatprep.subr.mxu0 0.0
        %429 = vmatpush1.msra.mxu0 0.0
        %430 = vmatprep.subr.mxu0 0.0
        %431 = vmatpush1.msra.mxu0 0.0
        %432 = vmatprep.subr.mxu0 0.0
        %433 = vmatpush1.msra.mxu0 0.0
        %434 = vmatprep.subr.mxu0 0.0
        %435 = vmatpush1.msra.mxu0 0.0
        %436 = vmatprep.subr.mxu0 0.0
        %437 = vmatpush1.msra.mxu0 0.0
        %438 = vmatprep.subr.mxu0 0.0
        %439 = vmatpush1.msra.mxu0 0.0
        %440 = vmatprep.subr.mxu0 0.0
        %441 = vmatpush1.msra.mxu0 0.0
        %442 = vmatprep.subr.mxu0 0.0
        %443 = vmatpush1.msra.mxu0 0.0
        %444 = vmatprep.subr.mxu0 0.0
        %445 = vmatpush1.msra.mxu0 0.0
        %446 = vmatprep.subr.mxu0 0.0
        %447 = vmatpush1.msra.mxu0 0.0
        %448 = vmatprep.subr.mxu0 0.0
        %449 = vmatpush1.msra.mxu0 0.0
        %450 = vmatprep.mubr.f32.mxu0 0.0
        %451 = vmatmul.mubr.f32.gmra.mrb[0].mxu0 %v384
        %v452 = vpop.f32.mrb[0].mxu0
        %v453 = vadd.f32 %v382, %v452
        %v454 = vpop.f32.mrb[0].mxu0
        %455 = vdwg.mxu0
        %v457 = vlaneseq
        %v458 = vshrl.u32 %v457, 7
        %v459 = vsub.s32 0, %v458
        %v460 = vrot.slane %v266, %v459
        %463 = vrot.lane.b32.xlu0 %v453, 96
        %v464 = vpop.permute.xlu0 %463
        %vm465 = vcmask 64512
        %v466 = vsel %vm465, %v453, 0
        %v468 = vsel %vm465, %v464, 0
        %470 = vmatprep.subr.mxu0 0.0
        %471 = vmatpush1.xpose.msra.mxu0 %v468
        %472 = vmatprep.subr.mxu0 0.0
        %473 = vmatpush1.xpose.msra.mxu0 0.0
        %474 = vmatprep.subr.mxu0 0.0
        %475 = vmatpush1.xpose.msra.mxu0 0.0
        %476 = vmatprep.subr.mxu0 0.0
        %477 = vmatpush1.xpose.msra.mxu0 0.0
        %478 = vmatprep.subr.mxu0 0.0
        %479 = vmatpush1.xpose.msra.mxu0 0.0
        %480 = vmatprep.subr.mxu0 0.0
        %481 = vmatpush1.xpose.msra.mxu0 0.0
        %482 = vmatprep.subr.mxu0 0.0
        %483 = vmatpush1.xpose.msra.mxu0 0.0
        %484 = vmatprep.subr.mxu0 0.0
        %485 = vmatpush1.xpose.msra.mxu0 0.0
        %486 = vmatprep.subr.mxu0 0.0
        %487 = vmatpush1.xpose.msra.mxu0 0.0
        %488 = vmatprep.subr.mxu0 0.0
        %489 = vmatpush1.xpose.msra.mxu0 0.0
        %490 = vmatprep.subr.mxu0 0.0
        %491 = vmatpush1.xpose.msra.mxu0 0.0
        %492 = vmatprep.subr.mxu0 0.0
        %493 = vmatpush1.xpose.msra.mxu0 0.0
        %494 = vmatprep.subr.mxu0 0.0
        %495 = vmatpush1.xpose.msra.mxu0 0.0
        %496 = vmatprep.subr.mxu0 0.0
        %497 = vmatpush1.xpose.msra.mxu0 0.0
        %498 = vmatprep.subr.mxu0 0.0
        %499 = vmatpush1.xpose.msra.mxu0 0.0
        %500 = vmatprep.subr.mxu0 0.0
        %501 = vmatpush1.xpose.msra.mxu0 0.0
        %502 = vmatprep.subr.mxu0 0.0
        %503 = vmatpush1.xpose.msra.mxu0 0.0
        %504 = vmatprep.subr.mxu0 0.0
        %505 = vmatpush1.xpose.msra.mxu0 0.0
        %506 = vmatprep.subr.mxu0 0.0
        %507 = vmatpush1.xpose.msra.mxu0 0.0
        %508 = vmatprep.subr.mxu0 0.0
        %509 = vmatpush1.xpose.msra.mxu0 0.0
        %510 = vmatprep.subr.mxu0 0.0
        %511 = vmatpush1.xpose.msra.mxu0 0.0
        %512 = vmatprep.subr.mxu0 0.0
        %513 = vmatpush1.xpose.msra.mxu0 0.0
        %514 = vmatprep.subr.mxu0 0.0
        %515 = vmatpush1.xpose.msra.mxu0 0.0
        %516 = vmatprep.subr.mxu0 0.0
        %517 = vmatpush1.xpose.msra.mxu0 0.0
        %518 = vmatprep.subr.mxu0 0.0
        %519 = vmatpush1.xpose.msra.mxu0 0.0
        %520 = vmatprep.subr.mxu0 0.0
        %521 = vmatpush1.xpose.msra.mxu0 0.0
        %522 = vmatprep.subr.mxu0 0.0
        %523 = vmatpush1.xpose.msra.mxu0 0.0
        %524 = vmatprep.subr.mxu0 0.0
        %525 = vmatpush1.xpose.msra.mxu0 0.0
        %526 = vmatprep.subr.mxu0 0.0
        %527 = vmatpush1.xpose.msra.mxu0 0.0
        %528 = vmatprep.subr.mxu0 0.0
        %529 = vmatpush1.xpose.msra.mxu0 0.0
        %530 = vmatprep.subr.mxu0 0.0
        %531 = vmatpush1.xpose.msra.mxu0 0.0
        %532 = vmatprep.subr.mxu0 0.0
        %533 = vmatpush1.xpose.msra.mxu0 0.0
        %534 = vmatprep.mubr.f32.mxu0 0.0
        %535 = vmatmul.mubr.f32.gmra.mrb[0].mxu0 %v466
        %v536 = vpop.f32.mrb[0].mxu0
        %v537 = vadd.f32 %v460, %v536
        %v538 = vpop.f32.mrb[0].mxu0
        %539 = vdwg.mxu0
        %v540 = vsel %vm465, %v537, -inf
        %541 = vmax.xlane.f32.xlu0 %v540
        %v542 = vpop.xlane.xlu0 %541
        %v543 = vsub.f32 %v537, %v542
        %v544 = vmul.f32 %v543, 1.442695
        %v545 = vpow.pop %v544
        %v546 = vsel %vm465, %v545, 0.0
        %547 = vadd.xlane.f32.xlu0 %v546
        %v548 = vpop.xlane.xlu0 %547
        %v549 = vrcp.pop %v548
        %v550 = vmul.f32 %v545, %v549
        %551 = vrot.lane.b32.xlu0 %v453, 64
        %v552 = vpop.permute.xlu0 %551
        %v555 = vsel %vm465, %v550, 0
        %557 = vmatprep.subr.mxu0 0.0
        %558 = vmatpush1.msra.mxu0 %v552
        %559 = vmatprep.subr.mxu0 0.0
        %560 = vmatpush1.msra.mxu0 0.0
        %561 = vmatprep.subr.mxu0 0.0
        %562 = vmatpush1.msra.mxu0 0.0
        %563 = vmatprep.subr.mxu0 0.0
        %564 = vmatpush1.msra.mxu0 0.0
        %565 = vmatprep.subr.mxu0 0.0
        %566 = vmatpush1.msra.mxu0 0.0
        %567 = vmatprep.subr.mxu0 0.0
        %568 = vmatpush1.msra.mxu0 0.0
        %569 = vmatprep.subr.mxu0 0.0
        %570 = vmatpush1.msra.mxu0 0.0
        %571 = vmatprep.subr.mxu0 0.0
        %572 = vmatpush1.msra.mxu0 0.0
        %573 = vmatprep.subr.mxu0 0.0
        %574 = vmatpush1.msra.mxu0 0.0
        %575 = vmatprep.subr.mxu0 0.0
        %576 = vmatpush1.msra.mxu0 0.0
        %577 = vmatprep.subr.mxu0 0.0
        %578 = vmatpush1.msra.mxu0 0.0
        %579 = vmatprep.subr.mxu0 0.0
        %580 = vmatpush1.msra.mxu0 0.0
        %581 = vmatprep.subr.mxu0 0.0
        %582 = vmatpush1.msra.mxu0 0.0
        %583 = vmatprep.subr.mxu0 0.0
        %584 = vmatpush1.msra.mxu0 0.0
        %585 = vmatprep.subr.mxu0 0.0
        %586 = vmatpush1.msra.mxu0 0.0
        %587 = vmatprep.subr.mxu0 0.0
        %588 = vmatpush1.msra.mxu0 0.0
        %589 = vmatprep.subr.mxu0 0.0
        %590 = vmatpush1.msra.mxu0 0.0
        %591 = vmatprep.subr.mxu0 0.0
        %592 = vmatpush1.msra.mxu0 0.0
        %593 = vmatprep.subr.mxu0 0.0
        %594 = vmatpush1.msra.mxu0 0.0
        %595 = vmatprep.subr.mxu0 0.0
        %596 = vmatpush1.msra.mxu0 0.0
        %597 = vmatprep.subr.mxu0 0.0
        %598 = vmatpush1.msra.mxu0 0.0
        %599 = vmatprep.subr.mxu0 0.0
        %600 = vmatpush1.msra.mxu0 0.0
        %601 = vmatprep.subr.mxu0 0.0
        %602 = vmatpush1.msra.mxu0 0.0
        %603 = vmatprep.subr.mxu0 0.0
        %604 = vmatpush1.msra.mxu0 0.0
        %605 = vmatprep.subr.mxu0 0.0
        %606 = vmatpush1.msra.mxu0 0.0
        %607 = vmatprep.subr.mxu0 0.0
        %608 = vmatpush1.msra.mxu0 0.0
        %609 = vmatprep.subr.mxu0 0.0
        %610 = vmatpush1.msra.mxu0 0.0
        %611 = vmatprep.subr.mxu0 0.0
        %612 = vmatpush1.msra.mxu0 0.0
        %613 = vmatprep.subr.mxu0 0.0
        %614 = vmatpush1.msra.mxu0 0.0
        %615 = vmatprep.subr.mxu0 0.0
        %616 = vmatpush1.msra.mxu0 0.0
        %617 = vmatprep.subr.mxu0 0.0
        %618 = vmatpush1.msra.mxu0 0.0
        %619 = vmatprep.subr.mxu0 0.0
        %620 = vmatpush1.msra.mxu0 0.0
        %621 = vmatprep.mubr.f32.mxu0 0.0
        %622 = vmatmul.mubr.f32.gmra.mrb[0].mxu0 %v555
        %v623 = vpop.f32.mrb[0].mxu0
        %v624 = vadd.f32 0.0, %v623
        %v625 = vpop.f32.mrb[0].mxu0
        %626 = vdwg.mxu0
        %627 = vrot.lane.b32.xlu0 %v453, 120
        %v628 = vpop.permute.xlu0 %627
        %629 = vrot.lane.b32.xlu0 %v453, 88
        %v630 = vpop.permute.xlu0 %629
        %v631 = vsel %vm465, %v628, 0
        %v633 = vsel %vm465, %v630, 0
        %635 = vmatprep.subr.mxu0 0.0
        %636 = vmatpush1.xpose.msra.mxu0 %v633
        %637 = vmatprep.subr.mxu0 0.0
        %638 = vmatpush1.xpose.msra.mxu0 0.0
        %639 = vmatprep.subr.mxu0 0.0
        %640 = vmatpush1.xpose.msra.mxu0 0.0
        %641 = vmatprep.subr.mxu0 0.0
        %642 = vmatpush1.xpose.msra.mxu0 0.0
        %643 = vmatprep.subr.mxu0 0.0
        %644 = vmatpush1.xpose.msra.mxu0 0.0
        %645 = vmatprep.subr.mxu0 0.0
        %646 = vmatpush1.xpose.msra.mxu0 0.0
        %647 = vmatprep.subr.mxu0 0.0
        %648 = vmatpush1.xpose.msra.mxu0 0.0
        %649 = vmatprep.subr.mxu0 0.0
        %650 = vmatpush1.xpose.msra.mxu0 0.0
        %651 = vmatprep.subr.mxu0 0.0
        %652 = vmatpush1.xpose.msra.mxu0 0.0
        %653 = vmatprep.subr.mxu0 0.0
        %654 = vmatpush1.xpose.msra.mxu0 0.0
        %655 = vmatprep.subr.mxu0 0.0
        %656 = vmatpush1.xpose.msra.mxu0 0.0
        %657 = vmatprep.subr.mxu0 0.0
        %658 = vmatpush1.xpose.msra.mxu0 0.0
        %659 = vmatprep.subr.mxu0 0.0
        %660 = vmatpush1.xpose.msra.mxu0 0.0
        %661 = vmatprep.subr.mxu0 0.0
        %662 = vmatpush1.xpose.msra.mxu0 0.0
        %663 = vmatprep.subr.mxu0 0.0
        %664 = vmatpush1.xpose.msra.mxu0 0.0
        %665 = vmatprep.subr.mxu0 0.0
        %666 = vmatpush1.xpose.msra.mxu0 0.0
        %667 = vmatprep.subr.mxu0 0.0
        %668 = vmatpush1.xpose.msra.mxu0 0.0
        %669 = vmatprep.subr.mxu0 0.0
        %670 = vmatpush1.xpose.msra.mxu0 0.0
        %671 = vmatprep.subr.mxu0 0.0
        %672 = vmatpush1.xpose.msra.mxu0 0.0
        %673 = vmatprep.subr.mxu0 0.0
        %674 = vmatpush1.xpose.msra.mxu0 0.0
        %675 = vmatprep.subr.mxu0 0.0
        %676 = vmatpush1.xpose.msra.mxu0 0.0
        %677 = vmatprep.subr.mxu0 0.0
        %678 = vmatpush1.xpose.msra.mxu0 0.0
        %679 = vmatprep.subr.mxu0 0.0
        %680 = vmatpush1.xpose.msra.mxu0 0.0
        %681 = vmatprep.subr.mxu0 0.0
        %682 = vmatpush1.xpose.msra.mxu0 0.0
        %683 = vmatprep.subr.mxu0 0.0
        %684 = vmatpush1.xpose.msra.mxu0 0.0
        %685 = vmatprep.subr.mxu0 0.0
        %686 = vmatpush1.xpose.msra.mxu0 0.0
        %687 = vmatprep.subr.mxu0 0.0
        %688 = vmatpush1.xpose.msra.mxu0 0.0
        %689 = vmatprep.subr.mxu0 0.0
        %690 = vmatpush1.xpose.msra.mxu0 0.0
        %691 = vmatprep.subr.mxu0 0.0
        %692 = vmatpush1.xpose.msra.mxu0 0.0
        %693 = vmatprep.subr.mxu0 0.0
        %694 = vmatpush1.xpose.msra.mxu0 0.0
        %695 = vmatprep.subr.mxu0 0.0
        %696 = vmatpush1.xpose.msra.mxu0 0.0
        %697 = vmatprep.subr.mxu0 0.0
        %698 = vmatpush1.xpose.msra.mxu0 0.0
        %699 = vmatprep.mubr.f32.mxu0 0.0
        %700 = vmatmul.mubr.f32.gmra.mrb[0].mxu0 %v631
        %v701 = vpop.f32.mrb[0].mxu0
        %v702 = vadd.f32 %v460, %v701
        %v703 = vpop.f32.mrb[0].mxu0
        %704 = vdwg.mxu0
        %v705 = vsel %vm465, %v702, -inf
        %706 = vmax.xlane.f32.xlu0 %v705
        %v707 = vpop.xlane.xlu0 %706
        %v708 = vsub.f32 %v702, %v707
        %v709 = vmul.f32 %v708, 1.442695
        %v710 = vpow.pop %v709
        %v711 = vsel %vm465, %v710, 0.0
        %712 = vadd.xlane.f32.xlu0 %v711
        %v713 = vpop.xlane.xlu0 %712
        %v714 = vrcp.pop %v713
        %v715 = vmul.f32 %v710, %v714
        %716 = vrot.lane.b32.xlu0 %v453, 56
        %v717 = vpop.permute.xlu0 %716
        %v720 = vsel %vm465, %v715, 0
        %722 = vmatprep.subr.mxu0 0.0
        %723 = vmatpush1.msra.mxu0 %v717
        %724 = vmatprep.subr.mxu0 0.0
        %725 = vmatpush1.msra.mxu0 0.0
        %726 = vmatprep.subr.mxu0 0.0
        %727 = vmatpush1.msra.mxu0 0.0
        %728 = vmatprep.subr.mxu0 0.0
        %729 = vmatpush1.msra.mxu0 0.0
        %730 = vmatprep.subr.mxu0 0.0
        %731 = vmatpush1.msra.mxu0 0.0
        %732 = vmatprep.subr.mxu0 0.0
        %733 = vmatpush1.msra.mxu0 0.0
        %734 = vmatprep.subr.mxu0 0.0
        %735 = vmatpush1.msra.mxu0 0.0
        %736 = vmatprep.subr.mxu0 0.0
        %737 = vmatpush1.msra.mxu0 0.0
        %738 = vmatprep.subr.mxu0 0.0
        %739 = vmatpush1.msra.mxu0 0.0
        %740 = vmatprep.subr.mxu0 0.0
        %741 = vmatpush1.msra.mxu0 0.0
        %742 = vmatprep.subr.mxu0 0.0
        %743 = vmatpush1.msra.mxu0 0.0
        %744 = vmatprep.subr.mxu0 0.0
        %745 = vmatpush1.msra.mxu0 0.0
        %746 = vmatprep.subr.mxu0 0.0
        %747 = vmatpush1.msra.mxu0 0.0
        %748 = vmatprep.subr.mxu0 0.0
        %749 = vmatpush1.msra.mxu0 0.0
        %750 = vmatprep.subr.mxu0 0.0
        %751 = vmatpush1.msra.mxu0 0.0
        %752 = vmatprep.subr.mxu0 0.0
        %753 = vmatpush1.msra.mxu0 0.0
        %754 = vmatprep.subr.mxu0 0.0
        %755 = vmatpush1.msra.mxu0 0.0
        %756 = vmatprep.subr.mxu0 0.0
        %757 = vmatpush1.msra.mxu0 0.0
        %758 = vmatprep.subr.mxu0 0.0
        %759 = vmatpush1.msra.mxu0 0.0
        %760 = vmatprep.subr.mxu0 0.0
        %761 = vmatpush1.msra.mxu0 0.0
        %762 = vmatprep.subr.mxu0 0.0
        %763 = vmatpush1.msra.mxu0 0.0
        %764 = vmatprep.subr.mxu0 0.0
        %765 = vmatpush1.msra.mxu0 0.0
        %766 = vmatprep.subr.mxu0 0.0
        %767 = vmatpush1.msra.mxu0 0.0
        %768 = vmatprep.subr.mxu0 0.0
        %769 = vmatpush1.msra.mxu0 0.0
        %770 = vmatprep.subr.mxu0 0.0
        %771 = vmatpush1.msra.mxu0 0.0
        %772 = vmatprep.subr.mxu0 0.0
        %773 = vmatpush1.msra.mxu0 0.0
        %774 = vmatprep.subr.mxu0 0.0
        %775 = vmatpush1.msra.mxu0 0.0
        %776 = vmatprep.subr.mxu0 0.0
        %777 = vmatpush1.msra.mxu0 0.0
        %778 = vmatprep.subr.mxu0 0.0
        %779 = vmatpush1.msra.mxu0 0.0
        %780 = vmatprep.subr.mxu0 0.0
        %781 = vmatpush1.msra.mxu0 0.0
        %782 = vmatprep.subr.mxu0 0.0
        %783 = vmatpush1.msra.mxu0 0.0
        %784 = vmatprep.subr.mxu0 0.0
        %785 = vmatpush1.msra.mxu0 0.0
        %786 = vmatprep.mubr.f32.mxu0 0.0
        %787 = vmatmul.mubr.f32.gmra.mrb[0].mxu0 %v720
        %v788 = vpop.f32.mrb[0].mxu0
        %v789 = vadd.f32 0.0, %v788
        %v790 = vpop.f32.mrb[0].mxu0
        %791 = vdwg.mxu0
        %792 = vrot.lane.b32.xlu0 %v453, 112
        %v793 = vpop.permute.xlu0 %792
        %794 = vrot.lane.b32.xlu0 %v453, 80
        %v795 = vpop.permute.xlu0 %794
        %v796 = vsel %vm465, %v793, 0
        %v798 = vsel %vm465, %v795, 0
        %800 = vmatprep.subr.mxu0 0.0
        %801 = vmatpush1.xpose.msra.mxu0 %v798
        %802 = vmatprep.subr.mxu0 0.0
        %803 = vmatpush1.xpose.msra.mxu0 0.0
        %804 = vmatprep.subr.mxu0 0.0
        %805 = vmatpush1.xpose.msra.mxu0 0.0
        %806 = vmatprep.subr.mxu0 0.0
        %807 = vmatpush1.xpose.msra.mxu0 0.0
        %808 = vmatprep.subr.mxu0 0.0
        %809 = vmatpush1.xpose.msra.mxu0 0.0
        %810 = vmatprep.subr.mxu0 0.0
        %811 = vmatpush1.xpose.msra.mxu0 0.0
        %812 = vmatprep.subr.mxu0 0.0
        %813 = vmatpush1.xpose.msra.mxu0 0.0
        %814 = vmatprep.subr.mxu0 0.0
        %815 = vmatpush1.xpose.msra.mxu0 0.0
        %816 = vmatprep.subr.mxu0 0.0
        %817 = vmatpush1.xpose.msra.mxu0 0.0
        %818 = vmatprep.subr.mxu0 0.0
        %819 = vmatpush1.xpose.msra.mxu0 0.0
        %820 = vmatprep.subr.mxu0 0.0
        %821 = vmatpush1.xpose.msra.mxu0 0.0
        %822 = vmatprep.subr.mxu0 0.0
        %823 = vmatpush1.xpose.msra.mxu0 0.0
        %824 = vmatprep.subr.mxu0 0.0
        %825 = vmatpush1.xpose.msra.mxu0 0.0
        %826 = vmatprep.subr.mxu0 0.0
        %827 = vmatpush1.xpose.msra.mxu0 0.0
        %828 = vmatprep.subr.mxu0 0.0
        %829 = vmatpush1.xpose.msra.mxu0 0.0
        %830 = vmatprep.subr.mxu0 0.0
        %831 = vmatpush1.xpose.msra.mxu0 0.0
        %832 = vmatprep.subr.mxu0 0.0
        %833 = vmatpush1.xpose.msra.mxu0 0.0
        %834 = vmatprep.subr.mxu0 0.0
        %835 = vmatpush1.xpose.msra.mxu0 0.0
        %836 = vmatprep.subr.mxu0 0.0
        %837 = vmatpush1.xpose.msra.mxu0 0.0
        %838 = vmatprep.subr.mxu0 0.0
        %839 = vmatpush1.xpose.msra.mxu0 0.0
        %840 = vmatprep.subr.mxu0 0.0
        %841 = vmatpush1.xpose.msra.mxu0 0.0
        %842 = vmatprep.subr.mxu0 0.0
        %843 = vmatpush1.xpose.msra.mxu0 0.0
        %844 = vmatprep.subr.mxu0 0.0
        %845 = vmatpush1.xpose.msra.mxu0 0.0
        %846 = vmatprep.subr.mxu0 0.0
        %847 = vmatpush1.xpose.msra.mxu0 0.0
        %848 = vmatprep.subr.mxu0 0.0
        %849 = vmatpush1.xpose.msra.mxu0 0.0
        %850 = vmatprep.subr.mxu0 0.0
        %851 = vmatpush1.xpose.msra.mxu0 0.0
        %852 = vmatprep.subr.mxu0 0.0
        %853 = vmatpush1.xpose.msra.mxu0 0.0
        %854 = vmatprep.subr.mxu0 0.0
        %855 = vmatpush1.xpose.msra.mxu0 0.0
        %856 = vmatprep.subr.mxu0 0.0
        %857 = vmatpush1.xpose.msra.mxu0 0.0
        %858 = vmatprep.subr.mxu0 0.0
        %859 = vmatpush1.xpose.msra.mxu0 0.0
        %860 = vmatprep.subr.mxu0 0.0
        %861 = vmatpush1.xpose.msra.mxu0 0.0
        %862 = vmatprep.subr.mxu0 0.0
        %863 = vmatpush1.xpose.msra.mxu0 0.0
        %864 = vmatprep.mubr.f32.mxu0 0.0
        %865 = vmatmul.mubr.f32.gmra.mrb[0].mxu0 %v796
        %v866 = vpop.f32.mrb[0].mxu0
        %v867 = vadd.f32 %v460, %v866
        %v868 = vpop.f32.mrb[0].mxu0
        %869 = vdwg.mxu0
        %v870 = vsel %vm465, %v867, -inf
        %871 = vmax.xlane.f32.xlu0 %v870
        %v872 = vpop.xlane.xlu0 %871
        %v873 = vsub.f32 %v867, %v872
        %v874 = vmul.f32 %v873, 1.442695
        %v875 = vpow.pop %v874
        %v876 = vsel %vm465, %v875, 0.0
        %877 = vadd.xlane.f32.xlu0 %v876
        %v878 = vpop.xlane.xlu0 %877
        %v879 = vrcp.pop %v878
        %v880 = vmul.f32 %v875, %v879
        %881 = vrot.lane.b32.xlu0 %v453, 48
        %v882 = vpop.permute.xlu0 %881
        %v885 = vsel %vm465, %v880, 0
        %887 = vmatprep.subr.mxu0 0.0
        %888 = vmatpush1.msra.mxu0 %v882
        %889 = vmatprep.subr.mxu0 0.0
        %890 = vmatpush1.msra.mxu0 0.0
        %891 = vmatprep.subr.mxu0 0.0
        %892 = vmatpush1.msra.mxu0 0.0
        %893 = vmatprep.subr.mxu0 0.0
        %894 = vmatpush1.msra.mxu0 0.0
        %895 = vmatprep.subr.mxu0 0.0
        %896 = vmatpush1.msra.mxu0 0.0
        %897 = vmatprep.subr.mxu0 0.0
        %898 = vmatpush1.msra.mxu0 0.0
        %899 = vmatprep.subr.mxu0 0.0
        %900 = vmatpush1.msra.mxu0 0.0
        %901 = vmatprep.subr.mxu0 0.0
        %902 = vmatpush1.msra.mxu0 0.0
        %903 = vmatprep.subr.mxu0 0.0
        %904 = vmatpush1.msra.mxu0 0.0
        %905 = vmatprep.subr.mxu0 0.0
        %906 = vmatpush1.msra.mxu0 0.0
        %907 = vmatprep.subr.mxu0 0.0
        %908 = vmatpush1.msra.mxu0 0.0
        %909 = vmatprep.subr.mxu0 0.0
        %910 = vmatpush1.msra.mxu0 0.0
        %911 = vmatprep.subr.mxu0 0.0
        %912 = vmatpush1.msra.mxu0 0.0
        %913 = vmatprep.subr.mxu0 0.0
        %914 = vmatpush1.msra.mxu0 0.0
        %915 = vmatprep.subr.mxu0 0.0
        %916 = vmatpush1.msra.mxu0 0.0
        %917 = vmatprep.subr.mxu0 0.0
        %918 = vmatpush1.msra.mxu0 0.0
        %919 = vmatprep.subr.mxu0 0.0
        %920 = vmatpush1.msra.mxu0 0.0
        %921 = vmatprep.subr.mxu0 0.0
        %922 = vmatpush1.msra.mxu0 0.0
        %923 = vmatprep.subr.mxu0 0.0
        %924 = vmatpush1.msra.mxu0 0.0
        %925 = vmatprep.subr.mxu0 0.0
        %926 = vmatpush1.msra.mxu0 0.0
        %927 = vmatprep.subr.mxu0 0.0
        %928 = vmatpush1.msra.mxu0 0.0
        %929 = vmatprep.subr.mxu0 0.0
        %930 = vmatpush1.msra.mxu0 0.0
        %931 = vmatprep.subr.mxu0 0.0
        %932 = vmatpush1.msra.mxu0 0.0
        %933 = vmatprep.subr.mxu0 0.0
        %934 = vmatpush1.msra.mxu0 0.0
        %935 = vmatprep.subr.mxu0 0.0
        %936 = vmatpush1.msra.mxu0 0.0
        %937 = vmatprep.subr.mxu0 0.0
        %938 = vmatpush1.msra.mxu0 0.0
        %939 = vmatprep.subr.mxu0 0.0
        %940 = vmatpush1.msra.mxu0 0.0
        %941 = vmatprep.subr.mxu0 0.0
        %942 = vmatpush1.msra.mxu0 0.0
        %943 = vmatprep.subr.mxu0 0.0
        %944 = vmatpush1.msra.mxu0 0.0
        %945 = vmatprep.subr.mxu0 0.0
        %946 = vmatpush1.msra.mxu0 0.0
        %947 = vmatprep.subr.mxu0 0.0
        %948 = vmatpush1.msra.mxu0 0.0
        %949 = vmatprep.subr.mxu0 0.0
        %950 = vmatpush1.msra.mxu0 0.0
        %951 = vmatprep.mubr.f32.mxu0 0.0
        %952 = vmatmul.mubr.f32.gmra.mrb[0].mxu0 %v885
        %v953 = vpop.f32.mrb[0].mxu0
        %v954 = vadd.f32 0.0, %v953
        %v955 = vpop.f32.mrb[0].mxu0
        %956 = vdwg.mxu0
        %957 = vrot.lane.b32.xlu0 %v453, 104
        %v958 = vpop.permute.xlu0 %957
        %959 = vrot.lane.b32.xlu0 %v453, 72
        %v960 = vpop.permute.xlu0 %959
        %v961 = vsel %vm465, %v958, 0
        %v963 = vsel %vm465, %v960, 0
        %965 = vmatprep.subr.mxu0 0.0
        %966 = vmatpush1.xpose.msra.mxu0 %v963
        %967 = vmatprep.subr.mxu0 0.0
        %968 = vmatpush1.xpose.msra.mxu0 0.0
        %969 = vmatprep.subr.mxu0 0.0
        %970 = vmatpush1.xpose.msra.mxu0 0.0
        %971 = vmatprep.subr.mxu0 0.0
        %972 = vmatpush1.xpose.msra.mxu0 0.0
        %973 = vmatprep.subr.mxu0 0.0
        %974 = vmatpush1.xpose.msra.mxu0 0.0
        %975 = vmatprep.subr.mxu0 0.0
        %976 = vmatpush1.xpose.msra.mxu0 0.0
        %977 = vmatprep.subr.mxu0 0.0
        %978 = vmatpush1.xpose.msra.mxu0 0.0
        %979 = vmatprep.subr.mxu0 0.0
        %980 = vmatpush1.xpose.msra.mxu0 0.0
        %981 = vmatprep.subr.mxu0 0.0
        %982 = vmatpush1.xpose.msra.mxu0 0.0
        %983 = vmatprep.subr.mxu0 0.0
        %984 = vmatpush1.xpose.msra.mxu0 0.0
        %985 = vmatprep.subr.mxu0 0.0
        %986 = vmatpush1.xpose.msra.mxu0 0.0
        %987 = vmatprep.subr.mxu0 0.0
        %988 = vmatpush1.xpose.msra.mxu0 0.0
        %989 = vmatprep.subr.mxu0 0.0
        %990 = vmatpush1.xpose.msra.mxu0 0.0
        %991 = vmatprep.subr.mxu0 0.0
        %992 = vmatpush1.xpose.msra.mxu0 0.0
        %993 = vmatprep.subr.mxu0 0.0
        %994 = vmatpush1.xpose.msra.mxu0 0.0
        %995 = vmatprep.subr.mxu0 0.0
        %996 = vmatpush1.xpose.msra.mxu0 0.0
        %997 = vmatprep.subr.mxu0 0.0
        %998 = vmatpush1.xpose.msra.mxu0 0.0
        %999 = vmatprep.subr.mxu0 0.0
        %1000 = vmatpush1.xpose.msra.mxu0 0.0
        %1001 = vmatprep.subr.mxu0 0.0
        %1002 = vmatpush1.xpose.msra.mxu0 0.0
        %1003 = vmatprep.subr.mxu0 0.0
        %1004 = vmatpush1.xpose.msra.mxu0 0.0
        %1005 = vmatprep.subr.mxu0 0.0
        %1006 = vmatpush1.xpose.msra.mxu0 0.0
        %1007 = vmatprep.subr.mxu0 0.0
        %1008 = vmatpush1.xpose.msra.mxu0 0.0
        %1009 = vmatprep.subr.mxu0 0.0
        %1010 = vmatpush1.xpose.msra.mxu0 0.0
        %1011 = vmatprep.subr.mxu0 0.0
        %1012 = vmatpush1.xpose.msra.mxu0 0.0
        %1013 = vmatprep.subr.mxu0 0.0
        %1014 = vmatpush1.xpose.msra.mxu0 0.0
        %1015 = vmatprep.subr.mxu0 0.0
        %1016 = vmatpush1.xpose.msra.mxu0 0.0
        %1017 = vmatprep.subr.mxu0 0.0
        %1018 = vmatpush1.xpose.msra.mxu0 0.0
        %1019 = vmatprep.subr.mxu0 0.0
        %1020 = vmatpush1.xpose.msra.mxu0 0.0
        %1021 = vmatprep.subr.mxu0 0.0
        %1022 = vmatpush1.xpose.msra.mxu0 0.0
        %1023 = vmatprep.subr.mxu0 0.0
        %1024 = vmatpush1.xpose.msra.mxu0 0.0
        %1025 = vmatprep.subr.mxu0 0.0
        %1026 = vmatpush1.xpose.msra.mxu0 0.0
        %1027 = vmatprep.subr.mxu0 0.0
        %1028 = vmatpush1.xpose.msra.mxu0 0.0
        %1029 = vmatprep.mubr.f32.mxu0 0.0
        %1030 = vmatmul.mubr.f32.gmra.mrb[0].mxu0 %v961
        %v1031 = vpop.f32.mrb[0].mxu0
        %v1032 = vadd.f32 %v460, %v1031
        %v1033 = vpop.f32.mrb[0].mxu0
        %1034 = vdwg.mxu0
        %v1035 = vsel %vm465, %v1032, -inf
        %1036 = vmax.xlane.f32.xlu0 %v1035
        %v1037 = vpop.xlane.xlu0 %1036
        %v1038 = vsub.f32 %v1032, %v1037
        %v1039 = vmul.f32 %v1038, 1.442695
        %v1040 = vpow.pop %v1039
        %v1041 = vsel %vm465, %v1040, 0.0
        %1042 = vadd.xlane.f32.xlu0 %v1041
        %v1043 = vpop.xlane.xlu0 %1042
        %v1044 = vrcp.pop %v1043
        %v1045 = vmul.f32 %v1040, %v1044
        %1046 = vrot.lane.b32.xlu0 %v453, 40
        %v1047 = vpop.permute.xlu0 %1046
        %v1050 = vsel %vm465, %v1045, 0
        %1052 = vmatprep.subr.mxu0 0.0
        %1053 = vmatpush1.msra.mxu0 %v1047
        %1054 = vmatprep.subr.mxu0 0.0
        %1055 = vmatpush1.msra.mxu0 0.0
        %1056 = vmatprep.subr.mxu0 0.0
        %1057 = vmatpush1.msra.mxu0 0.0
        %1058 = vmatprep.subr.mxu0 0.0
        %1059 = vmatpush1.msra.mxu0 0.0
        %1060 = vmatprep.subr.mxu0 0.0
        %1061 = vmatpush1.msra.mxu0 0.0
        %1062 = vmatprep.subr.mxu0 0.0
        %1063 = vmatpush1.msra.mxu0 0.0
        %1064 = vmatprep.subr.mxu0 0.0
        %1065 = vmatpush1.msra.mxu0 0.0
        %1066 = vmatprep.subr.mxu0 0.0
        %1067 = vmatpush1.msra.mxu0 0.0
        %1068 = vmatprep.subr.mxu0 0.0
        %1069 = vmatpush1.msra.mxu0 0.0
        %1070 = vmatprep.subr.mxu0 0.0
        %1071 = vmatpush1.msra.mxu0 0.0
        %1072 = vmatprep.subr.mxu0 0.0
        %1073 = vmatpush1.msra.mxu0 0.0
        %1074 = vmatprep.subr.mxu0 0.0
        %1075 = vmatpush1.msra.mxu0 0.0
        %1076 = vmatprep.subr.mxu0 0.0
        %1077 = vmatpush1.msra.mxu0 0.0
        %1078 = vmatprep.subr.mxu0 0.0
        %1079 = vmatpush1.msra.mxu0 0.0
        %1080 = vmatprep.subr.mxu0 0.0
        %1081 = vmatpush1.msra.mxu0 0.0
        %1082 = vmatprep.subr.mxu0 0.0
        %1083 = vmatpush1.msra.mxu0 0.0
        %1084 = vmatprep.subr.mxu0 0.0
        %1085 = vmatpush1.msra.mxu0 0.0
        %1086 = vmatprep.subr.mxu0 0.0
        %1087 = vmatpush1.msra.mxu0 0.0
        %1088 = vmatprep.subr.mxu0 0.0
        %1089 = vmatpush1.msra.mxu0 0.0
        %1090 = vmatprep.subr.mxu0 0.0
        %1091 = vmatpush1.msra.mxu0 0.0
        %1092 = vmatprep.subr.mxu0 0.0
        %1093 = vmatpush1.msra.mxu0 0.0
        %1094 = vmatprep.subr.mxu0 0.0
        %1095 = vmatpush1.msra.mxu0 0.0
        %1096 = vmatprep.subr.mxu0 0.0
        %1097 = vmatpush1.msra.mxu0 0.0
        %1098 = vmatprep.subr.mxu0 0.0
        %1099 = vmatpush1.msra.mxu0 0.0
        %1100 = vmatprep.subr.mxu0 0.0
        %1101 = vmatpush1.msra.mxu0 0.0
        %1102 = vmatprep.subr.mxu0 0.0
        %1103 = vmatpush1.msra.mxu0 0.0
        %1104 = vmatprep.subr.mxu0 0.0
        %1105 = vmatpush1.msra.mxu0 0.0
        %1106 = vmatprep.subr.mxu0 0.0
        %1107 = vmatpush1.msra.mxu0 0.0
        %1108 = vmatprep.subr.mxu0 0.0
        %1109 = vmatpush1.msra.mxu0 0.0
        %1110 = vmatprep.subr.mxu0 0.0
        %1111 = vmatpush1.msra.mxu0 0.0
        %1112 = vmatprep.subr.mxu0 0.0
        %1113 = vmatpush1.msra.mxu0 0.0
        %1114 = vmatprep.subr.mxu0 0.0
        %1115 = vmatpush1.msra.mxu0 0.0
        %1116 = vmatprep.mubr.f32.mxu0 0.0
        %1117 = vmatmul.mubr.f32.gmra.mrb[0].mxu0 %v1050
        %v1118 = vpop.f32.mrb[0].mxu0
        %v1119 = vadd.f32 0.0, %v1118
        %v1120 = vpop.f32.mrb[0].mxu0
        %1121 = vdwg.mxu0
        %1123 = vrot.lane.b32.xlu0 %v789, 8
        %v1124 = vpop.permute.xlu0 %1123
        %1127 = vrot.lane.b32.xlu0 %v954, 16
        %v1128 = vpop.permute.xlu0 %1127
        %1131 = vrot.lane.b32.xlu0 %v1119, 24
        %v1132 = vpop.permute.xlu0 %1131
        %v1134 = vsel %vm465, %v624, %v1124
        %vm1135 = vcmask 130048
        %v1136 = vsel %vm1135, %v1134, %v1128
        %vm1137 = vcmask 195584
        %v1138 = vsel %vm1137, %v1136, %v1132
        %v1139 = vld [vmem:[#allocation5 + $0xd0] sm:$0xff]
        %v1140 = vld [vmem:[#allocation5 + $0xd8] sm:$0xff]
        %v1141 = vld [vmem:[#allocation5 + $0xe0] sm:$0xff]
        %v1142 = vld [vmem:[#allocation5 + $0xe8] sm:$0xff]
        %v1143 = vld [vmem:[#allocation8 + $0x18] sm:$0x1]
        %v1144 = vlaneseq
        %v1145 = vshrl.u32 %v1144, 7
        %v1146 = vsub.s32 0, %v1145
        %v1147 = vrot.slane %v1143, %v1146
        %v1149 = vsel %vm340, %v1138, 0
        %1151 = vmatprep.subr.mxu0 0.0
        %1152 = vmatpush1.msra.mxu0 %v1139
        %1153 = vmatprep.subr.mxu0 0.0
        %1154 = vmatpush1.msra.mxu0 %v1140
        %1155 = vmatprep.subr.mxu0 0.0
        %1156 = vmatpush1.msra.mxu0 %v1141
        %1157 = vmatprep.subr.mxu0 0.0
        %1158 = vmatpush1.msra.mxu0 %v1142
        %1159 = vmatprep.subr.mxu0 0.0
        %1160 = vmatpush1.msra.mxu0 0.0
        %1161 = vmatprep.subr.mxu0 0.0
        %1162 = vmatpush1.msra.mxu0 0.0
        %1163 = vmatprep.subr.mxu0 0.0
        %1164 = vmatpush1.msra.mxu0 0.0
        %1165 = vmatprep.subr.mxu0 0.0
        %1166 = vmatpush1.msra.mxu0 0.0
        %1167 = vmatprep.subr.mxu0 0.0
        %1168 = vmatpush1.msra.mxu0 0.0
        %1169 = vmatprep.subr.mxu0 0.0
        %1170 = vmatpush1.msra.mxu0 0.0
        %1171 = vmatprep.subr.mxu0 0.0
        %1172 = vmatpush1.msra.mxu0 0.0
        %1173 = vmatprep.subr.mxu0 0.0
        %1174 = vmatpush1.msra.mxu0 0.0
        %1175 = vmatprep.subr.mxu0 0.0
        %1176 = vmatpush1.msra.mxu0 0.0
        %1177 = vmatprep.subr.mxu0 0.0
        %1178 = vmatpush1.msra.mxu0 0.0
        %1179 = vmatprep.subr.mxu0 0.0
        %1180 = vmatpush1.msra.mxu0 0.0
        %1181 = vmatprep.subr.mxu0 0.0
        %1182 = vmatpush1.msra.mxu0 0.0
        %1183 = vmatprep.subr.mxu0 0.0
        %1184 = vmatpush1.msra.mxu0 0.0
        %1185 = vmatprep.subr.mxu0 0.0
        %1186 = vmatpush1.msra.mxu0 0.0
        %1187 = vmatprep.subr.mxu0 0.0
        %1188 = vmatpush1.msra.mxu0 0.0
        %1189 = vmatprep.subr.mxu0 0.0
        %1190 = vmatpush1.msra.mxu0 0.0
        %1191 = vmatprep.subr.mxu0 0.0
        %1192 = vmatpush1.msra.mxu0 0.0
        %1193 = vmatprep.subr.mxu0 0.0
        %1194 = vmatpush1.msra.mxu0 0.0
        %1195 = vmatprep.subr.mxu0 0.0
        %1196 = vmatpush1.msra.mxu0 0.0
        %1197 = vmatprep.subr.mxu0 0.0
        %1198 = vmatpush1.msra.mxu0 0.0
        %1199 = vmatprep.subr.mxu0 0.0
        %1200 = vmatpush1.msra.mxu0 0.0
        %1201 = vmatprep.subr.mxu0 0.0
        %1202 = vmatpush1.msra.mxu0 0.0
        %1203 = vmatprep.subr.mxu0 0.0
        %1204 = vmatpush1.msra.mxu0 0.0
        %1205 = vmatprep.subr.mxu0 0.0
        %1206 = vmatpush1.msra.mxu0 0.0
        %1207 = vmatprep.subr.mxu0 0.0
        %1208 = vmatpush1.msra.mxu0 0.0
        %1209 = vmatprep.subr.mxu0 0.0
        %1210 = vmatpush1.msra.mxu0 0.0
        %1211 = vmatprep.subr.mxu0 0.0
        %1212 = vmatpush1.msra.mxu0 0.0
        %1213 = vmatprep.subr.mxu0 0.0
        %1214 = vmatpush1.msra.mxu0 0.0
        %1215 = vmatprep.mubr.f32.mxu0 0.0
        %1216 = vmatmul.mubr.f32.gmra.mrb[0].mxu0 %v1149
        %v1217 = vpop.f32.mrb[0].mxu0
        %v1218 = vadd.f32 %v1147, %v1217
        %v1219 = vpop.f32.mrb[0].mxu0
        %1220 = vdwg.mxu0
        %v1221 = vadd.f32 %v339, %v1218
        %v1222 = vsel %vm340, %v1221, 0.0
        %1223 = vadd.xlane.f32.xlu0 %v1222
        %v1224 = vpop.xlane.xlu0 %1223
        %v1225 = vmul.f32 %v1224, %v344
        %v1226 = vsub.f32 %v1221, %v1225
        %v1227 = vmul.f32 %v1226, %v1226
        %v1228 = vsel %vm340, %v1227, 0.0
        %1229 = vadd.xlane.f32.xlu0 %v1228
        %v1230 = vpop.xlane.xlu0 %1229
        %v1231 = vmul.f32 %v1230, 0.032258064
        %v1232 = vrsqrt.pop %v1231
        %v1233 = vmul.f32 %v1231, %v1232
        %vm1234 = vcmp.eq.f32.partialorder %v1231, inf
        %v1235 = vsel %vm1234, %v1231, %v1233
        %vm1236 = vcmp.eq.f32.partialorder %v1231, 0.0
        %v1237 = vand.u32 %v1231, 2147483648
        %v1238 = vsel %vm1236, %v1237, %v1235
        %v1239 = vld [vmem:[#allocation8 + $0x20] sm:$0x1]
        %v1240 = vlaneseq
        %v1241 = vshrl.u32 %v1240, 7
        %v1242 = vsub.s32 0, %v1241
        %v1243 = vrot.slane %v1239, %v1242
        %v1244 = vmul.f32 %v1243, %v1226
        %v1245 = vadd.f32 %v1238, 1e-06
        %v1246 = vrcp.pop %v1245
        %v1247 = vmul.f32 %v1244, %v1246
        %v1248 = vld [vmem:[#allocation8 + $0x28] sm:$0x1]
        %v1249 = vlaneseq
        %v1250 = vshrl.u32 %v1249, 7
        %v1251 = vsub.s32 0, %v1250
        %v1252 = vrot.slane %v1248, %v1251
        %v1253 = vadd.f32 %v1247, %v1252
        %v1254 = vld [vmem:[#allocation5 + $0xf0] sm:$0xff]
        %v1255 = vld [vmem:[#allocation5 + $0xf8] sm:$0xff]
        %v1256 = vld [vmem:[#allocation5 + $0x100] sm:$0xff]
        %v1257 = vld [vmem:[#allocation5 + $0x108] sm:$0xff]
        %v1258 = vld [vmem:[#allocation8 + $0x30] sm:$0x1]
        %v1259 = vlaneseq
        %v1260 = vshrl.u32 %v1259, 7
        %v1261 = vsub.s32 0, %v1260
        %v1262 = vrot.slane %v1258, %v1261
        %v1264 = vsel %vm340, %v1253, 0
        %1266 = vmatprep.subr.mxu0 0.0
        %1267 = vmatpush1.msra.mxu0 %v1254
        %1268 = vmatprep.subr.mxu0 0.0
        %1269 = vmatpush1.msra.mxu0 %v1255
        %1270 = vmatprep.subr.mxu0 0.0
        %1271 = vmatpush1.msra.mxu0 %v1256
        %1272 = vmatprep.subr.mxu0 0.0
        %1273 = vmatpush1.msra.mxu0 %v1257
        %1274 = vmatprep.subr.mxu0 0.0
        %1275 = vmatpush1.msra.mxu0 0.0
        %1276 = vmatprep.subr.mxu0 0.0
        %1277 = vmatpush1.msra.mxu0 0.0
        %1278 = vmatprep.subr.mxu0 0.0
        %1279 = vmatpush1.msra.mxu0 0.0
        %1280 = vmatprep.subr.mxu0 0.0
        %1281 = vmatpush1.msra.mxu0 0.0
        %1282 = vmatprep.subr.mxu0 0.0
        %1283 = vmatpush1.msra.mxu0 0.0
        %1284 = vmatprep.subr.mxu0 0.0
        %1285 = vmatpush1.msra.mxu0 0.0
        %1286 = vmatprep.subr.mxu0 0.0
        %1287 = vmatpush1.msra.mxu0 0.0
        %1288 = vmatprep.subr.mxu0 0.0
        %1289 = vmatpush1.msra.mxu0 0.0
        %1290 = vmatprep.subr.mxu0 0.0
        %1291 = vmatpush1.msra.mxu0 0.0
        %1292 = vmatprep.subr.mxu0 0.0
        %1293 = vmatpush1.msra.mxu0 0.0
        %1294 = vmatprep.subr.mxu0 0.0
        %1295 = vmatpush1.msra.mxu0 0.0
        %1296 = vmatprep.subr.mxu0 0.0
        %1297 = vmatpush1.msra.mxu0 0.0
        %1298 = vmatprep.subr.mxu0 0.0
        %1299 = vmatpush1.msra.mxu0 0.0
        %1300 = vmatprep.subr.mxu0 0.0
        %1301 = vmatpush1.msra.mxu0 0.0
        %1302 = vmatprep.subr.mxu0 0.0
        %1303 = vmatpush1.msra.mxu0 0.0
        %1304 = vmatprep.subr.mxu0 0.0
        %1305 = vmatpush1.msra.mxu0 0.0
        %1306 = vmatprep.subr.mxu0 0.0
        %1307 = vmatpush1.msra.mxu0 0.0
        %1308 = vmatprep.subr.mxu0 0.0
        %1309 = vmatpush1.msra.mxu0 0.0
        %1310 = vmatprep.subr.mxu0 0.0
        %1311 = vmatpush1.msra.mxu0 0.0
        %1312 = vmatprep.subr.mxu0 0.0
        %1313 = vmatpush1.msra.mxu0 0.0
        %1314 = vmatprep.subr.mxu0 0.0
        %1315 = vmatpush1.msra.mxu0 0.0
        %1316 = vmatprep.subr.mxu0 0.0
        %1317 = vmatpush1.msra.mxu0 0.0
        %1318 = vmatprep.subr.mxu0 0.0
        %1319 = vmatpush1.msra.mxu0 0.0
        %1320 = vmatprep.subr.mxu0 0.0
        %1321 = vmatpush1.msra.mxu0 0.0
        %1322 = vmatprep.subr.mxu0 0.0
        %1323 = vmatpush1.msra.mxu0 0.0
        %1324 = vmatprep.subr.mxu0 0.0
        %1325 = vmatpush1.msra.mxu0 0.0
        %1326 = vmatprep.subr.mxu0 0.0
        %1327 = vmatpush1.msra.mxu0 0.0
        %1328 = vmatprep.subr.mxu0 0.0
        %1329 = vmatpush1.msra.mxu0 0.0
        %1330 = vmatprep.mubr.f32.mxu0 0.0
        %1331 = vmatmul.mubr.f32.gmra.mrb[0].mxu0 %v1264
        %v1332 = vpop.f32.mrb[0].mxu0
        %v1333 = vadd.f32 %v1262, %v1332
        %v1334 = vpop.f32.mrb[0].mxu0
        %1335 = vdwg.mxu0
        %v1336 = vmax.f32 %v1333, 0.0
        %v1337 = vld [vmem:[#allocation5 + $0x110] sm:$0xff]
        %v1338 = vld [vmem:[#allocation5 + $0x118] sm:$0xff]
        %v1339 = vld [vmem:[#allocation5 + $0x120] sm:$0xff]
        %v1340 = vld [vmem:[#allocation5 + $0x128] sm:$0xff]
        %v1341 = vld [vmem:[#allocation5 + $0x130] sm:$0xff]
        %v1342 = vld [vmem:[#allocation5 + $0x138] sm:$0xff]
        %v1343 = vld [vmem:[#allocation5 + $0x140] sm:$0xff]
        %v1344 = vld [vmem:[#allocation5 + $0x148] sm:$0xff]
        %v1345 = vld [vmem:[#allocation8 + $0x38] sm:$0x1]
        %v1346 = vlaneseq
        %v1347 = vshrl.u32 %v1346, 7
        %v1348 = vsub.s32 0, %v1347
        %v1349 = vrot.slane %v1345, %v1348
        %vm1350 = vcmask 523264
        %v1352 = vsel %vm1350, %v1336, 0
        %1354 = vmatprep.subr.mxu0 0.0
        %1355 = vmatpush1.msra.mxu0 %v1337
        %1356 = vmatprep.subr.mxu0 0.0
        %1357 = vmatpush1.msra.mxu0 %v1338
        %1358 = vmatprep.subr.mxu0 0.0
        %1359 = vmatpush1.msra.mxu0 %v1339
        %1360 = vmatprep.subr.mxu0 0.0
        %1361 = vmatpush1.msra.mxu0 %v1340
        %1362 = vmatprep.subr.mxu0 0.0
        %1363 = vmatpush1.msra.mxu0 %v1341
        %1364 = vmatprep.subr.mxu0 0.0
        %1365 = vmatpush1.msra.mxu0 %v1342
        %1366 = vmatprep.subr.mxu0 0.0
        %1367 = vmatpush1.msra.mxu0 %v1343
        %1368 = vmatprep.subr.mxu0 0.0
        %1369 = vmatpush1.msra.mxu0 %v1344
        %1370 = vmatprep.subr.mxu0 0.0
        %1371 = vmatpush1.msra.mxu0 0.0
        %1372 = vmatprep.subr.mxu0 0.0
        %1373 = vmatpush1.msra.mxu0 0.0
        %1374 = vmatprep.subr.mxu0 0.0
        %1375 = vmatpush1.msra.mxu0 0.0
        %1376 = vmatprep.subr.mxu0 0.0
        %1377 = vmatpush1.msra.mxu0 0.0
        %1378 = vmatprep.subr.mxu0 0.0
        %1379 = vmatpush1.msra.mxu0 0.0
        %1380 = vmatprep.subr.mxu0 0.0
        %1381 = vmatpush1.msra.mxu0 0.0
        %1382 = vmatprep.subr.mxu0 0.0
        %1383 = vmatpush1.msra.mxu0 0.0
        %1384 = vmatprep.subr.mxu0 0.0
        %1385 = vmatpush1.msra.mxu0 0.0
        %1386 = vmatprep.subr.mxu0 0.0
        %1387 = vmatpush1.msra.mxu0 0.0
        %1388 = vmatprep.subr.mxu0 0.0
        %1389 = vmatpush1.msra.mxu0 0.0
        %1390 = vmatprep.subr.mxu0 0.0
        %1391 = vmatpush1.msra.mxu0 0.0
        %1392 = vmatprep.subr.mxu0 0.0
        %1393 = vmatpush1.msra.mxu0 0.0
        %1394 = vmatprep.subr.mxu0 0.0
        %1395 = vmatpush1.msra.mxu0 0.0
        %1396 = vmatprep.subr.mxu0 0.0
        %1397 = vmatpush1.msra.mxu0 0.0
        %1398 = vmatprep.subr.mxu0 0.0
        %1399 = vmatpush1.msra.mxu0 0.0
        %1400 = vmatprep.subr.mxu0 0.0
        %1401 = vmatpush1.msra.mxu0 0.0
        %1402 = vmatprep.subr.mxu0 0.0
        %1403 = vmatpush1.msra.mxu0 0.0
        %1404 = vmatprep.subr.mxu0 0.0
        %1405 = vmatpush1.msra.mxu0 0.0
        %1406 = vmatprep.subr.mxu0 0.0
        %1407 = vmatpush1.msra.mxu0 0.0
        %1408 = vmatprep.subr.mxu0 0.0
        %1409 = vmatpush1.msra.mxu0 0.0
        %1410 = vmatprep.subr.mxu0 0.0
        %1411 = vmatpush1.msra.mxu0 0.0
        %1412 = vmatprep.subr.mxu0 0.0
        %1413 = vmatpush1.msra.mxu0 0.0
        %1414 = vmatprep.subr.mxu0 0.0
        %1415 = vmatpush1.msra.mxu0 0.0
        %1416 = vmatprep.subr.mxu0 0.0
        %1417 = vmatpush1.msra.mxu0 0.0
        %1418 = vmatprep.mubr.f32.mxu0 0.0
        %1419 = vmatmul.mubr.f32.gmra.mrb[0].mxu0 %v1352
        %v1420 = vpop.f32.mrb[0].mxu0
        %v1421 = vadd.f32 %v1349, %v1420
        %v1422 = vpop.f32.mrb[0].mxu0
        %1423 = vdwg.mxu0
        %v1424 = vadd.f32 %v1221, %v1421
        %v1425 = vsel %vm340, %v1424, 0.0
        %1426 = vadd.xlane.f32.xlu0 %v1425
        %v1427 = vpop.xlane.xlu0 %1426
        %v1428 = vmul.f32 %v1427, %v344
        %v1429 = vsub.f32 %v1424, %v1428
        %v1430 = vmul.f32 %v1429, %v1429
        %v1431 = vsel %vm340, %v1430, 0.0
        %1432 = vadd.xlane.f32.xlu0 %v1431
        %v1433 = vpop.xlane.xlu0 %1432
        %v1434 = vmul.f32 %v1433, 0.032258064
        %v1435 = vrsqrt.pop %v1434
        %v1436 = vmul.f32 %v1434, %v1435
        %vm1437 = vcmp.eq.f32.partialorder %v1434, inf
        %v1438 = vsel %vm1437, %v1434, %v1436
        %vm1439 = vcmp.eq.f32.partialorder %v1434, 0.0
        %v1440 = vand.u32 %v1434, 2147483648
        %v1441 = vsel %vm1439, %v1440, %v1438
        %v1442 = vld [vmem:[#allocation8 + $0x40] sm:$0x1]
        %v1443 = vlaneseq
        %v1444 = vshrl.u32 %v1443, 7
        %v1445 = vsub.s32 0, %v1444
        %v1446 = vrot.slane %v1442, %v1445
        %v1447 = vmul.f32 %v1446, %v1429
        %v1448 = vadd.f32 %v1441, 1e-06
        %v1449 = vrcp.pop %v1448
        %v1450 = vmul.f32 %v1447, %v1449
        %v1451 = vld [vmem:[#allocation8 + $0x48] sm:$0x1]
        %v1452 = vlaneseq
        %v1453 = vshrl.u32 %v1452, 7
        %v1454 = vsub.s32 0, %v1453
        %v1455 = vrot.slane %v1451, %v1454
        %v1456 = vadd.f32 %v1450, %v1455
        %v1457 = vld [vmem:[#allocation5 + $0x150] sm:$0xff]
        %v1458 = vld [vmem:[#allocation5 + $0x158] sm:$0xff]
        %v1459 = vld [vmem:[#allocation5 + $0x160] sm:$0xff]
        %v1460 = vld [vmem:[#allocation5 + $0x168] sm:$0xff]
        %v1461 = vld [vmem:[#allocation8 + $0x50] sm:$0x1]
        %v1462 = vlaneseq
        %v1463 = vshrl.u32 %v1462, 7
        %v1464 = vsub.s32 0, %v1463
        %v1465 = vrot.slane %v1461, %v1464
        %v1467 = vsel %vm340, %v1456, 0
        %1469 = vmatprep.subr.mxu0 0.0
        %1470 = vmatpush1.msra.mxu0 %v1457
        %1471 = vmatprep.subr.mxu0 0.0
        %1472 = vmatpush1.msra.mxu0 %v1458
        %1473 = vmatprep.subr.mxu0 0.0
        %1474 = vmatpush1.msra.mxu0 %v1459
        %1475 = vmatprep.subr.mxu0 0.0
        %1476 = vmatpush1.msra.mxu0 %v1460
        %1477 = vmatprep.subr.mxu0 0.0
        %1478 = vmatpush1.msra.mxu0 0.0
        %1479 = vmatprep.subr.mxu0 0.0
        %1480 = vmatpush1.msra.mxu0 0.0
        %1481 = vmatprep.subr.mxu0 0.0
        %1482 = vmatpush1.msra.mxu0 0.0
        %1483 = vmatprep.subr.mxu0 0.0
        %1484 = vmatpush1.msra.mxu0 0.0
        %1485 = vmatprep.subr.mxu0 0.0
        %1486 = vmatpush1.msra.mxu0 0.0
        %1487 = vmatprep.subr.mxu0 0.0
        %1488 = vmatpush1.msra.mxu0 0.0
        %1489 = vmatprep.subr.mxu0 0.0
        %1490 = vmatpush1.msra.mxu0 0.0
        %1491 = vmatprep.subr.mxu0 0.0
        %1492 = vmatpush1.msra.mxu0 0.0
        %1493 = vmatprep.subr.mxu0 0.0
        %1494 = vmatpush1.msra.mxu0 0.0
        %1495 = vmatprep.subr.mxu0 0.0
        %1496 = vmatpush1.msra.mxu0 0.0
        %1497 = vmatprep.subr.mxu0 0.0
        %1498 = vmatpush1.msra.mxu0 0.0
        %1499 = vmatprep.subr.mxu0 0.0
        %1500 = vmatpush1.msra.mxu0 0.0
        %1501 = vmatprep.subr.mxu0 0.0
        %1502 = vmatpush1.msra.mxu0 0.0
        %1503 = vmatprep.subr.mxu0 0.0
        %1504 = vmatpush1.msra.mxu0 0.0
        %1505 = vmatprep.subr.mxu0 0.0
        %1506 = vmatpush1.msra.mxu0 0.0
        %1507 = vmatprep.subr.mxu0 0.0
        %1508 = vmatpush1.msra.mxu0 0.0
        %1509 = vmatprep.subr.mxu0 0.0
        %1510 = vmatpush1.msra.mxu0 0.0
        %1511 = vmatprep.subr.mxu0 0.0
        %1512 = vmatpush1.msra.mxu0 0.0
        %1513 = vmatprep.subr.mxu0 0.0
        %1514 = vmatpush1.msra.mxu0 0.0
        %1515 = vmatprep.subr.mxu0 0.0
        %1516 = vmatpush1.msra.mxu0 0.0
        %1517 = vmatprep.subr.mxu0 0.0
        %1518 = vmatpush1.msra.mxu0 0.0
        %1519 = vmatprep.subr.mxu0 0.0
        %1520 = vmatpush1.msra.mxu0 0.0
        %1521 = vmatprep.subr.mxu0 0.0
        %1522 = vmatpush1.msra.mxu0 0.0
        %1523 = vmatprep.subr.mxu0 0.0
        %1524 = vmatpush1.msra.mxu0 0.0
        %1525 = vmatprep.subr.mxu0 0.0
        %1526 = vmatpush1.msra.mxu0 0.0
        %1527 = vmatprep.subr.mxu0 0.0
        %1528 = vmatpush1.msra.mxu0 0.0
        %1529 = vmatprep.subr.mxu0 0.0
        %1530 = vmatpush1.msra.mxu0 0.0
        %1531 = vmatprep.subr.mxu0 0.0
        %1532 = vmatpush1.msra.mxu0 0.0
        %1533 = vmatprep.mubr.f32.mxu0 0.0
        %1534 = vmatmul.mubr.f32.gmra.mrb[0].mxu0 %v1467
        %v1535 = vpop.f32.mrb[0].mxu0
        %v1536 = vadd.f32 %v1465, %v1535
        %v1537 = vpop.f32.mrb[0].mxu0
        %1538 = vdwg.mxu0
        %1540 = vrot.lane.b32.xlu0 %v1536, 96
        %v1541 = vpop.permute.xlu0 %1540
        %v1542 = vsel %vm465, %v1536, 0
        %v1544 = vsel %vm465, %v1541, 0
        %1546 = vmatprep.subr.mxu0 0.0
        %1547 = vmatpush1.xpose.msra.mxu0 %v1544
        %1548 = vmatprep.subr.mxu0 0.0
        %1549 = vmatpush1.xpose.msra.mxu0 0.0
        %1550 = vmatprep.subr.mxu0 0.0
        %1551 = vmatpush1.xpose.msra.mxu0 0.0
        %1552 = vmatprep.subr.mxu0 0.0
        %1553 = vmatpush1.xpose.msra.mxu0 0.0
        %1554 = vmatprep.subr.mxu0 0.0
        %1555 = vmatpush1.xpose.msra.mxu0 0.0
        %1556 = vmatprep.subr.mxu0 0.0
        %1557 = vmatpush1.xpose.msra.mxu0 0.0
        %1558 = vmatprep.subr.mxu0 0.0
        %1559 = vmatpush1.xpose.msra.mxu0 0.0
        %1560 = vmatprep.subr.mxu0 0.0
        %1561 = vmatpush1.xpose.msra.mxu0 0.0
        %1562 = vmatprep.subr.mxu0 0.0
        %1563 = vmatpush1.xpose.msra.mxu0 0.0
        %1564 = vmatprep.subr.mxu0 0.0
        %1565 = vmatpush1.xpose.msra.mxu0 0.0
        %1566 = vmatprep.subr.mxu0 0.0
        %1567 = vmatpush1.xpose.msra.mxu0 0.0
        %1568 = vmatprep.subr.mxu0 0.0
        %1569 = vmatpush1.xpose.msra.mxu0 0.0
        %1570 = vmatprep.subr.mxu0 0.0
        %1571 = vmatpush1.xpose.msra.mxu0 0.0
        %1572 = vmatprep.subr.mxu0 0.0
        %1573 = vmatpush1.xpose.msra.mxu0 0.0
        %1574 = vmatprep.subr.mxu0 0.0
        %1575 = vmatpush1.xpose.msra.mxu0 0.0
        %1576 = vmatprep.subr.mxu0 0.0
        %1577 = vmatpush1.xpose.msra.mxu0 0.0
        %1578 = vmatprep.subr.mxu0 0.0
        %1579 = vmatpush1.xpose.msra.mxu0 0.0
        %1580 = vmatprep.subr.mxu0 0.0
        %1581 = vmatpush1.xpose.msra.mxu0 0.0
        %1582 = vmatprep.subr.mxu0 0.0
        %1583 = vmatpush1.xpose.msra.mxu0 0.0
        %1584 = vmatprep.subr.mxu0 0.0
        %1585 = vmatpush1.xpose.msra.mxu0 0.0
        %1586 = vmatprep.subr.mxu0 0.0
        %1587 = vmatpush1.xpose.msra.mxu0 0.0
        %1588 = vmatprep.subr.mxu0 0.0
        %1589 = vmatpush1.xpose.msra.mxu0 0.0
        %1590 = vmatprep.subr.mxu0 0.0
        %1591 = vmatpush1.xpose.msra.mxu0 0.0
        %1592 = vmatprep.subr.mxu0 0.0
        %1593 = vmatpush1.xpose.msra.mxu0 0.0
        %1594 = vmatprep.subr.mxu0 0.0
        %1595 = vmatpush1.xpose.msra.mxu0 0.0
        %1596 = vmatprep.subr.mxu0 0.0
        %1597 = vmatpush1.xpose.msra.mxu0 0.0
        %1598 = vmatprep.subr.mxu0 0.0
        %1599 = vmatpush1.xpose.msra.mxu0 0.0
        %1600 = vmatprep.subr.mxu0 0.0
        %1601 = vmatpush1.xpose.msra.mxu0 0.0
        %1602 = vmatprep.subr.mxu0 0.0
        %1603 = vmatpush1.xpose.msra.mxu0 0.0
        %1604 = vmatprep.subr.mxu0 0.0
        %1605 = vmatpush1.xpose.msra.mxu0 0.0
        %1606 = vmatprep.subr.mxu0 0.0
        %1607 = vmatpush1.xpose.msra.mxu0 0.0
        %1608 = vmatprep.subr.mxu0 0.0
        %1609 = vmatpush1.xpose.msra.mxu0 0.0
        %1610 = vmatprep.mubr.f32.mxu0 0.0
        %1611 = vmatmul.mubr.f32.gmra.mrb[0].mxu0 %v1542
        %v1612 = vpop.f32.mrb[0].mxu0
        %v1613 = vadd.f32 %v460, %v1612
        %v1614 = vpop.f32.mrb[0].mxu0
        %1615 = vdwg.mxu0
        %v1616 = vsel %vm465, %v1613, -inf
        %1617 = vmax.xlane.f32.xlu0 %v1616
        %v1618 = vpop.xlane.xlu0 %1617
        %v1619 = vsub.f32 %v1613, %v1618
        %v1620 = vmul.f32 %v1619, 1.442695
        %v1621 = vpow.pop %v1620
        %v1622 = vsel %vm465, %v1621, 0.0
        %1623 = vadd.xlane.f32.xlu0 %v1622
        %v1624 = vpop.xlane.xlu0 %1623
        %v1625 = vrcp.pop %v1624
        %v1626 = vmul.f32 %v1621, %v1625
        %1627 = vrot.lane.b32.xlu0 %v1536, 64
        %v1628 = vpop.permute.xlu0 %1627
        %v1631 = vsel %vm465, %v1626, 0
        %1633 = vmatprep.subr.mxu0 0.0
        %1634 = vmatpush1.msra.mxu0 %v1628
        %1635 = vmatprep.subr.mxu0 0.0
        %1636 = vmatpush1.msra.mxu0 0.0
        %1637 = vmatprep.subr.mxu0 0.0
        %1638 = vmatpush1.msra.mxu0 0.0
        %1639 = vmatprep.subr.mxu0 0.0
        %1640 = vmatpush1.msra.mxu0 0.0
        %1641 = vmatprep.subr.mxu0 0.0
        %1642 = vmatpush1.msra.mxu0 0.0
        %1643 = vmatprep.subr.mxu0 0.0
        %1644 = vmatpush1.msra.mxu0 0.0
        %1645 = vmatprep.subr.mxu0 0.0
        %1646 = vmatpush1.msra.mxu0 0.0
        %1647 = vmatprep.subr.mxu0 0.0
        %1648 = vmatpush1.msra.mxu0 0.0
        %1649 = vmatprep.subr.mxu0 0.0
        %1650 = vmatpush1.msra.mxu0 0.0
        %1651 = vmatprep.subr.mxu0 0.0
        %1652 = vmatpush1.msra.mxu0 0.0
        %1653 = vmatprep.subr.mxu0 0.0
        %1654 = vmatpush1.msra.mxu0 0.0
        %1655 = vmatprep.subr.mxu0 0.0
        %1656 = vmatpush1.msra.mxu0 0.0
        %1657 = vmatprep.subr.mxu0 0.0
        %1658 = vmatpush1.msra.mxu0 0.0
        %1659 = vmatprep.subr.mxu0 0.0
        %1660 = vmatpush1.msra.mxu0 0.0
        %1661 = vmatprep.subr.mxu0 0.0
        %1662 = vmatpush1.msra.mxu0 0.0
        %1663 = vmatprep.subr.mxu0 0.0
        %1664 = vmatpush1.msra.mxu0 0.0
        %1665 = vmatprep.subr.mxu0 0.0
        %1666 = vmatpush1.msra.mxu0 0.0
        %1667 = vmatprep.subr.mxu0 0.0
        %1668 = vmatpush1.msra.mxu0 0.0
        %1669 = vmatprep.subr.mxu0 0.0
        %1670 = vmatpush1.msra.mxu0 0.0
        %1671 = vmatprep.subr.mxu0 0.0
        %1672 = vmatpush1.msra.mxu0 0.0
        %1673 = vmatprep.subr.mxu0 0.0
        %1674 = vmatpush1.msra.mxu0 0.0
        %1675 = vmatprep.subr.mxu0 0.0
        %1676 = vmatpush1.msra.mxu0 0.0
        %1677 = vmatprep.subr.mxu0 0.0
        %1678 = vmatpush1.msra.mxu0 0.0
        %1679 = vmatprep.subr.mxu0 0.0
        %1680 = vmatpush1.msra.mxu0 0.0
        %1681 = vmatprep.subr.mxu0 0.0
        %1682 = vmatpush1.msra.mxu0 0.0
        %1683 = vmatprep.subr.mxu0 0.0
        %1684 = vmatpush1.msra.mxu0 0.0
        %1685 = vmatprep.subr.mxu0 0.0
        %1686 = vmatpush1.msra.mxu0 0.0
        %1687 = vmatprep.subr.mxu0 0.0
        %1688 = vmatpush1.msra.mxu0 0.0
        %1689 = vmatprep.subr.mxu0 0.0
        %1690 = vmatpush1.msra.mxu0 0.0
        %1691 = vmatprep.subr.mxu0 0.0
        %1692 = vmatpush1.msra.mxu0 0.0
        %1693 = vmatprep.subr.mxu0 0.0
        %1694 = vmatpush1.msra.mxu0 0.0
        %1695 = vmatprep.subr.mxu0 0.0
        %1696 = vmatpush1.msra.mxu0 0.0
        %1697 = vmatprep.mubr.f32.mxu0 0.0
        %1698 = vmatmul.mubr.f32.gmra.mrb[0].mxu0 %v1631
        %v1699 = vpop.f32.mrb[0].mxu0
        %v1700 = vadd.f32 0.0, %v1699
        %v1701 = vpop.f32.mrb[0].mxu0
        %1702 = vdwg.mxu0
        %1703 = vrot.lane.b32.xlu0 %v1536, 120
        %v1704 = vpop.permute.xlu0 %1703
        %1705 = vrot.lane.b32.xlu0 %v1536, 88
        %v1706 = vpop.permute.xlu0 %1705
        %v1707 = vsel %vm465, %v1704, 0
        %v1709 = vsel %vm465, %v1706, 0
        %1711 = vmatprep.subr.mxu0 0.0
        %1712 = vmatpush1.xpose.msra.mxu0 %v1709
        %1713 = vmatprep.subr.mxu0 0.0
        %1714 = vmatpush1.xpose.msra.mxu0 0.0
        %1715 = vmatprep.subr.mxu0 0.0
        %1716 = vmatpush1.xpose.msra.mxu0 0.0
        %1717 = vmatprep.subr.mxu0 0.0
        %1718 = vmatpush1.xpose.msra.mxu0 0.0
        %1719 = vmatprep.subr.mxu0 0.0
        %1720 = vmatpush1.xpose.msra.mxu0 0.0
        %1721 = vmatprep.subr.mxu0 0.0
        %1722 = vmatpush1.xpose.msra.mxu0 0.0
        %1723 = vmatprep.subr.mxu0 0.0
        %1724 = vmatpush1.xpose.msra.mxu0 0.0
        %1725 = vmatprep.subr.mxu0 0.0
        %1726 = vmatpush1.xpose.msra.mxu0 0.0
        %1727 = vmatprep.subr.mxu0 0.0
        %1728 = vmatpush1.xpose.msra.mxu0 0.0
        %1729 = vmatprep.subr.mxu0 0.0
        %1730 = vmatpush1.xpose.msra.mxu0 0.0
        %1731 = vmatprep.subr.mxu0 0.0
        %1732 = vmatpush1.xpose.msra.mxu0 0.0
        %1733 = vmatprep.subr.mxu0 0.0
        %1734 = vmatpush1.xpose.msra.mxu0 0.0
        %1735 = vmatprep.subr.mxu0 0.0
        %1736 = vmatpush1.xpose.msra.mxu0 0.0
        %1737 = vmatprep.subr.mxu0 0.0
        %1738 = vmatpush1.xpose.msra.mxu0 0.0
        %1739 = vmatprep.subr.mxu0 0.0
        %1740 = vmatpush1.xpose.msra.mxu0 0.0
        %1741 = vmatprep.subr.mxu0 0.0
        %1742 = vmatpush1.xpose.msra.mxu0 0.0
        %1743 = vmatprep.subr.mxu0 0.0
        %1744 = vmatpush1.xpose.msra.mxu0 0.0
        %1745 = vmatprep.subr.mxu0 0.0
        %1746 = vmatpush1.xpose.msra.mxu0 0.0
        %1747 = vmatprep.subr.mxu0 0.0
        %1748 = vmatpush1.xpose.msra.mxu0 0.0
        %1749 = vmatprep.subr.mxu0 0.0
        %1750 = vmatpush1.xpose.msra.mxu0 0.0
        %1751 = vmatprep.subr.mxu0 0.0
        %1752 = vmatpush1.xpose.msra.mxu0 0.0
        %1753 = vmatprep.subr.mxu0 0.0
        %1754 = vmatpush1.xpose.msra.mxu0 0.0
        %1755 = vmatprep.subr.mxu0 0.0
        %1756 = vmatpush1.xpose.msra.mxu0 0.0
        %1757 = vmatprep.subr.mxu0 0.0
        %1758 = vmatpush1.xpose.msra.mxu0 0.0
        %1759 = vmatprep.subr.mxu0 0.0
        %1760 = vmatpush1.xpose.msra.mxu0 0.0
        %1761 = vmatprep.subr.mxu0 0.0
        %1762 = vmatpush1.xpose.msra.mxu0 0.0
        %1763 = vmatprep.subr.mxu0 0.0
        %1764 = vmatpush1.xpose.msra.mxu0 0.0
        %1765 = vmatprep.subr.mxu0 0.0
        %1766 = vmatpush1.xpose.msra.mxu0 0.0
        %1767 = vmatprep.subr.mxu0 0.0
        %1768 = vmatpush1.xpose.msra.mxu0 0.0
        %1769 = vmatprep.subr.mxu0 0.0
        %1770 = vmatpush1.xpose.msra.mxu0 0.0
        %1771 = vmatprep.subr.mxu0 0.0
        %1772 = vmatpush1.xpose.msra.mxu0 0.0
        %1773 = vmatprep.subr.mxu0 0.0
        %1774 = vmatpush1.xpose.msra.mxu0 0.0
        %1775 = vmatprep.mubr.f32.mxu0 0.0
        %1776 = vmatmul.mubr.f32.gmra.mrb[0].mxu0 %v1707
        %v1777 = vpop.f32.mrb[0].mxu0
        %v1778 = vadd.f32 %v460, %v1777
        %v1779 = vpop.f32.mrb[0].mxu0
        %1780 = vdwg.mxu0
        %v1781 = vsel %vm465, %v1778, -inf
        %1782 = vmax.xlane.f32.xlu0 %v1781
        %v1783 = vpop.xlane.xlu0 %1782
        %v1784 = vsub.f32 %v1778, %v1783
        %v1785 = vmul.f32 %v1784, 1.442695
        %v1786 = vpow.pop %v1785
        %v1787 = vsel %vm465, %v1786, 0.0
        %1788 = vadd.xlane.f32.xlu0 %v1787
        %v1789 = vpop.xlane.xlu0 %1788
        %v1790 = vrcp.pop %v1789
        %v1791 = vmul.f32 %v1786, %v1790
        %1792 = vrot.lane.b32.xlu0 %v1536, 56
        %v1793 = vpop.permute.xlu0 %1792
        %v1796 = vsel %vm465, %v1791, 0
        %1798 = vmatprep.subr.mxu0 0.0
        %1799 = vmatpush1.msra.mxu0 %v1793
        %1800 = vmatprep.subr.mxu0 0.0
        %1801 = vmatpush1.msra.mxu0 0.0
        %1802 = vmatprep.subr.mxu0 0.0
        %1803 = vmatpush1.msra.mxu0 0.0
        %1804 = vmatprep.subr.mxu0 0.0
        %1805 = vmatpush1.msra.mxu0 0.0
        %1806 = vmatprep.subr.mxu0 0.0
        %1807 = vmatpush1.msra.mxu0 0.0
        %1808 = vmatprep.subr.mxu0 0.0
        %1809 = vmatpush1.msra.mxu0 0.0
        %1810 = vmatprep.subr.mxu0 0.0
        %1811 = vmatpush1.msra.mxu0 0.0
        %1812 = vmatprep.subr.mxu0 0.0
        %1813 = vmatpush1.msra.mxu0 0.0
        %1814 = vmatprep.subr.mxu0 0.0
        %1815 = vmatpush1.msra.mxu0 0.0
        %1816 = vmatprep.subr.mxu0 0.0
        %1817 = vmatpush1.msra.mxu0 0.0
        %1818 = vmatprep.subr.mxu0 0.0
        %1819 = vmatpush1.msra.mxu0 0.0
        %1820 = vmatprep.subr.mxu0 0.0
        %1821 = vmatpush1.msra.mxu0 0.0
        %1822 = vmatprep.subr.mxu0 0.0
        %1823 = vmatpush1.msra.mxu0 0.0
        %1824 = vmatprep.subr.mxu0 0.0
        %1825 = vmatpush1.msra.mxu0 0.0
        %1826 = vmatprep.subr.mxu0 0.0
        %1827 = vmatpush1.msra.mxu0 0.0
        %1828 = vmatprep.subr.mxu0 0.0
        %1829 = vmatpush1.msra.mxu0 0.0
        %1830 = vmatprep.subr.mxu0 0.0
        %1831 = vmatpush1.msra.mxu0 0.0
        %1832 = vmatprep.subr.mxu0 0.0
        %1833 = vmatpush1.msra.mxu0 0.0
        %1834 = vmatprep.subr.mxu0 0.0
        %1835 = vmatpush1.msra.mxu0 0.0
        %1836 = vmatprep.subr.mxu0 0.0
        %1837 = vmatpush1.msra.mxu0 0.0
        %1838 = vmatprep.subr.mxu0 0.0
        %1839 = vmatpush1.msra.mxu0 0.0
        %1840 = vmatprep.subr.mxu0 0.0
        %1841 = vmatpush1.msra.mxu0 0.0
        %1842 = vmatprep.subr.mxu0 0.0
        %1843 = vmatpush1.msra.mxu0 0.0
        %1844 = vmatprep.subr.mxu0 0.0
        %1845 = vmatpush1.msra.mxu0 0.0
        %1846 = vmatprep.subr.mxu0 0.0
        %1847 = vmatpush1.msra.mxu0 0.0
        %1848 = vmatprep.subr.mxu0 0.0
        %1849 = vmatpush1.msra.mxu0 0.0
        %1850 = vmatprep.subr.mxu0 0.0
        %1851 = vmatpush1.msra.mxu0 0.0
        %1852 = vmatprep.subr.mxu0 0.0
        %1853 = vmatpush1.msra.mxu0 0.0
        %1854 = vmatprep.subr.mxu0 0.0
        %1855 = vmatpush1.msra.mxu0 0.0
        %1856 = vmatprep.subr.mxu0 0.0
        %1857 = vmatpush1.msra.mxu0 0.0
        %1858 = vmatprep.subr.mxu0 0.0
        %1859 = vmatpush1.msra.mxu0 0.0
        %1860 = vmatprep.subr.mxu0 0.0
        %1861 = vmatpush1.msra.mxu0 0.0
        %1862 = vmatprep.mubr.f32.mxu0 0.0
        %1863 = vmatmul.mubr.f32.gmra.mrb[0].mxu0 %v1796
        %v1864 = vpop.f32.mrb[0].mxu0
        %v1865 = vadd.f32 0.0, %v1864
        %v1866 = vpop.f32.mrb[0].mxu0
        %1867 = vdwg.mxu0
        %1868 = vrot.lane.b32.xlu0 %v1536, 112
        %v1869 = vpop.permute.xlu0 %1868
        %1870 = vrot.lane.b32.xlu0 %v1536, 80
        %v1871 = vpop.permute.xlu0 %1870
        %v1872 = vsel %vm465, %v1869, 0
        %v1874 = vsel %vm465, %v1871, 0
        %1876 = vmatprep.subr.mxu0 0.0
        %1877 = vmatpush1.xpose.msra.mxu0 %v1874
        %1878 = vmatprep.subr.mxu0 0.0
        %1879 = vmatpush1.xpose.msra.mxu0 0.0
        %1880 = vmatprep.subr.mxu0 0.0
        %1881 = vmatpush1.xpose.msra.mxu0 0.0
        %1882 = vmatprep.subr.mxu0 0.0
        %1883 = vmatpush1.xpose.msra.mxu0 0.0
        %1884 = vmatprep.subr.mxu0 0.0
        %1885 = vmatpush1.xpose.msra.mxu0 0.0
        %1886 = vmatprep.subr.mxu0 0.0
        %1887 = vmatpush1.xpose.msra.mxu0 0.0
        %1888 = vmatprep.subr.mxu0 0.0
        %1889 = vmatpush1.xpose.msra.mxu0 0.0
        %1890 = vmatprep.subr.mxu0 0.0
        %1891 = vmatpush1.xpose.msra.mxu0 0.0
        %1892 = vmatprep.subr.mxu0 0.0
        %1893 = vmatpush1.xpose.msra.mxu0 0.0
        %1894 = vmatprep.subr.mxu0 0.0
        %1895 = vmatpush1.xpose.msra.mxu0 0.0
        %1896 = vmatprep.subr.mxu0 0.0
        %1897 = vmatpush1.xpose.msra.mxu0 0.0
        %1898 = vmatprep.subr.mxu0 0.0
        %1899 = vmatpush1.xpose.msra.mxu0 0.0
        %1900 = vmatprep.subr.mxu0 0.0
        %1901 = vmatpush1.xpose.msra.mxu0 0.0
        %1902 = vmatprep.subr.mxu0 0.0
        %1903 = vmatpush1.xpose.msra.mxu0 0.0
        %1904 = vmatprep.subr.mxu0 0.0
        %1905 = vmatpush1.xpose.msra.mxu0 0.0
        %1906 = vmatprep.subr.mxu0 0.0
        %1907 = vmatpush1.xpose.msra.mxu0 0.0
        %1908 = vmatprep.subr.mxu0 0.0
        %1909 = vmatpush1.xpose.msra.mxu0 0.0
        %1910 = vmatprep.subr.mxu0 0.0
        %1911 = vmatpush1.xpose.msra.mxu0 0.0
        %1912 = vmatprep.subr.mxu0 0.0
        %1913 = vmatpush1.xpose.msra.mxu0 0.0
        %1914 = vmatprep.subr.mxu0 0.0
        %1915 = vmatpush1.xpose.msra.mxu0 0.0
        %1916 = vmatprep.subr.mxu0 0.0
        %1917 = vmatpush1.xpose.msra.mxu0 0.0
        %1918 = vmatprep.subr.mxu0 0.0
        %1919 = vmatpush1.xpose.msra.mxu0 0.0
        %1920 = vmatprep.subr.mxu0 0.0
        %1921 = vmatpush1.xpose.msra.mxu0 0.0
        %1922 = vmatprep.subr.mxu0 0.0
        %1923 = vmatpush1.xpose.msra.mxu0 0.0
        %1924 = vmatprep.subr.mxu0 0.0
        %1925 = vmatpush1.xpose.msra.mxu0 0.0
        %1926 = vmatprep.subr.mxu0 0.0
        %1927 = vmatpush1.xpose.msra.mxu0 0.0
        %1928 = vmatprep.subr.mxu0 0.0
        %1929 = vmatpush1.xpose.msra.mxu0 0.0
        %1930 = vmatprep.subr.mxu0 0.0
        %1931 = vmatpush1.xpose.msra.mxu0 0.0
        %1932 = vmatprep.subr.mxu0 0.0
        %1933 = vmatpush1.xpose.msra.mxu0 0.0
        %1934 = vmatprep.subr.mxu0 0.0
        %1935 = vmatpush1.xpose.msra.mxu0 0.0
        %1936 = vmatprep.subr.mxu0 0.0
        %1937 = vmatpush1.xpose.msra.mxu0 0.0
        %1938 = vmatprep.subr.mxu0 0.0
        %1939 = vmatpush1.xpose.msra.mxu0 0.0
        %1940 = vmatprep.mubr.f32.mxu0 0.0
        %1941 = vmatmul.mubr.f32.gmra.mrb[0].mxu0 %v1872
        %v1942 = vpop.f32.mrb[0].mxu0
        %v1943 = vadd.f32 %v460, %v1942
        %v1944 = vpop.f32.mrb[0].mxu0
        %1945 = vdwg.mxu0
        %v1946 = vsel %vm465, %v1943, -inf
        %1947 = vmax.xlane.f32.xlu0 %v1946
        %v1948 = vpop.xlane.xlu0 %1947
        %v1949 = vsub.f32 %v1943, %v1948
        %v1950 = vmul.f32 %v1949, 1.442695
        %v1951 = vpow.pop %v1950
        %v1952 = vsel %vm465, %v1951, 0.0
        %1953 = vadd.xlane.f32.xlu0 %v1952
        %v1954 = vpop.xlane.xlu0 %1953
        %v1955 = vrcp.pop %v1954
        %v1956 = vmul.f32 %v1951, %v1955
        %1957 = vrot.lane.b32.xlu0 %v1536, 48
        %v1958 = vpop.permute.xlu0 %1957
        %v1961 = vsel %vm465, %v1956, 0
        %1963 = vmatprep.subr.mxu0 0.0
        %1964 = vmatpush1.msra.mxu0 %v1958
        %1965 = vmatprep.subr.mxu0 0.0
        %1966 = vmatpush1.msra.mxu0 0.0
        %1967 = vmatprep.subr.mxu0 0.0
        %1968 = vmatpush1.msra.mxu0 0.0
        %1969 = vmatprep.subr.mxu0 0.0
        %1970 = vmatpush1.msra.mxu0 0.0
        %1971 = vmatprep.subr.mxu0 0.0
        %1972 = vmatpush1.msra.mxu0 0.0
        %1973 = vmatprep.subr.mxu0 0.0
        %1974 = vmatpush1.msra.mxu0 0.0
        %1975 = vmatprep.subr.mxu0 0.0
        %1976 = vmatpush1.msra.mxu0 0.0
        %1977 = vmatprep.subr.mxu0 0.0
        %1978 = vmatpush1.msra.mxu0 0.0
        %1979 = vmatprep.subr.mxu0 0.0
        %1980 = vmatpush1.msra.mxu0 0.0
        %1981 = vmatprep.subr.mxu0 0.0
        %1982 = vmatpush1.msra.mxu0 0.0
        %1983 = vmatprep.subr.mxu0 0.0
        %1984 = vmatpush1.msra.mxu0 0.0
        %1985 = vmatprep.subr.mxu0 0.0
        %1986 = vmatpush1.msra.mxu0 0.0
        %1987 = vmatprep.subr.mxu0 0.0
        %1988 = vmatpush1.msra.mxu0 0.0
        %1989 = vmatprep.subr.mxu0 0.0
        %1990 = vmatpush1.msra.mxu0 0.0
        %1991 = vmatprep.subr.mxu0 0.0
        %1992 = vmatpush1.msra.mxu0 0.0
        %1993 = vmatprep.subr.mxu0 0.0
        %1994 = vmatpush1.msra.mxu0 0.0
        %1995 = vmatprep.subr.mxu0 0.0
        %1996 = vmatpush1.msra.mxu0 0.0
        %1997 = vmatprep.subr.mxu0 0.0
        %1998 = vmatpush1.msra.mxu0 0.0
        %1999 = vmatprep.subr.mxu0 0.0
        %2000 = vmatpush1.msra.mxu0 0.0
        %2001 = vmatprep.subr.mxu0 0.0
        %2002 = vmatpush1.msra.mxu0 0.0
        %2003 = vmatprep.subr.mxu0 0.0
        %2004 = vmatpush1.msra.mxu0 0.0
        %2005 = vmatprep.subr.mxu0 0.0
        %2006 = vmatpush1.msra.mxu0 0.0
        %2007 = vmatprep.subr.mxu0 0.0
        %2008 = vmatpush1.msra.mxu0 0.0
        %2009 = vmatprep.subr.mxu0 0.0
        %2010 = vmatpush1.msra.mxu0 0.0
        %2011 = vmatprep.subr.mxu0 0.0
        %2012 = vmatpush1.msra.mxu0 0.0
        %2013 = vmatprep.subr.mxu0 0.0
        %2014 = vmatpush1.msra.mxu0 0.0
        %2015 = vmatprep.subr.mxu0 0.0
        %2016 = vmatpush1.msra.mxu0 0.0
        %2017 = vmatprep.subr.mxu0 0.0
        %2018 = vmatpush1.msra.mxu0 0.0
        %2019 = vmatprep.subr.mxu0 0.0
        %2020 = vmatpush1.msra.mxu0 0.0
        %2021 = vmatprep.subr.mxu0 0.0
        %2022 = vmatpush1.msra.mxu0 0.0
        %2023 = vmatprep.subr.mxu0 0.0
        %2024 = vmatpush1.msra.mxu0 0.0
        %2025 = vmatprep.subr.mxu0 0.0
        %2026 = vmatpush1.msra.mxu0 0.0
        %2027 = vmatprep.mubr.f32.mxu0 0.0
        %2028 = vmatmul.mubr.f32.gmra.mrb[0].mxu0 %v1961
        %v2029 = vpop.f32.mrb[0].mxu0
        %v2030 = vadd.f32 0.0, %v2029
        %v2031 = vpop.f32.mrb[0].mxu0
        %2032 = vdwg.mxu0
        %2033 = vrot.lane.b32.xlu0 %v1536, 104
        %v2034 = vpop.permute.xlu0 %2033
        %2035 = vrot.lane.b32.xlu0 %v1536, 72
        %v2036 = vpop.permute.xlu0 %2035
        %v2037 = vsel %vm465, %v2034, 0
        %v2039 = vsel %vm465, %v2036, 0
        %2041 = vmatprep.subr.mxu0 0.0
        %2042 = vmatpush1.xpose.msra.mxu0 %v2039
        %2043 = vmatprep.subr.mxu0 0.0
        %2044 = vmatpush1.xpose.msra.mxu0 0.0
        %2045 = vmatprep.subr.mxu0 0.0
        %2046 = vmatpush1.xpose.msra.mxu0 0.0
        %2047 = vmatprep.subr.mxu0 0.0
        %2048 = vmatpush1.xpose.msra.mxu0 0.0
        %2049 = vmatprep.subr.mxu0 0.0
        %2050 = vmatpush1.xpose.msra.mxu0 0.0
        %2051 = vmatprep.subr.mxu0 0.0
        %2052 = vmatpush1.xpose.msra.mxu0 0.0
        %2053 = vmatprep.subr.mxu0 0.0
        %2054 = vmatpush1.xpose.msra.mxu0 0.0
        %2055 = vmatprep.subr.mxu0 0.0
        %2056 = vmatpush1.xpose.msra.mxu0 0.0
        %2057 = vmatprep.subr.mxu0 0.0
        %2058 = vmatpush1.xpose.msra.mxu0 0.0
        %2059 = vmatprep.subr.mxu0 0.0
        %2060 = vmatpush1.xpose.msra.mxu0 0.0
        %2061 = vmatprep.subr.mxu0 0.0
        %2062 = vmatpush1.xpose.msra.mxu0 0.0
        %2063 = vmatprep.subr.mxu0 0.0
        %2064 = vmatpush1.xpose.msra.mxu0 0.0
        %2065 = vmatprep.subr.mxu0 0.0
        %2066 = vmatpush1.xpose.msra.mxu0 0.0
        %2067 = vmatprep.subr.mxu0 0.0
        %2068 = vmatpush1.xpose.msra.mxu0 0.0
        %2069 = vmatprep.subr.mxu0 0.0
        %2070 = vmatpush1.xpose.msra.mxu0 0.0
        %2071 = vmatprep.subr.mxu0 0.0
        %2072 = vmatpush1.xpose.msra.mxu0 0.0
        %2073 = vmatprep.subr.mxu0 0.0
        %2074 = vmatpush1.xpose.msra.mxu0 0.0
        %2075 = vmatprep.subr.mxu0 0.0
        %2076 = vmatpush1.xpose.msra.mxu0 0.0
        %2077 = vmatprep.subr.mxu0 0.0
        %2078 = vmatpush1.xpose.msra.mxu0 0.0
        %2079 = vmatprep.subr.mxu0 0.0
        %2080 = vmatpush1.xpose.msra.mxu0 0.0
        %2081 = vmatprep.subr.mxu0 0.0
        %2082 = vmatpush1.xpose.msra.mxu0 0.0
        %2083 = vmatprep.subr.mxu0 0.0
        %2084 = vmatpush1.xpose.msra.mxu0 0.0
        %2085 = vmatprep.subr.mxu0 0.0
        %2086 = vmatpush1.xpose.msra.mxu0 0.0
        %2087 = vmatprep.subr.mxu0 0.0
        %2088 = vmatpush1.xpose.msra.mxu0 0.0
        %2089 = vmatprep.subr.mxu0 0.0
        %2090 = vmatpush1.xpose.msra.mxu0 0.0
        %2091 = vmatprep.subr.mxu0 0.0
        %2092 = vmatpush1.xpose.msra.mxu0 0.0
        %2093 = vmatprep.subr.mxu0 0.0
        %2094 = vmatpush1.xpose.msra.mxu0 0.0
        %2095 = vmatprep.subr.mxu0 0.0
        %2096 = vmatpush1.xpose.msra.mxu0 0.0
        %2097 = vmatprep.subr.mxu0 0.0
        %2098 = vmatpush1.xpose.msra.mxu0 0.0
        %2099 = vmatprep.subr.mxu0 0.0
        %2100 = vmatpush1.xpose.msra.mxu0 0.0
        %2101 = vmatprep.subr.mxu0 0.0
        %2102 = vmatpush1.xpose.msra.mxu0 0.0
        %2103 = vmatprep.subr.mxu0 0.0
        %2104 = vmatpush1.xpose.msra.mxu0 0.0
        %2105 = vmatprep.mubr.f32.mxu0 0.0
        %2106 = vmatmul.mubr.f32.gmra.mrb[0].mxu0 %v2037
        %v2107 = vpop.f32.mrb[0].mxu0
        %v2108 = vadd.f32 %v460, %v2107
        %v2109 = vpop.f32.mrb[0].mxu0
        %2110 = vdwg.mxu0
        %v2111 = vsel %vm465, %v2108, -inf
        %2112 = vmax.xlane.f32.xlu0 %v2111
        %v2113 = vpop.xlane.xlu0 %2112
        %v2114 = vsub.f32 %v2108, %v2113
        %v2115 = vmul.f32 %v2114, 1.442695
        %v2116 = vpow.pop %v2115
        %v2117 = vsel %vm465, %v2116, 0.0
        %2118 = vadd.xlane.f32.xlu0 %v2117
        %v2119 = vpop.xlane.xlu0 %2118
        %v2120 = vrcp.pop %v2119
        %v2121 = vmul.f32 %v2116, %v2120
        %2122 = vrot.lane.b32.xlu0 %v1536, 40
        %v2123 = vpop.permute.xlu0 %2122
        %v2126 = vsel %vm465, %v2121, 0
        %2128 = vmatprep.subr.mxu0 0.0
        %2129 = vmatpush1.msra.mxu0 %v2123
        %2130 = vmatprep.subr.mxu0 0.0
        %2131 = vmatpush1.msra.mxu0 0.0
        %2132 = vmatprep.subr.mxu0 0.0
        %2133 = vmatpush1.msra.mxu0 0.0
        %2134 = vmatprep.subr.mxu0 0.0
        %2135 = vmatpush1.msra.mxu0 0.0
        %2136 = vmatprep.subr.mxu0 0.0
        %2137 = vmatpush1.msra.mxu0 0.0
        %2138 = vmatprep.subr.mxu0 0.0
        %2139 = vmatpush1.msra.mxu0 0.0
        %2140 = vmatprep.subr.mxu0 0.0
        %2141 = vmatpush1.msra.mxu0 0.0
        %2142 = vmatprep.subr.mxu0 0.0
        %2143 = vmatpush1.msra.mxu0 0.0
        %2144 = vmatprep.subr.mxu0 0.0
        %2145 = vmatpush1.msra.mxu0 0.0
        %2146 = vmatprep.subr.mxu0 0.0
        %2147 = vmatpush1.msra.mxu0 0.0
        %2148 = vmatprep.subr.mxu0 0.0
        %2149 = vmatpush1.msra.mxu0 0.0
        %2150 = vmatprep.subr.mxu0 0.0
        %2151 = vmatpush1.msra.mxu0 0.0
        %2152 = vmatprep.subr.mxu0 0.0
        %2153 = vmatpush1.msra.mxu0 0.0
        %2154 = vmatprep.subr.mxu0 0.0
        %2155 = vmatpush1.msra.mxu0 0.0
        %2156 = vmatprep.subr.mxu0 0.0
        %2157 = vmatpush1.msra.mxu0 0.0
        %2158 = vmatprep.subr.mxu0 0.0
        %2159 = vmatpush1.msra.mxu0 0.0
        %2160 = vmatprep.subr.mxu0 0.0
        %2161 = vmatpush1.msra.mxu0 0.0
        %2162 = vmatprep.subr.mxu0 0.0
        %2163 = vmatpush1.msra.mxu0 0.0
        %2164 = vmatprep.subr.mxu0 0.0
        %2165 = vmatpush1.msra.mxu0 0.0
        %2166 = vmatprep.subr.mxu0 0.0
        %2167 = vmatpush1.msra.mxu0 0.0
        %2168 = vmatprep.subr.mxu0 0.0
        %2169 = vmatpush1.msra.mxu0 0.0
        %2170 = vmatprep.subr.mxu0 0.0
        %2171 = vmatpush1.msra.mxu0 0.0
        %2172 = vmatprep.subr.mxu0 0.0
        %2173 = vmatpush1.msra.mxu0 0.0
        %2174 = vmatprep.subr.mxu0 0.0
        %2175 = vmatpush1.msra.mxu0 0.0
        %2176 = vmatprep.subr.mxu0 0.0
        %2177 = vmatpush1.msra.mxu0 0.0
        %2178 = vmatprep.subr.mxu0 0.0
        %2179 = vmatpush1.msra.mxu0 0.0
        %2180 = vmatprep.subr.mxu0 0.0
        %2181 = vmatpush1.msra.mxu0 0.0
        %2182 = vmatprep.subr.mxu0 0.0
        %2183 = vmatpush1.msra.mxu0 0.0
        %2184 = vmatprep.subr.mxu0 0.0
        %2185 = vmatpush1.msra.mxu0 0.0
        %2186 = vmatprep.subr.mxu0 0.0
        %2187 = vmatpush1.msra.mxu0 0.0
        %2188 = vmatprep.subr.mxu0 0.0
        %2189 = vmatpush1.msra.mxu0 0.0
        %2190 = vmatprep.subr.mxu0 0.0
        %2191 = vmatpush1.msra.mxu0 0.0
        %2192 = vmatprep.mubr.f32.mxu0 0.0
        %2193 = vmatmul.mubr.f32.gmra.mrb[0].mxu0 %v2126
        %v2194 = vpop.f32.mrb[0].mxu0
        %v2195 = vadd.f32 0.0, %v2194
        %v2196 = vpop.f32.mrb[0].mxu0
        %2197 = vdwg.mxu0
        %2199 = vrot.lane.b32.xlu0 %v1865, 8
        %v2200 = vpop.permute.xlu0 %2199
        %2203 = vrot.lane.b32.xlu0 %v2030, 16
        %v2204 = vpop.permute.xlu0 %2203
        %2207 = vrot.lane.b32.xlu0 %v2195, 24
        %v2208 = vpop.permute.xlu0 %2207
        %v2210 = vsel %vm465, %v1700, %v2200
        %v2211 = vsel %vm1135, %v2210, %v2204
        %v2212 = vsel %vm1137, %v2211, %v2208
        %v2213 = vld [vmem:[#allocation5 + $0x170] sm:$0xff]
        %v2214 = vld [vmem:[#allocation5 + $0x178] sm:$0xff]
        %v2215 = vld [vmem:[#allocation5 + $0x180] sm:$0xff]
        %v2216 = vld [vmem:[#allocation5 + $0x188] sm:$0xff]
        %v2217 = vld [vmem:[#allocation8 + $0x58] sm:$0x1]
        %v2218 = vlaneseq
        %v2219 = vshrl.u32 %v2218, 7
        %v2220 = vsub.s32 0, %v2219
        %v2221 = vrot.slane %v2217, %v2220
        %v2223 = vsel %vm340, %v2212, 0
        %2225 = vmatprep.subr.mxu0 0.0
        %2226 = vmatpush1.msra.mxu0 %v2213
        %2227 = vmatprep.subr.mxu0 0.0
        %2228 = vmatpush1.msra.mxu0 %v2214
        %2229 = vmatprep.subr.mxu0 0.0
        %2230 = vmatpush1.msra.mxu0 %v2215
        %2231 = vmatprep.subr.mxu0 0.0
        %2232 = vmatpush1.msra.mxu0 %v2216
        %2233 = vmatprep.subr.mxu0 0.0
        %2234 = vmatpush1.msra.mxu0 0.0
        %2235 = vmatprep.subr.mxu0 0.0
        %2236 = vmatpush1.msra.mxu0 0.0
        %2237 = vmatprep.subr.mxu0 0.0
        %2238 = vmatpush1.msra.mxu0 0.0
        %2239 = vmatprep.subr.mxu0 0.0
        %2240 = vmatpush1.msra.mxu0 0.0
        %2241 = vmatprep.subr.mxu0 0.0
        %2242 = vmatpush1.msra.mxu0 0.0
        %2243 = vmatprep.subr.mxu0 0.0
        %2244 = vmatpush1.msra.mxu0 0.0
        %2245 = vmatprep.subr.mxu0 0.0
        %2246 = vmatpush1.msra.mxu0 0.0
        %2247 = vmatprep.subr.mxu0 0.0
        %2248 = vmatpush1.msra.mxu0 0.0
        %2249 = vmatprep.subr.mxu0 0.0
        %2250 = vmatpush1.msra.mxu0 0.0
        %2251 = vmatprep.subr.mxu0 0.0
        %2252 = vmatpush1.msra.mxu0 0.0
        %2253 = vmatprep.subr.mxu0 0.0
        %2254 = vmatpush1.msra.mxu0 0.0
        %2255 = vmatprep.subr.mxu0 0.0
        %2256 = vmatpush1.msra.mxu0 0.0
        %2257 = vmatprep.subr.mxu0 0.0
        %2258 = vmatpush1.msra.mxu0 0.0
        %2259 = vmatprep.subr.mxu0 0.0
        %2260 = vmatpush1.msra.mxu0 0.0
        %2261 = vmatprep.subr.mxu0 0.0
        %2262 = vmatpush1.msra.mxu0 0.0
        %2263 = vmatprep.subr.mxu0 0.0
        %2264 = vmatpush1.msra.mxu0 0.0
        %2265 = vmatprep.subr.mxu0 0.0
        %2266 = vmatpush1.msra.mxu0 0.0
        %2267 = vmatprep.subr.mxu0 0.0
        %2268 = vmatpush1.msra.mxu0 0.0
        %2269 = vmatprep.subr.mxu0 0.0
        %2270 = vmatpush1.msra.mxu0 0.0
        %2271 = vmatprep.subr.mxu0 0.0
        %2272 = vmatpush1.msra.mxu0 0.0
        %2273 = vmatprep.subr.mxu0 0.0
        %2274 = vmatpush1.msra.mxu0 0.0
        %2275 = vmatprep.subr.mxu0 0.0
        %2276 = vmatpush1.msra.mxu0 0.0
        %2277 = vmatprep.subr.mxu0 0.0
        %2278 = vmatpush1.msra.mxu0 0.0
        %2279 = vmatprep.subr.mxu0 0.0
        %2280 = vmatpush1.msra.mxu0 0.0
        %2281 = vmatprep.subr.mxu0 0.0
        %2282 = vmatpush1.msra.mxu0 0.0
        %2283 = vmatprep.subr.mxu0 0.0
        %2284 = vmatpush1.msra.mxu0 0.0
        %2285 = vmatprep.subr.mxu0 0.0
        %2286 = vmatpush1.msra.mxu0 0.0
        %2287 = vmatprep.subr.mxu0 0.0
        %2288 = vmatpush1.msra.mxu0 0.0
        %2289 = vmatprep.mubr.f32.mxu0 0.0
        %2290 = vmatmul.mubr.f32.gmra.mrb[0].mxu0 %v2223
        %v2291 = vpop.f32.mrb[0].mxu0
        %v2292 = vadd.f32 %v2221, %v2291
        %v2293 = vpop.f32.mrb[0].mxu0
        %2294 = vdwg.mxu0
        %v2295 = vadd.f32 %v1424, %v2292
        %v2296 = vsel %vm340, %v2295, 0.0
        %2297 = vadd.xlane.f32.xlu0 %v2296
        %v2298 = vpop.xlane.xlu0 %2297
        %v2299 = vmul.f32 %v2298, %v344
        %v2300 = vsub.f32 %v2295, %v2299
        %v2301 = vmul.f32 %v2300, %v2300
        %v2302 = vsel %vm340, %v2301, 0.0
        %2303 = vadd.xlane.f32.xlu0 %v2302
        %v2304 = vpop.xlane.xlu0 %2303
        %v2305 = vmul.f32 %v2304, 0.032258064
        %v2306 = vrsqrt.pop %v2305
        %v2307 = vmul.f32 %v2305, %v2306
        %vm2308 = vcmp.eq.f32.partialorder %v2305, inf
        %v2309 = vsel %vm2308, %v2305, %v2307
        %vm2310 = vcmp.eq.f32.partialorder %v2305, 0.0
        %v2311 = vand.u32 %v2305, 2147483648
        %v2312 = vsel %vm2310, %v2311, %v2309
        %v2313 = vld [vmem:[#allocation8 + $0x60] sm:$0x1]
        %v2314 = vlaneseq
        %v2315 = vshrl.u32 %v2314, 7
        %v2316 = vsub.s32 0, %v2315
        %v2317 = vrot.slane %v2313, %v2316
        %v2318 = vmul.f32 %v2317, %v2300
        %v2319 = vadd.f32 %v2312, 1e-06
        %v2320 = vrcp.pop %v2319
        %v2321 = vmul.f32 %v2318, %v2320
        %v2322 = vld [vmem:[#allocation8 + $0x68] sm:$0x1]
        %v2323 = vlaneseq
        %v2324 = vshrl.u32 %v2323, 7
        %v2325 = vsub.s32 0, %v2324
        %v2326 = vrot.slane %v2322, %v2325
        %v2327 = vadd.f32 %v2321, %v2326
        %v2328 = vld [vmem:[#allocation5 + $0x190] sm:$0xff]
        %v2329 = vld [vmem:[#allocation5 + $0x198] sm:$0xff]
        %v2330 = vld [vmem:[#allocation5 + $0x1a0] sm:$0xff]
        %v2331 = vld [vmem:[#allocation5 + $0x1a8] sm:$0xff]
        %v2332 = vld [vmem:[#allocation8 + $0x70] sm:$0x1]
        %v2333 = vlaneseq
        %v2334 = vshrl.u32 %v2333, 7
        %v2335 = vsub.s32 0, %v2334
        %v2336 = vrot.slane %v2332, %v2335
        %v2338 = vsel %vm340, %v2327, 0
        %2340 = vmatprep.subr.mxu0 0.0
        %2341 = vmatpush1.msra.mxu0 %v2328
        %2342 = vmatprep.subr.mxu0 0.0
        %2343 = vmatpush1.msra.mxu0 %v2329
        %2344 = vmatprep.subr.mxu0 0.0
        %2345 = vmatpush1.msra.mxu0 %v2330
        %2346 = vmatprep.subr.mxu0 0.0
        %2347 = vmatpush1.msra.mxu0 %v2331
        %2348 = vmatprep.subr.mxu0 0.0
        %2349 = vmatpush1.msra.mxu0 0.0
        %2350 = vmatprep.subr.mxu0 0.0
        %2351 = vmatpush1.msra.mxu0 0.0
        %2352 = vmatprep.subr.mxu0 0.0
        %2353 = vmatpush1.msra.mxu0 0.0
        %2354 = vmatprep.subr.mxu0 0.0
        %2355 = vmatpush1.msra.mxu0 0.0
        %2356 = vmatprep.subr.mxu0 0.0
        %2357 = vmatpush1.msra.mxu0 0.0
        %2358 = vmatprep.subr.mxu0 0.0
        %2359 = vmatpush1.msra.mxu0 0.0
        %2360 = vmatprep.subr.mxu0 0.0
        %2361 = vmatpush1.msra.mxu0 0.0
        %2362 = vmatprep.subr.mxu0 0.0
        %2363 = vmatpush1.msra.mxu0 0.0
        %2364 = vmatprep.subr.mxu0 0.0
        %2365 = vmatpush1.msra.mxu0 0.0
        %2366 = vmatprep.subr.mxu0 0.0
        %2367 = vmatpush1.msra.mxu0 0.0
        %2368 = vmatprep.subr.mxu0 0.0
        %2369 = vmatpush1.msra.mxu0 0.0
        %2370 = vmatprep.subr.mxu0 0.0
        %2371 = vmatpush1.msra.mxu0 0.0
        %2372 = vmatprep.subr.mxu0 0.0
        %2373 = vmatpush1.msra.mxu0 0.0
        %2374 = vmatprep.subr.mxu0 0.0
        %2375 = vmatpush1.msra.mxu0 0.0
        %2376 = vmatprep.subr.mxu0 0.0
        %2377 = vmatpush1.msra.mxu0 0.0
        %2378 = vmatprep.subr.mxu0 0.0
        %2379 = vmatpush1.msra.mxu0 0.0
        %2380 = vmatprep.subr.mxu0 0.0
        %2381 = vmatpush1.msra.mxu0 0.0
        %2382 = vmatprep.subr.mxu0 0.0
        %2383 = vmatpush1.msra.mxu0 0.0
        %2384 = vmatprep.subr.mxu0 0.0
        %2385 = vmatpush1.msra.mxu0 0.0
        %2386 = vmatprep.subr.mxu0 0.0
        %2387 = vmatpush1.msra.mxu0 0.0
        %2388 = vmatprep.subr.mxu0 0.0
        %2389 = vmatpush1.msra.mxu0 0.0
        %2390 = vmatprep.subr.mxu0 0.0
        %2391 = vmatpush1.msra.mxu0 0.0
        %2392 = vmatprep.subr.mxu0 0.0
        %2393 = vmatpush1.msra.mxu0 0.0
        %2394 = vmatprep.subr.mxu0 0.0
        %2395 = vmatpush1.msra.mxu0 0.0
        %2396 = vmatprep.subr.mxu0 0.0
        %2397 = vmatpush1.msra.mxu0 0.0
        %2398 = vmatprep.subr.mxu0 0.0
        %2399 = vmatpush1.msra.mxu0 0.0
        %2400 = vmatprep.subr.mxu0 0.0
        %2401 = vmatpush1.msra.mxu0 0.0
        %2402 = vmatprep.subr.mxu0 0.0
        %2403 = vmatpush1.msra.mxu0 0.0
        %2404 = vmatprep.mubr.f32.mxu0 0.0
        %2405 = vmatmul.mubr.f32.gmra.mrb[0].mxu0 %v2338
        %v2406 = vpop.f32.mrb[0].mxu0
        %v2407 = vadd.f32 %v2336, %v2406
        %v2408 = vpop.f32.mrb[0].mxu0
        %2409 = vdwg.mxu0
        %v2410 = vmax.f32 %v2407, 0.0
        %v2411 = vld [vmem:[#allocation5 + $0x1b0] sm:$0xff]
        %v2412 = vld [vmem:[#allocation5 + $0x1b8] sm:$0xff]
        %v2413 = vld [vmem:[#allocation5 + $0x1c0] sm:$0xff]
        %v2414 = vld [vmem:[#allocation5 + $0x1c8] sm:$0xff]
        %v2415 = vld [vmem:[#allocation5 + $0x1d0] sm:$0xff]
        %v2416 = vld [vmem:[#allocation5 + $0x1d8] sm:$0xff]
        %v2417 = vld [vmem:[#allocation5 + $0x1e0] sm:$0xff]
        %v2418 = vld [vmem:[#allocation5 + $0x1e8] sm:$0xff]
        %v2419 = vld [vmem:[#allocation8 + $0x78] sm:$0x1]
        %v2420 = vlaneseq
        %v2421 = vshrl.u32 %v2420, 7
        %v2422 = vsub.s32 0, %v2421
        %v2423 = vrot.slane %v2419, %v2422
        %v2425 = vsel %vm1350, %v2410, 0
        %2427 = vmatprep.subr.mxu0 0.0
        %2428 = vmatpush1.msra.mxu0 %v2411
        %2429 = vmatprep.subr.mxu0 0.0
        %2430 = vmatpush1.msra.mxu0 %v2412
        %2431 = vmatprep.subr.mxu0 0.0
        %2432 = vmatpush1.msra.mxu0 %v2413
        %2433 = vmatprep.subr.mxu0 0.0
        %2434 = vmatpush1.msra.mxu0 %v2414
        %2435 = vmatprep.subr.mxu0 0.0
        %2436 = vmatpush1.msra.mxu0 %v2415
        %2437 = vmatprep.subr.mxu0 0.0
        %2438 = vmatpush1.msra.mxu0 %v2416
        %2439 = vmatprep.subr.mxu0 0.0
        %2440 = vmatpush1.msra.mxu0 %v2417
        %2441 = vmatprep.subr.mxu0 0.0
        %2442 = vmatpush1.msra.mxu0 %v2418
        %2443 = vmatprep.subr.mxu0 0.0
        %2444 = vmatpush1.msra.mxu0 0.0
        %2445 = vmatprep.subr.mxu0 0.0
        %2446 = vmatpush1.msra.mxu0 0.0
        %2447 = vmatprep.subr.mxu0 0.0
        %2448 = vmatpush1.msra.mxu0 0.0
        %2449 = vmatprep.subr.mxu0 0.0
        %2450 = vmatpush1.msra.mxu0 0.0
        %2451 = vmatprep.subr.mxu0 0.0
        %2452 = vmatpush1.msra.mxu0 0.0
        %2453 = vmatprep.subr.mxu0 0.0
        %2454 = vmatpush1.msra.mxu0 0.0
        %2455 = vmatprep.subr.mxu0 0.0
        %2456 = vmatpush1.msra.mxu0 0.0
        %2457 = vmatprep.subr.mxu0 0.0
        %2458 = vmatpush1.msra.mxu0 0.0
        %2459 = vmatprep.subr.mxu0 0.0
        %2460 = vmatpush1.msra.mxu0 0.0
        %2461 = vmatprep.subr.mxu0 0.0
        %2462 = vmatpush1.msra.mxu0 0.0
        %2463 = vmatprep.subr.mxu0 0.0
        %2464 = vmatpush1.msra.mxu0 0.0
        %2465 = vmatprep.subr.mxu0 0.0
        %2466 = vmatpush1.msra.mxu0 0.0
        %2467 = vmatprep.subr.mxu0 0.0
        %2468 = vmatpush1.msra.mxu0 0.0
        %2469 = vmatprep.subr.mxu0 0.0
        %2470 = vmatpush1.msra.mxu0 0.0
        %2471 = vmatprep.subr.mxu0 0.0
        %2472 = vmatpush1.msra.mxu0 0.0
        %2473 = vmatprep.subr.mxu0 0.0
        %2474 = vmatpush1.msra.mxu0 0.0
        %2475 = vmatprep.subr.mxu0 0.0
        %2476 = vmatpush1.msra.mxu0 0.0
        %2477 = vmatprep.subr.mxu0 0.0
        %2478 = vmatpush1.msra.mxu0 0.0
        %2479 = vmatprep.subr.mxu0 0.0
        %2480 = vmatpush1.msra.mxu0 0.0
        %2481 = vmatprep.subr.mxu0 0.0
        %2482 = vmatpush1.msra.mxu0 0.0
        %2483 = vmatprep.subr.mxu0 0.0
        %2484 = vmatpush1.msra.mxu0 0.0
        %2485 = vmatprep.subr.mxu0 0.0
        %2486 = vmatpush1.msra.mxu0 0.0
        %2487 = vmatprep.subr.mxu0 0.0
        %2488 = vmatpush1.msra.mxu0 0.0
        %2489 = vmatprep.subr.mxu0 0.0
        %2490 = vmatpush1.msra.mxu0 0.0
        %2491 = vmatprep.mubr.f32.mxu0 0.0
        %2492 = vmatmul.mubr.f32.gmra.mrb[0].mxu0 %v2425
        %v2493 = vpop.f32.mrb[0].mxu0
        %v2494 = vadd.f32 %v2423, %v2493
        %v2495 = vpop.f32.mrb[0].mxu0
        %2496 = vdwg.mxu0
        %v2497 = vadd.f32 %v2295, %v2494
        %v2498 = vsel %vm340, %v2497, 0.0
        %2499 = vadd.xlane.f32.xlu0 %v2498
        %v2500 = vpop.xlane.xlu0 %2499
        %v2501 = vmul.f32 %v2500, %v344
        %v2502 = vsub.f32 %v2497, %v2501
        %v2503 = vmul.f32 %v2502, %v2502
        %v2504 = vsel %vm340, %v2503, 0.0
        %2505 = vadd.xlane.f32.xlu0 %v2504
        %v2506 = vpop.xlane.xlu0 %2505
        %v2507 = vmul.f32 %v2506, 0.032258064
        %v2508 = vrsqrt.pop %v2507
        %v2509 = vmul.f32 %v2507, %v2508
        %vm2510 = vcmp.eq.f32.partialorder %v2507, inf
        %v2511 = vsel %vm2510, %v2507, %v2509
        %vm2512 = vcmp.eq.f32.partialorder %v2507, 0.0
        %v2513 = vand.u32 %v2507, 2147483648
        %v2514 = vsel %vm2512, %v2513, %v2511
        %v2515 = vld [vmem:[#allocation8 + $0x80] sm:$0x1]
        %v2516 = vlaneseq
        %v2517 = vshrl.u32 %v2516, 7
        %v2518 = vsub.s32 0, %v2517
        %v2519 = vrot.slane %v2515, %v2518
        %v2520 = vmul.f32 %v2519, %v2502
        %v2521 = vadd.f32 %v2514, 1e-06
        %v2522 = vrcp.pop %v2521
        %v2523 = vmul.f32 %v2520, %v2522
        %v2524 = vld [vmem:[#allocation8 + $0x88] sm:$0x1]
        %v2525 = vlaneseq
        %v2526 = vshrl.u32 %v2525, 7
        %v2527 = vsub.s32 0, %v2526
        %v2528 = vrot.slane %v2524, %v2527
        %v2529 = vadd.f32 %v2523, %v2528
        %s2530 = sld [smem:[#allocation4 + %s270]]
        %s2531 = sadd.s32 %s2530, 56
        %s2532 = scalar_lea.vmem [#allocation5], %s2531
        %v2533 = vld [vmem:[%s2532] sm:$0x1]
        %s2534 = sld [smem:[#allocation4 + %s274]]
        %s2535 = sadd.s32 %s2534, 56
        %s2536 = scalar_lea.vmem [#allocation5], %s2535
        %v2537 = vld [vmem:[%s2536] sm:$0x1]
        %s2538 = sld [smem:[#allocation4 + %s278]]
        %s2539 = sadd.s32 %s2538, 56
        %s2540 = scalar_lea.vmem [#allocation5], %s2539
        %v2541 = vld [vmem:[%s2540] sm:$0x1]
        %s2542 = sld [smem:[#allocation4 + %s282]]
        %s2543 = sadd.s32 %s2542, 56
        %s2544 = scalar_lea.vmem [#allocation5], %s2543
        %v2545 = vld [vmem:[%s2544] sm:$0x1]
        %s2546 = sld [smem:[#allocation4 + %s286]]
        %s2547 = sadd.s32 %s2546, 56
        %s2548 = scalar_lea.vmem [#allocation5], %s2547
        %v2549 = vld [vmem:[%s2548] sm:$0x1]
        %s2550 = sld [smem:[#allocation4 + %s290]]
        %s2551 = sadd.s32 %s2550, 56
        %s2552 = scalar_lea.vmem [#allocation5], %s2551
        %v2553 = vld [vmem:[%s2552] sm:$0x1]
        %s2554 = sld [smem:[#allocation4 + %s294]]
        %s2555 = sadd.s32 %s2554, 56
        %s2556 = scalar_lea.vmem [#allocation5], %s2555
        %v2557 = vld [vmem:[%s2556] sm:$0x1]
        %s2558 = sld [smem:[#allocation4 + %s298]]
        %s2559 = sadd.s32 %s2558, 56
        %s2560 = scalar_lea.vmem [#allocation5], %s2559
        %v2561 = vld [vmem:[%s2560] sm:$0x1]
        %v2563 = vrot.slane %v2537, 7
        %v2566 = vrot.slane %v2541, 6
        %v2569 = vrot.slane %v2545, 5
        %v2572 = vrot.slane %v2549, 4
        %v2575 = vrot.slane %v2553, 3
        %v2578 = vrot.slane %v2557, 2
        %v2581 = vrot.slane %v2561, 1
        %v2583 = vsel %vm323, %v2533, %v2563
        %v2584 = vsel %vm325, %v2583, %v2566
        %v2585 = vsel %vm327, %v2584, %v2569
        %v2586 = vsel %vm329, %v2585, %v2572
        %v2587 = vsel %vm331, %v2586, %v2575
        %v2588 = vsel %vm333, %v2587, %v2578
        %v2589 = vsel %vm335, %v2588, %v2581
        %v2590 = vmul.f32 %v2589, 5.656854
        %v2591 = vadd.f32 %v2590, %v338
        %v2592 = vsel %vm340, %v2591, 0.0
        %2593 = vadd.xlane.f32.xlu0 %v2592
        %v2594 = vpop.xlane.xlu0 %2593
        %v2595 = vmul.f32 %v2594, %v344
        %v2596 = vsub.f32 %v2591, %v2595
        %v2597 = vmul.f32 %v2596, %v2596
        %v2598 = vsel %vm340, %v2597, 0.0
        %2599 = vadd.xlane.f32.xlu0 %v2598
        %v2600 = vpop.xlane.xlu0 %2599
        %v2601 = vmul.f32 %v2600, 0.032258064
        %v2602 = vrsqrt.pop %v2601
        %v2603 = vmul.f32 %v2601, %v2602
        %vm2604 = vcmp.eq.f32.partialorder %v2601, inf
        %v2605 = vsel %vm2604, %v2601, %v2603
        %vm2606 = vcmp.eq.f32.partialorder %v2601, 0.0
        %v2607 = vand.u32 %v2601, 2147483648
        %v2608 = vsel %vm2606, %v2607, %v2605
        %v2609 = vld [vmem:[#allocation8 + $0x90] sm:$0x1]
        %v2610 = vlaneseq
        %v2611 = vshrl.u32 %v2610, 7
        %v2612 = vsub.s32 0, %v2611
        %v2613 = vrot.slane %v2609, %v2612
        %v2614 = vmul.f32 %v2613, %v2596
        %v2615 = vadd.f32 %v2608, 1e-06
        %v2616 = vrcp.pop %v2615
        %v2617 = vmul.f32 %v2614, %v2616
        %v2618 = vld [vmem:[#allocation8 + $0x98] sm:$0x1]
        %v2619 = vlaneseq
        %v2620 = vshrl.u32 %v2619, 7
        %v2621 = vsub.s32 0, %v2620
        %v2622 = vrot.slane %v2618, %v2621
        %v2623 = vadd.f32 %v2617, %v2622
        %v2624 = vld [vmem:[#allocation5 + $0x1f0] sm:$0xff]
        %v2625 = vld [vmem:[#allocation5 + $0x1f8] sm:$0xff]
        %v2626 = vld [vmem:[#allocation5 + $0x200] sm:$0xff]
        %v2627 = vld [vmem:[#allocation5 + $0x208] sm:$0xff]
        %v2628 = vld [vmem:[#allocation8 + $0xa0] sm:$0x1]
        %v2629 = vlaneseq
        %v2630 = vshrl.u32 %v2629, 7
        %v2631 = vsub.s32 0, %v2630
        %v2632 = vrot.slane %v2628, %v2631
        %v2634 = vsel %vm340, %v2623, 0
        %2636 = vmatprep.subr.mxu0 0.0
        %2637 = vmatpush1.msra.mxu0 %v2624
        %2638 = vmatprep.subr.mxu0 0.0
        %2639 = vmatpush1.msra.mxu0 %v2625
        %2640 = vmatprep.subr.mxu0 0.0
        %2641 = vmatpush1.msra.mxu0 %v2626
        %2642 = vmatprep.subr.mxu0 0.0
        %2643 = vmatpush1.msra.mxu0 %v2627
        %2644 = vmatprep.subr.mxu0 0.0
        %2645 = vmatpush1.msra.mxu0 0.0
        %2646 = vmatprep.subr.mxu0 0.0
        %2647 = vmatpush1.msra.mxu0 0.0
        %2648 = vmatprep.subr.mxu0 0.0
        %2649 = vmatpush1.msra.mxu0 0.0
        %2650 = vmatprep.subr.mxu0 0.0
        %2651 = vmatpush1.msra.mxu0 0.0
        %2652 = vmatprep.subr.mxu0 0.0
        %2653 = vmatpush1.msra.mxu0 0.0
        %2654 = vmatprep.subr.mxu0 0.0
        %2655 = vmatpush1.msra.mxu0 0.0
        %2656 = vmatprep.subr.mxu0 0.0
        %2657 = vmatpush1.msra.mxu0 0.0
        %2658 = vmatprep.subr.mxu0 0.0
        %2659 = vmatpush1.msra.mxu0 0.0
        %2660 = vmatprep.subr.mxu0 0.0
        %2661 = vmatpush1.msra.mxu0 0.0
        %2662 = vmatprep.subr.mxu0 0.0
        %2663 = vmatpush1.msra.mxu0 0.0
        %2664 = vmatprep.subr.mxu0 0.0
        %2665 = vmatpush1.msra.mxu0 0.0
        %2666 = vmatprep.subr.mxu0 0.0
        %2667 = vmatpush1.msra.mxu0 0.0
        %2668 = vmatprep.subr.mxu0 0.0
        %2669 = vmatpush1.msra.mxu0 0.0
        %2670 = vmatprep.subr.mxu0 0.0
        %2671 = vmatpush1.msra.mxu0 0.0
        %2672 = vmatprep.subr.mxu0 0.0
        %2673 = vmatpush1.msra.mxu0 0.0
        %2674 = vmatprep.subr.mxu0 0.0
        %2675 = vmatpush1.msra.mxu0 0.0
        %2676 = vmatprep.subr.mxu0 0.0
        %2677 = vmatpush1.msra.mxu0 0.0
        %2678 = vmatprep.subr.mxu0 0.0
        %2679 = vmatpush1.msra.mxu0 0.0
        %2680 = vmatprep.subr.mxu0 0.0
        %2681 = vmatpush1.msra.mxu0 0.0
        %2682 = vmatprep.subr.mxu0 0.0
        %2683 = vmatpush1.msra.mxu0 0.0
        %2684 = vmatprep.subr.mxu0 0.0
        %2685 = vmatpush1.msra.mxu0 0.0
        %2686 = vmatprep.subr.mxu0 0.0
        %2687 = vmatpush1.msra.mxu0 0.0
        %2688 = vmatprep.subr.mxu0 0.0
        %2689 = vmatpush1.msra.mxu0 0.0
        %2690 = vmatprep.subr.mxu0 0.0
        %2691 = vmatpush1.msra.mxu0 0.0
        %2692 = vmatprep.subr.mxu0 0.0
        %2693 = vmatpush1.msra.mxu0 0.0
        %2694 = vmatprep.subr.mxu0 0.0
        %2695 = vmatpush1.msra.mxu0 0.0
        %2696 = vmatprep.subr.mxu0 0.0
        %2697 = vmatpush1.msra.mxu0 0.0
        %2698 = vmatprep.subr.mxu0 0.0
        %2699 = vmatpush1.msra.mxu0 0.0
        %2700 = vmatprep.mubr.f32.mxu0 0.0
        %2701 = vmatmul.mubr.f32.gmra.mrb[0].mxu0 %v2634
        %v2702 = vpop.f32.mrb[0].mxu0
        %v2703 = vadd.f32 %v2632, %v2702
        %v2704 = vpop.f32.mrb[0].mxu0
        %2705 = vdwg.mxu0
        %2707 = vrot.lane.b32.xlu0 %v2703, 96
        %v2708 = vpop.permute.xlu0 %2707
        %v2709 = vsel %vm465, %v2703, 0
        %v2711 = vsel %vm465, %v2708, 0
        %2713 = vmatprep.subr.mxu0 0.0
        %2714 = vmatpush1.xpose.msra.mxu0 %v2711
        %2715 = vmatprep.subr.mxu0 0.0
        %2716 = vmatpush1.xpose.msra.mxu0 0.0
        %2717 = vmatprep.subr.mxu0 0.0
        %2718 = vmatpush1.xpose.msra.mxu0 0.0
        %2719 = vmatprep.subr.mxu0 0.0
        %2720 = vmatpush1.xpose.msra.mxu0 0.0
        %2721 = vmatprep.subr.mxu0 0.0
        %2722 = vmatpush1.xpose.msra.mxu0 0.0
        %2723 = vmatprep.subr.mxu0 0.0
        %2724 = vmatpush1.xpose.msra.mxu0 0.0
        %2725 = vmatprep.subr.mxu0 0.0
        %2726 = vmatpush1.xpose.msra.mxu0 0.0
        %2727 = vmatprep.subr.mxu0 0.0
        %2728 = vmatpush1.xpose.msra.mxu0 0.0
        %2729 = vmatprep.subr.mxu0 0.0
        %2730 = vmatpush1.xpose.msra.mxu0 0.0
        %2731 = vmatprep.subr.mxu0 0.0
        %2732 = vmatpush1.xpose.msra.mxu0 0.0
        %2733 = vmatprep.subr.mxu0 0.0
        %2734 = vmatpush1.xpose.msra.mxu0 0.0
        %2735 = vmatprep.subr.mxu0 0.0
        %2736 = vmatpush1.xpose.msra.mxu0 0.0
        %2737 = vmatprep.subr.mxu0 0.0
        %2738 = vmatpush1.xpose.msra.mxu0 0.0
        %2739 = vmatprep.subr.mxu0 0.0
        %2740 = vmatpush1.xpose.msra.mxu0 0.0
        %2741 = vmatprep.subr.mxu0 0.0
        %2742 = vmatpush1.xpose.msra.mxu0 0.0
        %2743 = vmatprep.subr.mxu0 0.0
        %2744 = vmatpush1.xpose.msra.mxu0 0.0
        %2745 = vmatprep.subr.mxu0 0.0
        %2746 = vmatpush1.xpose.msra.mxu0 0.0
        %2747 = vmatprep.subr.mxu0 0.0
        %2748 = vmatpush1.xpose.msra.mxu0 0.0
        %2749 = vmatprep.subr.mxu0 0.0
        %2750 = vmatpush1.xpose.msra.mxu0 0.0
        %2751 = vmatprep.subr.mxu0 0.0
        %2752 = vmatpush1.xpose.msra.mxu0 0.0
        %2753 = vmatprep.subr.mxu0 0.0
        %2754 = vmatpush1.xpose.msra.mxu0 0.0
        %2755 = vmatprep.subr.mxu0 0.0
        %2756 = vmatpush1.xpose.msra.mxu0 0.0
        %2757 = vmatprep.subr.mxu0 0.0
        %2758 = vmatpush1.xpose.msra.mxu0 0.0
        %2759 = vmatprep.subr.mxu0 0.0
        %2760 = vmatpush1.xpose.msra.mxu0 0.0
        %2761 = vmatprep.subr.mxu0 0.0
        %2762 = vmatpush1.xpose.msra.mxu0 0.0
        %2763 = vmatprep.subr.mxu0 0.0
        %2764 = vmatpush1.xpose.msra.mxu0 0.0
        %2765 = vmatprep.subr.mxu0 0.0
        %2766 = vmatpush1.xpose.msra.mxu0 0.0
        %2767 = vmatprep.subr.mxu0 0.0
        %2768 = vmatpush1.xpose.msra.mxu0 0.0
        %2769 = vmatprep.subr.mxu0 0.0
        %2770 = vmatpush1.xpose.msra.mxu0 0.0
        %2771 = vmatprep.subr.mxu0 0.0
        %2772 = vmatpush1.xpose.msra.mxu0 0.0
        %2773 = vmatprep.subr.mxu0 0.0
        %2774 = vmatpush1.xpose.msra.mxu0 0.0
        %2775 = vmatprep.subr.mxu0 0.0
        %2776 = vmatpush1.xpose.msra.mxu0 0.0
        %2777 = vmatprep.mubr.f32.mxu0 0.0
        %2778 = vmatmul.mubr.f32.gmra.mrb[0].mxu0 %v2709
        %v2779 = vpop.f32.mrb[0].mxu0
        %v2780 = vadd.f32 %v269, %v2779
        %v2781 = vpop.f32.mrb[0].mxu0
        %2782 = vdwg.mxu0
        %v2783 = vsel %vm465, %v2780, -inf
        %2784 = vmax.xlane.f32.xlu0 %v2783
        %v2785 = vpop.xlane.xlu0 %2784
        %v2786 = vsub.f32 %v2780, %v2785
        %v2787 = vmul.f32 %v2786, 1.442695
        %v2788 = vpow.pop %v2787
        %v2789 = vsel %vm465, %v2788, 0.0
        %2790 = vadd.xlane.f32.xlu0 %v2789
        %v2791 = vpop.xlane.xlu0 %2790
        %v2792 = vrcp.pop %v2791
        %v2793 = vmul.f32 %v2788, %v2792
        %2794 = vrot.lane.b32.xlu0 %v2703, 64
        %v2795 = vpop.permute.xlu0 %2794
        %v2798 = vsel %vm465, %v2793, 0
        %2800 = vmatprep.subr.mxu0 0.0
        %2801 = vmatpush1.msra.mxu0 %v2795
        %2802 = vmatprep.subr.mxu0 0.0
        %2803 = vmatpush1.msra.mxu0 0.0
        %2804 = vmatprep.subr.mxu0 0.0
        %2805 = vmatpush1.msra.mxu0 0.0
        %2806 = vmatprep.subr.mxu0 0.0
        %2807 = vmatpush1.msra.mxu0 0.0
        %2808 = vmatprep.subr.mxu0 0.0
        %2809 = vmatpush1.msra.mxu0 0.0
        %2810 = vmatprep.subr.mxu0 0.0
        %2811 = vmatpush1.msra.mxu0 0.0
        %2812 = vmatprep.subr.mxu0 0.0
        %2813 = vmatpush1.msra.mxu0 0.0
        %2814 = vmatprep.subr.mxu0 0.0
        %2815 = vmatpush1.msra.mxu0 0.0
        %2816 = vmatprep.subr.mxu0 0.0
        %2817 = vmatpush1.msra.mxu0 0.0
        %2818 = vmatprep.subr.mxu0 0.0
        %2819 = vmatpush1.msra.mxu0 0.0
        %2820 = vmatprep.subr.mxu0 0.0
        %2821 = vmatpush1.msra.mxu0 0.0
        %2822 = vmatprep.subr.mxu0 0.0
        %2823 = vmatpush1.msra.mxu0 0.0
        %2824 = vmatprep.subr.mxu0 0.0
        %2825 = vmatpush1.msra.mxu0 0.0
        %2826 = vmatprep.subr.mxu0 0.0
        %2827 = vmatpush1.msra.mxu0 0.0
        %2828 = vmatprep.subr.mxu0 0.0
        %2829 = vmatpush1.msra.mxu0 0.0
        %2830 = vmatprep.subr.mxu0 0.0
        %2831 = vmatpush1.msra.mxu0 0.0
        %2832 = vmatprep.subr.mxu0 0.0
        %2833 = vmatpush1.msra.mxu0 0.0
        %2834 = vmatprep.subr.mxu0 0.0
        %2835 = vmatpush1.msra.mxu0 0.0
        %2836 = vmatprep.subr.mxu0 0.0
        %2837 = vmatpush1.msra.mxu0 0.0
        %2838 = vmatprep.subr.mxu0 0.0
        %2839 = vmatpush1.msra.mxu0 0.0
        %2840 = vmatprep.subr.mxu0 0.0
        %2841 = vmatpush1.msra.mxu0 0.0
        %2842 = vmatprep.subr.mxu0 0.0
        %2843 = vmatpush1.msra.mxu0 0.0
        %2844 = vmatprep.subr.mxu0 0.0
        %2845 = vmatpush1.msra.mxu0 0.0
        %2846 = vmatprep.subr.mxu0 0.0
        %2847 = vmatpush1.msra.mxu0 0.0
        %2848 = vmatprep.subr.mxu0 0.0
        %2849 = vmatpush1.msra.mxu0 0.0
        %2850 = vmatprep.subr.mxu0 0.0
        %2851 = vmatpush1.msra.mxu0 0.0
        %2852 = vmatprep.subr.mxu0 0.0
        %2853 = vmatpush1.msra.mxu0 0.0
        %2854 = vmatprep.subr.mxu0 0.0
        %2855 = vmatpush1.msra.mxu0 0.0
        %2856 = vmatprep.subr.mxu0 0.0
        %2857 = vmatpush1.msra.mxu0 0.0
        %2858 = vmatprep.subr.mxu0 0.0
        %2859 = vmatpush1.msra.mxu0 0.0
        %2860 = vmatprep.subr.mxu0 0.0
        %2861 = vmatpush1.msra.mxu0 0.0
        %2862 = vmatprep.subr.mxu0 0.0
        %2863 = vmatpush1.msra.mxu0 0.0
        %2864 = vmatprep.mubr.f32.mxu0 0.0
        %2865 = vmatmul.mubr.f32.gmra.mrb[0].mxu0 %v2798
        %v2866 = vpop.f32.mrb[0].mxu0
        %v2867 = vadd.f32 0.0, %v2866
        %v2868 = vpop.f32.mrb[0].mxu0
        %2869 = vdwg.mxu0
        %2870 = vrot.lane.b32.xlu0 %v2703, 120
        %v2871 = vpop.permute.xlu0 %2870
        %2872 = vrot.lane.b32.xlu0 %v2703, 88
        %v2873 = vpop.permute.xlu0 %2872
        %v2874 = vsel %vm465, %v2871, 0
        %v2876 = vsel %vm465, %v2873, 0
        %2878 = vmatprep.subr.mxu0 0.0
        %2879 = vmatpush1.xpose.msra.mxu0 %v2876
        %2880 = vmatprep.subr.mxu0 0.0
        %2881 = vmatpush1.xpose.msra.mxu0 0.0
        %2882 = vmatprep.subr.mxu0 0.0
        %2883 = vmatpush1.xpose.msra.mxu0 0.0
        %2884 = vmatprep.subr.mxu0 0.0
        %2885 = vmatpush1.xpose.msra.mxu0 0.0
        %2886 = vmatprep.subr.mxu0 0.0
        %2887 = vmatpush1.xpose.msra.mxu0 0.0
        %2888 = vmatprep.subr.mxu0 0.0
        %2889 = vmatpush1.xpose.msra.mxu0 0.0
        %2890 = vmatprep.subr.mxu0 0.0
        %2891 = vmatpush1.xpose.msra.mxu0 0.0
        %2892 = vmatprep.subr.mxu0 0.0
        %2893 = vmatpush1.xpose.msra.mxu0 0.0
        %2894 = vmatprep.subr.mxu0 0.0
        %2895 = vmatpush1.xpose.msra.mxu0 0.0
        %2896 = vmatprep.subr.mxu0 0.0
        %2897 = vmatpush1.xpose.msra.mxu0 0.0
        %2898 = vmatprep.subr.mxu0 0.0
        %2899 = vmatpush1.xpose.msra.mxu0 0.0
        %2900 = vmatprep.subr.mxu0 0.0
        %2901 = vmatpush1.xpose.msra.mxu0 0.0
        %2902 = vmatprep.subr.mxu0 0.0
        %2903 = vmatpush1.xpose.msra.mxu0 0.0
        %2904 = vmatprep.subr.mxu0 0.0
        %2905 = vmatpush1.xpose.msra.mxu0 0.0
        %2906 = vmatprep.subr.mxu0 0.0
        %2907 = vmatpush1.xpose.msra.mxu0 0.0
        %2908 = vmatprep.subr.mxu0 0.0
        %2909 = vmatpush1.xpose.msra.mxu0 0.0
        %2910 = vmatprep.subr.mxu0 0.0
        %2911 = vmatpush1.xpose.msra.mxu0 0.0
        %2912 = vmatprep.subr.mxu0 0.0
        %2913 = vmatpush1.xpose.msra.mxu0 0.0
        %2914 = vmatprep.subr.mxu0 0.0
        %2915 = vmatpush1.xpose.msra.mxu0 0.0
        %2916 = vmatprep.subr.mxu0 0.0
        %2917 = vmatpush1.xpose.msra.mxu0 0.0
        %2918 = vmatprep.subr.mxu0 0.0
        %2919 = vmatpush1.xpose.msra.mxu0 0.0
        %2920 = vmatprep.subr.mxu0 0.0
        %2921 = vmatpush1.xpose.msra.mxu0 0.0
        %2922 = vmatprep.subr.mxu0 0.0
        %2923 = vmatpush1.xpose.msra.mxu0 0.0
        %2924 = vmatprep.subr.mxu0 0.0
        %2925 = vmatpush1.xpose.msra.mxu0 0.0
        %2926 = vmatprep.subr.mxu0 0.0
        %2927 = vmatpush1.xpose.msra.mxu0 0.0
        %2928 = vmatprep.subr.mxu0 0.0
        %2929 = vmatpush1.xpose.msra.mxu0 0.0
        %2930 = vmatprep.subr.mxu0 0.0
        %2931 = vmatpush1.xpose.msra.mxu0 0.0
        %2932 = vmatprep.subr.mxu0 0.0
        %2933 = vmatpush1.xpose.msra.mxu0 0.0
        %2934 = vmatprep.subr.mxu0 0.0
        %2935 = vmatpush1.xpose.msra.mxu0 0.0
        %2936 = vmatprep.subr.mxu0 0.0
        %2937 = vmatpush1.xpose.msra.mxu0 0.0
        %2938 = vmatprep.subr.mxu0 0.0
        %2939 = vmatpush1.xpose.msra.mxu0 0.0
        %2940 = vmatprep.subr.mxu0 0.0
        %2941 = vmatpush1.xpose.msra.mxu0 0.0
        %2942 = vmatprep.mubr.f32.mxu0 0.0
        %2943 = vmatmul.mubr.f32.gmra.mrb[0].mxu0 %v2874
        %v2944 = vpop.f32.mrb[0].mxu0
        %v2945 = vadd.f32 %v269, %v2944
        %v2946 = vpop.f32.mrb[0].mxu0
        %2947 = vdwg.mxu0
        %v2948 = vsel %vm465, %v2945, -inf
        %2949 = vmax.xlane.f32.xlu0 %v2948
        %v2950 = vpop.xlane.xlu0 %2949
        %v2951 = vsub.f32 %v2945, %v2950
        %v2952 = vmul.f32 %v2951, 1.442695
        %v2953 = vpow.pop %v2952
        %v2954 = vsel %vm465, %v2953, 0.0
        %2955 = vadd.xlane.f32.xlu0 %v2954
        %v2956 = vpop.xlane.xlu0 %2955
        %v2957 = vrcp.pop %v2956
        %v2958 = vmul.f32 %v2953, %v2957
        %2959 = vrot.lane.b32.xlu0 %v2703, 56
        %v2960 = vpop.permute.xlu0 %2959
        %v2963 = vsel %vm465, %v2958, 0
        %2965 = vmatprep.subr.mxu0 0.0
        %2966 = vmatpush1.msra.mxu0 %v2960
        %2967 = vmatprep.subr.mxu0 0.0
        %2968 = vmatpush1.msra.mxu0 0.0
        %2969 = vmatprep.subr.mxu0 0.0
        %2970 = vmatpush1.msra.mxu0 0.0
        %2971 = vmatprep.subr.mxu0 0.0
        %2972 = vmatpush1.msra.mxu0 0.0
        %2973 = vmatprep.subr.mxu0 0.0
        %2974 = vmatpush1.msra.mxu0 0.0
        %2975 = vmatprep.subr.mxu0 0.0
        %2976 = vmatpush1.msra.mxu0 0.0
        %2977 = vmatprep.subr.mxu0 0.0
        %2978 = vmatpush1.msra.mxu0 0.0
        %2979 = vmatprep.subr.mxu0 0.0
        %2980 = vmatpush1.msra.mxu0 0.0
        %2981 = vmatprep.subr.mxu0 0.0
        %2982 = vmatpush1.msra.mxu0 0.0
        %2983 = vmatprep.subr.mxu0 0.0
        %2984 = vmatpush1.msra.mxu0 0.0
        %2985 = vmatprep.subr.mxu0 0.0
        %2986 = vmatpush1.msra.mxu0 0.0
        %2987 = vmatprep.subr.mxu0 0.0
        %2988 = vmatpush1.msra.mxu0 0.0
        %2989 = vmatprep.subr.mxu0 0.0
        %2990 = vmatpush1.msra.mxu0 0.0
        %2991 = vmatprep.subr.mxu0 0.0
        %2992 = vmatpush1.msra.mxu0 0.0
        %2993 = vmatprep.subr.mxu0 0.0
        %2994 = vmatpush1.msra.mxu0 0.0
        %2995 = vmatprep.subr.mxu0 0.0
        %2996 = vmatpush1.msra.mxu0 0.0
        %2997 = vmatprep.subr.mxu0 0.0
        %2998 = vmatpush1.msra.mxu0 0.0
        %2999 = vmatprep.subr.mxu0 0.0
        %3000 = vmatpush1.msra.mxu0 0.0
        %3001 = vmatprep.subr.mxu0 0.0
        %3002 = vmatpush1.msra.mxu0 0.0
        %3003 = vmatprep.subr.mxu0 0.0
        %3004 = vmatpush1.msra.mxu0 0.0
        %3005 = vmatprep.subr.mxu0 0.0
        %3006 = vmatpush1.msra.mxu0 0.0
        %3007 = vmatprep.subr.mxu0 0.0
        %3008 = vmatpush1.msra.mxu0 0.0
        %3009 = vmatprep.subr.mxu0 0.0
        %3010 = vmatpush1.msra.mxu0 0.0
        %3011 = vmatprep.subr.mxu0 0.0
        %3012 = vmatpush1.msra.mxu0 0.0
        %3013 = vmatprep.subr.mxu0 0.0
        %3014 = vmatpush1.msra.mxu0 0.0
        %3015 = vmatprep.subr.mxu0 0.0
        %3016 = vmatpush1.msra.mxu0 0.0
        %3017 = vmatprep.subr.mxu0 0.0
        %3018 = vmatpush1.msra.mxu0 0.0
        %3019 = vmatprep.subr.mxu0 0.0
        %3020 = vmatpush1.msra.mxu0 0.0
        %3021 = vmatprep.subr.mxu0 0.0
        %3022 = vmatpush1.msra.mxu0 0.0
        %3023 = vmatprep.subr.mxu0 0.0
        %3024 = vmatpush1.msra.mxu0 0.0
        %3025 = vmatprep.subr.mxu0 0.0
        %3026 = vmatpush1.msra.mxu0 0.0
        %3027 = vmatprep.subr.mxu0 0.0
        %3028 = vmatpush1.msra.mxu0 0.0
        %3029 = vmatprep.mubr.f32.mxu0 0.0
        %3030 = vmatmul.mubr.f32.gmra.mrb[0].mxu0 %v2963
        %v3031 = vpop.f32.mrb[0].mxu0
        %v3032 = vadd.f32 0.0, %v3031
        %v3033 = vpop.f32.mrb[0].mxu0
        %3034 = vdwg.mxu0
        %3035 = vrot.lane.b32.xlu0 %v2703, 112
        %v3036 = vpop.permute.xlu0 %3035
        %3037 = vrot.lane.b32.xlu0 %v2703, 80
        %v3038 = vpop.permute.xlu0 %3037
        %v3039 = vsel %vm465, %v3036, 0
        %v3041 = vsel %vm465, %v3038, 0
        %3043 = vmatprep.subr.mxu0 0.0
        %3044 = vmatpush1.xpose.msra.mxu0 %v3041
        %3045 = vmatprep.subr.mxu0 0.0
        %3046 = vmatpush1.xpose.msra.mxu0 0.0
        %3047 = vmatprep.subr.mxu0 0.0
        %3048 = vmatpush1.xpose.msra.mxu0 0.0
        %3049 = vmatprep.subr.mxu0 0.0
        %3050 = vmatpush1.xpose.msra.mxu0 0.0
        %3051 = vmatprep.subr.mxu0 0.0
        %3052 = vmatpush1.xpose.msra.mxu0 0.0
        %3053 = vmatprep.subr.mxu0 0.0
        %3054 = vmatpush1.xpose.msra.mxu0 0.0
        %3055 = vmatprep.subr.mxu0 0.0
        %3056 = vmatpush1.xpose.msra.mxu0 0.0
        %3057 = vmatprep.subr.mxu0 0.0
        %3058 = vmatpush1.xpose.msra.mxu0 0.0
        %3059 = vmatprep.subr.mxu0 0.0
        %3060 = vmatpush1.xpose.msra.mxu0 0.0
        %3061 = vmatprep.subr.mxu0 0.0
        %3062 = vmatpush1.xpose.msra.mxu0 0.0
        %3063 = vmatprep.subr.mxu0 0.0
        %3064 = vmatpush1.xpose.msra.mxu0 0.0
        %3065 = vmatprep.subr.mxu0 0.0
        %3066 = vmatpush1.xpose.msra.mxu0 0.0
        %3067 = vmatprep.subr.mxu0 0.0
        %3068 = vmatpush1.xpose.msra.mxu0 0.0
        %3069 = vmatprep.subr.mxu0 0.0
        %3070 = vmatpush1.xpose.msra.mxu0 0.0
        %3071 = vmatprep.subr.mxu0 0.0
        %3072 = vmatpush1.xpose.msra.mxu0 0.0
        %3073 = vmatprep.subr.mxu0 0.0
        %3074 = vmatpush1.xpose.msra.mxu0 0.0
        %3075 = vmatprep.subr.mxu0 0.0
        %3076 = vmatpush1.xpose.msra.mxu0 0.0
        %3077 = vmatprep.subr.mxu0 0.0
        %3078 = vmatpush1.xpose.msra.mxu0 0.0
        %3079 = vmatprep.subr.mxu0 0.0
        %3080 = vmatpush1.xpose.msra.mxu0 0.0
        %3081 = vmatprep.subr.mxu0 0.0
        %3082 = vmatpush1.xpose.msra.mxu0 0.0
        %3083 = vmatprep.subr.mxu0 0.0
        %3084 = vmatpush1.xpose.msra.mxu0 0.0
        %3085 = vmatprep.subr.mxu0 0.0
        %3086 = vmatpush1.xpose.msra.mxu0 0.0
        %3087 = vmatprep.subr.mxu0 0.0
        %3088 = vmatpush1.xpose.msra.mxu0 0.0
        %3089 = vmatprep.subr.mxu0 0.0
        %3090 = vmatpush1.xpose.msra.mxu0 0.0
        %3091 = vmatprep.subr.mxu0 0.0
        %3092 = vmatpush1.xpose.msra.mxu0 0.0
        %3093 = vmatprep.subr.mxu0 0.0
        %3094 = vmatpush1.xpose.msra.mxu0 0.0
        %3095 = vmatprep.subr.mxu0 0.0
        %3096 = vmatpush1.xpose.msra.mxu0 0.0
        %3097 = vmatprep.subr.mxu0 0.0
        %3098 = vmatpush1.xpose.msra.mxu0 0.0
        %3099 = vmatprep.subr.mxu0 0.0
        %3100 = vmatpush1.xpose.msra.mxu0 0.0
        %3101 = vmatprep.subr.mxu0 0.0
        %3102 = vmatpush1.xpose.msra.mxu0 0.0
        %3103 = vmatprep.subr.mxu0 0.0
        %3104 = vmatpush1.xpose.msra.mxu0 0.0
        %3105 = vmatprep.subr.mxu0 0.0
        %3106 = vmatpush1.xpose.msra.mxu0 0.0
        %3107 = vmatprep.mubr.f32.mxu0 0.0
        %3108 = vmatmul.mubr.f32.gmra.mrb[0].mxu0 %v3039
        %v3109 = vpop.f32.mrb[0].mxu0
        %v3110 = vadd.f32 %v269, %v3109
        %v3111 = vpop.f32.mrb[0].mxu0
        %3112 = vdwg.mxu0
        %v3113 = vsel %vm465, %v3110, -inf
        %3114 = vmax.xlane.f32.xlu0 %v3113
        %v3115 = vpop.xlane.xlu0 %3114
        %v3116 = vsub.f32 %v3110, %v3115
        %v3117 = vmul.f32 %v3116, 1.442695
        %v3118 = vpow.pop %v3117
        %v3119 = vsel %vm465, %v3118, 0.0
        %3120 = vadd.xlane.f32.xlu0 %v3119
        %v3121 = vpop.xlane.xlu0 %3120
        %v3122 = vrcp.pop %v3121
        %v3123 = vmul.f32 %v3118, %v3122
        %3124 = vrot.lane.b32.xlu0 %v2703, 48
        %v3125 = vpop.permute.xlu0 %3124
        %v3128 = vsel %vm465, %v3123, 0
        %3130 = vmatprep.subr.mxu0 0.0
        %3131 = vmatpush1.msra.mxu0 %v3125
        %3132 = vmatprep.subr.mxu0 0.0
        %3133 = vmatpush1.msra.mxu0 0.0
        %3134 = vmatprep.subr.mxu0 0.0
        %3135 = vmatpush1.msra.mxu0 0.0
        %3136 = vmatprep.subr.mxu0 0.0
        %3137 = vmatpush1.msra.mxu0 0.0
        %3138 = vmatprep.subr.mxu0 0.0
        %3139 = vmatpush1.msra.mxu0 0.0
        %3140 = vmatprep.subr.mxu0 0.0
        %3141 = vmatpush1.msra.mxu0 0.0
        %3142 = vmatprep.subr.mxu0 0.0
        %3143 = vmatpush1.msra.mxu0 0.0
        %3144 = vmatprep.subr.mxu0 0.0
        %3145 = vmatpush1.msra.mxu0 0.0
        %3146 = vmatprep.subr.mxu0 0.0
        %3147 = vmatpush1.msra.mxu0 0.0
        %3148 = vmatprep.subr.mxu0 0.0
        %3149 = vmatpush1.msra.mxu0 0.0
        %3150 = vmatprep.subr.mxu0 0.0
        %3151 = vmatpush1.msra.mxu0 0.0
        %3152 = vmatprep.subr.mxu0 0.0
        %3153 = vmatpush1.msra.mxu0 0.0
        %3154 = vmatprep.subr.mxu0 0.0
        %3155 = vmatpush1.msra.mxu0 0.0
        %3156 = vmatprep.subr.mxu0 0.0
        %3157 = vmatpush1.msra.mxu0 0.0
        %3158 = vmatprep.subr.mxu0 0.0
        %3159 = vmatpush1.msra.mxu0 0.0
        %3160 = vmatprep.subr.mxu0 0.0
        %3161 = vmatpush1.msra.mxu0 0.0
        %3162 = vmatprep.subr.mxu0 0.0
        %3163 = vmatpush1.msra.mxu0 0.0
        %3164 = vmatprep.subr.mxu0 0.0
        %3165 = vmatpush1.msra.mxu0 0.0
        %3166 = vmatprep.subr.mxu0 0.0
        %3167 = vmatpush1.msra.mxu0 0.0
        %3168 = vmatprep.subr.mxu0 0.0
        %3169 = vmatpush1.msra.mxu0 0.0
        %3170 = vmatprep.subr.mxu0 0.0
        %3171 = vmatpush1.msra.mxu0 0.0
        %3172 = vmatprep.subr.mxu0 0.0
        %3173 = vmatpush1.msra.mxu0 0.0
        %3174 = vmatprep.subr.mxu0 0.0
        %3175 = vmatpush1.msra.mxu0 0.0
        %3176 = vmatprep.subr.mxu0 0.0
        %3177 = vmatpush1.msra.mxu0 0.0
        %3178 = vmatprep.subr.mxu0 0.0
        %3179 = vmatpush1.msra.mxu0 0.0
        %3180 = vmatprep.subr.mxu0 0.0
        %3181 = vmatpush1.msra.mxu0 0.0
        %3182 = vmatprep.subr.mxu0 0.0
        %3183 = vmatpush1.msra.mxu0 0.0
        %3184 = vmatprep.subr.mxu0 0.0
        %3185 = vmatpush1.msra.mxu0 0.0
        %3186 = vmatprep.subr.mxu0 0.0
        %3187 = vmatpush1.msra.mxu0 0.0
        %3188 = vmatprep.subr.mxu0 0.0
        %3189 = vmatpush1.msra.mxu0 0.0
        %3190 = vmatprep.subr.mxu0 0.0
        %3191 = vmatpush1.msra.mxu0 0.0
        %3192 = vmatprep.subr.mxu0 0.0
        %3193 = vmatpush1.msra.mxu0 0.0
        %3194 = vmatprep.mubr.f32.mxu0 0.0
        %3195 = vmatmul.mubr.f32.gmra.mrb[0].mxu0 %v3128
        %v3196 = vpop.f32.mrb[0].mxu0
        %v3197 = vadd.f32 0.0, %v3196
        %v3198 = vpop.f32.mrb[0].mxu0
        %3199 = vdwg.mxu0
        %3200 = vrot.lane.b32.xlu0 %v2703, 104
        %v3201 = vpop.permute.xlu0 %3200
        %3202 = vrot.lane.b32.xlu0 %v2703, 72
        %v3203 = vpop.permute.xlu0 %3202
        %v3204 = vsel %vm465, %v3201, 0
        %v3206 = vsel %vm465, %v3203, 0
        %3208 = vmatprep.subr.mxu0 0.0
        %3209 = vmatpush1.xpose.msra.mxu0 %v3206
        %3210 = vmatprep.subr.mxu0 0.0
        %3211 = vmatpush1.xpose.msra.mxu0 0.0
        %3212 = vmatprep.subr.mxu0 0.0
        %3213 = vmatpush1.xpose.msra.mxu0 0.0
        %3214 = vmatprep.subr.mxu0 0.0
        %3215 = vmatpush1.xpose.msra.mxu0 0.0
        %3216 = vmatprep.subr.mxu0 0.0
        %3217 = vmatpush1.xpose.msra.mxu0 0.0
        %3218 = vmatprep.subr.mxu0 0.0
        %3219 = vmatpush1.xpose.msra.mxu0 0.0
        %3220 = vmatprep.subr.mxu0 0.0
        %3221 = vmatpush1.xpose.msra.mxu0 0.0
        %3222 = vmatprep.subr.mxu0 0.0
        %3223 = vmatpush1.xpose.msra.mxu0 0.0
        %3224 = vmatprep.subr.mxu0 0.0
        %3225 = vmatpush1.xpose.msra.mxu0 0.0
        %3226 = vmatprep.subr.mxu0 0.0
        %3227 = vmatpush1.xpose.msra.mxu0 0.0
        %3228 = vmatprep.subr.mxu0 0.0
        %3229 = vmatpush1.xpose.msra.mxu0 0.0
        %3230 = vmatprep.subr.mxu0 0.0
        %3231 = vmatpush1.xpose.msra.mxu0 0.0
        %3232 = vmatprep.subr.mxu0 0.0
        %3233 = vmatpush1.xpose.msra.mxu0 0.0
        %3234 = vmatprep.subr.mxu0 0.0
        %3235 = vmatpush1.xpose.msra.mxu0 0.0
        %3236 = vmatprep.subr.mxu0 0.0
        %3237 = vmatpush1.xpose.msra.mxu0 0.0
        %3238 = vmatprep.subr.mxu0 0.0
        %3239 = vmatpush1.xpose.msra.mxu0 0.0
        %3240 = vmatprep.subr.mxu0 0.0
        %3241 = vmatpush1.xpose.msra.mxu0 0.0
        %3242 = vmatprep.subr.mxu0 0.0
        %3243 = vmatpush1.xpose.msra.mxu0 0.0
        %3244 = vmatprep.subr.mxu0 0.0
        %3245 = vmatpush1.xpose.msra.mxu0 0.0
        %3246 = vmatprep.subr.mxu0 0.0
        %3247 = vmatpush1.xpose.msra.mxu0 0.0
        %3248 = vmatprep.subr.mxu0 0.0
        %3249 = vmatpush1.xpose.msra.mxu0 0.0
        %3250 = vmatprep.subr.mxu0 0.0
        %3251 = vmatpush1.xpose.msra.mxu0 0.0
        %3252 = vmatprep.subr.mxu0 0.0
        %3253 = vmatpush1.xpose.msra.mxu0 0.0
        %3254 = vmatprep.subr.mxu0 0.0
        %3255 = vmatpush1.xpose.msra.mxu0 0.0
        %3256 = vmatprep.subr.mxu0 0.0
        %3257 = vmatpush1.xpose.msra.mxu0 0.0
        %3258 = vmatprep.subr.mxu0 0.0
        %3259 = vmatpush1.xpose.msra.mxu0 0.0
        %3260 = vmatprep.subr.mxu0 0.0
        %3261 = vmatpush1.xpose.msra.mxu0 0.0
        %3262 = vmatprep.subr.mxu0 0.0
        %3263 = vmatpush1.xpose.msra.mxu0 0.0
        %3264 = vmatprep.subr.mxu0 0.0
        %3265 = vmatpush1.xpose.msra.mxu0 0.0
        %3266 = vmatprep.subr.mxu0 0.0
        %3267 = vmatpush1.xpose.msra.mxu0 0.0
        %3268 = vmatprep.subr.mxu0 0.0
        %3269 = vmatpush1.xpose.msra.mxu0 0.0
        %3270 = vmatprep.subr.mxu0 0.0
        %3271 = vmatpush1.xpose.msra.mxu0 0.0
        %3272 = vmatprep.mubr.f32.mxu0 0.0
        %3273 = vmatmul.mubr.f32.gmra.mrb[0].mxu0 %v3204
        %v3274 = vpop.f32.mrb[0].mxu0
        %v3275 = vadd.f32 %v269, %v3274
        %v3276 = vpop.f32.mrb[0].mxu0
        %3277 = vdwg.mxu0
        %v3278 = vsel %vm465, %v3275, -inf
        %3279 = vmax.xlane.f32.xlu0 %v3278
        %v3280 = vpop.xlane.xlu0 %3279
        %v3281 = vsub.f32 %v3275, %v3280
        %v3282 = vmul.f32 %v3281, 1.442695
        %v3283 = vpow.pop %v3282
        %v3284 = vsel %vm465, %v3283, 0.0
        %3285 = vadd.xlane.f32.xlu0 %v3284
        %v3286 = vpop.xlane.xlu0 %3285
        %v3287 = vrcp.pop %v3286
        %v3288 = vmul.f32 %v3283, %v3287
        %3289 = vrot.lane.b32.xlu0 %v2703, 40
        %v3290 = vpop.permute.xlu0 %3289
        %v3293 = vsel %vm465, %v3288, 0
        %3295 = vmatprep.subr.mxu0 0.0
        %3296 = vmatpush1.msra.mxu0 %v3290
        %3297 = vmatprep.subr.mxu0 0.0
        %3298 = vmatpush1.msra.mxu0 0.0
        %3299 = vmatprep.subr.mxu0 0.0
        %3300 = vmatpush1.msra.mxu0 0.0
        %3301 = vmatprep.subr.mxu0 0.0
        %3302 = vmatpush1.msra.mxu0 0.0
        %3303 = vmatprep.subr.mxu0 0.0
        %3304 = vmatpush1.msra.mxu0 0.0
        %3305 = vmatprep.subr.mxu0 0.0
        %3306 = vmatpush1.msra.mxu0 0.0
        %3307 = vmatprep.subr.mxu0 0.0
        %3308 = vmatpush1.msra.mxu0 0.0
        %3309 = vmatprep.subr.mxu0 0.0
        %3310 = vmatpush1.msra.mxu0 0.0
        %3311 = vmatprep.subr.mxu0 0.0
        %3312 = vmatpush1.msra.mxu0 0.0
        %3313 = vmatprep.subr.mxu0 0.0
        %3314 = vmatpush1.msra.mxu0 0.0
        %3315 = vmatprep.subr.mxu0 0.0
        %3316 = vmatpush1.msra.mxu0 0.0
        %3317 = vmatprep.subr.mxu0 0.0
        %3318 = vmatpush1.msra.mxu0 0.0
        %3319 = vmatprep.subr.mxu0 0.0
        %3320 = vmatpush1.msra.mxu0 0.0
        %3321 = vmatprep.subr.mxu0 0.0
        %3322 = vmatpush1.msra.mxu0 0.0
        %3323 = vmatprep.subr.mxu0 0.0
        %3324 = vmatpush1.msra.mxu0 0.0
        %3325 = vmatprep.subr.mxu0 0.0
        %3326 = vmatpush1.msra.mxu0 0.0
        %3327 = vmatprep.subr.mxu0 0.0
        %3328 = vmatpush1.msra.mxu0 0.0
        %3329 = vmatprep.subr.mxu0 0.0
        %3330 = vmatpush1.msra.mxu0 0.0
        %3331 = vmatprep.subr.mxu0 0.0
        %3332 = vmatpush1.msra.mxu0 0.0
        %3333 = vmatprep.subr.mxu0 0.0
        %3334 = vmatpush1.msra.mxu0 0.0
        %3335 = vmatprep.subr.mxu0 0.0
        %3336 = vmatpush1.msra.mxu0 0.0
        %3337 = vmatprep.subr.mxu0 0.0
        %3338 = vmatpush1.msra.mxu0 0.0
        %3339 = vmatprep.subr.mxu0 0.0
        %3340 = vmatpush1.msra.mxu0 0.0
        %3341 = vmatprep.subr.mxu0 0.0
        %3342 = vmatpush1.msra.mxu0 0.0
        %3343 = vmatprep.subr.mxu0 0.0
        %3344 = vmatpush1.msra.mxu0 0.0
        %3345 = vmatprep.subr.mxu0 0.0
        %3346 = vmatpush1.msra.mxu0 0.0
        %3347 = vmatprep.subr.mxu0 0.0
        %3348 = vmatpush1.msra.mxu0 0.0
        %3349 = vmatprep.subr.mxu0 0.0
        %3350 = vmatpush1.msra.mxu0 0.0
        %3351 = vmatprep.subr.mxu0 0.0
        %3352 = vmatpush1.msra.mxu0 0.0
        %3353 = vmatprep.subr.mxu0 0.0
        %3354 = vmatpush1.msra.mxu0 0.0
        %3355 = vmatprep.subr.mxu0 0.0
        %3356 = vmatpush1.msra.mxu0 0.0
        %3357 = vmatprep.subr.mxu0 0.0
        %3358 = vmatpush1.msra.mxu0 0.0
        %3359 = vmatprep.mubr.f32.mxu0 0.0
        %3360 = vmatmul.mubr.f32.gmra.mrb[0].mxu0 %v3293
        %v3361 = vpop.f32.mrb[0].mxu0
        %v3362 = vadd.f32 0.0, %v3361
        %v3363 = vpop.f32.mrb[0].mxu0
        %3364 = vdwg.mxu0
        %3366 = vrot.lane.b32.xlu0 %v3032, 8
        %v3367 = vpop.permute.xlu0 %3366
        %3370 = vrot.lane.b32.xlu0 %v3197, 16
        %v3371 = vpop.permute.xlu0 %3370
        %3374 = vrot.lane.b32.xlu0 %v3362, 24
        %v3375 = vpop.permute.xlu0 %3374
        %v3377 = vsel %vm465, %v2867, %v3367
        %v3378 = vsel %vm1135, %v3377, %v3371
        %v3379 = vsel %vm1137, %v3378, %v3375
        %v3380 = vld [vmem:[#allocation5 + $0x210] sm:$0xff]
        %v3381 = vld [vmem:[#allocation5 + $0x218] sm:$0xff]
        %v3382 = vld [vmem:[#allocation5 + $0x220] sm:$0xff]
        %v3383 = vld [vmem:[#allocation5 + $0x228] sm:$0xff]
        %v3384 = vld [vmem:[#allocation8 + $0xa8] sm:$0x1]
        %v3385 = vlaneseq
        %v3386 = vshrl.u32 %v3385, 7
        %v3387 = vsub.s32 0, %v3386
        %v3388 = vrot.slane %v3384, %v3387
        %v3390 = vsel %vm340, %v3379, 0
        %3392 = vmatprep.subr.mxu0 0.0
        %3393 = vmatpush1.msra.mxu0 %v3380
        %3394 = vmatprep.subr.mxu0 0.0
        %3395 = vmatpush1.msra.mxu0 %v3381
        %3396 = vmatprep.subr.mxu0 0.0
        %3397 = vmatpush1.msra.mxu0 %v3382
        %3398 = vmatprep.subr.mxu0 0.0
        %3399 = vmatpush1.msra.mxu0 %v3383
        %3400 = vmatprep.subr.mxu0 0.0
        %3401 = vmatpush1.msra.mxu0 0.0
        %3402 = vmatprep.subr.mxu0 0.0
        %3403 = vmatpush1.msra.mxu0 0.0
        %3404 = vmatprep.subr.mxu0 0.0
        %3405 = vmatpush1.msra.mxu0 0.0
        %3406 = vmatprep.subr.mxu0 0.0
        %3407 = vmatpush1.msra.mxu0 0.0
        %3408 = vmatprep.subr.mxu0 0.0
        %3409 = vmatpush1.msra.mxu0 0.0
        %3410 = vmatprep.subr.mxu0 0.0
        %3411 = vmatpush1.msra.mxu0 0.0
        %3412 = vmatprep.subr.mxu0 0.0
        %3413 = vmatpush1.msra.mxu0 0.0
        %3414 = vmatprep.subr.mxu0 0.0
        %3415 = vmatpush1.msra.mxu0 0.0
        %3416 = vmatprep.subr.mxu0 0.0
        %3417 = vmatpush1.msra.mxu0 0.0
        %3418 = vmatprep.subr.mxu0 0.0
        %3419 = vmatpush1.msra.mxu0 0.0
        %3420 = vmatprep.subr.mxu0 0.0
        %3421 = vmatpush1.msra.mxu0 0.0
        %3422 = vmatprep.subr.mxu0 0.0
        %3423 = vmatpush1.msra.mxu0 0.0
        %3424 = vmatprep.subr.mxu0 0.0
        %3425 = vmatpush1.msra.mxu0 0.0
        %3426 = vmatprep.subr.mxu0 0.0
        %3427 = vmatpush1.msra.mxu0 0.0
        %3428 = vmatprep.subr.mxu0 0.0
        %3429 = vmatpush1.msra.mxu0 0.0
        %3430 = vmatprep.subr.mxu0 0.0
        %3431 = vmatpush1.msra.mxu0 0.0
        %3432 = vmatprep.subr.mxu0 0.0
        %3433 = vmatpush1.msra.mxu0 0.0
        %3434 = vmatprep.subr.mxu0 0.0
        %3435 = vmatpush1.msra.mxu0 0.0
        %3436 = vmatprep.subr.mxu0 0.0
        %3437 = vmatpush1.msra.mxu0 0.0
        %3438 = vmatprep.subr.mxu0 0.0
        %3439 = vmatpush1.msra.mxu0 0.0
        %3440 = vmatprep.subr.mxu0 0.0
        %3441 = vmatpush1.msra.mxu0 0.0
        %3442 = vmatprep.subr.mxu0 0.0
        %3443 = vmatpush1.msra.mxu0 0.0
        %3444 = vmatprep.subr.mxu0 0.0
        %3445 = vmatpush1.msra.mxu0 0.0
        %3446 = vmatprep.subr.mxu0 0.0
        %3447 = vmatpush1.msra.mxu0 0.0
        %3448 = vmatprep.subr.mxu0 0.0
        %3449 = vmatpush1.msra.mxu0 0.0
        %3450 = vmatprep.subr.mxu0 0.0
        %3451 = vmatpush1.msra.mxu0 0.0
        %3452 = vmatprep.subr.mxu0 0.0
        %3453 = vmatpush1.msra.mxu0 0.0
        %3454 = vmatprep.subr.mxu0 0.0
        %3455 = vmatpush1.msra.mxu0 0.0
        %3456 = vmatprep.mubr.f32.mxu0 0.0
        %3457 = vmatmul.mubr.f32.gmra.mrb[0].mxu0 %v3390
        %v3458 = vpop.f32.mrb[0].mxu0
        %v3459 = vadd.f32 %v3388, %v3458
        %v3460 = vpop.f32.mrb[0].mxu0
        %3461 = vdwg.mxu0
        %v3462 = vadd.f32 %v2591, %v3459
        %v3463 = vsel %vm340, %v3462, 0.0
        %3464 = vadd.xlane.f32.xlu0 %v3463
        %v3465 = vpop.xlane.xlu0 %3464
        %v3466 = vmul.f32 %v3465, %v344
        %v3467 = vsub.f32 %v3462, %v3466
        %v3468 = vmul.f32 %v3467, %v3467
        %v3469 = vsel %vm340, %v3468, 0.0
        %3470 = vadd.xlane.f32.xlu0 %v3469
        %v3471 = vpop.xlane.xlu0 %3470
        %v3472 = vmul.f32 %v3471, 0.032258064
        %v3473 = vrsqrt.pop %v3472
        %v3474 = vmul.f32 %v3472, %v3473
        %vm3475 = vcmp.eq.f32.partialorder %v3472, inf
        %v3476 = vsel %vm3475, %v3472, %v3474
        %vm3477 = vcmp.eq.f32.partialorder %v3472, 0.0
        %v3478 = vand.u32 %v3472, 2147483648
        %v3479 = vsel %vm3477, %v3478, %v3476
        %v3480 = vld [vmem:[#allocation8 + $0xb0] sm:$0x1]
        %v3481 = vlaneseq
        %v3482 = vshrl.u32 %v3481, 7
        %v3483 = vsub.s32 0, %v3482
        %v3484 = vrot.slane %v3480, %v3483
        %v3485 = vmul.f32 %v3484, %v3467
        %v3486 = vadd.f32 %v3479, 1e-06
        %v3487 = vrcp.pop %v3486
        %v3488 = vmul.f32 %v3485, %v3487
        %v3489 = vld [vmem:[#allocation8 + $0xb8] sm:$0x1]
        %v3490 = vlaneseq
        %v3491 = vshrl.u32 %v3490, 7
        %v3492 = vsub.s32 0, %v3491
        %v3493 = vrot.slane %v3489, %v3492
        %v3494 = vadd.f32 %v3488, %v3493
        %v3495 = vld [vmem:[#allocation5 + $0x230] sm:$0xff]
        %v3496 = vld [vmem:[#allocation5 + $0x238] sm:$0xff]
        %v3497 = vld [vmem:[#allocation5 + $0x240] sm:$0xff]
        %v3498 = vld [vmem:[#allocation5 + $0x248] sm:$0xff]
        %v3499 = vld [vmem:[#allocation8 + $0xc0] sm:$0x1]
        %v3500 = vlaneseq
        %v3501 = vshrl.u32 %v3500, 7
        %v3502 = vsub.s32 0, %v3501
        %v3503 = vrot.slane %v3499, %v3502
        %v3505 = vsel %vm340, %v3494, 0
        %3507 = vmatprep.subr.mxu0 0.0
        %3508 = vmatpush1.msra.mxu0 %v3495
        %3509 = vmatprep.subr.mxu0 0.0
        %3510 = vmatpush1.msra.mxu0 %v3496
        %3511 = vmatprep.subr.mxu0 0.0
        %3512 = vmatpush1.msra.mxu0 %v3497
        %3513 = vmatprep.subr.mxu0 0.0
        %3514 = vmatpush1.msra.mxu0 %v3498
        %3515 = vmatprep.subr.mxu0 0.0
        %3516 = vmatpush1.msra.mxu0 0.0
        %3517 = vmatprep.subr.mxu0 0.0
        %3518 = vmatpush1.msra.mxu0 0.0
        %3519 = vmatprep.subr.mxu0 0.0
        %3520 = vmatpush1.msra.mxu0 0.0
        %3521 = vmatprep.subr.mxu0 0.0
        %3522 = vmatpush1.msra.mxu0 0.0
        %3523 = vmatprep.subr.mxu0 0.0
        %3524 = vmatpush1.msra.mxu0 0.0
        %3525 = vmatprep.subr.mxu0 0.0
        %3526 = vmatpush1.msra.mxu0 0.0
        %3527 = vmatprep.subr.mxu0 0.0
        %3528 = vmatpush1.msra.mxu0 0.0
        %3529 = vmatprep.subr.mxu0 0.0
        %3530 = vmatpush1.msra.mxu0 0.0
        %3531 = vmatprep.subr.mxu0 0.0
        %3532 = vmatpush1.msra.mxu0 0.0
        %3533 = vmatprep.subr.mxu0 0.0
        %3534 = vmatpush1.msra.mxu0 0.0
        %3535 = vmatprep.subr.mxu0 0.0
        %3536 = vmatpush1.msra.mxu0 0.0
        %3537 = vmatprep.subr.mxu0 0.0
        %3538 = vmatpush1.msra.mxu0 0.0
        %3539 = vmatprep.subr.mxu0 0.0
        %3540 = vmatpush1.msra.mxu0 0.0
        %3541 = vmatprep.subr.mxu0 0.0
        %3542 = vmatpush1.msra.mxu0 0.0
        %3543 = vmatprep.subr.mxu0 0.0
        %3544 = vmatpush1.msra.mxu0 0.0
        %3545 = vmatprep.subr.mxu0 0.0
        %3546 = vmatpush1.msra.mxu0 0.0
        %3547 = vmatprep.subr.mxu0 0.0
        %3548 = vmatpush1.msra.mxu0 0.0
        %3549 = vmatprep.subr.mxu0 0.0
        %3550 = vmatpush1.msra.mxu0 0.0
        %3551 = vmatprep.subr.mxu0 0.0
        %3552 = vmatpush1.msra.mxu0 0.0
        %3553 = vmatprep.subr.mxu0 0.0
        %3554 = vmatpush1.msra.mxu0 0.0
        %3555 = vmatprep.subr.mxu0 0.0
        %3556 = vmatpush1.msra.mxu0 0.0
        %3557 = vmatprep.subr.mxu0 0.0
        %3558 = vmatpush1.msra.mxu0 0.0
        %3559 = vmatprep.subr.mxu0 0.0
        %3560 = vmatpush1.msra.mxu0 0.0
        %3561 = vmatprep.subr.mxu0 0.0
        %3562 = vmatpush1.msra.mxu0 0.0
        %3563 = vmatprep.subr.mxu0 0.0
        %3564 = vmatpush1.msra.mxu0 0.0
        %3565 = vmatprep.subr.mxu0 0.0
        %3566 = vmatpush1.msra.mxu0 0.0
        %3567 = vmatprep.subr.mxu0 0.0
        %3568 = vmatpush1.msra.mxu0 0.0
        %3569 = vmatprep.subr.mxu0 0.0
        %3570 = vmatpush1.msra.mxu0 0.0
        %3571 = vmatprep.mubr.f32.mxu0 0.0
        %3572 = vmatmul.mubr.f32.gmra.mrb[0].mxu0 %v3505
        %v3573 = vpop.f32.mrb[0].mxu0
        %v3574 = vadd.f32 %v3503, %v3573
        %v3575 = vpop.f32.mrb[0].mxu0
        %3576 = vdwg.mxu0
        %v3577 = vld [vmem:[#allocation5 + $0x250] sm:$0xff]
        %v3578 = vld [vmem:[#allocation5 + $0x258] sm:$0xff]
        %v3579 = vld [vmem:[#allocation5 + $0x260] sm:$0xff]
        %v3580 = vld [vmem:[#allocation5 + $0x268] sm:$0xff]
        %v3581 = vld [vmem:[#allocation8 + $0xc8] sm:$0x1]
        %v3582 = vlaneseq
        %v3583 = vshrl.u32 %v3582, 7
        %v3584 = vsub.s32 0, %v3583
        %v3585 = vrot.slane %v3581, %v3584
        %v3587 = vsel %vm340, %v2529, 0
        %3589 = vmatprep.subr.mxu0 0.0
        %3590 = vmatpush1.msra.mxu0 %v3577
        %3591 = vmatprep.subr.mxu0 0.0
        %3592 = vmatpush1.msra.mxu0 %v3578
        %3593 = vmatprep.subr.mxu0 0.0
        %3594 = vmatpush1.msra.mxu0 %v3579
        %3595 = vmatprep.subr.mxu0 0.0
        %3596 = vmatpush1.msra.mxu0 %v3580
        %3597 = vmatprep.subr.mxu0 0.0
        %3598 = vmatpush1.msra.mxu0 0.0
        %3599 = vmatprep.subr.mxu0 0.0
        %3600 = vmatpush1.msra.mxu0 0.0
        %3601 = vmatprep.subr.mxu0 0.0
        %3602 = vmatpush1.msra.mxu0 0.0
        %3603 = vmatprep.subr.mxu0 0.0
        %3604 = vmatpush1.msra.mxu0 0.0
        %3605 = vmatprep.subr.mxu0 0.0
        %3606 = vmatpush1.msra.mxu0 0.0
        %3607 = vmatprep.subr.mxu0 0.0
        %3608 = vmatpush1.msra.mxu0 0.0
        %3609 = vmatprep.subr.mxu0 0.0
        %3610 = vmatpush1.msra.mxu0 0.0
        %3611 = vmatprep.subr.mxu0 0.0
        %3612 = vmatpush1.msra.mxu0 0.0
        %3613 = vmatprep.subr.mxu0 0.0
        %3614 = vmatpush1.msra.mxu0 0.0
        %3615 = vmatprep.subr.mxu0 0.0
        %3616 = vmatpush1.msra.mxu0 0.0
        %3617 = vmatprep.subr.mxu0 0.0
        %3618 = vmatpush1.msra.mxu0 0.0
        %3619 = vmatprep.subr.mxu0 0.0
        %3620 = vmatpush1.msra.mxu0 0.0
        %3621 = vmatprep.subr.mxu0 0.0
        %3622 = vmatpush1.msra.mxu0 0.0
        %3623 = vmatprep.subr.mxu0 0.0
        %3624 = vmatpush1.msra.mxu0 0.0
        %3625 = vmatprep.subr.mxu0 0.0
        %3626 = vmatpush1.msra.mxu0 0.0
        %3627 = vmatprep.subr.mxu0 0.0
        %3628 = vmatpush1.msra.mxu0 0.0
        %3629 = vmatprep.subr.mxu0 0.0
        %3630 = vmatpush1.msra.mxu0 0.0
        %3631 = vmatprep.subr.mxu0 0.0
        %3632 = vmatpush1.msra.mxu0 0.0
        %3633 = vmatprep.subr.mxu0 0.0
        %3634 = vmatpush1.msra.mxu0 0.0
        %3635 = vmatprep.subr.mxu0 0.0
        %3636 = vmatpush1.msra.mxu0 0.0
        %3637 = vmatprep.subr.mxu0 0.0
        %3638 = vmatpush1.msra.mxu0 0.0
        %3639 = vmatprep.subr.mxu0 0.0
        %3640 = vmatpush1.msra.mxu0 0.0
        %3641 = vmatprep.subr.mxu0 0.0
        %3642 = vmatpush1.msra.mxu0 0.0
        %3643 = vmatprep.subr.mxu0 0.0
        %3644 = vmatpush1.msra.mxu0 0.0
        %3645 = vmatprep.subr.mxu0 0.0
        %3646 = vmatpush1.msra.mxu0 0.0
        %3647 = vmatprep.subr.mxu0 0.0
        %3648 = vmatpush1.msra.mxu0 0.0
        %3649 = vmatprep.subr.mxu0 0.0
        %3650 = vmatpush1.msra.mxu0 0.0
        %3651 = vmatprep.subr.mxu0 0.0
        %3652 = vmatpush1.msra.mxu0 0.0
        %3653 = vmatprep.mubr.f32.mxu0 0.0
        %3654 = vmatmul.mubr.f32.gmra.mrb[0].mxu0 %v3587
        %v3655 = vpop.f32.mrb[0].mxu0
        %v3656 = vadd.f32 %v3585, %v3655
        %v3657 = vpop.f32.mrb[0].mxu0
        %3658 = vdwg.mxu0
        %v3660 = vsel %vm465, %v3574, 0
        %v3663 = vsel %vm465, %v3656, 0
        %3665 = vmatprep.subr.mxu0 0.0
        %3666 = vmatpush1.xpose.msra.mxu0 %v3663
        %3667 = vmatprep.subr.mxu0 0.0
        %3668 = vmatpush1.xpose.msra.mxu0 0.0
        %3669 = vmatprep.subr.mxu0 0.0
        %3670 = vmatpush1.xpose.msra.mxu0 0.0
        %3671 = vmatprep.subr.mxu0 0.0
        %3672 = vmatpush1.xpose.msra.mxu0 0.0
        %3673 = vmatprep.subr.mxu0 0.0
        %3674 = vmatpush1.xpose.msra.mxu0 0.0
        %3675 = vmatprep.subr.mxu0 0.0
        %3676 = vmatpush1.xpose.msra.mxu0 0.0
        %3677 = vmatprep.subr.mxu0 0.0
        %3678 = vmatpush1.xpose.msra.mxu0 0.0
        %3679 = vmatprep.subr.mxu0 0.0
        %3680 = vmatpush1.xpose.msra.mxu0 0.0
        %3681 = vmatprep.subr.mxu0 0.0
        %3682 = vmatpush1.xpose.msra.mxu0 0.0
        %3683 = vmatprep.subr.mxu0 0.0
        %3684 = vmatpush1.xpose.msra.mxu0 0.0
        %3685 = vmatprep.subr.mxu0 0.0
        %3686 = vmatpush1.xpose.msra.mxu0 0.0
        %3687 = vmatprep.subr.mxu0 0.0
        %3688 = vmatpush1.xpose.msra.mxu0 0.0
        %3689 = vmatprep.subr.mxu0 0.0
        %3690 = vmatpush1.xpose.msra.mxu0 0.0
        %3691 = vmatprep.subr.mxu0 0.0
        %3692 = vmatpush1.xpose.msra.mxu0 0.0
        %3693 = vmatprep.subr.mxu0 0.0
        %3694 = vmatpush1.xpose.msra.mxu0 0.0
        %3695 = vmatprep.subr.mxu0 0.0
        %3696 = vmatpush1.xpose.msra.mxu0 0.0
        %3697 = vmatprep.subr.mxu0 0.0
        %3698 = vmatpush1.xpose.msra.mxu0 0.0
        %3699 = vmatprep.subr.mxu0 0.0
        %3700 = vmatpush1.xpose.msra.mxu0 0.0
        %3701 = vmatprep.subr.mxu0 0.0
        %3702 = vmatpush1.xpose.msra.mxu0 0.0
        %3703 = vmatprep.subr.mxu0 0.0
        %3704 = vmatpush1.xpose.msra.mxu0 0.0
        %3705 = vmatprep.subr.mxu0 0.0
        %3706 = vmatpush1.xpose.msra.mxu0 0.0
        %3707 = vmatprep.subr.mxu0 0.0
        %3708 = vmatpush1.xpose.msra.mxu0 0.0
        %3709 = vmatprep.subr.mxu0 0.0
        %3710 = vmatpush1.xpose.msra.mxu0 0.0
        %3711 = vmatprep.subr.mxu0 0.0
        %3712 = vmatpush1.xpose.msra.mxu0 0.0
        %3713 = vmatprep.subr.mxu0 0.0
        %3714 = vmatpush1.xpose.msra.mxu0 0.0
        %3715 = vmatprep.subr.mxu0 0.0
        %3716 = vmatpush1.xpose.msra.mxu0 0.0
        %3717 = vmatprep.subr.mxu0 0.0
        %3718 = vmatpush1.xpose.msra.mxu0 0.0
        %3719 = vmatprep.subr.mxu0 0.0
        %3720 = vmatpush1.xpose.msra.mxu0 0.0
        %3721 = vmatprep.subr.mxu0 0.0
        %3722 = vmatpush1.xpose.msra.mxu0 0.0
        %3723 = vmatprep.subr.mxu0 0.0
        %3724 = vmatpush1.xpose.msra.mxu0 0.0
        %3725 = vmatprep.subr.mxu0 0.0
        %3726 = vmatpush1.xpose.msra.mxu0 0.0
        %3727 = vmatprep.subr.mxu0 0.0
        %3728 = vmatpush1.xpose.msra.mxu0 0.0
        %3729 = vmatprep.mubr.f32.mxu0 0.0
        %3730 = vmatmul.mubr.f32.gmra.mrb[0].mxu0 %v3660
        %v3731 = vpop.f32.mrb[0].mxu0
        %v3732 = vadd.f32 %v460, %v3731
        %v3733 = vpop.f32.mrb[0].mxu0
        %3734 = vdwg.mxu0
        %v3735 = vsel %vm465, %v3732, -inf
        %3736 = vmax.xlane.f32.xlu0 %v3735
        %v3737 = vpop.xlane.xlu0 %3736
        %v3738 = vsub.f32 %v3732, %v3737
        %v3739 = vmul.f32 %v3738, 1.442695
        %v3740 = vpow.pop %v3739
        %v3741 = vsel %vm465, %v3740, 0.0
        %3742 = vadd.xlane.f32.xlu0 %v3741
        %v3743 = vpop.xlane.xlu0 %3742
        %v3744 = vrcp.pop %v3743
        %v3745 = vmul.f32 %v3740, %v3744
        %3746 = vrot.lane.b32.xlu0 %v3656, 96
        %v3747 = vpop.permute.xlu0 %3746
        %v3750 = vsel %vm465, %v3745, 0
        %3752 = vmatprep.subr.mxu0 0.0
        %3753 = vmatpush1.msra.mxu0 %v3747
        %3754 = vmatprep.subr.mxu0 0.0
        %3755 = vmatpush1.msra.mxu0 0.0
        %3756 = vmatprep.subr.mxu0 0.0
        %3757 = vmatpush1.msra.mxu0 0.0
        %3758 = vmatprep.subr.mxu0 0.0
        %3759 = vmatpush1.msra.mxu0 0.0
        %3760 = vmatprep.subr.mxu0 0.0
        %3761 = vmatpush1.msra.mxu0 0.0
        %3762 = vmatprep.subr.mxu0 0.0
        %3763 = vmatpush1.msra.mxu0 0.0
        %3764 = vmatprep.subr.mxu0 0.0
        %3765 = vmatpush1.msra.mxu0 0.0
        %3766 = vmatprep.subr.mxu0 0.0
        %3767 = vmatpush1.msra.mxu0 0.0
        %3768 = vmatprep.subr.mxu0 0.0
        %3769 = vmatpush1.msra.mxu0 0.0
        %3770 = vmatprep.subr.mxu0 0.0
        %3771 = vmatpush1.msra.mxu0 0.0
        %3772 = vmatprep.subr.mxu0 0.0
        %3773 = vmatpush1.msra.mxu0 0.0
        %3774 = vmatprep.subr.mxu0 0.0
        %3775 = vmatpush1.msra.mxu0 0.0
        %3776 = vmatprep.subr.mxu0 0.0
        %3777 = vmatpush1.msra.mxu0 0.0
        %3778 = vmatprep.subr.mxu0 0.0
        %3779 = vmatpush1.msra.mxu0 0.0
        %3780 = vmatprep.subr.mxu0 0.0
        %3781 = vmatpush1.msra.mxu0 0.0
        %3782 = vmatprep.subr.mxu0 0.0
        %3783 = vmatpush1.msra.mxu0 0.0
        %3784 = vmatprep.subr.mxu0 0.0
        %3785 = vmatpush1.msra.mxu0 0.0
        %3786 = vmatprep.subr.mxu0 0.0
        %3787 = vmatpush1.msra.mxu0 0.0
        %3788 = vmatprep.subr.mxu0 0.0
        %3789 = vmatpush1.msra.mxu0 0.0
        %3790 = vmatprep.subr.mxu0 0.0
        %3791 = vmatpush1.msra.mxu0 0.0
        %3792 = vmatprep.subr.mxu0 0.0
        %3793 = vmatpush1.msra.mxu0 0.0
        %3794 = vmatprep.subr.mxu0 0.0
        %3795 = vmatpush1.msra.mxu0 0.0
        %3796 = vmatprep.subr.mxu0 0.0
        %3797 = vmatpush1.msra.mxu0 0.0
        %3798 = vmatprep.subr.mxu0 0.0
        %3799 = vmatpush1.msra.mxu0 0.0
        %3800 = vmatprep.subr.mxu0 0.0
        %3801 = vmatpush1.msra.mxu0 0.0
        %3802 = vmatprep.subr.mxu0 0.0
        %3803 = vmatpush1.msra.mxu0 0.0
        %3804 = vmatprep.subr.mxu0 0.0
        %3805 = vmatpush1.msra.mxu0 0.0
        %3806 = vmatprep.subr.mxu0 0.0
        %3807 = vmatpush1.msra.mxu0 0.0
        %3808 = vmatprep.subr.mxu0 0.0
        %3809 = vmatpush1.msra.mxu0 0.0
        %3810 = vmatprep.subr.mxu0 0.0
        %3811 = vmatpush1.msra.mxu0 0.0
        %3812 = vmatprep.subr.mxu0 0.0
        %3813 = vmatpush1.msra.mxu0 0.0
        %3814 = vmatprep.subr.mxu0 0.0
        %3815 = vmatpush1.msra.mxu0 0.0
        %3816 = vmatprep.mubr.f32.mxu0 0.0
        %3817 = vmatmul.mubr.f32.gmra.mrb[0].mxu0 %v3750
        %v3818 = vpop.f32.mrb[0].mxu0
        %v3819 = vadd.f32 0.0, %v3818
        %v3820 = vpop.f32.mrb[0].mxu0
        %3821 = vdwg.mxu0
        %3822 = vrot.lane.b32.xlu0 %v3574, 120
        %v3823 = vpop.permute.xlu0 %3822
        %3824 = vrot.lane.b32.xlu0 %v3656, 120
        %v3825 = vpop.permute.xlu0 %3824
        %v3826 = vsel %vm465, %v3823, 0
        %v3828 = vsel %vm465, %v3825, 0
        %3830 = vmatprep.subr.mxu0 0.0
        %3831 = vmatpush1.xpose.msra.mxu0 %v3828
        %3832 = vmatprep.subr.mxu0 0.0
        %3833 = vmatpush1.xpose.msra.mxu0 0.0
        %3834 = vmatprep.subr.mxu0 0.0
        %3835 = vmatpush1.xpose.msra.mxu0 0.0
        %3836 = vmatprep.subr.mxu0 0.0
        %3837 = vmatpush1.xpose.msra.mxu0 0.0
        %3838 = vmatprep.subr.mxu0 0.0
        %3839 = vmatpush1.xpose.msra.mxu0 0.0
        %3840 = vmatprep.subr.mxu0 0.0
        %3841 = vmatpush1.xpose.msra.mxu0 0.0
        %3842 = vmatprep.subr.mxu0 0.0
        %3843 = vmatpush1.xpose.msra.mxu0 0.0
        %3844 = vmatprep.subr.mxu0 0.0
        %3845 = vmatpush1.xpose.msra.mxu0 0.0
        %3846 = vmatprep.subr.mxu0 0.0
        %3847 = vmatpush1.xpose.msra.mxu0 0.0
        %3848 = vmatprep.subr.mxu0 0.0
        %3849 = vmatpush1.xpose.msra.mxu0 0.0
        %3850 = vmatprep.subr.mxu0 0.0
        %3851 = vmatpush1.xpose.msra.mxu0 0.0
        %3852 = vmatprep.subr.mxu0 0.0
        %3853 = vmatpush1.xpose.msra.mxu0 0.0
        %3854 = vmatprep.subr.mxu0 0.0
        %3855 = vmatpush1.xpose.msra.mxu0 0.0
        %3856 = vmatprep.subr.mxu0 0.0
        %3857 = vmatpush1.xpose.msra.mxu0 0.0
        %3858 = vmatprep.subr.mxu0 0.0
        %3859 = vmatpush1.xpose.msra.mxu0 0.0
        %3860 = vmatprep.subr.mxu0 0.0
        %3861 = vmatpush1.xpose.msra.mxu0 0.0
        %3862 = vmatprep.subr.mxu0 0.0
        %3863 = vmatpush1.xpose.msra.mxu0 0.0
        %3864 = vmatprep.subr.mxu0 0.0
        %3865 = vmatpush1.xpose.msra.mxu0 0.0
        %3866 = vmatprep.subr.mxu0 0.0
        %3867 = vmatpush1.xpose.msra.mxu0 0.0
        %3868 = vmatprep.subr.mxu0 0.0
        %3869 = vmatpush1.xpose.msra.mxu0 0.0
        %3870 = vmatprep.subr.mxu0 0.0
        %3871 = vmatpush1.xpose.msra.mxu0 0.0
        %3872 = vmatprep.subr.mxu0 0.0
        %3873 = vmatpush1.xpose.msra.mxu0 0.0
        %3874 = vmatprep.subr.mxu0 0.0
        %3875 = vmatpush1.xpose.msra.mxu0 0.0
        %3876 = vmatprep.subr.mxu0 0.0
        %3877 = vmatpush1.xpose.msra.mxu0 0.0
        %3878 = vmatprep.subr.mxu0 0.0
        %3879 = vmatpush1.xpose.msra.mxu0 0.0
        %3880 = vmatprep.subr.mxu0 0.0
        %3881 = vmatpush1.xpose.msra.mxu0 0.0
        %3882 = vmatprep.subr.mxu0 0.0
        %3883 = vmatpush1.xpose.msra.mxu0 0.0
        %3884 = vmatprep.subr.mxu0 0.0
        %3885 = vmatpush1.xpose.msra.mxu0 0.0
        %3886 = vmatprep.subr.mxu0 0.0
        %3887 = vmatpush1.xpose.msra.mxu0 0.0
        %3888 = vmatprep.subr.mxu0 0.0
        %3889 = vmatpush1.xpose.msra.mxu0 0.0
        %3890 = vmatprep.subr.mxu0 0.0
        %3891 = vmatpush1.xpose.msra.mxu0 0.0
        %3892 = vmatprep.subr.mxu0 0.0
        %3893 = vmatpush1.xpose.msra.mxu0 0.0
        %3894 = vmatprep.mubr.f32.mxu0 0.0
        %3895 = vmatmul.mubr.f32.gmra.mrb[0].mxu0 %v3826
        %v3896 = vpop.f32.mrb[0].mxu0
        %v3897 = vadd.f32 %v460, %v3896
        %v3898 = vpop.f32.mrb[0].mxu0
        %3899 = vdwg.mxu0
        %v3900 = vsel %vm465, %v3897, -inf
        %3901 = vmax.xlane.f32.xlu0 %v3900
        %v3902 = vpop.xlane.xlu0 %3901
        %v3903 = vsub.f32 %v3897, %v3902
        %v3904 = vmul.f32 %v3903, 1.442695
        %v3905 = vpow.pop %v3904
        %v3906 = vsel %vm465, %v3905, 0.0
        %3907 = vadd.xlane.f32.xlu0 %v3906
        %v3908 = vpop.xlane.xlu0 %3907
        %v3909 = vrcp.pop %v3908
        %v3910 = vmul.f32 %v3905, %v3909
        %3911 = vrot.lane.b32.xlu0 %v3656, 88
        %v3912 = vpop.permute.xlu0 %3911
        %v3915 = vsel %vm465, %v3910, 0
        %3917 = vmatprep.subr.mxu0 0.0
        %3918 = vmatpush1.msra.mxu0 %v3912
        %3919 = vmatprep.subr.mxu0 0.0
        %3920 = vmatpush1.msra.mxu0 0.0
        %3921 = vmatprep.subr.mxu0 0.0
        %3922 = vmatpush1.msra.mxu0 0.0
        %3923 = vmatprep.subr.mxu0 0.0
        %3924 = vmatpush1.msra.mxu0 0.0
        %3925 = vmatprep.subr.mxu0 0.0
        %3926 = vmatpush1.msra.mxu0 0.0
        %3927 = vmatprep.subr.mxu0 0.0
        %3928 = vmatpush1.msra.mxu0 0.0
        %3929 = vmatprep.subr.mxu0 0.0
        %3930 = vmatpush1.msra.mxu0 0.0
        %3931 = vmatprep.subr.mxu0 0.0
        %3932 = vmatpush1.msra.mxu0 0.0
        %3933 = vmatprep.subr.mxu0 0.0
        %3934 = vmatpush1.msra.mxu0 0.0
        %3935 = vmatprep.subr.mxu0 0.0
        %3936 = vmatpush1.msra.mxu0 0.0
        %3937 = vmatprep.subr.mxu0 0.0
        %3938 = vmatpush1.msra.mxu0 0.0
        %3939 = vmatprep.subr.mxu0 0.0
        %3940 = vmatpush1.msra.mxu0 0.0
        %3941 = vmatprep.subr.mxu0 0.0
        %3942 = vmatpush1.msra.mxu0 0.0
        %3943 = vmatprep.subr.mxu0 0.0
        %3944 = vmatpush1.msra.mxu0 0.0
        %3945 = vmatprep.subr.mxu0 0.0
        %3946 = vmatpush1.msra.mxu0 0.0
        %3947 = vmatprep.subr.mxu0 0.0
        %3948 = vmatpush1.msra.mxu0 0.0
        %3949 = vmatprep.subr.mxu0 0.0
        %3950 = vmatpush1.msra.mxu0 0.0
        %3951 = vmatprep.subr.mxu0 0.0
        %3952 = vmatpush1.msra.mxu0 0.0
        %3953 = vmatprep.subr.mxu0 0.0
        %3954 = vmatpush1.msra.mxu0 0.0
        %3955 = vmatprep.subr.mxu0 0.0
        %3956 = vmatpush1.msra.mxu0 0.0
        %3957 = vmatprep.subr.mxu0 0.0
        %3958 = vmatpush1.msra.mxu0 0.0
        %3959 = vmatprep.subr.mxu0 0.0
        %3960 = vmatpush1.msra.mxu0 0.0
        %3961 = vmatprep.subr.mxu0 0.0
        %3962 = vmatpush1.msra.mxu0 0.0
        %3963 = vmatprep.subr.mxu0 0.0
        %3964 = vmatpush1.msra.mxu0 0.0
        %3965 = vmatprep.subr.mxu0 0.0
        %3966 = vmatpush1.msra.mxu0 0.0
        %3967 = vmatprep.subr.mxu0 0.0
        %3968 = vmatpush1.msra.mxu0 0.0
        %3969 = vmatprep.subr.mxu0 0.0
        %3970 = vmatpush1.msra.mxu0 0.0
        %3971 = vmatprep.subr.mxu0 0.0
        %3972 = vmatpush1.msra.mxu0 0.0
        %3973 = vmatprep.subr.mxu0 0.0
        %3974 = vmatpush1.msra.mxu0 0.0
        %3975 = vmatprep.subr.mxu0 0.0
        %3976 = vmatpush1.msra.mxu0 0.0
        %3977 = vmatprep.subr.mxu0 0.0
        %3978 = vmatpush1.msra.mxu0 0.0
        %3979 = vmatprep.subr.mxu0 0.0
        %3980 = vmatpush1.msra.mxu0 0.0
        %3981 = vmatprep.mubr.f32.mxu0 0.0
        %3982 = vmatmul.mubr.f32.gmra.mrb[0].mxu0 %v3915
        %v3983 = vpop.f32.mrb[0].mxu0
        %v3984 = vadd.f32 0.0, %v3983
        %v3985 = vpop.f32.mrb[0].mxu0
        %3986 = vdwg.mxu0
        %3987 = vrot.lane.b32.xlu0 %v3574, 112
        %v3988 = vpop.permute.xlu0 %3987
        %3989 = vrot.lane.b32.xlu0 %v3656, 112
        %v3990 = vpop.permute.xlu0 %3989
        %v3991 = vsel %vm465, %v3988, 0
        %v3993 = vsel %vm465, %v3990, 0
        %3995 = vmatprep.subr.mxu0 0.0
        %3996 = vmatpush1.xpose.msra.mxu0 %v3993
        %3997 = vmatprep.subr.mxu0 0.0
        %3998 = vmatpush1.xpose.msra.mxu0 0.0
        %3999 = vmatprep.subr.mxu0 0.0
        %4000 = vmatpush1.xpose.msra.mxu0 0.0
        %4001 = vmatprep.subr.mxu0 0.0
        %4002 = vmatpush1.xpose.msra.mxu0 0.0
        %4003 = vmatprep.subr.mxu0 0.0
        %4004 = vmatpush1.xpose.msra.mxu0 0.0
        %4005 = vmatprep.subr.mxu0 0.0
        %4006 = vmatpush1.xpose.msra.mxu0 0.0
        %4007 = vmatprep.subr.mxu0 0.0
        %4008 = vmatpush1.xpose.msra.mxu0 0.0
        %4009 = vmatprep.subr.mxu0 0.0
        %4010 = vmatpush1.xpose.msra.mxu0 0.0
        %4011 = vmatprep.subr.mxu0 0.0
        %4012 = vmatpush1.xpose.msra.mxu0 0.0
        %4013 = vmatprep.subr.mxu0 0.0
        %4014 = vmatpush1.xpose.msra.mxu0 0.0
        %4015 = vmatprep.subr.mxu0 0.0
        %4016 = vmatpush1.xpose.msra.mxu0 0.0
        %4017 = vmatprep.subr.mxu0 0.0
        %4018 = vmatpush1.xpose.msra.mxu0 0.0
        %4019 = vmatprep.subr.mxu0 0.0
        %4020 = vmatpush1.xpose.msra.mxu0 0.0
        %4021 = vmatprep.subr.mxu0 0.0
        %4022 = vmatpush1.xpose.msra.mxu0 0.0
        %4023 = vmatprep.subr.mxu0 0.0
        %4024 = vmatpush1.xpose.msra.mxu0 0.0
        %4025 = vmatprep.subr.mxu0 0.0
        %4026 = vmatpush1.xpose.msra.mxu0 0.0
        %4027 = vmatprep.subr.mxu0 0.0
        %4028 = vmatpush1.xpose.msra.mxu0 0.0
        %4029 = vmatprep.subr.mxu0 0.0
        %4030 = vmatpush1.xpose.msra.mxu0 0.0
        %4031 = vmatprep.subr.mxu0 0.0
        %4032 = vmatpush1.xpose.msra.mxu0 0.0
        %4033 = vmatprep.subr.mxu0 0.0
        %4034 = vmatpush1.xpose.msra.mxu0 0.0
        %4035 = vmatprep.subr.mxu0 0.0
        %4036 = vmatpush1.xpose.msra.mxu0 0.0
        %4037 = vmatprep.subr.mxu0 0.0
        %4038 = vmatpush1.xpose.msra.mxu0 0.0
        %4039 = vmatprep.subr.mxu0 0.0
        %4040 = vmatpush1.xpose.msra.mxu0 0.0
        %4041 = vmatprep.subr.mxu0 0.0
        %4042 = vmatpush1.xpose.msra.mxu0 0.0
        %4043 = vmatprep.subr.mxu0 0.0
        %4044 = vmatpush1.xpose.msra.mxu0 0.0
        %4045 = vmatprep.subr.mxu0 0.0
        %4046 = vmatpush1.xpose.msra.mxu0 0.0
        %4047 = vmatprep.subr.mxu0 0.0
        %4048 = vmatpush1.xpose.msra.mxu0 0.0
        %4049 = vmatprep.subr.mxu0 0.0
        %4050 = vmatpush1.xpose.msra.mxu0 0.0
        %4051 = vmatprep.subr.mxu0 0.0
        %4052 = vmatpush1.xpose.msra.mxu0 0.0
        %4053 = vmatprep.subr.mxu0 0.0
        %4054 = vmatpush1.xpose.msra.mxu0 0.0
        %4055 = vmatprep.subr.mxu0 0.0
        %4056 = vmatpush1.xpose.msra.mxu0 0.0
        %4057 = vmatprep.subr.mxu0 0.0
        %4058 = vmatpush1.xpose.msra.mxu0 0.0
        %4059 = vmatprep.mubr.f32.mxu0 0.0
        %4060 = vmatmul.mubr.f32.gmra.mrb[0].mxu0 %v3991
        %v4061 = vpop.f32.mrb[0].mxu0
        %v4062 = vadd.f32 %v460, %v4061
        %v4063 = vpop.f32.mrb[0].mxu0
        %4064 = vdwg.mxu0
        %v4065 = vsel %vm465, %v4062, -inf
        %4066 = vmax.xlane.f32.xlu0 %v4065
        %v4067 = vpop.xlane.xlu0 %4066
        %v4068 = vsub.f32 %v4062, %v4067
        %v4069 = vmul.f32 %v4068, 1.442695
        %v4070 = vpow.pop %v4069
        %v4071 = vsel %vm465, %v4070, 0.0
        %4072 = vadd.xlane.f32.xlu0 %v4071
        %v4073 = vpop.xlane.xlu0 %4072
        %v4074 = vrcp.pop %v4073
        %v4075 = vmul.f32 %v4070, %v4074
        %4076 = vrot.lane.b32.xlu0 %v3656, 80
        %v4077 = vpop.permute.xlu0 %4076
        %v4080 = vsel %vm465, %v4075, 0
        %4082 = vmatprep.subr.mxu0 0.0
        %4083 = vmatpush1.msra.mxu0 %v4077
        %4084 = vmatprep.subr.mxu0 0.0
        %4085 = vmatpush1.msra.mxu0 0.0
        %4086 = vmatprep.subr.mxu0 0.0
        %4087 = vmatpush1.msra.mxu0 0.0
        %4088 = vmatprep.subr.mxu0 0.0
        %4089 = vmatpush1.msra.mxu0 0.0
        %4090 = vmatprep.subr.mxu0 0.0
        %4091 = vmatpush1.msra.mxu0 0.0
        %4092 = vmatprep.subr.mxu0 0.0
        %4093 = vmatpush1.msra.mxu0 0.0
        %4094 = vmatprep.subr.mxu0 0.0
        %4095 = vmatpush1.msra.mxu0 0.0
        %4096 = vmatprep.subr.mxu0 0.0
        %4097 = vmatpush1.msra.mxu0 0.0
        %4098 = vmatprep.subr.mxu0 0.0
        %4099 = vmatpush1.msra.mxu0 0.0
        %4100 = vmatprep.subr.mxu0 0.0
        %4101 = vmatpush1.msra.mxu0 0.0
        %4102 = vmatprep.subr.mxu0 0.0
        %4103 = vmatpush1.msra.mxu0 0.0
        %4104 = vmatprep.subr.mxu0 0.0
        %4105 = vmatpush1.msra.mxu0 0.0
        %4106 = vmatprep.subr.mxu0 0.0
        %4107 = vmatpush1.msra.mxu0 0.0
        %4108 = vmatprep.subr.mxu0 0.0
        %4109 = vmatpush1.msra.mxu0 0.0
        %4110 = vmatprep.subr.mxu0 0.0
        %4111 = vmatpush1.msra.mxu0 0.0
        %4112 = vmatprep.subr.mxu0 0.0
        %4113 = vmatpush1.msra.mxu0 0.0
        %4114 = vmatprep.subr.mxu0 0.0
        %4115 = vmatpush1.msra.mxu0 0.0
        %4116 = vmatprep.subr.mxu0 0.0
        %4117 = vmatpush1.msra.mxu0 0.0
        %4118 = vmatprep.subr.mxu0 0.0
        %4119 = vmatpush1.msra.mxu0 0.0
        %4120 = vmatprep.subr.mxu0 0.0
        %4121 = vmatpush1.msra.mxu0 0.0
        %4122 = vmatprep.subr.mxu0 0.0
        %4123 = vmatpush1.msra.mxu0 0.0
        %4124 = vmatprep.subr.mxu0 0.0
        %4125 = vmatpush1.msra.mxu0 0.0
        %4126 = vmatprep.subr.mxu0 0.0
        %4127 = vmatpush1.msra.mxu0 0.0
        %4128 = vmatprep.subr.mxu0 0.0
        %4129 = vmatpush1.msra.mxu0 0.0
        %4130 = vmatprep.subr.mxu0 0.0
        %4131 = vmatpush1.msra.mxu0 0.0
        %4132 = vmatprep.subr.mxu0 0.0
        %4133 = vmatpush1.msra.mxu0 0.0
        %4134 = vmatprep.subr.mxu0 0.0
        %4135 = vmatpush1.msra.mxu0 0.0
        %4136 = vmatprep.subr.mxu0 0.0
        %4137 = vmatpush1.msra.mxu0 0.0
        %4138 = vmatprep.subr.mxu0 0.0
        %4139 = vmatpush1.msra.mxu0 0.0
        %4140 = vmatprep.subr.mxu0 0.0
        %4141 = vmatpush1.msra.mxu0 0.0
        %4142 = vmatprep.subr.mxu0 0.0
        %4143 = vmatpush1.msra.mxu0 0.0
        %4144 = vmatprep.subr.mxu0 0.0
        %4145 = vmatpush1.msra.mxu0 0.0
        %4146 = vmatprep.mubr.f32.mxu0 0.0
        %4147 = vmatmul.mubr.f32.gmra.mrb[0].mxu0 %v4080
        %v4148 = vpop.f32.mrb[0].mxu0
        %v4149 = vadd.f32 0.0, %v4148
        %v4150 = vpop.f32.mrb[0].mxu0
        %4151 = vdwg.mxu0
        %4152 = vrot.lane.b32.xlu0 %v3574, 104
        %v4153 = vpop.permute.xlu0 %4152
        %4154 = vrot.lane.b32.xlu0 %v3656, 104
        %v4155 = vpop.permute.xlu0 %4154
        %v4156 = vsel %vm465, %v4153, 0
        %v4158 = vsel %vm465, %v4155, 0
        %4160 = vmatprep.subr.mxu0 0.0
        %4161 = vmatpush1.xpose.msra.mxu0 %v4158
        %4162 = vmatprep.subr.mxu0 0.0
        %4163 = vmatpush1.xpose.msra.mxu0 0.0
        %4164 = vmatprep.subr.mxu0 0.0
        %4165 = vmatpush1.xpose.msra.mxu0 0.0
        %4166 = vmatprep.subr.mxu0 0.0
        %4167 = vmatpush1.xpose.msra.mxu0 0.0
        %4168 = vmatprep.subr.mxu0 0.0
        %4169 = vmatpush1.xpose.msra.mxu0 0.0
        %4170 = vmatprep.subr.mxu0 0.0
        %4171 = vmatpush1.xpose.msra.mxu0 0.0
        %4172 = vmatprep.subr.mxu0 0.0
        %4173 = vmatpush1.xpose.msra.mxu0 0.0
        %4174 = vmatprep.subr.mxu0 0.0
        %4175 = vmatpush1.xpose.msra.mxu0 0.0
        %4176 = vmatprep.subr.mxu0 0.0
        %4177 = vmatpush1.xpose.msra.mxu0 0.0
        %4178 = vmatprep.subr.mxu0 0.0
        %4179 = vmatpush1.xpose.msra.mxu0 0.0
        %4180 = vmatprep.subr.mxu0 0.0
        %4181 = vmatpush1.xpose.msra.mxu0 0.0
        %4182 = vmatprep.subr.mxu0 0.0
        %4183 = vmatpush1.xpose.msra.mxu0 0.0
        %4184 = vmatprep.subr.mxu0 0.0
        %4185 = vmatpush1.xpose.msra.mxu0 0.0
        %4186 = vmatprep.subr.mxu0 0.0
        %4187 = vmatpush1.xpose.msra.mxu0 0.0
        %4188 = vmatprep.subr.mxu0 0.0
        %4189 = vmatpush1.xpose.msra.mxu0 0.0
        %4190 = vmatprep.subr.mxu0 0.0
        %4191 = vmatpush1.xpose.msra.mxu0 0.0
        %4192 = vmatprep.subr.mxu0 0.0
        %4193 = vmatpush1.xpose.msra.mxu0 0.0
        %4194 = vmatprep.subr.mxu0 0.0
        %4195 = vmatpush1.xpose.msra.mxu0 0.0
        %4196 = vmatprep.subr.mxu0 0.0
        %4197 = vmatpush1.xpose.msra.mxu0 0.0
        %4198 = vmatprep.subr.mxu0 0.0
        %4199 = vmatpush1.xpose.msra.mxu0 0.0
        %4200 = vmatprep.subr.mxu0 0.0
        %4201 = vmatpush1.xpose.msra.mxu0 0.0
        %4202 = vmatprep.subr.mxu0 0.0
        %4203 = vmatpush1.xpose.msra.mxu0 0.0
        %4204 = vmatprep.subr.mxu0 0.0
        %4205 = vmatpush1.xpose.msra.mxu0 0.0
        %4206 = vmatprep.subr.mxu0 0.0
        %4207 = vmatpush1.xpose.msra.mxu0 0.0
        %4208 = vmatprep.subr.mxu0 0.0
        %4209 = vmatpush1.xpose.msra.mxu0 0.0
        %4210 = vmatprep.subr.mxu0 0.0
        %4211 = vmatpush1.xpose.msra.mxu0 0.0
        %4212 = vmatprep.subr.mxu0 0.0
        %4213 = vmatpush1.xpose.msra.mxu0 0.0
        %4214 = vmatprep.subr.mxu0 0.0
        %4215 = vmatpush1.xpose.msra.mxu0 0.0
        %4216 = vmatprep.subr.mxu0 0.0
        %4217 = vmatpush1.xpose.msra.mxu0 0.0
        %4218 = vmatprep.subr.mxu0 0.0
        %4219 = vmatpush1.xpose.msra.mxu0 0.0
        %4220 = vmatprep.subr.mxu0 0.0
        %4221 = vmatpush1.xpose.msra.mxu0 0.0
        %4222 = vmatprep.subr.mxu0 0.0
        %4223 = vmatpush1.xpose.msra.mxu0 0.0
        %4224 = vmatprep.mubr.f32.mxu0 0.0
        %4225 = vmatmul.mubr.f32.gmra.mrb[0].mxu0 %v4156
        %v4226 = vpop.f32.mrb[0].mxu0
        %v4227 = vadd.f32 %v460, %v4226
        %v4228 = vpop.f32.mrb[0].mxu0
        %4229 = vdwg.mxu0
        %v4230 = vsel %vm465, %v4227, -inf
        %4231 = vmax.xlane.f32.xlu0 %v4230
        %v4232 = vpop.xlane.xlu0 %4231
        %v4233 = vsub.f32 %v4227, %v4232
        %v4234 = vmul.f32 %v4233, 1.442695
        %v4235 = vpow.pop %v4234
        %v4236 = vsel %vm465, %v4235, 0.0
        %4237 = vadd.xlane.f32.xlu0 %v4236
        %v4238 = vpop.xlane.xlu0 %4237
        %v4239 = vrcp.pop %v4238
        %v4240 = vmul.f32 %v4235, %v4239
        %4241 = vrot.lane.b32.xlu0 %v3656, 72
        %v4242 = vpop.permute.xlu0 %4241
        %v4245 = vsel %vm465, %v4240, 0
        %4247 = vmatprep.subr.mxu0 0.0
        %4248 = vmatpush1.msra.mxu0 %v4242
        %4249 = vmatprep.subr.mxu0 0.0
        %4250 = vmatpush1.msra.mxu0 0.0
        %4251 = vmatprep.subr.mxu0 0.0
        %4252 = vmatpush1.msra.mxu0 0.0
        %4253 = vmatprep.subr.mxu0 0.0
        %4254 = vmatpush1.msra.mxu0 0.0
        %4255 = vmatprep.subr.mxu0 0.0
        %4256 = vmatpush1.msra.mxu0 0.0
        %4257 = vmatprep.subr.mxu0 0.0
        %4258 = vmatpush1.msra.mxu0 0.0
        %4259 = vmatprep.subr.mxu0 0.0
        %4260 = vmatpush1.msra.mxu0 0.0
        %4261 = vmatprep.subr.mxu0 0.0
        %4262 = vmatpush1.msra.mxu0 0.0
        %4263 = vmatprep.subr.mxu0 0.0
        %4264 = vmatpush1.msra.mxu0 0.0
        %4265 = vmatprep.subr.mxu0 0.0
        %4266 = vmatpush1.msra.mxu0 0.0
        %4267 = vmatprep.subr.mxu0 0.0
        %4268 = vmatpush1.msra.mxu0 0.0
        %4269 = vmatprep.subr.mxu0 0.0
        %4270 = vmatpush1.msra.mxu0 0.0
        %4271 = vmatprep.subr.mxu0 0.0
        %4272 = vmatpush1.msra.mxu0 0.0
        %4273 = vmatprep.subr.mxu0 0.0
        %4274 = vmatpush1.msra.mxu0 0.0
        %4275 = vmatprep.subr.mxu0 0.0
        %4276 = vmatpush1.msra.mxu0 0.0
        %4277 = vmatprep.subr.mxu0 0.0
        %4278 = vmatpush1.msra.mxu0 0.0
        %4279 = vmatprep.subr.mxu0 0.0
        %4280 = vmatpush1.msra.mxu0 0.0
        %4281 = vmatprep.subr.mxu0 0.0
        %4282 = vmatpush1.msra.mxu0 0.0
        %4283 = vmatprep.subr.mxu0 0.0
        %4284 = vmatpush1.msra.mxu0 0.0
        %4285 = vmatprep.subr.mxu0 0.0
        %4286 = vmatpush1.msra.mxu0 0.0
        %4287 = vmatprep.subr.mxu0 0.0
        %4288 = vmatpush1.msra.mxu0 0.0
        %4289 = vmatprep.subr.mxu0 0.0
        %4290 = vmatpush1.msra.mxu0 0.0
        %4291 = vmatprep.subr.mxu0 0.0
        %4292 = vmatpush1.msra.mxu0 0.0
        %4293 = vmatprep.subr.mxu0 0.0
        %4294 = vmatpush1.msra.mxu0 0.0
        %4295 = vmatprep.subr.mxu0 0.0
        %4296 = vmatpush1.msra.mxu0 0.0
        %4297 = vmatprep.subr.mxu0 0.0
        %4298 = vmatpush1.msra.mxu0 0.0
        %4299 = vmatprep.subr.mxu0 0.0
        %4300 = vmatpush1.msra.mxu0 0.0
        %4301 = vmatprep.subr.mxu0 0.0
        %4302 = vmatpush1.msra.mxu0 0.0
        %4303 = vmatprep.subr.mxu0 0.0
        %4304 = vmatpush1.msra.mxu0 0.0
        %4305 = vmatprep.subr.mxu0 0.0
        %4306 = vmatpush1.msra.mxu0 0.0
        %4307 = vmatprep.subr.mxu0 0.0
        %4308 = vmatpush1.msra.mxu0 0.0
        %4309 = vmatprep.subr.mxu0 0.0
        %4310 = vmatpush1.msra.mxu0 0.0
        %4311 = vmatprep.mubr.f32.mxu0 0.0
        %4312 = vmatmul.mubr.f32.gmra.mrb[0].mxu0 %v4245
        %v4313 = vpop.f32.mrb[0].mxu0
        %v4314 = vadd.f32 0.0, %v4313
        %v4315 = vpop.f32.mrb[0].mxu0
        %4316 = vdwg.mxu0
        %4318 = vrot.lane.b32.xlu0 %v3984, 8
        %v4319 = vpop.permute.xlu0 %4318
        %4322 = vrot.lane.b32.xlu0 %v4149, 16
        %v4323 = vpop.permute.xlu0 %4322
        %4326 = vrot.lane.b32.xlu0 %v4314, 24
        %v4327 = vpop.permute.xlu0 %4326
        %v4329 = vsel %vm465, %v3819, %v4319
        %v4330 = vsel %vm1135, %v4329, %v4323
        %v4331 = vsel %vm1137, %v4330, %v4327
        %v4332 = vld [vmem:[#allocation5 + $0x270] sm:$0xff]
        %v4333 = vld [vmem:[#allocation5 + $0x278] sm:$0xff]
        %v4334 = vld [vmem:[#allocation5 + $0x280] sm:$0xff]
        %v4335 = vld [vmem:[#allocation5 + $0x288] sm:$0xff]
        %v4336 = vld [vmem:[#allocation8 + $0xd0] sm:$0x1]
        %v4337 = vlaneseq
        %v4338 = vshrl.u32 %v4337, 7
        %v4339 = vsub.s32 0, %v4338
        %v4340 = vrot.slane %v4336, %v4339
        %v4342 = vsel %vm340, %v4331, 0
        %4344 = vmatprep.subr.mxu0 0.0
        %4345 = vmatpush1.msra.mxu0 %v4332
        %4346 = vmatprep.subr.mxu0 0.0
        %4347 = vmatpush1.msra.mxu0 %v4333
        %4348 = vmatprep.subr.mxu0 0.0
        %4349 = vmatpush1.msra.mxu0 %v4334
        %4350 = vmatprep.subr.mxu0 0.0
        %4351 = vmatpush1.msra.mxu0 %v4335
        %4352 = vmatprep.subr.mxu0 0.0
        %4353 = vmatpush1.msra.mxu0 0.0
        %4354 = vmatprep.subr.mxu0 0.0
        %4355 = vmatpush1.msra.mxu0 0.0
        %4356 = vmatprep.subr.mxu0 0.0
        %4357 = vmatpush1.msra.mxu0 0.0
        %4358 = vmatprep.subr.mxu0 0.0
        %4359 = vmatpush1.msra.mxu0 0.0
        %4360 = vmatprep.subr.mxu0 0.0
        %4361 = vmatpush1.msra.mxu0 0.0
        %4362 = vmatprep.subr.mxu0 0.0
        %4363 = vmatpush1.msra.mxu0 0.0
        %4364 = vmatprep.subr.mxu0 0.0
        %4365 = vmatpush1.msra.mxu0 0.0
        %4366 = vmatprep.subr.mxu0 0.0
        %4367 = vmatpush1.msra.mxu0 0.0
        %4368 = vmatprep.subr.mxu0 0.0
        %4369 = vmatpush1.msra.mxu0 0.0
        %4370 = vmatprep.subr.mxu0 0.0
        %4371 = vmatpush1.msra.mxu0 0.0
        %4372 = vmatprep.subr.mxu0 0.0
        %4373 = vmatpush1.msra.mxu0 0.0
        %4374 = vmatprep.subr.mxu0 0.0
        %4375 = vmatpush1.msra.mxu0 0.0
        %4376 = vmatprep.subr.mxu0 0.0
        %4377 = vmatpush1.msra.mxu0 0.0
        %4378 = vmatprep.subr.mxu0 0.0
        %4379 = vmatpush1.msra.mxu0 0.0
        %4380 = vmatprep.subr.mxu0 0.0
        %4381 = vmatpush1.msra.mxu0 0.0
        %4382 = vmatprep.subr.mxu0 0.0
        %4383 = vmatpush1.msra.mxu0 0.0
        %4384 = vmatprep.subr.mxu0 0.0
        %4385 = vmatpush1.msra.mxu0 0.0
        %4386 = vmatprep.subr.mxu0 0.0
        %4387 = vmatpush1.msra.mxu0 0.0
        %4388 = vmatprep.subr.mxu0 0.0
        %4389 = vmatpush1.msra.mxu0 0.0
        %4390 = vmatprep.subr.mxu0 0.0
        %4391 = vmatpush1.msra.mxu0 0.0
        %4392 = vmatprep.subr.mxu0 0.0
        %4393 = vmatpush1.msra.mxu0 0.0
        %4394 = vmatprep.subr.mxu0 0.0
        %4395 = vmatpush1.msra.mxu0 0.0
        %4396 = vmatprep.subr.mxu0 0.0
        %4397 = vmatpush1.msra.mxu0 0.0
        %4398 = vmatprep.subr.mxu0 0.0
        %4399 = vmatpush1.msra.mxu0 0.0
        %4400 = vmatprep.subr.mxu0 0.0
        %4401 = vmatpush1.msra.mxu0 0.0
        %4402 = vmatprep.subr.mxu0 0.0
        %4403 = vmatpush1.msra.mxu0 0.0
        %4404 = vmatprep.subr.mxu0 0.0
        %4405 = vmatpush1.msra.mxu0 0.0
        %4406 = vmatprep.subr.mxu0 0.0
        %4407 = vmatpush1.msra.mxu0 0.0
        %4408 = vmatprep.mubr.f32.mxu0 0.0
        %4409 = vmatmul.mubr.f32.gmra.mrb[0].mxu0 %v4342
        %v4410 = vpop.f32.mrb[0].mxu0
        %v4411 = vadd.f32 %v4340, %v4410
        %v4412 = vpop.f32.mrb[0].mxu0
        %4413 = vdwg.mxu0
        %v4414 = vadd.f32 %v3462, %v4411
        %v4415 = vsel %vm340, %v4414, 0.0
        %4416 = vadd.xlane.f32.xlu0 %v4415
        %v4417 = vpop.xlane.xlu0 %4416
        %v4418 = vmul.f32 %v4417, %v344
        %v4419 = vsub.f32 %v4414, %v4418
        %v4420 = vmul.f32 %v4419, %v4419
        %v4421 = vsel %vm340, %v4420, 0.0
        %4422 = vadd.xlane.f32.xlu0 %v4421
        %v4423 = vpop.xlane.xlu0 %4422
        %v4424 = vmul.f32 %v4423, 0.032258064
        %v4425 = vrsqrt.pop %v4424
        %v4426 = vmul.f32 %v4424, %v4425
        %vm4427 = vcmp.eq.f32.partialorder %v4424, inf
        %v4428 = vsel %vm4427, %v4424, %v4426
        %vm4429 = vcmp.eq.f32.partialorder %v4424, 0.0
        %v4430 = vand.u32 %v4424, 2147483648
        %v4431 = vsel %vm4429, %v4430, %v4428
        %v4432 = vld [vmem:[#allocation8 + $0xd8] sm:$0x1]
        %v4433 = vlaneseq
        %v4434 = vshrl.u32 %v4433, 7
        %v4435 = vsub.s32 0, %v4434
        %v4436 = vrot.slane %v4432, %v4435
        %v4437 = vmul.f32 %v4436, %v4419
        %v4438 = vadd.f32 %v4431, 1e-06
        %v4439 = vrcp.pop %v4438
        %v4440 = vmul.f32 %v4437, %v4439
        %v4441 = vld [vmem:[#allocation8 + $0xe0] sm:$0x1]
        %v4442 = vlaneseq
        %v4443 = vshrl.u32 %v4442, 7
        %v4444 = vsub.s32 0, %v4443
        %v4445 = vrot.slane %v4441, %v4444
        %v4446 = vadd.f32 %v4440, %v4445
        %v4447 = vld [vmem:[#allocation5 + $0x290] sm:$0xff]
        %v4448 = vld [vmem:[#allocation5 + $0x298] sm:$0xff]
        %v4449 = vld [vmem:[#allocation5 + $0x2a0] sm:$0xff]
        %v4450 = vld [vmem:[#allocation5 + $0x2a8] sm:$0xff]
        %v4451 = vld [vmem:[#allocation8 + $0xe8] sm:$0x1]
        %v4452 = vlaneseq
        %v4453 = vshrl.u32 %v4452, 7
        %v4454 = vsub.s32 0, %v4453
        %v4455 = vrot.slane %v4451, %v4454
        %v4457 = vsel %vm340, %v4446, 0
        %4459 = vmatprep.subr.mxu0 0.0
        %4460 = vmatpush1.msra.mxu0 %v4447
        %4461 = vmatprep.subr.mxu0 0.0
        %4462 = vmatpush1.msra.mxu0 %v4448
        %4463 = vmatprep.subr.mxu0 0.0
        %4464 = vmatpush1.msra.mxu0 %v4449
        %4465 = vmatprep.subr.mxu0 0.0
        %4466 = vmatpush1.msra.mxu0 %v4450
        %4467 = vmatprep.subr.mxu0 0.0
        %4468 = vmatpush1.msra.mxu0 0.0
        %4469 = vmatprep.subr.mxu0 0.0
        %4470 = vmatpush1.msra.mxu0 0.0
        %4471 = vmatprep.subr.mxu0 0.0
        %4472 = vmatpush1.msra.mxu0 0.0
        %4473 = vmatprep.subr.mxu0 0.0
        %4474 = vmatpush1.msra.mxu0 0.0
        %4475 = vmatprep.subr.mxu0 0.0
        %4476 = vmatpush1.msra.mxu0 0.0
        %4477 = vmatprep.subr.mxu0 0.0
        %4478 = vmatpush1.msra.mxu0 0.0
        %4479 = vmatprep.subr.mxu0 0.0
        %4480 = vmatpush1.msra.mxu0 0.0
        %4481 = vmatprep.subr.mxu0 0.0
        %4482 = vmatpush1.msra.mxu0 0.0
        %4483 = vmatprep.subr.mxu0 0.0
        %4484 = vmatpush1.msra.mxu0 0.0
        %4485 = vmatprep.subr.mxu0 0.0
        %4486 = vmatpush1.msra.mxu0 0.0
        %4487 = vmatprep.subr.mxu0 0.0
        %4488 = vmatpush1.msra.mxu0 0.0
        %4489 = vmatprep.subr.mxu0 0.0
        %4490 = vmatpush1.msra.mxu0 0.0
        %4491 = vmatprep.subr.mxu0 0.0
        %4492 = vmatpush1.msra.mxu0 0.0
        %4493 = vmatprep.subr.mxu0 0.0
        %4494 = vmatpush1.msra.mxu0 0.0
        %4495 = vmatprep.subr.mxu0 0.0
        %4496 = vmatpush1.msra.mxu0 0.0
        %4497 = vmatprep.subr.mxu0 0.0
        %4498 = vmatpush1.msra.mxu0 0.0
        %4499 = vmatprep.subr.mxu0 0.0
        %4500 = vmatpush1.msra.mxu0 0.0
        %4501 = vmatprep.subr.mxu0 0.0
        %4502 = vmatpush1.msra.mxu0 0.0
        %4503 = vmatprep.subr.mxu0 0.0
        %4504 = vmatpush1.msra.mxu0 0.0
        %4505 = vmatprep.subr.mxu0 0.0
        %4506 = vmatpush1.msra.mxu0 0.0
        %4507 = vmatprep.subr.mxu0 0.0
        %4508 = vmatpush1.msra.mxu0 0.0
        %4509 = vmatprep.subr.mxu0 0.0
        %4510 = vmatpush1.msra.mxu0 0.0
        %4511 = vmatprep.subr.mxu0 0.0
        %4512 = vmatpush1.msra.mxu0 0.0
        %4513 = vmatprep.subr.mxu0 0.0
        %4514 = vmatpush1.msra.mxu0 0.0
        %4515 = vmatprep.subr.mxu0 0.0
        %4516 = vmatpush1.msra.mxu0 0.0
        %4517 = vmatprep.subr.mxu0 0.0
        %4518 = vmatpush1.msra.mxu0 0.0
        %4519 = vmatprep.subr.mxu0 0.0
        %4520 = vmatpush1.msra.mxu0 0.0
        %4521 = vmatprep.subr.mxu0 0.0
        %4522 = vmatpush1.msra.mxu0 0.0
        %4523 = vmatprep.mubr.f32.mxu0 0.0
        %4524 = vmatmul.mubr.f32.gmra.mrb[0].mxu0 %v4457
        %v4525 = vpop.f32.mrb[0].mxu0
        %v4526 = vadd.f32 %v4455, %v4525
        %v4527 = vpop.f32.mrb[0].mxu0
        %4528 = vdwg.mxu0
        %v4529 = vmax.f32 %v4526, 0.0
        %v4530 = vld [vmem:[#allocation5 + $0x2b0] sm:$0xff]
        %v4531 = vld [vmem:[#allocation5 + $0x2b8] sm:$0xff]
        %v4532 = vld [vmem:[#allocation5 + $0x2c0] sm:$0xff]
        %v4533 = vld [vmem:[#allocation5 + $0x2c8] sm:$0xff]
        %v4534 = vld [vmem:[#allocation5 + $0x2d0] sm:$0xff]
        %v4535 = vld [vmem:[#allocation5 + $0x2d8] sm:$0xff]
        %v4536 = vld [vmem:[#allocation5 + $0x2e0] sm:$0xff]
        %v4537 = vld [vmem:[#allocation5 + $0x2e8] sm:$0xff]
        %v4538 = vld [vmem:[#allocation8 + $0xf0] sm:$0x1]
        %v4539 = vlaneseq
        %v4540 = vshrl.u32 %v4539, 7
        %v4541 = vsub.s32 0, %v4540
        %v4542 = vrot.slane %v4538, %v4541
        %v4544 = vsel %vm1350, %v4529, 0
        %4546 = vmatprep.subr.mxu0 0.0
        %4547 = vmatpush1.msra.mxu0 %v4530
        %4548 = vmatprep.subr.mxu0 0.0
        %4549 = vmatpush1.msra.mxu0 %v4531
        %4550 = vmatprep.subr.mxu0 0.0
        %4551 = vmatpush1.msra.mxu0 %v4532
        %4552 = vmatprep.subr.mxu0 0.0
        %4553 = vmatpush1.msra.mxu0 %v4533
        %4554 = vmatprep.subr.mxu0 0.0
        %4555 = vmatpush1.msra.mxu0 %v4534
        %4556 = vmatprep.subr.mxu0 0.0
        %4557 = vmatpush1.msra.mxu0 %v4535
        %4558 = vmatprep.subr.mxu0 0.0
        %4559 = vmatpush1.msra.mxu0 %v4536
        %4560 = vmatprep.subr.mxu0 0.0
        %4561 = vmatpush1.msra.mxu0 %v4537
        %4562 = vmatprep.subr.mxu0 0.0
        %4563 = vmatpush1.msra.mxu0 0.0
        %4564 = vmatprep.subr.mxu0 0.0
        %4565 = vmatpush1.msra.mxu0 0.0
        %4566 = vmatprep.subr.mxu0 0.0
        %4567 = vmatpush1.msra.mxu0 0.0
        %4568 = vmatprep.subr.mxu0 0.0
        %4569 = vmatpush1.msra.mxu0 0.0
        %4570 = vmatprep.subr.mxu0 0.0
        %4571 = vmatpush1.msra.mxu0 0.0
        %4572 = vmatprep.subr.mxu0 0.0
        %4573 = vmatpush1.msra.mxu0 0.0
        %4574 = vmatprep.subr.mxu0 0.0
        %4575 = vmatpush1.msra.mxu0 0.0
        %4576 = vmatprep.subr.mxu0 0.0
        %4577 = vmatpush1.msra.mxu0 0.0
        %4578 = vmatprep.subr.mxu0 0.0
        %4579 = vmatpush1.msra.mxu0 0.0
        %4580 = vmatprep.subr.mxu0 0.0
        %4581 = vmatpush1.msra.mxu0 0.0
        %4582 = vmatprep.subr.mxu0 0.0
        %4583 = vmatpush1.msra.mxu0 0.0
        %4584 = vmatprep.subr.mxu0 0.0
        %4585 = vmatpush1.msra.mxu0 0.0
        %4586 = vmatprep.subr.mxu0 0.0
        %4587 = vmatpush1.msra.mxu0 0.0
        %4588 = vmatprep.subr.mxu0 0.0
        %4589 = vmatpush1.msra.mxu0 0.0
        %4590 = vmatprep.subr.mxu0 0.0
        %4591 = vmatpush1.msra.mxu0 0.0
        %4592 = vmatprep.subr.mxu0 0.0
        %4593 = vmatpush1.msra.mxu0 0.0
        %4594 = vmatprep.subr.mxu0 0.0
        %4595 = vmatpush1.msra.mxu0 0.0
        %4596 = vmatprep.subr.mxu0 0.0
        %4597 = vmatpush1.msra.mxu0 0.0
        %4598 = vmatprep.subr.mxu0 0.0
        %4599 = vmatpush1.msra.mxu0 0.0
        %4600 = vmatprep.subr.mxu0 0.0
        %4601 = vmatpush1.msra.mxu0 0.0
        %4602 = vmatprep.subr.mxu0 0.0
        %4603 = vmatpush1.msra.mxu0 0.0
        %4604 = vmatprep.subr.mxu0 0.0
        %4605 = vmatpush1.msra.mxu0 0.0
        %4606 = vmatprep.subr.mxu0 0.0
        %4607 = vmatpush1.msra.mxu0 0.0
        %4608 = vmatprep.subr.mxu0 0.0
        %4609 = vmatpush1.msra.mxu0 0.0
        %4610 = vmatprep.mubr.f32.mxu0 0.0
        %4611 = vmatmul.mubr.f32.gmra.mrb[0].mxu0 %v4544
        %v4612 = vpop.f32.mrb[0].mxu0
        %v4613 = vadd.f32 %v4542, %v4612
        %v4614 = vpop.f32.mrb[0].mxu0
        %4615 = vdwg.mxu0
        %v4616 = vadd.f32 %v4414, %v4613
        %v4617 = vsel %vm340, %v4616, 0.0
        %4618 = vadd.xlane.f32.xlu0 %v4617
        %v4619 = vpop.xlane.xlu0 %4618
        %v4620 = vmul.f32 %v4619, %v344
        %v4621 = vsub.f32 %v4616, %v4620
        %v4622 = vmul.f32 %v4621, %v4621
        %v4623 = vsel %vm340, %v4622, 0.0
        %4624 = vadd.xlane.f32.xlu0 %v4623
        %v4625 = vpop.xlane.xlu0 %4624
        %v4626 = vmul.f32 %v4625, 0.032258064
        %v4627 = vrsqrt.pop %v4626
        %v4628 = vmul.f32 %v4626, %v4627
        %vm4629 = vcmp.eq.f32.partialorder %v4626, inf
        %v4630 = vsel %vm4629, %v4626, %v4628
        %vm4631 = vcmp.eq.f32.partialorder %v4626, 0.0
        %v4632 = vand.u32 %v4626, 2147483648
        %v4633 = vsel %vm4631, %v4632, %v4630
        %v4634 = vld [vmem:[#allocation8 + $0xf8] sm:$0x1]
        %v4635 = vlaneseq
        %v4636 = vshrl.u32 %v4635, 7
        %v4637 = vsub.s32 0, %v4636
        %v4638 = vrot.slane %v4634, %v4637
        %v4639 = vmul.f32 %v4638, %v4621
        %v4640 = vadd.f32 %v4633, 1e-06
        %v4641 = vrcp.pop %v4640
        %v4642 = vmul.f32 %v4639, %v4641
        %v4643 = vld [vmem:[#allocation8 + $0x100] sm:$0x1]
        %v4644 = vlaneseq
        %v4645 = vshrl.u32 %v4644, 7
        %v4646 = vsub.s32 0, %v4645
        %v4647 = vrot.slane %v4643, %v4646
        %v4648 = vadd.f32 %v4642, %v4647
        %v4649 = vld [vmem:[#allocation5 + $0x2f0] sm:$0xff]
        %v4650 = vld [vmem:[#allocation5 + $0x2f8] sm:$0xff]
        %v4651 = vld [vmem:[#allocation5 + $0x300] sm:$0xff]
        %v4652 = vld [vmem:[#allocation5 + $0x308] sm:$0xff]
        %v4653 = vld [vmem:[#allocation8 + $0x108] sm:$0x1]
        %v4654 = vlaneseq
        %v4655 = vshrl.u32 %v4654, 7
        %v4656 = vsub.s32 0, %v4655
        %v4657 = vrot.slane %v4653, %v4656
        %v4659 = vsel %vm340, %v4648, 0
        %4661 = vmatprep.subr.mxu0 0.0
        %4662 = vmatpush1.msra.mxu0 %v4649
        %4663 = vmatprep.subr.mxu0 0.0
        %4664 = vmatpush1.msra.mxu0 %v4650
        %4665 = vmatprep.subr.mxu0 0.0
        %4666 = vmatpush1.msra.mxu0 %v4651
        %4667 = vmatprep.subr.mxu0 0.0
        %4668 = vmatpush1.msra.mxu0 %v4652
        %4669 = vmatprep.subr.mxu0 0.0
        %4670 = vmatpush1.msra.mxu0 0.0
        %4671 = vmatprep.subr.mxu0 0.0
        %4672 = vmatpush1.msra.mxu0 0.0
        %4673 = vmatprep.subr.mxu0 0.0
        %4674 = vmatpush1.msra.mxu0 0.0
        %4675 = vmatprep.subr.mxu0 0.0
        %4676 = vmatpush1.msra.mxu0 0.0
        %4677 = vmatprep.subr.mxu0 0.0
        %4678 = vmatpush1.msra.mxu0 0.0
        %4679 = vmatprep.subr.mxu0 0.0
        %4680 = vmatpush1.msra.mxu0 0.0
        %4681 = vmatprep.subr.mxu0 0.0
        %4682 = vmatpush1.msra.mxu0 0.0
        %4683 = vmatprep.subr.mxu0 0.0
        %4684 = vmatpush1.msra.mxu0 0.0
        %4685 = vmatprep.subr.mxu0 0.0
        %4686 = vmatpush1.msra.mxu0 0.0
        %4687 = vmatprep.subr.mxu0 0.0
        %4688 = vmatpush1.msra.mxu0 0.0
        %4689 = vmatprep.subr.mxu0 0.0
        %4690 = vmatpush1.msra.mxu0 0.0
        %4691 = vmatprep.subr.mxu0 0.0
        %4692 = vmatpush1.msra.mxu0 0.0
        %4693 = vmatprep.subr.mxu0 0.0
        %4694 = vmatpush1.msra.mxu0 0.0
        %4695 = vmatprep.subr.mxu0 0.0
        %4696 = vmatpush1.msra.mxu0 0.0
        %4697 = vmatprep.subr.mxu0 0.0
        %4698 = vmatpush1.msra.mxu0 0.0
        %4699 = vmatprep.subr.mxu0 0.0
        %4700 = vmatpush1.msra.mxu0 0.0
        %4701 = vmatprep.subr.mxu0 0.0
        %4702 = vmatpush1.msra.mxu0 0.0
        %4703 = vmatprep.subr.mxu0 0.0
        %4704 = vmatpush1.msra.mxu0 0.0
        %4705 = vmatprep.subr.mxu0 0.0
        %4706 = vmatpush1.msra.mxu0 0.0
        %4707 = vmatprep.subr.mxu0 0.0
        %4708 = vmatpush1.msra.mxu0 0.0
        %4709 = vmatprep.subr.mxu0 0.0
        %4710 = vmatpush1.msra.mxu0 0.0
        %4711 = vmatprep.subr.mxu0 0.0
        %4712 = vmatpush1.msra.mxu0 0.0
        %4713 = vmatprep.subr.mxu0 0.0
        %4714 = vmatpush1.msra.mxu0 0.0
        %4715 = vmatprep.subr.mxu0 0.0
        %4716 = vmatpush1.msra.mxu0 0.0
        %4717 = vmatprep.subr.mxu0 0.0
        %4718 = vmatpush1.msra.mxu0 0.0
        %4719 = vmatprep.subr.mxu0 0.0
        %4720 = vmatpush1.msra.mxu0 0.0
        %4721 = vmatprep.subr.mxu0 0.0
        %4722 = vmatpush1.msra.mxu0 0.0
        %4723 = vmatprep.subr.mxu0 0.0
        %4724 = vmatpush1.msra.mxu0 0.0
        %4725 = vmatprep.mubr.f32.mxu0 0.0
        %4726 = vmatmul.mubr.f32.gmra.mrb[0].mxu0 %v4659
        %v4727 = vpop.f32.mrb[0].mxu0
        %v4728 = vadd.f32 %v4657, %v4727
        %v4729 = vpop.f32.mrb[0].mxu0
        %4730 = vdwg.mxu0
        %4732 = vrot.lane.b32.xlu0 %v4728, 96
        %v4733 = vpop.permute.xlu0 %4732
        %v4734 = vsel %vm465, %v4728, 0
        %v4736 = vsel %vm465, %v4733, 0
        %4738 = vmatprep.subr.mxu0 0.0
        %4739 = vmatpush1.xpose.msra.mxu0 %v4736
        %4740 = vmatprep.subr.mxu0 0.0
        %4741 = vmatpush1.xpose.msra.mxu0 0.0
        %4742 = vmatprep.subr.mxu0 0.0
        %4743 = vmatpush1.xpose.msra.mxu0 0.0
        %4744 = vmatprep.subr.mxu0 0.0
        %4745 = vmatpush1.xpose.msra.mxu0 0.0
        %4746 = vmatprep.subr.mxu0 0.0
        %4747 = vmatpush1.xpose.msra.mxu0 0.0
        %4748 = vmatprep.subr.mxu0 0.0
        %4749 = vmatpush1.xpose.msra.mxu0 0.0
        %4750 = vmatprep.subr.mxu0 0.0
        %4751 = vmatpush1.xpose.msra.mxu0 0.0
        %4752 = vmatprep.subr.mxu0 0.0
        %4753 = vmatpush1.xpose.msra.mxu0 0.0
        %4754 = vmatprep.subr.mxu0 0.0
        %4755 = vmatpush1.xpose.msra.mxu0 0.0
        %4756 = vmatprep.subr.mxu0 0.0
        %4757 = vmatpush1.xpose.msra.mxu0 0.0
        %4758 = vmatprep.subr.mxu0 0.0
        %4759 = vmatpush1.xpose.msra.mxu0 0.0
        %4760 = vmatprep.subr.mxu0 0.0
        %4761 = vmatpush1.xpose.msra.mxu0 0.0
        %4762 = vmatprep.subr.mxu0 0.0
        %4763 = vmatpush1.xpose.msra.mxu0 0.0
        %4764 = vmatprep.subr.mxu0 0.0
        %4765 = vmatpush1.xpose.msra.mxu0 0.0
        %4766 = vmatprep.subr.mxu0 0.0
        %4767 = vmatpush1.xpose.msra.mxu0 0.0
        %4768 = vmatprep.subr.mxu0 0.0
        %4769 = vmatpush1.xpose.msra.mxu0 0.0
        %4770 = vmatprep.subr.mxu0 0.0
        %4771 = vmatpush1.xpose.msra.mxu0 0.0
        %4772 = vmatprep.subr.mxu0 0.0
        %4773 = vmatpush1.xpose.msra.mxu0 0.0
        %4774 = vmatprep.subr.mxu0 0.0
        %4775 = vmatpush1.xpose.msra.mxu0 0.0
        %4776 = vmatprep.subr.mxu0 0.0
        %4777 = vmatpush1.xpose.msra.mxu0 0.0
        %4778 = vmatprep.subr.mxu0 0.0
        %4779 = vmatpush1.xpose.msra.mxu0 0.0
        %4780 = vmatprep.subr.mxu0 0.0
        %4781 = vmatpush1.xpose.msra.mxu0 0.0
        %4782 = vmatprep.subr.mxu0 0.0
        %4783 = vmatpush1.xpose.msra.mxu0 0.0
        %4784 = vmatprep.subr.mxu0 0.0
        %4785 = vmatpush1.xpose.msra.mxu0 0.0
        %4786 = vmatprep.subr.mxu0 0.0
        %4787 = vmatpush1.xpose.msra.mxu0 0.0
        %4788 = vmatprep.subr.mxu0 0.0
        %4789 = vmatpush1.xpose.msra.mxu0 0.0
        %4790 = vmatprep.subr.mxu0 0.0
        %4791 = vmatpush1.xpose.msra.mxu0 0.0
        %4792 = vmatprep.subr.mxu0 0.0
        %4793 = vmatpush1.xpose.msra.mxu0 0.0
        %4794 = vmatprep.subr.mxu0 0.0
        %4795 = vmatpush1.xpose.msra.mxu0 0.0
        %4796 = vmatprep.subr.mxu0 0.0
        %4797 = vmatpush1.xpose.msra.mxu0 0.0
        %4798 = vmatprep.subr.mxu0 0.0
        %4799 = vmatpush1.xpose.msra.mxu0 0.0
        %4800 = vmatprep.subr.mxu0 0.0
        %4801 = vmatpush1.xpose.msra.mxu0 0.0
        %4802 = vmatprep.mubr.f32.mxu0 0.0
        %4803 = vmatmul.mubr.f32.gmra.mrb[0].mxu0 %v4734
        %v4804 = vpop.f32.mrb[0].mxu0
        %v4805 = vadd.f32 %v269, %v4804
        %v4806 = vpop.f32.mrb[0].mxu0
        %4807 = vdwg.mxu0
        %v4808 = vsel %vm465, %v4805, -inf
        %4809 = vmax.xlane.f32.xlu0 %v4808
        %v4810 = vpop.xlane.xlu0 %4809
        %v4811 = vsub.f32 %v4805, %v4810
        %v4812 = vmul.f32 %v4811, 1.442695
        %v4813 = vpow.pop %v4812
        %v4814 = vsel %vm465, %v4813, 0.0
        %4815 = vadd.xlane.f32.xlu0 %v4814
        %v4816 = vpop.xlane.xlu0 %4815
        %v4817 = vrcp.pop %v4816
        %v4818 = vmul.f32 %v4813, %v4817
        %4819 = vrot.lane.b32.xlu0 %v4728, 64
        %v4820 = vpop.permute.xlu0 %4819
        %v4823 = vsel %vm465, %v4818, 0
        %4825 = vmatprep.subr.mxu0 0.0
        %4826 = vmatpush1.msra.mxu0 %v4820
        %4827 = vmatprep.subr.mxu0 0.0
        %4828 = vmatpush1.msra.mxu0 0.0
        %4829 = vmatprep.subr.mxu0 0.0
        %4830 = vmatpush1.msra.mxu0 0.0
        %4831 = vmatprep.subr.mxu0 0.0
        %4832 = vmatpush1.msra.mxu0 0.0
        %4833 = vmatprep.subr.mxu0 0.0
        %4834 = vmatpush1.msra.mxu0 0.0
        %4835 = vmatprep.subr.mxu0 0.0
        %4836 = vmatpush1.msra.mxu0 0.0
        %4837 = vmatprep.subr.mxu0 0.0
        %4838 = vmatpush1.msra.mxu0 0.0
        %4839 = vmatprep.subr.mxu0 0.0
        %4840 = vmatpush1.msra.mxu0 0.0
        %4841 = vmatprep.subr.mxu0 0.0
        %4842 = vmatpush1.msra.mxu0 0.0
        %4843 = vmatprep.subr.mxu0 0.0
        %4844 = vmatpush1.msra.mxu0 0.0
        %4845 = vmatprep.subr.mxu0 0.0
        %4846 = vmatpush1.msra.mxu0 0.0
        %4847 = vmatprep.subr.mxu0 0.0
        %4848 = vmatpush1.msra.mxu0 0.0
        %4849 = vmatprep.subr.mxu0 0.0
        %4850 = vmatpush1.msra.mxu0 0.0
        %4851 = vmatprep.subr.mxu0 0.0
        %4852 = vmatpush1.msra.mxu0 0.0
        %4853 = vmatprep.subr.mxu0 0.0
        %4854 = vmatpush1.msra.mxu0 0.0
        %4855 = vmatprep.subr.mxu0 0.0
        %4856 = vmatpush1.msra.mxu0 0.0
        %4857 = vmatprep.subr.mxu0 0.0
        %4858 = vmatpush1.msra.mxu0 0.0
        %4859 = vmatprep.subr.mxu0 0.0
        %4860 = vmatpush1.msra.mxu0 0.0
        %4861 = vmatprep.subr.mxu0 0.0
        %4862 = vmatpush1.msra.mxu0 0.0
        %4863 = vmatprep.subr.mxu0 0.0
        %4864 = vmatpush1.msra.mxu0 0.0
        %4865 = vmatprep.subr.mxu0 0.0
        %4866 = vmatpush1.msra.mxu0 0.0
        %4867 = vmatprep.subr.mxu0 0.0
        %4868 = vmatpush1.msra.mxu0 0.0
        %4869 = vmatprep.subr.mxu0 0.0
        %4870 = vmatpush1.msra.mxu0 0.0
        %4871 = vmatprep.subr.mxu0 0.0
        %4872 = vmatpush1.msra.mxu0 0.0
        %4873 = vmatprep.subr.mxu0 0.0
        %4874 = vmatpush1.msra.mxu0 0.0
        %4875 = vmatprep.subr.mxu0 0.0
        %4876 = vmatpush1.msra.mxu0 0.0
        %4877 = vmatprep.subr.mxu0 0.0
        %4878 = vmatpush1.msra.mxu0 0.0
        %4879 = vmatprep.subr.mxu0 0.0
        %4880 = vmatpush1.msra.mxu0 0.0
        %4881 = vmatprep.subr.mxu0 0.0
        %4882 = vmatpush1.msra.mxu0 0.0
        %4883 = vmatprep.subr.mxu0 0.0
        %4884 = vmatpush1.msra.mxu0 0.0
        %4885 = vmatprep.subr.mxu0 0.0
        %4886 = vmatpush1.msra.mxu0 0.0
        %4887 = vmatprep.subr.mxu0 0.0
        %4888 = vmatpush1.msra.mxu0 0.0
        %4889 = vmatprep.mubr.f32.mxu0 0.0
        %4890 = vmatmul.mubr.f32.gmra.mrb[0].mxu0 %v4823
        %v4891 = vpop.f32.mrb[0].mxu0
        %v4892 = vadd.f32 0.0, %v4891
        %v4893 = vpop.f32.mrb[0].mxu0
        %4894 = vdwg.mxu0
        %4895 = vrot.lane.b32.xlu0 %v4728, 120
        %v4896 = vpop.permute.xlu0 %4895
        %4897 = vrot.lane.b32.xlu0 %v4728, 88
        %v4898 = vpop.permute.xlu0 %4897
        %v4899 = vsel %vm465, %v4896, 0
        %v4901 = vsel %vm465, %v4898, 0
        %4903 = vmatprep.subr.mxu0 0.0
        %4904 = vmatpush1.xpose.msra.mxu0 %v4901
        %4905 = vmatprep.subr.mxu0 0.0
        %4906 = vmatpush1.xpose.msra.mxu0 0.0
        %4907 = vmatprep.subr.mxu0 0.0
        %4908 = vmatpush1.xpose.msra.mxu0 0.0
        %4909 = vmatprep.subr.mxu0 0.0
        %4910 = vmatpush1.xpose.msra.mxu0 0.0
        %4911 = vmatprep.subr.mxu0 0.0
        %4912 = vmatpush1.xpose.msra.mxu0 0.0
        %4913 = vmatprep.subr.mxu0 0.0
        %4914 = vmatpush1.xpose.msra.mxu0 0.0
        %4915 = vmatprep.subr.mxu0 0.0
        %4916 = vmatpush1.xpose.msra.mxu0 0.0
        %4917 = vmatprep.subr.mxu0 0.0
        %4918 = vmatpush1.xpose.msra.mxu0 0.0
        %4919 = vmatprep.subr.mxu0 0.0
        %4920 = vmatpush1.xpose.msra.mxu0 0.0
        %4921 = vmatprep.subr.mxu0 0.0
        %4922 = vmatpush1.xpose.msra.mxu0 0.0
        %4923 = vmatprep.subr.mxu0 0.0
        %4924 = vmatpush1.xpose.msra.mxu0 0.0
        %4925 = vmatprep.subr.mxu0 0.0
        %4926 = vmatpush1.xpose.msra.mxu0 0.0
        %4927 = vmatprep.subr.mxu0 0.0
        %4928 = vmatpush1.xpose.msra.mxu0 0.0
        %4929 = vmatprep.subr.mxu0 0.0
        %4930 = vmatpush1.xpose.msra.mxu0 0.0
        %4931 = vmatprep.subr.mxu0 0.0
        %4932 = vmatpush1.xpose.msra.mxu0 0.0
        %4933 = vmatprep.subr.mxu0 0.0
        %4934 = vmatpush1.xpose.msra.mxu0 0.0
        %4935 = vmatprep.subr.mxu0 0.0
        %4936 = vmatpush1.xpose.msra.mxu0 0.0
        %4937 = vmatprep.subr.mxu0 0.0
        %4938 = vmatpush1.xpose.msra.mxu0 0.0
        %4939 = vmatprep.subr.mxu0 0.0
        %4940 = vmatpush1.xpose.msra.mxu0 0.0
        %4941 = vmatprep.subr.mxu0 0.0
        %4942 = vmatpush1.xpose.msra.mxu0 0.0
        %4943 = vmatprep.subr.mxu0 0.0
        %4944 = vmatpush1.xpose.msra.mxu0 0.0
        %4945 = vmatprep.subr.mxu0 0.0
        %4946 = vmatpush1.xpose.msra.mxu0 0.0
        %4947 = vmatprep.subr.mxu0 0.0
        %4948 = vmatpush1.xpose.msra.mxu0 0.0
        %4949 = vmatprep.subr.mxu0 0.0
        %4950 = vmatpush1.xpose.msra.mxu0 0.0
        %4951 = vmatprep.subr.mxu0 0.0
        %4952 = vmatpush1.xpose.msra.mxu0 0.0
        %4953 = vmatprep.subr.mxu0 0.0
        %4954 = vmatpush1.xpose.msra.mxu0 0.0
        %4955 = vmatprep.subr.mxu0 0.0
        %4956 = vmatpush1.xpose.msra.mxu0 0.0
        %4957 = vmatprep.subr.mxu0 0.0
        %4958 = vmatpush1.xpose.msra.mxu0 0.0
        %4959 = vmatprep.subr.mxu0 0.0
        %4960 = vmatpush1.xpose.msra.mxu0 0.0
        %4961 = vmatprep.subr.mxu0 0.0
        %4962 = vmatpush1.xpose.msra.mxu0 0.0
        %4963 = vmatprep.subr.mxu0 0.0
        %4964 = vmatpush1.xpose.msra.mxu0 0.0
        %4965 = vmatprep.subr.mxu0 0.0
        %4966 = vmatpush1.xpose.msra.mxu0 0.0
        %4967 = vmatprep.mubr.f32.mxu0 0.0
        %4968 = vmatmul.mubr.f32.gmra.mrb[0].mxu0 %v4899
        %v4969 = vpop.f32.mrb[0].mxu0
        %v4970 = vadd.f32 %v269, %v4969
        %v4971 = vpop.f32.mrb[0].mxu0
        %4972 = vdwg.mxu0
        %v4973 = vsel %vm465, %v4970, -inf
        %4974 = vmax.xlane.f32.xlu0 %v4973
        %v4975 = vpop.xlane.xlu0 %4974
        %v4976 = vsub.f32 %v4970, %v4975
        %v4977 = vmul.f32 %v4976, 1.442695
        %v4978 = vpow.pop %v4977
        %v4979 = vsel %vm465, %v4978, 0.0
        %4980 = vadd.xlane.f32.xlu0 %v4979
        %v4981 = vpop.xlane.xlu0 %4980
        %v4982 = vrcp.pop %v4981
        %v4983 = vmul.f32 %v4978, %v4982
        %4984 = vrot.lane.b32.xlu0 %v4728, 56
        %v4985 = vpop.permute.xlu0 %4984
        %v4988 = vsel %vm465, %v4983, 0
        %4990 = vmatprep.subr.mxu0 0.0
        %4991 = vmatpush1.msra.mxu0 %v4985
        %4992 = vmatprep.subr.mxu0 0.0
        %4993 = vmatpush1.msra.mxu0 0.0
        %4994 = vmatprep.subr.mxu0 0.0
        %4995 = vmatpush1.msra.mxu0 0.0
        %4996 = vmatprep.subr.mxu0 0.0
        %4997 = vmatpush1.msra.mxu0 0.0
        %4998 = vmatprep.subr.mxu0 0.0
        %4999 = vmatpush1.msra.mxu0 0.0
        %5000 = vmatprep.subr.mxu0 0.0
        %5001 = vmatpush1.msra.mxu0 0.0
        %5002 = vmatprep.subr.mxu0 0.0
        %5003 = vmatpush1.msra.mxu0 0.0
        %5004 = vmatprep.subr.mxu0 0.0
        %5005 = vmatpush1.msra.mxu0 0.0
        %5006 = vmatprep.subr.mxu0 0.0
        %5007 = vmatpush1.msra.mxu0 0.0
        %5008 = vmatprep.subr.mxu0 0.0
        %5009 = vmatpush1.msra.mxu0 0.0
        %5010 = vmatprep.subr.mxu0 0.0
        %5011 = vmatpush1.msra.mxu0 0.0
        %5012 = vmatprep.subr.mxu0 0.0
        %5013 = vmatpush1.msra.mxu0 0.0
        %5014 = vmatprep.subr.mxu0 0.0
        %5015 = vmatpush1.msra.mxu0 0.0
        %5016 = vmatprep.subr.mxu0 0.0
        %5017 = vmatpush1.msra.mxu0 0.0
        %5018 = vmatprep.subr.mxu0 0.0
        %5019 = vmatpush1.msra.mxu0 0.0
        %5020 = vmatprep.subr.mxu0 0.0
        %5021 = vmatpush1.msra.mxu0 0.0
        %5022 = vmatprep.subr.mxu0 0.0
        %5023 = vmatpush1.msra.mxu0 0.0
        %5024 = vmatprep.subr.mxu0 0.0
        %5025 = vmatpush1.msra.mxu0 0.0
        %5026 = vmatprep.subr.mxu0 0.0
        %5027 = vmatpush1.msra.mxu0 0.0
        %5028 = vmatprep.subr.mxu0 0.0
        %5029 = vmatpush1.msra.mxu0 0.0
        %5030 = vmatprep.subr.mxu0 0.0
        %5031 = vmatpush1.msra.mxu0 0.0
        %5032 = vmatprep.subr.mxu0 0.0
        %5033 = vmatpush1.msra.mxu0 0.0
        %5034 = vmatprep.subr.mxu0 0.0
        %5035 = vmatpush1.msra.mxu0 0.0
        %5036 = vmatprep.subr.mxu0 0.0
        %5037 = vmatpush1.msra.mxu0 0.0
        %5038 = vmatprep.subr.mxu0 0.0
        %5039 = vmatpush1.msra.mxu0 0.0
        %5040 = vmatprep.subr.mxu0 0.0
        %5041 = vmatpush1.msra.mxu0 0.0
        %5042 = vmatprep.subr.mxu0 0.0
        %5043 = vmatpush1.msra.mxu0 0.0
        %5044 = vmatprep.subr.mxu0 0.0
        %5045 = vmatpush1.msra.mxu0 0.0
        %5046 = vmatprep.subr.mxu0 0.0
        %5047 = vmatpush1.msra.mxu0 0.0
        %5048 = vmatprep.subr.mxu0 0.0
        %5049 = vmatpush1.msra.mxu0 0.0
        %5050 = vmatprep.subr.mxu0 0.0
        %5051 = vmatpush1.msra.mxu0 0.0
        %5052 = vmatprep.subr.mxu0 0.0
        %5053 = vmatpush1.msra.mxu0 0.0
        %5054 = vmatprep.mubr.f32.mxu0 0.0
        %5055 = vmatmul.mubr.f32.gmra.mrb[0].mxu0 %v4988
        %v5056 = vpop.f32.mrb[0].mxu0
        %v5057 = vadd.f32 0.0, %v5056
        %v5058 = vpop.f32.mrb[0].mxu0
        %5059 = vdwg.mxu0
        %5060 = vrot.lane.b32.xlu0 %v4728, 112
        %v5061 = vpop.permute.xlu0 %5060
        %5062 = vrot.lane.b32.xlu0 %v4728, 80
        %v5063 = vpop.permute.xlu0 %5062
        %v5064 = vsel %vm465, %v5061, 0
        %v5066 = vsel %vm465, %v5063, 0
        %5068 = vmatprep.subr.mxu0 0.0
        %5069 = vmatpush1.xpose.msra.mxu0 %v5066
        %5070 = vmatprep.subr.mxu0 0.0
        %5071 = vmatpush1.xpose.msra.mxu0 0.0
        %5072 = vmatprep.subr.mxu0 0.0
        %5073 = vmatpush1.xpose.msra.mxu0 0.0
        %5074 = vmatprep.subr.mxu0 0.0
        %5075 = vmatpush1.xpose.msra.mxu0 0.0
        %5076 = vmatprep.subr.mxu0 0.0
        %5077 = vmatpush1.xpose.msra.mxu0 0.0
        %5078 = vmatprep.subr.mxu0 0.0
        %5079 = vmatpush1.xpose.msra.mxu0 0.0
        %5080 = vmatprep.subr.mxu0 0.0
        %5081 = vmatpush1.xpose.msra.mxu0 0.0
        %5082 = vmatprep.subr.mxu0 0.0
        %5083 = vmatpush1.xpose.msra.mxu0 0.0
        %5084 = vmatprep.subr.mxu0 0.0
        %5085 = vmatpush1.xpose.msra.mxu0 0.0
        %5086 = vmatprep.subr.mxu0 0.0
        %5087 = vmatpush1.xpose.msra.mxu0 0.0
        %5088 = vmatprep.subr.mxu0 0.0
        %5089 = vmatpush1.xpose.msra.mxu0 0.0
        %5090 = vmatprep.subr.mxu0 0.0
        %5091 = vmatpush1.xpose.msra.mxu0 0.0
        %5092 = vmatprep.subr.mxu0 0.0
        %5093 = vmatpush1.xpose.msra.mxu0 0.0
        %5094 = vmatprep.subr.mxu0 0.0
        %5095 = vmatpush1.xpose.msra.mxu0 0.0
        %5096 = vmatprep.subr.mxu0 0.0
        %5097 = vmatpush1.xpose.msra.mxu0 0.0
        %5098 = vmatprep.subr.mxu0 0.0
        %5099 = vmatpush1.xpose.msra.mxu0 0.0
        %5100 = vmatprep.subr.mxu0 0.0
        %5101 = vmatpush1.xpose.msra.mxu0 0.0
        %5102 = vmatprep.subr.mxu0 0.0
        %5103 = vmatpush1.xpose.msra.mxu0 0.0
        %5104 = vmatprep.subr.mxu0 0.0
        %5105 = vmatpush1.xpose.msra.mxu0 0.0
        %5106 = vmatprep.subr.mxu0 0.0
        %5107 = vmatpush1.xpose.msra.mxu0 0.0
        %5108 = vmatprep.subr.mxu0 0.0
        %5109 = vmatpush1.xpose.msra.mxu0 0.0
        %5110 = vmatprep.subr.mxu0 0.0
        %5111 = vmatpush1.xpose.msra.mxu0 0.0
        %5112 = vmatprep.subr.mxu0 0.0
        %5113 = vmatpush1.xpose.msra.mxu0 0.0
        %5114 = vmatprep.subr.mxu0 0.0
        %5115 = vmatpush1.xpose.msra.mxu0 0.0
        %5116 = vmatprep.subr.mxu0 0.0
        %5117 = vmatpush1.xpose.msra.mxu0 0.0
        %5118 = vmatprep.subr.mxu0 0.0
        %5119 = vmatpush1.xpose.msra.mxu0 0.0
        %5120 = vmatprep.subr.mxu0 0.0
        %5121 = vmatpush1.xpose.msra.mxu0 0.0
        %5122 = vmatprep.subr.mxu0 0.0
        %5123 = vmatpush1.xpose.msra.mxu0 0.0
        %5124 = vmatprep.subr.mxu0 0.0
        %5125 = vmatpush1.xpose.msra.mxu0 0.0
        %5126 = vmatprep.subr.mxu0 0.0
        %5127 = vmatpush1.xpose.msra.mxu0 0.0
        %5128 = vmatprep.subr.mxu0 0.0
        %5129 = vmatpush1.xpose.msra.mxu0 0.0
        %5130 = vmatprep.subr.mxu0 0.0
        %5131 = vmatpush1.xpose.msra.mxu0 0.0
        %5132 = vmatprep.mubr.f32.mxu0 0.0
        %5133 = vmatmul.mubr.f32.gmra.mrb[0].mxu0 %v5064
        %v5134 = vpop.f32.mrb[0].mxu0
        %v5135 = vadd.f32 %v269, %v5134
        %v5136 = vpop.f32.mrb[0].mxu0
        %5137 = vdwg.mxu0
        %v5138 = vsel %vm465, %v5135, -inf
        %5139 = vmax.xlane.f32.xlu0 %v5138
        %v5140 = vpop.xlane.xlu0 %5139
        %v5141 = vsub.f32 %v5135, %v5140
        %v5142 = vmul.f32 %v5141, 1.442695
        %v5143 = vpow.pop %v5142
        %v5144 = vsel %vm465, %v5143, 0.0
        %5145 = vadd.xlane.f32.xlu0 %v5144
        %v5146 = vpop.xlane.xlu0 %5145
        %v5147 = vrcp.pop %v5146
        %v5148 = vmul.f32 %v5143, %v5147
        %5149 = vrot.lane.b32.xlu0 %v4728, 48
        %v5150 = vpop.permute.xlu0 %5149
        %v5153 = vsel %vm465, %v5148, 0
        %5155 = vmatprep.subr.mxu0 0.0
        %5156 = vmatpush1.msra.mxu0 %v5150
        %5157 = vmatprep.subr.mxu0 0.0
        %5158 = vmatpush1.msra.mxu0 0.0
        %5159 = vmatprep.subr.mxu0 0.0
        %5160 = vmatpush1.msra.mxu0 0.0
        %5161 = vmatprep.subr.mxu0 0.0
        %5162 = vmatpush1.msra.mxu0 0.0
        %5163 = vmatprep.subr.mxu0 0.0
        %5164 = vmatpush1.msra.mxu0 0.0
        %5165 = vmatprep.subr.mxu0 0.0
        %5166 = vmatpush1.msra.mxu0 0.0
        %5167 = vmatprep.subr.mxu0 0.0
        %5168 = vmatpush1.msra.mxu0 0.0
        %5169 = vmatprep.subr.mxu0 0.0
        %5170 = vmatpush1.msra.mxu0 0.0
        %5171 = vmatprep.subr.mxu0 0.0
        %5172 = vmatpush1.msra.mxu0 0.0
        %5173 = vmatprep.subr.mxu0 0.0
        %5174 = vmatpush1.msra.mxu0 0.0
        %5175 = vmatprep.subr.mxu0 0.0
        %5176 = vmatpush1.msra.mxu0 0.0
        %5177 = vmatprep.subr.mxu0 0.0
        %5178 = vmatpush1.msra.mxu0 0.0
        %5179 = vmatprep.subr.mxu0 0.0
        %5180 = vmatpush1.msra.mxu0 0.0
        %5181 = vmatprep.subr.mxu0 0.0
        %5182 = vmatpush1.msra.mxu0 0.0
        %5183 = vmatprep.subr.mxu0 0.0
        %5184 = vmatpush1.msra.mxu0 0.0
        %5185 = vmatprep.subr.mxu0 0.0
        %5186 = vmatpush1.msra.mxu0 0.0
        %5187 = vmatprep.subr.mxu0 0.0
        %5188 = vmatpush1.msra.mxu0 0.0
        %5189 = vmatprep.subr.mxu0 0.0
        %5190 = vmatpush1.msra.mxu0 0.0
        %5191 = vmatprep.subr.mxu0 0.0
        %5192 = vmatpush1.msra.mxu0 0.0
        %5193 = vmatprep.subr.mxu0 0.0
        %5194 = vmatpush1.msra.mxu0 0.0
        %5195 = vmatprep.subr.mxu0 0.0
        %5196 = vmatpush1.msra.mxu0 0.0
        %5197 = vmatprep.subr.mxu0 0.0
        %5198 = vmatpush1.msra.mxu0 0.0
        %5199 = vmatprep.subr.mxu0 0.0
        %5200 = vmatpush1.msra.mxu0 0.0
        %5201 = vmatprep.subr.mxu0 0.0
        %5202 = vmatpush1.msra.mxu0 0.0
        %5203 = vmatprep.subr.mxu0 0.0
        %5204 = vmatpush1.msra.mxu0 0.0
        %5205 = vmatprep.subr.mxu0 0.0
        %5206 = vmatpush1.msra.mxu0 0.0
        %5207 = vmatprep.subr.mxu0 0.0
        %5208 = vmatpush1.msra.mxu0 0.0
        %5209 = vmatprep.subr.mxu0 0.0
        %5210 = vmatpush1.msra.mxu0 0.0
        %5211 = vmatprep.subr.mxu0 0.0
        %5212 = vmatpush1.msra.mxu0 0.0
        %5213 = vmatprep.subr.mxu0 0.0
        %5214 = vmatpush1.msra.mxu0 0.0
        %5215 = vmatprep.subr.mxu0 0.0
        %5216 = vmatpush1.msra.mxu0 0.0
        %5217 = vmatprep.subr.mxu0 0.0
        %5218 = vmatpush1.msra.mxu0 0.0
        %5219 = vmatprep.mubr.f32.mxu0 0.0
        %5220 = vmatmul.mubr.f32.gmra.mrb[0].mxu0 %v5153
        %v5221 = vpop.f32.mrb[0].mxu0
        %v5222 = vadd.f32 0.0, %v5221
        %v5223 = vpop.f32.mrb[0].mxu0
        %5224 = vdwg.mxu0
        %5225 = vrot.lane.b32.xlu0 %v4728, 104
        %v5226 = vpop.permute.xlu0 %5225
        %5227 = vrot.lane.b32.xlu0 %v4728, 72
        %v5228 = vpop.permute.xlu0 %5227
        %v5229 = vsel %vm465, %v5226, 0
        %v5231 = vsel %vm465, %v5228, 0
        %5233 = vmatprep.subr.mxu0 0.0
        %5234 = vmatpush1.xpose.msra.mxu0 %v5231
        %5235 = vmatprep.subr.mxu0 0.0
        %5236 = vmatpush1.xpose.msra.mxu0 0.0
        %5237 = vmatprep.subr.mxu0 0.0
        %5238 = vmatpush1.xpose.msra.mxu0 0.0
        %5239 = vmatprep.subr.mxu0 0.0
        %5240 = vmatpush1.xpose.msra.mxu0 0.0
        %5241 = vmatprep.subr.mxu0 0.0
        %5242 = vmatpush1.xpose.msra.mxu0 0.0
        %5243 = vmatprep.subr.mxu0 0.0
        %5244 = vmatpush1.xpose.msra.mxu0 0.0
        %5245 = vmatprep.subr.mxu0 0.0
        %5246 = vmatpush1.xpose.msra.mxu0 0.0
        %5247 = vmatprep.subr.mxu0 0.0
        %5248 = vmatpush1.xpose.msra.mxu0 0.0
        %5249 = vmatprep.subr.mxu0 0.0
        %5250 = vmatpush1.xpose.msra.mxu0 0.0
        %5251 = vmatprep.subr.mxu0 0.0
        %5252 = vmatpush1.xpose.msra.mxu0 0.0
        %5253 = vmatprep.subr.mxu0 0.0
        %5254 = vmatpush1.xpose.msra.mxu0 0.0
        %5255 = vmatprep.subr.mxu0 0.0
        %5256 = vmatpush1.xpose.msra.mxu0 0.0
        %5257 = vmatprep.subr.mxu0 0.0
        %5258 = vmatpush1.xpose.msra.mxu0 0.0
        %5259 = vmatprep.subr.mxu0 0.0
        %5260 = vmatpush1.xpose.msra.mxu0 0.0
        %5261 = vmatprep.subr.mxu0 0.0
        %5262 = vmatpush1.xpose.msra.mxu0 0.0
        %5263 = vmatprep.subr.mxu0 0.0
        %5264 = vmatpush1.xpose.msra.mxu0 0.0
        %5265 = vmatprep.subr.mxu0 0.0
        %5266 = vmatpush1.xpose.msra.mxu0 0.0
        %5267 = vmatprep.subr.mxu0 0.0
        %5268 = vmatpush1.xpose.msra.mxu0 0.0
        %5269 = vmatprep.subr.mxu0 0.0
        %5270 = vmatpush1.xpose.msra.mxu0 0.0
        %5271 = vmatprep.subr.mxu0 0.0
        %5272 = vmatpush1.xpose.msra.mxu0 0.0
        %5273 = vmatprep.subr.mxu0 0.0
        %5274 = vmatpush1.xpose.msra.mxu0 0.0
        %5275 = vmatprep.subr.mxu0 0.0
        %5276 = vmatpush1.xpose.msra.mxu0 0.0
        %5277 = vmatprep.subr.mxu0 0.0
        %5278 = vmatpush1.xpose.msra.mxu0 0.0
        %5279 = vmatprep.subr.mxu0 0.0
        %5280 = vmatpush1.xpose.msra.mxu0 0.0
        %5281 = vmatprep.subr.mxu0 0.0
        %5282 = vmatpush1.xpose.msra.mxu0 0.0
        %5283 = vmatprep.subr.mxu0 0.0
        %5284 = vmatpush1.xpose.msra.mxu0 0.0
        %5285 = vmatprep.subr.mxu0 0.0
        %5286 = vmatpush1.xpose.msra.mxu0 0.0
        %5287 = vmatprep.subr.mxu0 0.0
        %5288 = vmatpush1.xpose.msra.mxu0 0.0
        %5289 = vmatprep.subr.mxu0 0.0
        %5290 = vmatpush1.xpose.msra.mxu0 0.0
        %5291 = vmatprep.subr.mxu0 0.0
        %5292 = vmatpush1.xpose.msra.mxu0 0.0
        %5293 = vmatprep.subr.mxu0 0.0
        %5294 = vmatpush1.xpose.msra.mxu0 0.0
        %5295 = vmatprep.subr.mxu0 0.0
        %5296 = vmatpush1.xpose.msra.mxu0 0.0
        %5297 = vmatprep.mubr.f32.mxu0 0.0
        %5298 = vmatmul.mubr.f32.gmra.mrb[0].mxu0 %v5229
        %v5299 = vpop.f32.mrb[0].mxu0
        %v5300 = vadd.f32 %v269, %v5299
        %v5301 = vpop.f32.mrb[0].mxu0
        %5302 = vdwg.mxu0
        %v5303 = vsel %vm465, %v5300, -inf
        %5304 = vmax.xlane.f32.xlu0 %v5303
        %v5305 = vpop.xlane.xlu0 %5304
        %v5306 = vsub.f32 %v5300, %v5305
        %v5307 = vmul.f32 %v5306, 1.442695
        %v5308 = vpow.pop %v5307
        %v5309 = vsel %vm465, %v5308, 0.0
        %5310 = vadd.xlane.f32.xlu0 %v5309
        %v5311 = vpop.xlane.xlu0 %5310
        %v5312 = vrcp.pop %v5311
        %v5313 = vmul.f32 %v5308, %v5312
        %5314 = vrot.lane.b32.xlu0 %v4728, 40
        %v5315 = vpop.permute.xlu0 %5314
        %v5318 = vsel %vm465, %v5313, 0
        %5320 = vmatprep.subr.mxu0 0.0
        %5321 = vmatpush1.msra.mxu0 %v5315
        %5322 = vmatprep.subr.mxu0 0.0
        %5323 = vmatpush1.msra.mxu0 0.0
        %5324 = vmatprep.subr.mxu0 0.0
        %5325 = vmatpush1.msra.mxu0 0.0
        %5326 = vmatprep.subr.mxu0 0.0
        %5327 = vmatpush1.msra.mxu0 0.0
        %5328 = vmatprep.subr.mxu0 0.0
        %5329 = vmatpush1.msra.mxu0 0.0
        %5330 = vmatprep.subr.mxu0 0.0
        %5331 = vmatpush1.msra.mxu0 0.0
        %5332 = vmatprep.subr.mxu0 0.0
        %5333 = vmatpush1.msra.mxu0 0.0
        %5334 = vmatprep.subr.mxu0 0.0
        %5335 = vmatpush1.msra.mxu0 0.0
        %5336 = vmatprep.subr.mxu0 0.0
        %5337 = vmatpush1.msra.mxu0 0.0
        %5338 = vmatprep.subr.mxu0 0.0
        %5339 = vmatpush1.msra.mxu0 0.0
        %5340 = vmatprep.subr.mxu0 0.0
        %5341 = vmatpush1.msra.mxu0 0.0
        %5342 = vmatprep.subr.mxu0 0.0
        %5343 = vmatpush1.msra.mxu0 0.0
        %5344 = vmatprep.subr.mxu0 0.0
        %5345 = vmatpush1.msra.mxu0 0.0
        %5346 = vmatprep.subr.mxu0 0.0
        %5347 = vmatpush1.msra.mxu0 0.0
        %5348 = vmatprep.subr.mxu0 0.0
        %5349 = vmatpush1.msra.mxu0 0.0
        %5350 = vmatprep.subr.mxu0 0.0
        %5351 = vmatpush1.msra.mxu0 0.0
        %5352 = vmatprep.subr.mxu0 0.0
        %5353 = vmatpush1.msra.mxu0 0.0
        %5354 = vmatprep.subr.mxu0 0.0
        %5355 = vmatpush1.msra.mxu0 0.0
        %5356 = vmatprep.subr.mxu0 0.0
        %5357 = vmatpush1.msra.mxu0 0.0
        %5358 = vmatprep.subr.mxu0 0.0
        %5359 = vmatpush1.msra.mxu0 0.0
        %5360 = vmatprep.subr.mxu0 0.0
        %5361 = vmatpush1.msra.mxu0 0.0
        %5362 = vmatprep.subr.mxu0 0.0
        %5363 = vmatpush1.msra.mxu0 0.0
        %5364 = vmatprep.subr.mxu0 0.0
        %5365 = vmatpush1.msra.mxu0 0.0
        %5366 = vmatprep.subr.mxu0 0.0
        %5367 = vmatpush1.msra.mxu0 0.0
        %5368 = vmatprep.subr.mxu0 0.0
        %5369 = vmatpush1.msra.mxu0 0.0
        %5370 = vmatprep.subr.mxu0 0.0
        %5371 = vmatpush1.msra.mxu0 0.0
        %5372 = vmatprep.subr.mxu0 0.0
        %5373 = vmatpush1.msra.mxu0 0.0
        %5374 = vmatprep.subr.mxu0 0.0
        %5375 = vmatpush1.msra.mxu0 0.0
        %5376 = vmatprep.subr.mxu0 0.0
        %5377 = vmatpush1.msra.mxu0 0.0
        %5378 = vmatprep.subr.mxu0 0.0
        %5379 = vmatpush1.msra.mxu0 0.0
        %5380 = vmatprep.subr.mxu0 0.0
        %5381 = vmatpush1.msra.mxu0 0.0
        %5382 = vmatprep.subr.mxu0 0.0
        %5383 = vmatpush1.msra.mxu0 0.0
        %5384 = vmatprep.mubr.f32.mxu0 0.0
        %5385 = vmatmul.mubr.f32.gmra.mrb[0].mxu0 %v5318
        %v5386 = vpop.f32.mrb[0].mxu0
        %v5387 = vadd.f32 0.0, %v5386
        %v5388 = vpop.f32.mrb[0].mxu0
        %5389 = vdwg.mxu0
        %5391 = vrot.lane.b32.xlu0 %v5057, 8
        %v5392 = vpop.permute.xlu0 %5391
        %5395 = vrot.lane.b32.xlu0 %v5222, 16
        %v5396 = vpop.permute.xlu0 %5395
        %5399 = vrot.lane.b32.xlu0 %v5387, 24
        %v5400 = vpop.permute.xlu0 %5399
        %v5402 = vsel %vm465, %v4892, %v5392
        %v5403 = vsel %vm1135, %v5402, %v5396
        %v5404 = vsel %vm1137, %v5403, %v5400
        %v5405 = vld [vmem:[#allocation5 + $0x310] sm:$0xff]
        %v5406 = vld [vmem:[#allocation5 + $0x318] sm:$0xff]
        %v5407 = vld [vmem:[#allocation5 + $0x320] sm:$0xff]
        %v5408 = vld [vmem:[#allocation5 + $0x328] sm:$0xff]
        %v5409 = vld [vmem:[#allocation8 + $0x110] sm:$0x1]
        %v5410 = vlaneseq
        %v5411 = vshrl.u32 %v5410, 7
        %v5412 = vsub.s32 0, %v5411
        %v5413 = vrot.slane %v5409, %v5412
        %v5415 = vsel %vm340, %v5404, 0
        %5417 = vmatprep.subr.mxu0 0.0
        %5418 = vmatpush1.msra.mxu0 %v5405
        %5419 = vmatprep.subr.mxu0 0.0
        %5420 = vmatpush1.msra.mxu0 %v5406
        %5421 = vmatprep.subr.mxu0 0.0
        %5422 = vmatpush1.msra.mxu0 %v5407
        %5423 = vmatprep.subr.mxu0 0.0
        %5424 = vmatpush1.msra.mxu0 %v5408
        %5425 = vmatprep.subr.mxu0 0.0
        %5426 = vmatpush1.msra.mxu0 0.0
        %5427 = vmatprep.subr.mxu0 0.0
        %5428 = vmatpush1.msra.mxu0 0.0
        %5429 = vmatprep.subr.mxu0 0.0
        %5430 = vmatpush1.msra.mxu0 0.0
        %5431 = vmatprep.subr.mxu0 0.0
        %5432 = vmatpush1.msra.mxu0 0.0
        %5433 = vmatprep.subr.mxu0 0.0
        %5434 = vmatpush1.msra.mxu0 0.0
        %5435 = vmatprep.subr.mxu0 0.0
        %5436 = vmatpush1.msra.mxu0 0.0
        %5437 = vmatprep.subr.mxu0 0.0
        %5438 = vmatpush1.msra.mxu0 0.0
        %5439 = vmatprep.subr.mxu0 0.0
        %5440 = vmatpush1.msra.mxu0 0.0
        %5441 = vmatprep.subr.mxu0 0.0
        %5442 = vmatpush1.msra.mxu0 0.0
        %5443 = vmatprep.subr.mxu0 0.0
        %5444 = vmatpush1.msra.mxu0 0.0
        %5445 = vmatprep.subr.mxu0 0.0
        %5446 = vmatpush1.msra.mxu0 0.0
        %5447 = vmatprep.subr.mxu0 0.0
        %5448 = vmatpush1.msra.mxu0 0.0
        %5449 = vmatprep.subr.mxu0 0.0
        %5450 = vmatpush1.msra.mxu0 0.0
        %5451 = vmatprep.subr.mxu0 0.0
        %5452 = vmatpush1.msra.mxu0 0.0
        %5453 = vmatprep.subr.mxu0 0.0
        %5454 = vmatpush1.msra.mxu0 0.0
        %5455 = vmatprep.subr.mxu0 0.0
        %5456 = vmatpush1.msra.mxu0 0.0
        %5457 = vmatprep.subr.mxu0 0.0
        %5458 = vmatpush1.msra.mxu0 0.0
        %5459 = vmatprep.subr.mxu0 0.0
        %5460 = vmatpush1.msra.mxu0 0.0
        %5461 = vmatprep.subr.mxu0 0.0
        %5462 = vmatpush1.msra.mxu0 0.0
        %5463 = vmatprep.subr.mxu0 0.0
        %5464 = vmatpush1.msra.mxu0 0.0
        %5465 = vmatprep.subr.mxu0 0.0
        %5466 = vmatpush1.msra.mxu0 0.0
        %5467 = vmatprep.subr.mxu0 0.0
        %5468 = vmatpush1.msra.mxu0 0.0
        %5469 = vmatprep.subr.mxu0 0.0
        %5470 = vmatpush1.msra.mxu0 0.0
        %5471 = vmatprep.subr.mxu0 0.0
        %5472 = vmatpush1.msra.mxu0 0.0
        %5473 = vmatprep.subr.mxu0 0.0
        %5474 = vmatpush1.msra.mxu0 0.0
        %5475 = vmatprep.subr.mxu0 0.0
        %5476 = vmatpush1.msra.mxu0 0.0
        %5477 = vmatprep.subr.mxu0 0.0
        %5478 = vmatpush1.msra.mxu0 0.0
        %5479 = vmatprep.subr.mxu0 0.0
        %5480 = vmatpush1.msra.mxu0 0.0
        %5481 = vmatprep.mubr.f32.mxu0 0.0
        %5482 = vmatmul.mubr.f32.gmra.mrb[0].mxu0 %v5415
        %v5483 = vpop.f32.mrb[0].mxu0
        %v5484 = vadd.f32 %v5413, %v5483
        %v5485 = vpop.f32.mrb[0].mxu0
        %5486 = vdwg.mxu0
        %v5487 = vadd.f32 %v4616, %v5484
        %v5488 = vsel %vm340, %v5487, 0.0
        %5489 = vadd.xlane.f32.xlu0 %v5488
        %v5490 = vpop.xlane.xlu0 %5489
        %v5491 = vmul.f32 %v5490, %v344
        %v5492 = vsub.f32 %v5487, %v5491
        %v5493 = vmul.f32 %v5492, %v5492
        %v5494 = vsel %vm340, %v5493, 0.0
        %5495 = vadd.xlane.f32.xlu0 %v5494
        %v5496 = vpop.xlane.xlu0 %5495
        %v5497 = vmul.f32 %v5496, 0.032258064
        %v5498 = vrsqrt.pop %v5497
        %v5499 = vmul.f32 %v5497, %v5498
        %vm5500 = vcmp.eq.f32.partialorder %v5497, inf
        %v5501 = vsel %vm5500, %v5497, %v5499
        %vm5502 = vcmp.eq.f32.partialorder %v5497, 0.0
        %v5503 = vand.u32 %v5497, 2147483648
        %v5504 = vsel %vm5502, %v5503, %v5501
        %v5505 = vld [vmem:[#allocation8 + $0x118] sm:$0x1]
        %v5506 = vlaneseq
        %v5507 = vshrl.u32 %v5506, 7
        %v5508 = vsub.s32 0, %v5507
        %v5509 = vrot.slane %v5505, %v5508
        %v5510 = vmul.f32 %v5509, %v5492
        %v5511 = vadd.f32 %v5504, 1e-06
        %v5512 = vrcp.pop %v5511
        %v5513 = vmul.f32 %v5510, %v5512
        %v5514 = vld [vmem:[#allocation8 + $0x120] sm:$0x1]
        %v5515 = vlaneseq
        %v5516 = vshrl.u32 %v5515, 7
        %v5517 = vsub.s32 0, %v5516
        %v5518 = vrot.slane %v5514, %v5517
        %v5519 = vadd.f32 %v5513, %v5518
        %v5520 = vld [vmem:[#allocation5 + $0x330] sm:$0xff]
        %v5521 = vld [vmem:[#allocation5 + $0x338] sm:$0xff]
        %v5522 = vld [vmem:[#allocation5 + $0x340] sm:$0xff]
        %v5523 = vld [vmem:[#allocation5 + $0x348] sm:$0xff]
        %v5524 = vld [vmem:[#allocation8 + $0x128] sm:$0x1]
        %v5525 = vlaneseq
        %v5526 = vshrl.u32 %v5525, 7
        %v5527 = vsub.s32 0, %v5526
        %v5528 = vrot.slane %v5524, %v5527
        %v5530 = vsel %vm340, %v5519, 0
        %5532 = vmatprep.subr.mxu0 0.0
        %5533 = vmatpush1.msra.mxu0 %v5520
        %5534 = vmatprep.subr.mxu0 0.0
        %5535 = vmatpush1.msra.mxu0 %v5521
        %5536 = vmatprep.subr.mxu0 0.0
        %5537 = vmatpush1.msra.mxu0 %v5522
        %5538 = vmatprep.subr.mxu0 0.0
        %5539 = vmatpush1.msra.mxu0 %v5523
        %5540 = vmatprep.subr.mxu0 0.0
        %5541 = vmatpush1.msra.mxu0 0.0
        %5542 = vmatprep.subr.mxu0 0.0
        %5543 = vmatpush1.msra.mxu0 0.0
        %5544 = vmatprep.subr.mxu0 0.0
        %5545 = vmatpush1.msra.mxu0 0.0
        %5546 = vmatprep.subr.mxu0 0.0
        %5547 = vmatpush1.msra.mxu0 0.0
        %5548 = vmatprep.subr.mxu0 0.0
        %5549 = vmatpush1.msra.mxu0 0.0
        %5550 = vmatprep.subr.mxu0 0.0
        %5551 = vmatpush1.msra.mxu0 0.0
        %5552 = vmatprep.subr.mxu0 0.0
        %5553 = vmatpush1.msra.mxu0 0.0
        %5554 = vmatprep.subr.mxu0 0.0
        %5555 = vmatpush1.msra.mxu0 0.0
        %5556 = vmatprep.subr.mxu0 0.0
        %5557 = vmatpush1.msra.mxu0 0.0
        %5558 = vmatprep.subr.mxu0 0.0
        %5559 = vmatpush1.msra.mxu0 0.0
        %5560 = vmatprep.subr.mxu0 0.0
        %5561 = vmatpush1.msra.mxu0 0.0
        %5562 = vmatprep.subr.mxu0 0.0
        %5563 = vmatpush1.msra.mxu0 0.0
        %5564 = vmatprep.subr.mxu0 0.0
        %5565 = vmatpush1.msra.mxu0 0.0
        %5566 = vmatprep.subr.mxu0 0.0
        %5567 = vmatpush1.msra.mxu0 0.0
        %5568 = vmatprep.subr.mxu0 0.0
        %5569 = vmatpush1.msra.mxu0 0.0
        %5570 = vmatprep.subr.mxu0 0.0
        %5571 = vmatpush1.msra.mxu0 0.0
        %5572 = vmatprep.subr.mxu0 0.0
        %5573 = vmatpush1.msra.mxu0 0.0
        %5574 = vmatprep.subr.mxu0 0.0
        %5575 = vmatpush1.msra.mxu0 0.0
        %5576 = vmatprep.subr.mxu0 0.0
        %5577 = vmatpush1.msra.mxu0 0.0
        %5578 = vmatprep.subr.mxu0 0.0
        %5579 = vmatpush1.msra.mxu0 0.0
        %5580 = vmatprep.subr.mxu0 0.0
        %5581 = vmatpush1.msra.mxu0 0.0
        %5582 = vmatprep.subr.mxu0 0.0
        %5583 = vmatpush1.msra.mxu0 0.0
        %5584 = vmatprep.subr.mxu0 0.0
        %5585 = vmatpush1.msra.mxu0 0.0
        %5586 = vmatprep.subr.mxu0 0.0
        %5587 = vmatpush1.msra.mxu0 0.0
        %5588 = vmatprep.subr.mxu0 0.0
        %5589 = vmatpush1.msra.mxu0 0.0
        %5590 = vmatprep.subr.mxu0 0.0
        %5591 = vmatpush1.msra.mxu0 0.0
        %5592 = vmatprep.subr.mxu0 0.0
        %5593 = vmatpush1.msra.mxu0 0.0
        %5594 = vmatprep.subr.mxu0 0.0
        %5595 = vmatpush1.msra.mxu0 0.0
        %5596 = vmatprep.mubr.f32.mxu0 0.0
        %5597 = vmatmul.mubr.f32.gmra.mrb[0].mxu0 %v5530
        %v5598 = vpop.f32.mrb[0].mxu0
        %v5599 = vadd.f32 %v5528, %v5598
        %v5600 = vpop.f32.mrb[0].mxu0
        %5601 = vdwg.mxu0
        %v5602 = vld [vmem:[#allocation5 + $0x350] sm:$0xff]
        %v5603 = vld [vmem:[#allocation5 + $0x358] sm:$0xff]
        %v5604 = vld [vmem:[#allocation5 + $0x360] sm:$0xff]
        %v5605 = vld [vmem:[#allocation5 + $0x368] sm:$0xff]
        %v5606 = vld [vmem:[#allocation8 + $0x130] sm:$0x1]
        %v5607 = vlaneseq
        %v5608 = vshrl.u32 %v5607, 7
        %v5609 = vsub.s32 0, %v5608
        %v5610 = vrot.slane %v5606, %v5609
        %5611 = vmatprep.subr.mxu0 0.0
        %5612 = vmatpush1.msra.mxu0 %v5602
        %5613 = vmatprep.subr.mxu0 0.0
        %5614 = vmatpush1.msra.mxu0 %v5603
        %5615 = vmatprep.subr.mxu0 0.0
        %5616 = vmatpush1.msra.mxu0 %v5604
        %5617 = vmatprep.subr.mxu0 0.0
        %5618 = vmatpush1.msra.mxu0 %v5605
        %5619 = vmatprep.subr.mxu0 0.0
        %5620 = vmatpush1.msra.mxu0 0.0
        %5621 = vmatprep.subr.mxu0 0.0
        %5622 = vmatpush1.msra.mxu0 0.0
        %5623 = vmatprep.subr.mxu0 0.0
        %5624 = vmatpush1.msra.mxu0 0.0
        %5625 = vmatprep.subr.mxu0 0.0
        %5626 = vmatpush1.msra.mxu0 0.0
        %5627 = vmatprep.subr.mxu0 0.0
        %5628 = vmatpush1.msra.mxu0 0.0
        %5629 = vmatprep.subr.mxu0 0.0
        %5630 = vmatpush1.msra.mxu0 0.0
        %5631 = vmatprep.subr.mxu0 0.0
        %5632 = vmatpush1.msra.mxu0 0.0
        %5633 = vmatprep.subr.mxu0 0.0
        %5634 = vmatpush1.msra.mxu0 0.0
        %5635 = vmatprep.subr.mxu0 0.0
        %5636 = vmatpush1.msra.mxu0 0.0
        %5637 = vmatprep.subr.mxu0 0.0
        %5638 = vmatpush1.msra.mxu0 0.0
        %5639 = vmatprep.subr.mxu0 0.0
        %5640 = vmatpush1.msra.mxu0 0.0
        %5641 = vmatprep.subr.mxu0 0.0
        %5642 = vmatpush1.msra.mxu0 0.0
        %5643 = vmatprep.subr.mxu0 0.0
        %5644 = vmatpush1.msra.mxu0 0.0
        %5645 = vmatprep.subr.mxu0 0.0
        %5646 = vmatpush1.msra.mxu0 0.0
        %5647 = vmatprep.subr.mxu0 0.0
        %5648 = vmatpush1.msra.mxu0 0.0
        %5649 = vmatprep.subr.mxu0 0.0
        %5650 = vmatpush1.msra.mxu0 0.0
        %5651 = vmatprep.subr.mxu0 0.0
        %5652 = vmatpush1.msra.mxu0 0.0
        %5653 = vmatprep.subr.mxu0 0.0
        %5654 = vmatpush1.msra.mxu0 0.0
        %5655 = vmatprep.subr.mxu0 0.0
        %5656 = vmatpush1.msra.mxu0 0.0
        %5657 = vmatprep.subr.mxu0 0.0
        %5658 = vmatpush1.msra.mxu0 0.0
        %5659 = vmatprep.subr.mxu0 0.0
        %5660 = vmatpush1.msra.mxu0 0.0
        %5661 = vmatprep.subr.mxu0 0.0
        %5662 = vmatpush1.msra.mxu0 0.0
        %5663 = vmatprep.subr.mxu0 0.0
        %5664 = vmatpush1.msra.mxu0 0.0
        %5665 = vmatprep.subr.mxu0 0.0
        %5666 = vmatpush1.msra.mxu0 0.0
        %5667 = vmatprep.subr.mxu0 0.0
        %5668 = vmatpush1.msra.mxu0 0.0
        %5669 = vmatprep.subr.mxu0 0.0
        %5670 = vmatpush1.msra.mxu0 0.0
        %5671 = vmatprep.subr.mxu0 0.0
        %5672 = vmatpush1.msra.mxu0 0.0
        %5673 = vmatprep.subr.mxu0 0.0
        %5674 = vmatpush1.msra.mxu0 0.0
        %5675 = vmatprep.mubr.f32.mxu0 0.0
        %5676 = vmatmul.mubr.f32.gmra.mrb[0].mxu0 %v3587
        %v5677 = vpop.f32.mrb[0].mxu0
        %v5678 = vadd.f32 %v5610, %v5677
        %v5679 = vpop.f32.mrb[0].mxu0
        %5680 = vdwg.mxu0
        %v5682 = vsel %vm465, %v5599, 0
        %v5685 = vsel %vm465, %v5678, 0
        %5687 = vmatprep.subr.mxu0 0.0
        %5688 = vmatpush1.xpose.msra.mxu0 %v5685
        %5689 = vmatprep.subr.mxu0 0.0
        %5690 = vmatpush1.xpose.msra.mxu0 0.0
        %5691 = vmatprep.subr.mxu0 0.0
        %5692 = vmatpush1.xpose.msra.mxu0 0.0
        %5693 = vmatprep.subr.mxu0 0.0
        %5694 = vmatpush1.xpose.msra.mxu0 0.0
        %5695 = vmatprep.subr.mxu0 0.0
        %5696 = vmatpush1.xpose.msra.mxu0 0.0
        %5697 = vmatprep.subr.mxu0 0.0
        %5698 = vmatpush1.xpose.msra.mxu0 0.0
        %5699 = vmatprep.subr.mxu0 0.0
        %5700 = vmatpush1.xpose.msra.mxu0 0.0
        %5701 = vmatprep.subr.mxu0 0.0
        %5702 = vmatpush1.xpose.msra.mxu0 0.0
        %5703 = vmatprep.subr.mxu0 0.0
        %5704 = vmatpush1.xpose.msra.mxu0 0.0
        %5705 = vmatprep.subr.mxu0 0.0
        %5706 = vmatpush1.xpose.msra.mxu0 0.0
        %5707 = vmatprep.subr.mxu0 0.0
        %5708 = vmatpush1.xpose.msra.mxu0 0.0
        %5709 = vmatprep.subr.mxu0 0.0
        %5710 = vmatpush1.xpose.msra.mxu0 0.0
        %5711 = vmatprep.subr.mxu0 0.0
        %5712 = vmatpush1.xpose.msra.mxu0 0.0
        %5713 = vmatprep.subr.mxu0 0.0
        %5714 = vmatpush1.xpose.msra.mxu0 0.0
        %5715 = vmatprep.subr.mxu0 0.0
        %5716 = vmatpush1.xpose.msra.mxu0 0.0
        %5717 = vmatprep.subr.mxu0 0.0
        %5718 = vmatpush1.xpose.msra.mxu0 0.0
        %5719 = vmatprep.subr.mxu0 0.0
        %5720 = vmatpush1.xpose.msra.mxu0 0.0
        %5721 = vmatprep.subr.mxu0 0.0
        %5722 = vmatpush1.xpose.msra.mxu0 0.0
        %5723 = vmatprep.subr.mxu0 0.0
        %5724 = vmatpush1.xpose.msra.mxu0 0.0
        %5725 = vmatprep.subr.mxu0 0.0
        %5726 = vmatpush1.xpose.msra.mxu0 0.0
        %5727 = vmatprep.subr.mxu0 0.0
        %5728 = vmatpush1.xpose.msra.mxu0 0.0
        %5729 = vmatprep.subr.mxu0 0.0
        %5730 = vmatpush1.xpose.msra.mxu0 0.0
        %5731 = vmatprep.subr.mxu0 0.0
        %5732 = vmatpush1.xpose.msra.mxu0 0.0
        %5733 = vmatprep.subr.mxu0 0.0
        %5734 = vmatpush1.xpose.msra.mxu0 0.0
        %5735 = vmatprep.subr.mxu0 0.0
        %5736 = vmatpush1.xpose.msra.mxu0 0.0
        %5737 = vmatprep.subr.mxu0 0.0
        %5738 = vmatpush1.xpose.msra.mxu0 0.0
        %5739 = vmatprep.subr.mxu0 0.0
        %5740 = vmatpush1.xpose.msra.mxu0 0.0
        %5741 = vmatprep.subr.mxu0 0.0
        %5742 = vmatpush1.xpose.msra.mxu0 0.0
        %5743 = vmatprep.subr.mxu0 0.0
        %5744 = vmatpush1.xpose.msra.mxu0 0.0
        %5745 = vmatprep.subr.mxu0 0.0
        %5746 = vmatpush1.xpose.msra.mxu0 0.0
        %5747 = vmatprep.subr.mxu0 0.0
        %5748 = vmatpush1.xpose.msra.mxu0 0.0
        %5749 = vmatprep.subr.mxu0 0.0
        %5750 = vmatpush1.xpose.msra.mxu0 0.0
        %5751 = vmatprep.mubr.f32.mxu0 0.0
        %5752 = vmatmul.mubr.f32.gmra.mrb[0].mxu0 %v5682
        %v5753 = vpop.f32.mrb[0].mxu0
        %v5754 = vadd.f32 %v460, %v5753
        %v5755 = vpop.f32.mrb[0].mxu0
        %5756 = vdwg.mxu0
        %v5757 = vsel %vm465, %v5754, -inf
        %5758 = vmax.xlane.f32.xlu0 %v5757
        %v5759 = vpop.xlane.xlu0 %5758
        %v5760 = vsub.f32 %v5754, %v5759
        %v5761 = vmul.f32 %v5760, 1.442695
        %v5762 = vpow.pop %v5761
        %v5763 = vsel %vm465, %v5762, 0.0
        %5764 = vadd.xlane.f32.xlu0 %v5763
        %v5765 = vpop.xlane.xlu0 %5764
        %v5766 = vrcp.pop %v5765
        %v5767 = vmul.f32 %v5762, %v5766
        %5768 = vrot.lane.b32.xlu0 %v5678, 96
        %v5769 = vpop.permute.xlu0 %5768
        %v5772 = vsel %vm465, %v5767, 0
        %5774 = vmatprep.subr.mxu0 0.0
        %5775 = vmatpush1.msra.mxu0 %v5769
        %5776 = vmatprep.subr.mxu0 0.0
        %5777 = vmatpush1.msra.mxu0 0.0
        %5778 = vmatprep.subr.mxu0 0.0
        %5779 = vmatpush1.msra.mxu0 0.0
        %5780 = vmatprep.subr.mxu0 0.0
        %5781 = vmatpush1.msra.mxu0 0.0
        %5782 = vmatprep.subr.mxu0 0.0
        %5783 = vmatpush1.msra.mxu0 0.0
        %5784 = vmatprep.subr.mxu0 0.0
        %5785 = vmatpush1.msra.mxu0 0.0
        %5786 = vmatprep.subr.mxu0 0.0
        %5787 = vmatpush1.msra.mxu0 0.0
        %5788 = vmatprep.subr.mxu0 0.0
        %5789 = vmatpush1.msra.mxu0 0.0
        %5790 = vmatprep.subr.mxu0 0.0
        %5791 = vmatpush1.msra.mxu0 0.0
        %5792 = vmatprep.subr.mxu0 0.0
        %5793 = vmatpush1.msra.mxu0 0.0
        %5794 = vmatprep.subr.mxu0 0.0
        %5795 = vmatpush1.msra.mxu0 0.0
        %5796 = vmatprep.subr.mxu0 0.0
        %5797 = vmatpush1.msra.mxu0 0.0
        %5798 = vmatprep.subr.mxu0 0.0
        %5799 = vmatpush1.msra.mxu0 0.0
        %5800 = vmatprep.subr.mxu0 0.0
        %5801 = vmatpush1.msra.mxu0 0.0
        %5802 = vmatprep.subr.mxu0 0.0
        %5803 = vmatpush1.msra.mxu0 0.0
        %5804 = vmatprep.subr.mxu0 0.0
        %5805 = vmatpush1.msra.mxu0 0.0
        %5806 = vmatprep.subr.mxu0 0.0
        %5807 = vmatpush1.msra.mxu0 0.0
        %5808 = vmatprep.subr.mxu0 0.0
        %5809 = vmatpush1.msra.mxu0 0.0
        %5810 = vmatprep.subr.mxu0 0.0
        %5811 = vmatpush1.msra.mxu0 0.0
        %5812 = vmatprep.subr.mxu0 0.0
        %5813 = vmatpush1.msra.mxu0 0.0
        %5814 = vmatprep.subr.mxu0 0.0
        %5815 = vmatpush1.msra.mxu0 0.0
        %5816 = vmatprep.subr.mxu0 0.0
        %5817 = vmatpush1.msra.mxu0 0.0
        %5818 = vmatprep.subr.mxu0 0.0
        %5819 = vmatpush1.msra.mxu0 0.0
        %5820 = vmatprep.subr.mxu0 0.0
        %5821 = vmatpush1.msra.mxu0 0.0
        %5822 = vmatprep.subr.mxu0 0.0
        %5823 = vmatpush1.msra.mxu0 0.0
        %5824 = vmatprep.subr.mxu0 0.0
        %5825 = vmatpush1.msra.mxu0 0.0
        %5826 = vmatprep.subr.mxu0 0.0
        %5827 = vmatpush1.msra.mxu0 0.0
        %5828 = vmatprep.subr.mxu0 0.0
        %5829 = vmatpush1.msra.mxu0 0.0
        %5830 = vmatprep.subr.mxu0 0.0
        %5831 = vmatpush1.msra.mxu0 0.0
        %5832 = vmatprep.subr.mxu0 0.0
        %5833 = vmatpush1.msra.mxu0 0.0
        %5834 = vmatprep.subr.mxu0 0.0
        %5835 = vmatpush1.msra.mxu0 0.0
        %5836 = vmatprep.subr.mxu0 0.0
        %5837 = vmatpush1.msra.mxu0 0.0
        %5838 = vmatprep.mubr.f32.mxu0 0.0
        %5839 = vmatmul.mubr.f32.gmra.mrb[0].mxu0 %v5772
        %v5840 = vpop.f32.mrb[0].mxu0
        %v5841 = vadd.f32 0.0, %v5840
        %v5842 = vpop.f32.mrb[0].mxu0
        %5843 = vdwg.mxu0
        %5844 = vrot.lane.b32.xlu0 %v5599, 120
        %v5845 = vpop.permute.xlu0 %5844
        %5846 = vrot.lane.b32.xlu0 %v5678, 120
        %v5847 = vpop.permute.xlu0 %5846
        %v5848 = vsel %vm465, %v5845, 0
        %v5850 = vsel %vm465, %v5847, 0
        %5852 = vmatprep.subr.mxu0 0.0
        %5853 = vmatpush1.xpose.msra.mxu0 %v5850
        %5854 = vmatprep.subr.mxu0 0.0
        %5855 = vmatpush1.xpose.msra.mxu0 0.0
        %5856 = vmatprep.subr.mxu0 0.0
        %5857 = vmatpush1.xpose.msra.mxu0 0.0
        %5858 = vmatprep.subr.mxu0 0.0
        %5859 = vmatpush1.xpose.msra.mxu0 0.0
        %5860 = vmatprep.subr.mxu0 0.0
        %5861 = vmatpush1.xpose.msra.mxu0 0.0
        %5862 = vmatprep.subr.mxu0 0.0
        %5863 = vmatpush1.xpose.msra.mxu0 0.0
        %5864 = vmatprep.subr.mxu0 0.0
        %5865 = vmatpush1.xpose.msra.mxu0 0.0
        %5866 = vmatprep.subr.mxu0 0.0
        %5867 = vmatpush1.xpose.msra.mxu0 0.0
        %5868 = vmatprep.subr.mxu0 0.0
        %5869 = vmatpush1.xpose.msra.mxu0 0.0
        %5870 = vmatprep.subr.mxu0 0.0
        %5871 = vmatpush1.xpose.msra.mxu0 0.0
        %5872 = vmatprep.subr.mxu0 0.0
        %5873 = vmatpush1.xpose.msra.mxu0 0.0
        %5874 = vmatprep.subr.mxu0 0.0
        %5875 = vmatpush1.xpose.msra.mxu0 0.0
        %5876 = vmatprep.subr.mxu0 0.0
        %5877 = vmatpush1.xpose.msra.mxu0 0.0
        %5878 = vmatprep.subr.mxu0 0.0
        %5879 = vmatpush1.xpose.msra.mxu0 0.0
        %5880 = vmatprep.subr.mxu0 0.0
        %5881 = vmatpush1.xpose.msra.mxu0 0.0
        %5882 = vmatprep.subr.mxu0 0.0
        %5883 = vmatpush1.xpose.msra.mxu0 0.0
        %5884 = vmatprep.subr.mxu0 0.0
        %5885 = vmatpush1.xpose.msra.mxu0 0.0
        %5886 = vmatprep.subr.mxu0 0.0
        %5887 = vmatpush1.xpose.msra.mxu0 0.0
        %5888 = vmatprep.subr.mxu0 0.0
        %5889 = vmatpush1.xpose.msra.mxu0 0.0
        %5890 = vmatprep.subr.mxu0 0.0
        %5891 = vmatpush1.xpose.msra.mxu0 0.0
        %5892 = vmatprep.subr.mxu0 0.0
        %5893 = vmatpush1.xpose.msra.mxu0 0.0
        %5894 = vmatprep.subr.mxu0 0.0
        %5895 = vmatpush1.xpose.msra.mxu0 0.0
        %5896 = vmatprep.subr.mxu0 0.0
        %5897 = vmatpush1.xpose.msra.mxu0 0.0
        %5898 = vmatprep.subr.mxu0 0.0
        %5899 = vmatpush1.xpose.msra.mxu0 0.0
        %5900 = vmatprep.subr.mxu0 0.0
        %5901 = vmatpush1.xpose.msra.mxu0 0.0
        %5902 = vmatprep.subr.mxu0 0.0
        %5903 = vmatpush1.xpose.msra.mxu0 0.0
        %5904 = vmatprep.subr.mxu0 0.0
        %5905 = vmatpush1.xpose.msra.mxu0 0.0
        %5906 = vmatprep.subr.mxu0 0.0
        %5907 = vmatpush1.xpose.msra.mxu0 0.0
        %5908 = vmatprep.subr.mxu0 0.0
        %5909 = vmatpush1.xpose.msra.mxu0 0.0
        %5910 = vmatprep.subr.mxu0 0.0
        %5911 = vmatpush1.xpose.msra.mxu0 0.0
        %5912 = vmatprep.subr.mxu0 0.0
        %5913 = vmatpush1.xpose.msra.mxu0 0.0
        %5914 = vmatprep.subr.mxu0 0.0
        %5915 = vmatpush1.xpose.msra.mxu0 0.0
        %5916 = vmatprep.mubr.f32.mxu0 0.0
        %5917 = vmatmul.mubr.f32.gmra.mrb[0].mxu0 %v5848
        %v5918 = vpop.f32.mrb[0].mxu0
        %v5919 = vadd.f32 %v460, %v5918
        %v5920 = vpop.f32.mrb[0].mxu0
        %5921 = vdwg.mxu0
        %v5922 = vsel %vm465, %v5919, -inf
        %5923 = vmax.xlane.f32.xlu0 %v5922
        %v5924 = vpop.xlane.xlu0 %5923
        %v5925 = vsub.f32 %v5919, %v5924
        %v5926 = vmul.f32 %v5925, 1.442695
        %v5927 = vpow.pop %v5926
        %v5928 = vsel %vm465, %v5927, 0.0
        %5929 = vadd.xlane.f32.xlu0 %v5928
        %v5930 = vpop.xlane.xlu0 %5929
        %v5931 = vrcp.pop %v5930
        %v5932 = vmul.f32 %v5927, %v5931
        %5933 = vrot.lane.b32.xlu0 %v5678, 88
        %v5934 = vpop.permute.xlu0 %5933
        %v5937 = vsel %vm465, %v5932, 0
        %5939 = vmatprep.subr.mxu0 0.0
        %5940 = vmatpush1.msra.mxu0 %v5934
        %5941 = vmatprep.subr.mxu0 0.0
        %5942 = vmatpush1.msra.mxu0 0.0
        %5943 = vmatprep.subr.mxu0 0.0
        %5944 = vmatpush1.msra.mxu0 0.0
        %5945 = vmatprep.subr.mxu0 0.0
        %5946 = vmatpush1.msra.mxu0 0.0
        %5947 = vmatprep.subr.mxu0 0.0
        %5948 = vmatpush1.msra.mxu0 0.0
        %5949 = vmatprep.subr.mxu0 0.0
        %5950 = vmatpush1.msra.mxu0 0.0
        %5951 = vmatprep.subr.mxu0 0.0
        %5952 = vmatpush1.msra.mxu0 0.0
        %5953 = vmatprep.subr.mxu0 0.0
        %5954 = vmatpush1.msra.mxu0 0.0
        %5955 = vmatprep.subr.mxu0 0.0
        %5956 = vmatpush1.msra.mxu0 0.0
        %5957 = vmatprep.subr.mxu0 0.0
        %5958 = vmatpush1.msra.mxu0 0.0
        %5959 = vmatprep.subr.mxu0 0.0
        %5960 = vmatpush1.msra.mxu0 0.0
        %5961 = vmatprep.subr.mxu0 0.0
        %5962 = vmatpush1.msra.mxu0 0.0
        %5963 = vmatprep.subr.mxu0 0.0
        %5964 = vmatpush1.msra.mxu0 0.0
        %5965 = vmatprep.subr.mxu0 0.0
        %5966 = vmatpush1.msra.mxu0 0.0
        %5967 = vmatprep.subr.mxu0 0.0
        %5968 = vmatpush1.msra.mxu0 0.0
        %5969 = vmatprep.subr.mxu0 0.0
        %5970 = vmatpush1.msra.mxu0 0.0
        %5971 = vmatprep.subr.mxu0 0.0
        %5972 = vmatpush1.msra.mxu0 0.0
        %5973 = vmatprep.subr.mxu0 0.0
        %5974 = vmatpush1.msra.mxu0 0.0
        %5975 = vmatprep.subr.mxu0 0.0
        %5976 = vmatpush1.msra.mxu0 0.0
        %5977 = vmatprep.subr.mxu0 0.0
        %5978 = vmatpush1.msra.mxu0 0.0
        %5979 = vmatprep.subr.mxu0 0.0
        %5980 = vmatpush1.msra.mxu0 0.0
        %5981 = vmatprep.subr.mxu0 0.0
        %5982 = vmatpush1.msra.mxu0 0.0
        %5983 = vmatprep.subr.mxu0 0.0
        %5984 = vmatpush1.msra.mxu0 0.0
        %5985 = vmatprep.subr.mxu0 0.0
        %5986 = vmatpush1.msra.mxu0 0.0
        %5987 = vmatprep.subr.mxu0 0.0
        %5988 = vmatpush1.msra.mxu0 0.0
        %5989 = vmatprep.subr.mxu0 0.0
        %5990 = vmatpush1.msra.mxu0 0.0
        %5991 = vmatprep.subr.mxu0 0.0
        %5992 = vmatpush1.msra.mxu0 0.0
        %5993 = vmatprep.subr.mxu0 0.0
        %5994 = vmatpush1.msra.mxu0 0.0
        %5995 = vmatprep.subr.mxu0 0.0
        %5996 = vmatpush1.msra.mxu0 0.0
        %5997 = vmatprep.subr.mxu0 0.0
        %5998 = vmatpush1.msra.mxu0 0.0
        %5999 = vmatprep.subr.mxu0 0.0
        %6000 = vmatpush1.msra.mxu0 0.0
        %6001 = vmatprep.subr.mxu0 0.0
        %6002 = vmatpush1.msra.mxu0 0.0
        %6003 = vmatprep.mubr.f32.mxu0 0.0
        %6004 = vmatmul.mubr.f32.gmra.mrb[0].mxu0 %v5937
        %v6005 = vpop.f32.mrb[0].mxu0
        %v6006 = vadd.f32 0.0, %v6005
        %v6007 = vpop.f32.mrb[0].mxu0
        %6008 = vdwg.mxu0
        %6009 = vrot.lane.b32.xlu0 %v5599, 112
        %v6010 = vpop.permute.xlu0 %6009
        %6011 = vrot.lane.b32.xlu0 %v5678, 112
        %v6012 = vpop.permute.xlu0 %6011
        %v6013 = vsel %vm465, %v6010, 0
        %v6015 = vsel %vm465, %v6012, 0
        %6017 = vmatprep.subr.mxu0 0.0
        %6018 = vmatpush1.xpose.msra.mxu0 %v6015
        %6019 = vmatprep.subr.mxu0 0.0
        %6020 = vmatpush1.xpose.msra.mxu0 0.0
        %6021 = vmatprep.subr.mxu0 0.0
        %6022 = vmatpush1.xpose.msra.mxu0 0.0
        %6023 = vmatprep.subr.mxu0 0.0
        %6024 = vmatpush1.xpose.msra.mxu0 0.0
        %6025 = vmatprep.subr.mxu0 0.0
        %6026 = vmatpush1.xpose.msra.mxu0 0.0
        %6027 = vmatprep.subr.mxu0 0.0
        %6028 = vmatpush1.xpose.msra.mxu0 0.0
        %6029 = vmatprep.subr.mxu0 0.0
        %6030 = vmatpush1.xpose.msra.mxu0 0.0
        %6031 = vmatprep.subr.mxu0 0.0
        %6032 = vmatpush1.xpose.msra.mxu0 0.0
        %6033 = vmatprep.subr.mxu0 0.0
        %6034 = vmatpush1.xpose.msra.mxu0 0.0
        %6035 = vmatprep.subr.mxu0 0.0
        %6036 = vmatpush1.xpose.msra.mxu0 0.0
        %6037 = vmatprep.subr.mxu0 0.0
        %6038 = vmatpush1.xpose.msra.mxu0 0.0
        %6039 = vmatprep.subr.mxu0 0.0
        %6040 = vmatpush1.xpose.msra.mxu0 0.0
        %6041 = vmatprep.subr.mxu0 0.0
        %6042 = vmatpush1.xpose.msra.mxu0 0.0
        %6043 = vmatprep.subr.mxu0 0.0
        %6044 = vmatpush1.xpose.msra.mxu0 0.0
        %6045 = vmatprep.subr.mxu0 0.0
        %6046 = vmatpush1.xpose.msra.mxu0 0.0
        %6047 = vmatprep.subr.mxu0 0.0
        %6048 = vmatpush1.xpose.msra.mxu0 0.0
        %6049 = vmatprep.subr.mxu0 0.0
        %6050 = vmatpush1.xpose.msra.mxu0 0.0
        %6051 = vmatprep.subr.mxu0 0.0
        %6052 = vmatpush1.xpose.msra.mxu0 0.0
        %6053 = vmatprep.subr.mxu0 0.0
        %6054 = vmatpush1.xpose.msra.mxu0 0.0
        %6055 = vmatprep.subr.mxu0 0.0
        %6056 = vmatpush1.xpose.msra.mxu0 0.0
        %6057 = vmatprep.subr.mxu0 0.0
        %6058 = vmatpush1.xpose.msra.mxu0 0.0
        %6059 = vmatprep.subr.mxu0 0.0
        %6060 = vmatpush1.xpose.msra.mxu0 0.0
        %6061 = vmatprep.subr.mxu0 0.0
        %6062 = vmatpush1.xpose.msra.mxu0 0.0
        %6063 = vmatprep.subr.mxu0 0.0
        %6064 = vmatpush1.xpose.msra.mxu0 0.0
        %6065 = vmatprep.subr.mxu0 0.0
        %6066 = vmatpush1.xpose.msra.mxu0 0.0
        %6067 = vmatprep.subr.mxu0 0.0
        %6068 = vmatpush1.xpose.msra.mxu0 0.0
        %6069 = vmatprep.subr.mxu0 0.0
        %6070 = vmatpush1.xpose.msra.mxu0 0.0
        %6071 = vmatprep.subr.mxu0 0.0
        %6072 = vmatpush1.xpose.msra.mxu0 0.0
        %6073 = vmatprep.subr.mxu0 0.0
        %6074 = vmatpush1.xpose.msra.mxu0 0.0
        %6075 = vmatprep.subr.mxu0 0.0
        %6076 = vmatpush1.xpose.msra.mxu0 0.0
        %6077 = vmatprep.subr.mxu0 0.0
        %6078 = vmatpush1.xpose.msra.mxu0 0.0
        %6079 = vmatprep.subr.mxu0 0.0
        %6080 = vmatpush1.xpose.msra.mxu0 0.0
        %6081 = vmatprep.mubr.f32.mxu0 0.0
        %6082 = vmatmul.mubr.f32.gmra.mrb[0].mxu0 %v6013
        %v6083 = vpop.f32.mrb[0].mxu0
        %v6084 = vadd.f32 %v460, %v6083
        %v6085 = vpop.f32.mrb[0].mxu0
        %6086 = vdwg.mxu0
        %v6087 = vsel %vm465, %v6084, -inf
        %6088 = vmax.xlane.f32.xlu0 %v6087
        %v6089 = vpop.xlane.xlu0 %6088
        %v6090 = vsub.f32 %v6084, %v6089
        %v6091 = vmul.f32 %v6090, 1.442695
        %v6092 = vpow.pop %v6091
        %v6093 = vsel %vm465, %v6092, 0.0
        %6094 = vadd.xlane.f32.xlu0 %v6093
        %v6095 = vpop.xlane.xlu0 %6094
        %v6096 = vrcp.pop %v6095
        %v6097 = vmul.f32 %v6092, %v6096
        %6098 = vrot.lane.b32.xlu0 %v5678, 80
        %v6099 = vpop.permute.xlu0 %6098
        %v6102 = vsel %vm465, %v6097, 0
        %6104 = vmatprep.subr.mxu0 0.0
        %6105 = vmatpush1.msra.mxu0 %v6099
        %6106 = vmatprep.subr.mxu0 0.0
        %6107 = vmatpush1.msra.mxu0 0.0
        %6108 = vmatprep.subr.mxu0 0.0
        %6109 = vmatpush1.msra.mxu0 0.0
        %6110 = vmatprep.subr.mxu0 0.0
        %6111 = vmatpush1.msra.mxu0 0.0
        %6112 = vmatprep.subr.mxu0 0.0
        %6113 = vmatpush1.msra.mxu0 0.0
        %6114 = vmatprep.subr.mxu0 0.0
        %6115 = vmatpush1.msra.mxu0 0.0
        %6116 = vmatprep.subr.mxu0 0.0
        %6117 = vmatpush1.msra.mxu0 0.0
        %6118 = vmatprep.subr.mxu0 0.0
        %6119 = vmatpush1.msra.mxu0 0.0
        %6120 = vmatprep.subr.mxu0 0.0
        %6121 = vmatpush1.msra.mxu0 0.0
        %6122 = vmatprep.subr.mxu0 0.0
        %6123 = vmatpush1.msra.mxu0 0.0
        %6124 = vmatprep.subr.mxu0 0.0
        %6125 = vmatpush1.msra.mxu0 0.0
        %6126 = vmatprep.subr.mxu0 0.0
        %6127 = vmatpush1.msra.mxu0 0.0
        %6128 = vmatprep.subr.mxu0 0.0
        %6129 = vmatpush1.msra.mxu0 0.0
        %6130 = vmatprep.subr.mxu0 0.0
        %6131 = vmatpush1.msra.mxu0 0.0
        %6132 = vmatprep.subr.mxu0 0.0
        %6133 = vmatpush1.msra.mxu0 0.0
        %6134 = vmatprep.subr.mxu0 0.0
        %6135 = vmatpush1.msra.mxu0 0.0
        %6136 = vmatprep.subr.mxu0 0.0
        %6137 = vmatpush1.msra.mxu0 0.0
        %6138 = vmatprep.subr.mxu0 0.0
        %6139 = vmatpush1.msra.mxu0 0.0
        %6140 = vmatprep.subr.mxu0 0.0
        %6141 = vmatpush1.msra.mxu0 0.0
        %6142 = vmatprep.subr.mxu0 0.0
        %6143 = vmatpush1.msra.mxu0 0.0
        %6144 = vmatprep.subr.mxu0 0.0
        %6145 = vmatpush1.msra.mxu0 0.0
        %6146 = vmatprep.subr.mxu0 0.0
        %6147 = vmatpush1.msra.mxu0 0.0
        %6148 = vmatprep.subr.mxu0 0.0
        %6149 = vmatpush1.msra.mxu0 0.0
        %6150 = vmatprep.subr.mxu0 0.0
        %6151 = vmatpush1.msra.mxu0 0.0
        %6152 = vmatprep.subr.mxu0 0.0
        %6153 = vmatpush1.msra.mxu0 0.0
        %6154 = vmatprep.subr.mxu0 0.0
        %6155 = vmatpush1.msra.mxu0 0.0
        %6156 = vmatprep.subr.mxu0 0.0
        %6157 = vmatpush1.msra.mxu0 0.0
        %6158 = vmatprep.subr.mxu0 0.0
        %6159 = vmatpush1.msra.mxu0 0.0
        %6160 = vmatprep.subr.mxu0 0.0
        %6161 = vmatpush1.msra.mxu0 0.0
        %6162 = vmatprep.subr.mxu0 0.0
        %6163 = vmatpush1.msra.mxu0 0.0
        %6164 = vmatprep.subr.mxu0 0.0
        %6165 = vmatpush1.msra.mxu0 0.0
        %6166 = vmatprep.subr.mxu0 0.0
        %6167 = vmatpush1.msra.mxu0 0.0
        %6168 = vmatprep.mubr.f32.mxu0 0.0
        %6169 = vmatmul.mubr.f32.gmra.mrb[0].mxu0 %v6102
        %v6170 = vpop.f32.mrb[0].mxu0
        %v6171 = vadd.f32 0.0, %v6170
        %v6172 = vpop.f32.mrb[0].mxu0
        %6173 = vdwg.mxu0
        %6174 = vrot.lane.b32.xlu0 %v5599, 104
        %v6175 = vpop.permute.xlu0 %6174
        %6176 = vrot.lane.b32.xlu0 %v5678, 104
        %v6177 = vpop.permute.xlu0 %6176
        %v6178 = vsel %vm465, %v6175, 0
        %v6180 = vsel %vm465, %v6177, 0
        %6182 = vmatprep.subr.mxu0 0.0
        %6183 = vmatpush1.xpose.msra.mxu0 %v6180
        %6184 = vmatprep.subr.mxu0 0.0
        %6185 = vmatpush1.xpose.msra.mxu0 0.0
        %6186 = vmatprep.subr.mxu0 0.0
        %6187 = vmatpush1.xpose.msra.mxu0 0.0
        %6188 = vmatprep.subr.mxu0 0.0
        %6189 = vmatpush1.xpose.msra.mxu0 0.0
        %6190 = vmatprep.subr.mxu0 0.0
        %6191 = vmatpush1.xpose.msra.mxu0 0.0
        %6192 = vmatprep.subr.mxu0 0.0
        %6193 = vmatpush1.xpose.msra.mxu0 0.0
        %6194 = vmatprep.subr.mxu0 0.0
        %6195 = vmatpush1.xpose.msra.mxu0 0.0
        %6196 = vmatprep.subr.mxu0 0.0
        %6197 = vmatpush1.xpose.msra.mxu0 0.0
        %6198 = vmatprep.subr.mxu0 0.0
        %6199 = vmatpush1.xpose.msra.mxu0 0.0
        %6200 = vmatprep.subr.mxu0 0.0
        %6201 = vmatpush1.xpose.msra.mxu0 0.0
        %6202 = vmatprep.subr.mxu0 0.0
        %6203 = vmatpush1.xpose.msra.mxu0 0.0
        %6204 = vmatprep.subr.mxu0 0.0
        %6205 = vmatpush1.xpose.msra.mxu0 0.0
        %6206 = vmatprep.subr.mxu0 0.0
        %6207 = vmatpush1.xpose.msra.mxu0 0.0
        %6208 = vmatprep.subr.mxu0 0.0
        %6209 = vmatpush1.xpose.msra.mxu0 0.0
        %6210 = vmatprep.subr.mxu0 0.0
        %6211 = vmatpush1.xpose.msra.mxu0 0.0
        %6212 = vmatprep.subr.mxu0 0.0
        %6213 = vmatpush1.xpose.msra.mxu0 0.0
        %6214 = vmatprep.subr.mxu0 0.0
        %6215 = vmatpush1.xpose.msra.mxu0 0.0
        %6216 = vmatprep.subr.mxu0 0.0
        %6217 = vmatpush1.xpose.msra.mxu0 0.0
        %6218 = vmatprep.subr.mxu0 0.0
        %6219 = vmatpush1.xpose.msra.mxu0 0.0
        %6220 = vmatprep.subr.mxu0 0.0
        %6221 = vmatpush1.xpose.msra.mxu0 0.0
        %6222 = vmatprep.subr.mxu0 0.0
        %6223 = vmatpush1.xpose.msra.mxu0 0.0
        %6224 = vmatprep.subr.mxu0 0.0
        %6225 = vmatpush1.xpose.msra.mxu0 0.0
        %6226 = vmatprep.subr.mxu0 0.0
        %6227 = vmatpush1.xpose.msra.mxu0 0.0
        %6228 = vmatprep.subr.mxu0 0.0
        %6229 = vmatpush1.xpose.msra.mxu0 0.0
        %6230 = vmatprep.subr.mxu0 0.0
        %6231 = vmatpush1.xpose.msra.mxu0 0.0
        %6232 = vmatprep.subr.mxu0 0.0
        %6233 = vmatpush1.xpose.msra.mxu0 0.0
        %6234 = vmatprep.subr.mxu0 0.0
        %6235 = vmatpush1.xpose.msra.mxu0 0.0
        %6236 = vmatprep.subr.mxu0 0.0
        %6237 = vmatpush1.xpose.msra.mxu0 0.0
        %6238 = vmatprep.subr.mxu0 0.0
        %6239 = vmatpush1.xpose.msra.mxu0 0.0
        %6240 = vmatprep.subr.mxu0 0.0
        %6241 = vmatpush1.xpose.msra.mxu0 0.0
        %6242 = vmatprep.subr.mxu0 0.0
        %6243 = vmatpush1.xpose.msra.mxu0 0.0
        %6244 = vmatprep.subr.mxu0 0.0
        %6245 = vmatpush1.xpose.msra.mxu0 0.0
        %6246 = vmatprep.mubr.f32.mxu0 0.0
        %6247 = vmatmul.mubr.f32.gmra.mrb[0].mxu0 %v6178
        %v6248 = vpop.f32.mrb[0].mxu0
        %v6249 = vadd.f32 %v460, %v6248
        %v6250 = vpop.f32.mrb[0].mxu0
        %6251 = vdwg.mxu0
        %v6252 = vsel %vm465, %v6249, -inf
        %6253 = vmax.xlane.f32.xlu0 %v6252
        %v6254 = vpop.xlane.xlu0 %6253
        %v6255 = vsub.f32 %v6249, %v6254
        %v6256 = vmul.f32 %v6255, 1.442695
        %v6257 = vpow.pop %v6256
        %v6258 = vsel %vm465, %v6257, 0.0
        %6259 = vadd.xlane.f32.xlu0 %v6258
        %v6260 = vpop.xlane.xlu0 %6259
        %v6261 = vrcp.pop %v6260
        %v6262 = vmul.f32 %v6257, %v6261
        %6263 = vrot.lane.b32.xlu0 %v5678, 72
        %v6264 = vpop.permute.xlu0 %6263
        %v6267 = vsel %vm465, %v6262, 0
        %6269 = vmatprep.subr.mxu0 0.0
        %6270 = vmatpush1.msra.mxu0 %v6264
        %6271 = vmatprep.subr.mxu0 0.0
        %6272 = vmatpush1.msra.mxu0 0.0
        %6273 = vmatprep.subr.mxu0 0.0
        %6274 = vmatpush1.msra.mxu0 0.0
        %6275 = vmatprep.subr.mxu0 0.0
        %6276 = vmatpush1.msra.mxu0 0.0
        %6277 = vmatprep.subr.mxu0 0.0
        %6278 = vmatpush1.msra.mxu0 0.0
        %6279 = vmatprep.subr.mxu0 0.0
        %6280 = vmatpush1.msra.mxu0 0.0
        %6281 = vmatprep.subr.mxu0 0.0
        %6282 = vmatpush1.msra.mxu0 0.0
        %6283 = vmatprep.subr.mxu0 0.0
        %6284 = vmatpush1.msra.mxu0 0.0
        %6285 = vmatprep.subr.mxu0 0.0
        %6286 = vmatpush1.msra.mxu0 0.0
        %6287 = vmatprep.subr.mxu0 0.0
        %6288 = vmatpush1.msra.mxu0 0.0
        %6289 = vmatprep.subr.mxu0 0.0
        %6290 = vmatpush1.msra.mxu0 0.0
        %6291 = vmatprep.subr.mxu0 0.0
        %6292 = vmatpush1.msra.mxu0 0.0
        %6293 = vmatprep.subr.mxu0 0.0
        %6294 = vmatpush1.msra.mxu0 0.0
        %6295 = vmatprep.subr.mxu0 0.0
        %6296 = vmatpush1.msra.mxu0 0.0
        %6297 = vmatprep.subr.mxu0 0.0
        %6298 = vmatpush1.msra.mxu0 0.0
        %6299 = vmatprep.subr.mxu0 0.0
        %6300 = vmatpush1.msra.mxu0 0.0
        %6301 = vmatprep.subr.mxu0 0.0
        %6302 = vmatpush1.msra.mxu0 0.0
        %6303 = vmatprep.subr.mxu0 0.0
        %6304 = vmatpush1.msra.mxu0 0.0
        %6305 = vmatprep.subr.mxu0 0.0
        %6306 = vmatpush1.msra.mxu0 0.0
        %6307 = vmatprep.subr.mxu0 0.0
        %6308 = vmatpush1.msra.mxu0 0.0
        %6309 = vmatprep.subr.mxu0 0.0
        %6310 = vmatpush1.msra.mxu0 0.0
        %6311 = vmatprep.subr.mxu0 0.0
        %6312 = vmatpush1.msra.mxu0 0.0
        %6313 = vmatprep.subr.mxu0 0.0
        %6314 = vmatpush1.msra.mxu0 0.0
        %6315 = vmatprep.subr.mxu0 0.0
        %6316 = vmatpush1.msra.mxu0 0.0
        %6317 = vmatprep.subr.mxu0 0.0
        %6318 = vmatpush1.msra.mxu0 0.0
        %6319 = vmatprep.subr.mxu0 0.0
        %6320 = vmatpush1.msra.mxu0 0.0
        %6321 = vmatprep.subr.mxu0 0.0
        %6322 = vmatpush1.msra.mxu0 0.0
        %6323 = vmatprep.subr.mxu0 0.0
        %6324 = vmatpush1.msra.mxu0 0.0
        %6325 = vmatprep.subr.mxu0 0.0
        %6326 = vmatpush1.msra.mxu0 0.0
        %6327 = vmatprep.subr.mxu0 0.0
        %6328 = vmatpush1.msra.mxu0 0.0
        %6329 = vmatprep.subr.mxu0 0.0
        %6330 = vmatpush1.msra.mxu0 0.0
        %6331 = vmatprep.subr.mxu0 0.0
        %6332 = vmatpush1.msra.mxu0 0.0
        %6333 = vmatprep.mubr.f32.mxu0 0.0
        %6334 = vmatmul.mubr.f32.gmra.mrb[0].mxu0 %v6267
        %v6335 = vpop.f32.mrb[0].mxu0
        %v6336 = vadd.f32 0.0, %v6335
        %v6337 = vpop.f32.mrb[0].mxu0
        %6338 = vdwg.mxu0
        %6340 = vrot.lane.b32.xlu0 %v6006, 8
        %v6341 = vpop.permute.xlu0 %6340
        %6344 = vrot.lane.b32.xlu0 %v6171, 16
        %v6345 = vpop.permute.xlu0 %6344
        %6348 = vrot.lane.b32.xlu0 %v6336, 24
        %v6349 = vpop.permute.xlu0 %6348
        %v6351 = vsel %vm465, %v5841, %v6341
        %v6352 = vsel %vm1135, %v6351, %v6345
        %v6353 = vsel %vm1137, %v6352, %v6349
        %v6354 = vld [vmem:[#allocation5 + $0x370] sm:$0xff]
        %v6355 = vld [vmem:[#allocation5 + $0x378] sm:$0xff]
        %v6356 = vld [vmem:[#allocation5 + $0x380] sm:$0xff]
        %v6357 = vld [vmem:[#allocation5 + $0x388] sm:$0xff]
        %v6358 = vld [vmem:[#allocation8 + $0x138] sm:$0x1]
        %v6359 = vlaneseq
        %v6360 = vshrl.u32 %v6359, 7
        %v6361 = vsub.s32 0, %v6360
        %v6362 = vrot.slane %v6358, %v6361
        %v6364 = vsel %vm340, %v6353, 0
        %6366 = vmatprep.subr.mxu0 0.0
        %6367 = vmatpush1.msra.mxu0 %v6354
        %6368 = vmatprep.subr.mxu0 0.0
        %6369 = vmatpush1.msra.mxu0 %v6355
        %6370 = vmatprep.subr.mxu0 0.0
        %6371 = vmatpush1.msra.mxu0 %v6356
        %6372 = vmatprep.subr.mxu0 0.0
        %6373 = vmatpush1.msra.mxu0 %v6357
        %6374 = vmatprep.subr.mxu0 0.0
        %6375 = vmatpush1.msra.mxu0 0.0
        %6376 = vmatprep.subr.mxu0 0.0
        %6377 = vmatpush1.msra.mxu0 0.0
        %6378 = vmatprep.subr.mxu0 0.0
        %6379 = vmatpush1.msra.mxu0 0.0
        %6380 = vmatprep.subr.mxu0 0.0
        %6381 = vmatpush1.msra.mxu0 0.0
        %6382 = vmatprep.subr.mxu0 0.0
        %6383 = vmatpush1.msra.mxu0 0.0
        %6384 = vmatprep.subr.mxu0 0.0
        %6385 = vmatpush1.msra.mxu0 0.0
        %6386 = vmatprep.subr.mxu0 0.0
        %6387 = vmatpush1.msra.mxu0 0.0
        %6388 = vmatprep.subr.mxu0 0.0
        %6389 = vmatpush1.msra.mxu0 0.0
        %6390 = vmatprep.subr.mxu0 0.0
        %6391 = vmatpush1.msra.mxu0 0.0
        %6392 = vmatprep.subr.mxu0 0.0
        %6393 = vmatpush1.msra.mxu0 0.0
        %6394 = vmatprep.subr.mxu0 0.0
        %6395 = vmatpush1.msra.mxu0 0.0
        %6396 = vmatprep.subr.mxu0 0.0
        %6397 = vmatpush1.msra.mxu0 0.0
        %6398 = vmatprep.subr.mxu0 0.0
        %6399 = vmatpush1.msra.mxu0 0.0
        %6400 = vmatprep.subr.mxu0 0.0
        %6401 = vmatpush1.msra.mxu0 0.0
        %6402 = vmatprep.subr.mxu0 0.0
        %6403 = vmatpush1.msra.mxu0 0.0
        %6404 = vmatprep.subr.mxu0 0.0
        %6405 = vmatpush1.msra.mxu0 0.0
        %6406 = vmatprep.subr.mxu0 0.0
        %6407 = vmatpush1.msra.mxu0 0.0
        %6408 = vmatprep.subr.mxu0 0.0
        %6409 = vmatpush1.msra.mxu0 0.0
        %6410 = vmatprep.subr.mxu0 0.0
        %6411 = vmatpush1.msra.mxu0 0.0
        %6412 = vmatprep.subr.mxu0 0.0
        %6413 = vmatpush1.msra.mxu0 0.0
        %6414 = vmatprep.subr.mxu0 0.0
        %6415 = vmatpush1.msra.mxu0 0.0
        %6416 = vmatprep.subr.mxu0 0.0
        %6417 = vmatpush1.msra.mxu0 0.0
        %6418 = vmatprep.subr.mxu0 0.0
        %6419 = vmatpush1.msra.mxu0 0.0
        %6420 = vmatprep.subr.mxu0 0.0
        %6421 = vmatpush1.msra.mxu0 0.0
        %6422 = vmatprep.subr.mxu0 0.0
        %6423 = vmatpush1.msra.mxu0 0.0
        %6424 = vmatprep.subr.mxu0 0.0
        %6425 = vmatpush1.msra.mxu0 0.0
        %6426 = vmatprep.subr.mxu0 0.0
        %6427 = vmatpush1.msra.mxu0 0.0
        %6428 = vmatprep.subr.mxu0 0.0
        %6429 = vmatpush1.msra.mxu0 0.0
        %6430 = vmatprep.mubr.f32.mxu0 0.0
        %6431 = vmatmul.mubr.f32.gmra.mrb[0].mxu0 %v6364
        %v6432 = vpop.f32.mrb[0].mxu0
        %v6433 = vadd.f32 %v6362, %v6432
        %v6434 = vpop.f32.mrb[0].mxu0
        %6435 = vdwg.mxu0
        %v6436 = vadd.f32 %v5487, %v6433
        %v6437 = vsel %vm340, %v6436, 0.0
        %6438 = vadd.xlane.f32.xlu0 %v6437
        %v6439 = vpop.xlane.xlu0 %6438
        %v6440 = vmul.f32 %v6439, %v344
        %v6441 = vsub.f32 %v6436, %v6440
        %v6442 = vmul.f32 %v6441, %v6441
        %v6443 = vsel %vm340, %v6442, 0.0
        %6444 = vadd.xlane.f32.xlu0 %v6443
        %v6445 = vpop.xlane.xlu0 %6444
        %v6446 = vmul.f32 %v6445, 0.032258064
        %v6447 = vrsqrt.pop %v6446
        %v6448 = vmul.f32 %v6446, %v6447
        %vm6449 = vcmp.eq.f32.partialorder %v6446, inf
        %v6450 = vsel %vm6449, %v6446, %v6448
        %vm6451 = vcmp.eq.f32.partialorder %v6446, 0.0
        %v6452 = vand.u32 %v6446, 2147483648
        %v6453 = vsel %vm6451, %v6452, %v6450
        %v6454 = vld [vmem:[#allocation8 + $0x140] sm:$0x1]
        %v6455 = vlaneseq
        %v6456 = vshrl.u32 %v6455, 7
        %v6457 = vsub.s32 0, %v6456
        %v6458 = vrot.slane %v6454, %v6457
        %v6459 = vmul.f32 %v6458, %v6441
        %v6460 = vadd.f32 %v6453, 1e-06
        %v6461 = vrcp.pop %v6460
        %v6462 = vmul.f32 %v6459, %v6461
        %v6463 = vld [vmem:[#allocation8 + $0x148] sm:$0x1]
        %v6464 = vlaneseq
        %v6465 = vshrl.u32 %v6464, 7
        %v6466 = vsub.s32 0, %v6465
        %v6467 = vrot.slane %v6463, %v6466
        %v6468 = vadd.f32 %v6462, %v6467
        %v6469 = vld [vmem:[#allocation5 + $0x390] sm:$0xff]
        %v6470 = vld [vmem:[#allocation5 + $0x398] sm:$0xff]
        %v6471 = vld [vmem:[#allocation5 + $0x3a0] sm:$0xff]
        %v6472 = vld [vmem:[#allocation5 + $0x3a8] sm:$0xff]
        %v6473 = vld [vmem:[#allocation8 + $0x150] sm:$0x1]
        %v6474 = vlaneseq
        %v6475 = vshrl.u32 %v6474, 7
        %v6476 = vsub.s32 0, %v6475
        %v6477 = vrot.slane %v6473, %v6476
        %v6479 = vsel %vm340, %v6468, 0
        %6481 = vmatprep.subr.mxu0 0.0
        %6482 = vmatpush1.msra.mxu0 %v6469
        %6483 = vmatprep.subr.mxu0 0.0
        %6484 = vmatpush1.msra.mxu0 %v6470
        %6485 = vmatprep.subr.mxu0 0.0
        %6486 = vmatpush1.msra.mxu0 %v6471
        %6487 = vmatprep.subr.mxu0 0.0
        %6488 = vmatpush1.msra.mxu0 %v6472
        %6489 = vmatprep.subr.mxu0 0.0
        %6490 = vmatpush1.msra.mxu0 0.0
        %6491 = vmatprep.subr.mxu0 0.0
        %6492 = vmatpush1.msra.mxu0 0.0
        %6493 = vmatprep.subr.mxu0 0.0
        %6494 = vmatpush1.msra.mxu0 0.0
        %6495 = vmatprep.subr.mxu0 0.0
        %6496 = vmatpush1.msra.mxu0 0.0
        %6497 = vmatprep.subr.mxu0 0.0
        %6498 = vmatpush1.msra.mxu0 0.0
        %6499 = vmatprep.subr.mxu0 0.0
        %6500 = vmatpush1.msra.mxu0 0.0
        %6501 = vmatprep.subr.mxu0 0.0
        %6502 = vmatpush1.msra.mxu0 0.0
        %6503 = vmatprep.subr.mxu0 0.0
        %6504 = vmatpush1.msra.mxu0 0.0
        %6505 = vmatprep.subr.mxu0 0.0
        %6506 = vmatpush1.msra.mxu0 0.0
        %6507 = vmatprep.subr.mxu0 0.0
        %6508 = vmatpush1.msra.mxu0 0.0
        %6509 = vmatprep.subr.mxu0 0.0
        %6510 = vmatpush1.msra.mxu0 0.0
        %6511 = vmatprep.subr.mxu0 0.0
        %6512 = vmatpush1.msra.mxu0 0.0
        %6513 = vmatprep.subr.mxu0 0.0
        %6514 = vmatpush1.msra.mxu0 0.0
        %6515 = vmatprep.subr.mxu0 0.0
        %6516 = vmatpush1.msra.mxu0 0.0
        %6517 = vmatprep.subr.mxu0 0.0
        %6518 = vmatpush1.msra.mxu0 0.0
        %6519 = vmatprep.subr.mxu0 0.0
        %6520 = vmatpush1.msra.mxu0 0.0
        %6521 = vmatprep.subr.mxu0 0.0
        %6522 = vmatpush1.msra.mxu0 0.0
        %6523 = vmatprep.subr.mxu0 0.0
        %6524 = vmatpush1.msra.mxu0 0.0
        %6525 = vmatprep.subr.mxu0 0.0
        %6526 = vmatpush1.msra.mxu0 0.0
        %6527 = vmatprep.subr.mxu0 0.0
        %6528 = vmatpush1.msra.mxu0 0.0
        %6529 = vmatprep.subr.mxu0 0.0
        %6530 = vmatpush1.msra.mxu0 0.0
        %6531 = vmatprep.subr.mxu0 0.0
        %6532 = vmatpush1.msra.mxu0 0.0
        %6533 = vmatprep.subr.mxu0 0.0
        %6534 = vmatpush1.msra.mxu0 0.0
        %6535 = vmatprep.subr.mxu0 0.0
        %6536 = vmatpush1.msra.mxu0 0.0
        %6537 = vmatprep.subr.mxu0 0.0
        %6538 = vmatpush1.msra.mxu0 0.0
        %6539 = vmatprep.subr.mxu0 0.0
        %6540 = vmatpush1.msra.mxu0 0.0
        %6541 = vmatprep.subr.mxu0 0.0
        %6542 = vmatpush1.msra.mxu0 0.0
        %6543 = vmatprep.subr.mxu0 0.0
        %6544 = vmatpush1.msra.mxu0 0.0
        %6545 = vmatprep.mubr.f32.mxu0 0.0
        %6546 = vmatmul.mubr.f32.gmra.mrb[0].mxu0 %v6479
        %v6547 = vpop.f32.mrb[0].mxu0
        %v6548 = vadd.f32 %v6477, %v6547
        %v6549 = vpop.f32.mrb[0].mxu0
        %6550 = vdwg.mxu0
        %v6551 = vmax.f32 %v6548, 0.0
        %v6552 = vld [vmem:[#allocation5 + $0x3b0] sm:$0xff]
        %v6553 = vld [vmem:[#allocation5 + $0x3b8] sm:$0xff]
        %v6554 = vld [vmem:[#allocation5 + $0x3c0] sm:$0xff]
        %v6555 = vld [vmem:[#allocation5 + $0x3c8] sm:$0xff]
        %v6556 = vld [vmem:[#allocation5 + $0x3d0] sm:$0xff]
        %v6557 = vld [vmem:[#allocation5 + $0x3d8] sm:$0xff]
        %v6558 = vld [vmem:[#allocation5 + $0x3e0] sm:$0xff]
        %v6559 = vld [vmem:[#allocation5 + $0x3e8] sm:$0xff]
        %v6560 = vld [vmem:[#allocation8 + $0x158] sm:$0x1]
        %v6561 = vlaneseq
        %v6562 = vshrl.u32 %v6561, 7
        %v6563 = vsub.s32 0, %v6562
        %v6564 = vrot.slane %v6560, %v6563
        %v6566 = vsel %vm1350, %v6551, 0
        %6568 = vmatprep.subr.mxu0 0.0
        %6569 = vmatpush1.msra.mxu0 %v6552
        %6570 = vmatprep.subr.mxu0 0.0
        %6571 = vmatpush1.msra.mxu0 %v6553
        %6572 = vmatprep.subr.mxu0 0.0
        %6573 = vmatpush1.msra.mxu0 %v6554
        %6574 = vmatprep.subr.mxu0 0.0
        %6575 = vmatpush1.msra.mxu0 %v6555
        %6576 = vmatprep.subr.mxu0 0.0
        %6577 = vmatpush1.msra.mxu0 %v6556
        %6578 = vmatprep.subr.mxu0 0.0
        %6579 = vmatpush1.msra.mxu0 %v6557
        %6580 = vmatprep.subr.mxu0 0.0
        %6581 = vmatpush1.msra.mxu0 %v6558
        %6582 = vmatprep.subr.mxu0 0.0
        %6583 = vmatpush1.msra.mxu0 %v6559
        %6584 = vmatprep.subr.mxu0 0.0
        %6585 = vmatpush1.msra.mxu0 0.0
        %6586 = vmatprep.subr.mxu0 0.0
        %6587 = vmatpush1.msra.mxu0 0.0
        %6588 = vmatprep.subr.mxu0 0.0
        %6589 = vmatpush1.msra.mxu0 0.0
        %6590 = vmatprep.subr.mxu0 0.0
        %6591 = vmatpush1.msra.mxu0 0.0
        %6592 = vmatprep.subr.mxu0 0.0
        %6593 = vmatpush1.msra.mxu0 0.0
        %6594 = vmatprep.subr.mxu0 0.0
        %6595 = vmatpush1.msra.mxu0 0.0
        %6596 = vmatprep.subr.mxu0 0.0
        %6597 = vmatpush1.msra.mxu0 0.0
        %6598 = vmatprep.subr.mxu0 0.0
        %6599 = vmatpush1.msra.mxu0 0.0
        %6600 = vmatprep.subr.mxu0 0.0
        %6601 = vmatpush1.msra.mxu0 0.0
        %6602 = vmatprep.subr.mxu0 0.0
        %6603 = vmatpush1.msra.mxu0 0.0
        %6604 = vmatprep.subr.mxu0 0.0
        %6605 = vmatpush1.msra.mxu0 0.0
        %6606 = vmatprep.subr.mxu0 0.0
        %6607 = vmatpush1.msra.mxu0 0.0
        %6608 = vmatprep.subr.mxu0 0.0
        %6609 = vmatpush1.msra.mxu0 0.0
        %6610 = vmatprep.subr.mxu0 0.0
        %6611 = vmatpush1.msra.mxu0 0.0
        %6612 = vmatprep.subr.mxu0 0.0
        %6613 = vmatpush1.msra.mxu0 0.0
        %6614 = vmatprep.subr.mxu0 0.0
        %6615 = vmatpush1.msra.mxu0 0.0
        %6616 = vmatprep.subr.mxu0 0.0
        %6617 = vmatpush1.msra.mxu0 0.0
        %6618 = vmatprep.subr.mxu0 0.0
        %6619 = vmatpush1.msra.mxu0 0.0
        %6620 = vmatprep.subr.mxu0 0.0
        %6621 = vmatpush1.msra.mxu0 0.0
        %6622 = vmatprep.subr.mxu0 0.0
        %6623 = vmatpush1.msra.mxu0 0.0
        %6624 = vmatprep.subr.mxu0 0.0
        %6625 = vmatpush1.msra.mxu0 0.0
        %6626 = vmatprep.subr.mxu0 0.0
        %6627 = vmatpush1.msra.mxu0 0.0
        %6628 = vmatprep.subr.mxu0 0.0
        %6629 = vmatpush1.msra.mxu0 0.0
        %6630 = vmatprep.subr.mxu0 0.0
        %6631 = vmatpush1.msra.mxu0 0.0
        %6632 = vmatprep.mubr.f32.mxu0 0.0
        %6633 = vmatmul.mubr.f32.gmra.mrb[0].mxu0 %v6566
        %v6634 = vpop.f32.mrb[0].mxu0
        %v6635 = vadd.f32 %v6564, %v6634
        %v6636 = vpop.f32.mrb[0].mxu0
        %6637 = vdwg.mxu0
        %v6638 = vadd.f32 %v6436, %v6635
        %v6639 = vsel %vm340, %v6638, 0.0
        %6640 = vadd.xlane.f32.xlu0 %v6639
        %v6641 = vpop.xlane.xlu0 %6640
        %v6642 = vmul.f32 %v6641, %v344
        %v6643 = vsub.f32 %v6638, %v6642
        %v6644 = vmul.f32 %v6643, %v6643
        %v6645 = vsel %vm340, %v6644, 0.0
        %6646 = vadd.xlane.f32.xlu0 %v6645
        %v6647 = vpop.xlane.xlu0 %6646
        %v6648 = vmul.f32 %v6647, 0.032258064
        %v6649 = vrsqrt.pop %v6648
        %v6650 = vmul.f32 %v6648, %v6649
        %vm6651 = vcmp.eq.f32.partialorder %v6648, inf
        %v6652 = vsel %vm6651, %v6648, %v6650
        %vm6653 = vcmp.eq.f32.partialorder %v6648, 0.0
        %v6654 = vand.u32 %v6648, 2147483648
        %v6655 = vsel %vm6653, %v6654, %v6652
        %v6656 = vld [vmem:[#allocation8 + $0x160] sm:$0x1]
        %v6657 = vlaneseq
        %v6658 = vshrl.u32 %v6657, 7
        %v6659 = vsub.s32 0, %v6658
        %v6660 = vrot.slane %v6656, %v6659
        %v6661 = vmul.f32 %v6660, %v6643
        %v6662 = vadd.f32 %v6655, 1e-06
        %v6663 = vrcp.pop %v6662
        %v6664 = vmul.f32 %v6661, %v6663
        %v6665 = vld [vmem:[#allocation8 + $0x168] sm:$0x1]
        %v6666 = vlaneseq
        %v6667 = vshrl.u32 %v6666, 7
        %v6668 = vsub.s32 0, %v6667
        %v6669 = vrot.slane %v6665, %v6668
        %v6670 = vadd.f32 %v6664, %v6669
        %6671 = vst.msk [vmem:[%s259] sm:$0xff] %vm340, %v6670
        %s6672 = sand.u32 %s132, 1
        %s6673 = scalar_lea.sflag [#allocation7], %s6672
        %s6674 = sand.u32 %s132, 1
        %s6675 = smul.addr %s6674, 8
        %s6676 = scalar_lea.vmem [#allocation11], %s6675
        // Predicated region
        $region49: #{fwd.1} parent=35 // pred_check
          %p6677 = pneg %p142
        $region50: #{fwd.1} parent=35 // pred_check_branch
          %6679 = sbr.rel (%p6677) target = $region52
        $region51: #{fwd.1} parent=35 // pred_region
          %s6681 = ssub.s32 128, 128
          %6682 = vsyncadd %s6673, %s6681
          %s6683 = smul.addr %s30, 128
          %s6684 = scalar_lea.hbm %s6, %s6683
          %s6686 = sshll.u32 %s6676, 4
          %s6687 = int_to_ptr.vmem [resolvable:$true] %s6686
          %6689 = dma.vmem_to_hbm [thread:$0]  %s6687, 128, %s6684, %s6673
        $region52: #{fwd.1} parent=35 // pred_fallthru
          _
      $region36: #{fwd.1} parent=5 // pred_fallthru
        _
      %p6690 = scmp.le.s32.totalorder 2, %s25
      // Predicated region
      $region53: #{fwd.1} parent=5 // pred_check
        %p6691 = pneg %p6690
      $region54: #{fwd.1} parent=5 // pred_check_branch
        %6693 = sbr.rel (%p6691) target = $region56
      $region55: #{fwd.1} parent=5 // pred_region
        %s6694 = ssub.s32 %s25, 2
        // Predicated region
        $region57: #{fwd.1} parent=55 // pred_check
          %p6695 = pneg %p148
        $region58: #{fwd.1} parent=55 // pred_check_branch
          %6697 = sbr.rel (%p6695) target = $region60
        $region59: #{fwd.1} parent=55 // pred_region
          %s6698 = sand.u32 %s133, 1
          %s6699 = scalar_lea.sflag [#allocation7], %s6698
          %s6700 = sand.u32 %s133, 1
          %s6701 = smul.addr %s6700, 8
          %s6702 = scalar_lea.vmem [#allocation11], %s6701
          %6703 = dma.done %s6699, 128
        $region60: #{fwd.1} parent=55 // pred_fallthru
          _
      $region56: #{fwd.1} parent=5 // pred_fallthru
        _
    $region6: #{fwd.1} parent=1 // loop_footer
      %s29 = sadd.s32 1, %s25
    $region7: #{fwd.1} parent=1 // loop_footer_branch
      %24 = sbr.rel target = $region3
    $region8: #{fwd.1} parent=1 // loop_exit
      _
    %6704 = vsyncpa [#allocation6], 1
    %s6705 = scalar_lea.sflag [#allocation6], 1
    %6706 = vsyncpa %s6705, 1
    %6707 = vsyncpa [#allocation9], 1
    %6708 = vsyncpa [#allocation7], 1
    %s6709 = scalar_lea.sflag [#allocation7], 1
    %6710 = vsyncpa %s6709, 1

</llo_original>
